<compile_context>
chip_gen: v5e
topology: v5e:2x2
jax: 0.10.0
libtpu: 0.0.40
codegen_flags: <defaults>
</compile_context>

<pallas_src>
import functools

import jax
import jax.numpy as jnp
from jax import lax
from jax.experimental import pallas as pl
from jax.experimental.pallas import tpu as pltpu

_VMEM_LIMIT_BYTES = 48 * 1024 * 1024   # explicit scoped-VMEM budget (headroom under v7x 64 MiB)
_ROWSUM_EPS = 1e-36                    # guards zero-neighbour (padded) rows: 0/eps = 0, not NaN
_LOGIT_CLAMP = 40.0                    # |f1|,|f2| <= 40 => exp(-f1)*exp(-f2) <= e^80 < f32 max,
                                       # so the factored form never hits inf*0; exact wherever
                                       # the pyGAT reference itself does not overflow.


def _round_up(n, q):
    return ((n + q - 1) // q) * q


def _pick_tile(n, requested, quantum):
    """Largest multiple of `quantum` that divides n and is <= requested; else full n."""
    t = (min(requested, n) // quantum) * quantum
    while t >= quantum:
        if n % t == 0:
            return t
        t -= quantum
    return n


def _pick_row_tile(n, requested):
    """Row tile: multiple of 32 (int8 adj sublane tiling); prefer an even tile count so the
    'parallel' row axis shards across both v7x TensorCores (no-op on single-TC v5e/v6e)."""
    t = _pick_tile(n, requested, 32)
    if t < n and (n // t) % 2 == 1 and t % 64 == 0:
        t //= 2
    return t


def _proj_kernel(x_ref, w_ref, a12_ref, hrhs_ref, rf_ref, cf_ref, *, nheads, hd_total, alpha):
    # h = x @ W for every head at once; W is zero-padded to the lane-dense RHS width Wc,
    # so pad lanes of h are exactly 0.
    h = jnp.dot(x_ref[...], w_ref[...], preferred_element_type=jnp.float32)     # (TR, Wc)
    # f1[:, g] = a1_g . h_g ; f2[:, g] = a2_g . h_g  via block-diag [A1 | A2] (rows zero-padded).
    f12 = jnp.dot(h, a12_ref[...], preferred_element_type=jnp.float32)          # (TR, 2H)
    f12 = jnp.minimum(jnp.maximum(f12, -_LOGIT_CLAMP), _LOGIT_CLAMP)
    f1 = f12[:, :nheads]
    f2 = f12[:, nheads:]
    # Per-node exp factors so the attention kernel never touches the EUP:
    #   exp(-leakyrelu(f1_i + f2_j)) == where(f1_i + f2_j > 0,
    #                                         exp(-f1_i) * exp(-f2_j),
    #                                         exp(-alpha*f1_i) * exp(-alpha*f2_j))
    rf_ref[...] = jnp.exp(-jnp.concatenate([f1, alpha * f1], axis=1))           # (TR, 2H)
    cf_ref[...] = jnp.exp(-jnp.concatenate([f2, alpha * f2], axis=1))           # (TR, 2H)
    # bf16 MXU RHS: [ h | rowsum-ones column at lane hd_total | zero pad ] -> lane-dense store.
    lane = lax.broadcasted_iota(jnp.int32, h.shape, 1)
    hrhs_ref[...] = (h + (lane == hd_total).astype(jnp.float32)).astype(jnp.bfloat16)


def _attn_kernel(rf_ref, cft_ref, rhs_ref, adj_ref, out_ref, acc_ref,
                 *, nheads, dhead, hd_total, mode):
    col = pl.program_id(1)

    @pl.when(col == 0)
    def _init():
        acc_ref[...] = jnp.zeros_like(acc_ref)

    # Only the nonzero pattern of adj is used (== adj.nonzero() edge list in the reference).
    mask = adj_ref[...] != 0                          # int8 tile -> bool, no f32 unpack/copy
    rf = rf_ref[...]                                  # (TR, 2H): [exp(-f1) | exp(-alpha f1)]
    cft = cft_ref[...]                                # (2H, TC): [exp(-f2) ; exp(-alpha f2)]
    rhs = rhs_ref[...]                                # (TC, Wc) bf16: [h | 1 | 0 pad]

    for hd in range(nheads):
        # s = exp(-(f1+f2)); t = exp(-alpha*(f1+f2)); s < 1  <=>  f1+f2 > 0 (leakyrelu branch).
        s = rf[:, hd:hd + 1] * cft[hd:hd + 1, :]                                      # (TR, TC)
        t = rf[:, nheads + hd:nheads + hd + 1] * cft[nheads + hd:nheads + hd + 1, :]  # (TR, TC)
        e = jnp.where(s < 1.0, s, t)
        e = jnp.where(mask, e, 0.0)        # select (not e*mask): no inf*0 = NaN hazard off-edge
        # One bf16 MXU matmul per head yields the aggregation AND (via the ones column at lane
        # hd_total) the rowsum.  Full-width RHS keeps the inner loop free of narrow lane
        # slices; MXU cost is unchanged for <= 256 output columns.
        acc_ref[hd] = acc_ref[hd] + jnp.dot(e.astype(jnp.bfloat16), rhs,
                                            preferred_element_type=jnp.float32)

    @pl.when(col == pl.num_programs(1) - 1)
    def _finalize():
        tr, wc = out_ref.shape
        lane = lax.broadcasted_iota(jnp.int32, (tr, wc), 1)
        merged = jnp.zeros((tr, wc), jnp.float32)
        for hd in range(nheads):
            plane = acc_ref[hd]                                   # (TR, Wc) f32
            rowsum = plane[:, hd_total:hd_total + 1]              # ones-column result
            # exact reciprocal (once per row tile): numerator and denominator now share the
            # same bf16 matmul path, and no approx-reciprocal error enters the log_softmax.
            inv = 1.0 / jnp.maximum(rowsum, _ROWSUM_EPS)          # eps: padded / isolated rows
            hp = plane * inv
            act = jnp.where(hp > 0, hp, jnp.exp(hp) - 1.0)        # elu
            head_lanes = (lane >= hd * dhead) & (lane < (hd + 1) * dhead)
            merged = jnp.where(head_lanes, act, merged)           # lane select, no lane concat
        if mode == "out":
            # concat=False layer returns hp; SpGAT then applies elu + log_softmax(dim=1).
            z = jnp.where(lane < hd_total, merged, -jnp.inf)      # mask pad lanes out of softmax
            m = jnp.max(z, axis=1, keepdims=True)
            z = z - m
            lse = jnp.log(jnp.sum(jnp.exp(z), axis=1, keepdims=True))
            merged = jnp.where(lane < hd_total, z - lse, 0.0)
        out_ref[...] = merged.astype(out_ref.dtype)               # lane-dense (TR, Wc) store


def gat_layer(x, W_all, a1_vecs, a2_vecs, adj_i8, *, alpha, mode,
              row_tile=512, col_tile=1024):
    """One (multi-head) SpGraphAttentionLayer stage on a padded node set.

    Returns (Np, Wc) with real activations in lanes [0, H*D); pad lanes are 0 (head mode)
    so the next layer can consume it directly with a zero-row-padded weight matrix.
    """
    Np, Fin = x.shape
    H, D = a1_vecs.shape
    HD = H * D
    assert W_all.shape == (Fin, HD)
    if mode == "out":
        assert H == 1, "output layer must be single-head"
    Wc = _round_up(HD + 1, 128)          # lane-dense width: [h | ones | zero pad]

    TR = _pick_row_tile(Np, row_tile)
    TC = _pick_tile(Np, col_tile, 128)

    # Block-diagonal attention matrices: A1[h*D+d, g] = a1[h, d] * (h == g).
    eye = jnp.eye(H, dtype=jnp.float32)
    A1 = (a1_vecs[:, :, None] * eye[:, None, :]).reshape(HD, H)
    A2 = (a2_vecs[:, :, None] * eye[:, None, :]).reshape(HD, H)
    A12 = jnp.concatenate([A1, A2], axis=1)                        # (HD, 2H)
    # zero-pad weights to the lane-dense width so the proj kernel runs at full vreg lanes
    W_pad = jnp.pad(W_all, ((0, 0), (0, Wc - HD)))                 # (Fin, Wc)
    A12_pad = jnp.pad(A12, ((0, Wc - HD), (0, 0)))                 # (Wc, 2H)

    # ---- kernel 1: projection -> bf16 [h|1] RHS + per-node exp factors (row-tiled).
    h_rhs, rf, cf = pl.pallas_call(
        functools.partial(_proj_kernel, nheads=H, hd_total=HD, alpha=alpha),
        out_shape=(jax.ShapeDtypeStruct((Np, Wc), jnp.bfloat16),
                   jax.ShapeDtypeStruct((Np, 2 * H), jnp.float32),
                   jax.ShapeDtypeStruct((Np, 2 * H), jnp.float32)),
        grid_spec=pltpu.PrefetchScalarGridSpec(
            num_scalar_prefetch=0,
            grid=(Np // TR,),
            in_specs=[pl.BlockSpec((TR, Fin), lambda i: (i, 0)),
                      pl.BlockSpec((Fin, Wc), lambda i: (0, 0)),
                      pl.BlockSpec((Wc, 2 * H), lambda i: (0, 0))],
            out_specs=(pl.BlockSpec((TR, Wc), lambda i: (i, 0)),
                       pl.BlockSpec((TR, 2 * H), lambda i: (i, 0)),
                       pl.BlockSpec((TR, 2 * H), lambda i: (i, 0)))),
        compiler_params=pltpu.CompilerParams(
            dimension_semantics=("parallel",),
            vmem_limit_bytes=_VMEM_LIMIT_BYTES),
    )(x, W_pad, A12_pad)

    cft = cf.T   # tiny (Np, 2H) -> (2H, Np) transpose outside keeps col tiles lane-friendly

    # ---- kernel 2: flash-style attention / aggregation over int8 adjacency tiles.
    kernel = functools.partial(_attn_kernel, nheads=H, dhead=D, hd_total=HD, mode=mode)
    out = pl.pallas_call(
        kernel,
        out_shape=jax.ShapeDtypeStruct((Np, Wc), jnp.float32),
        grid_spec=pltpu.PrefetchScalarGridSpec(
            num_scalar_prefetch=0,
            grid=(Np // TR, Np // TC),
            in_specs=[pl.BlockSpec((TR, 2 * H), lambda i, j: (i, 0)),    # row exp factors
                      pl.BlockSpec((2 * H, TC), lambda i, j: (0, j)),    # col exp factors^T
                      pl.BlockSpec((TC, Wc), lambda i, j: (j, 0)),       # bf16 [h | 1] RHS
                      pl.BlockSpec((TR, TC), lambda i, j: (i, j))],      # adj int8 tile
            out_specs=pl.BlockSpec((TR, Wc), lambda i, j: (i, 0)),
            scratch_shapes=[pltpu.VMEM((H, TR, Wc), jnp.float32)]),      # per-head acc + rowsum
        compiler_params=pltpu.CompilerParams(
            dimension_semantics=("parallel", "arbitrary"),
            vmem_limit_bytes=_VMEM_LIMIT_BYTES),
    )(rf, cft, h_rhs, adj_i8)
    return out


def spgat_forward(x, adj, params, *, alpha, row_tile=512, col_tile=1024):
    N = x.shape[0]
    Np = _round_up(N, 256)                     # 256: legal int8/lane tiling + even-friendly rows
    adj_i8 = (adj != 0).astype(jnp.int8)       # only the sparsity pattern is needed
    if Np != N:
        x = jnp.pad(x, ((0, Np - N), (0, 0)))
        adj_i8 = jnp.pad(adj_i8, ((0, Np - N), (0, Np - N)))

    # x = dropout(x) -> identity in eval mode
    D = params["heads"][0][0].shape[1]
    W_all = jnp.concatenate([W for (W, _) in params["heads"]], axis=1)   # (F, H*nhid)
    a1 = jnp.stack([a[0, :D] for (_, a) in params["heads"]])             # (H, nhid)
    a2 = jnp.stack([a[0, D:] for (_, a) in params["heads"]])             # (H, nhid)
    h = gat_layer(x, W_all, a1, a2, adj_i8, alpha=alpha, mode="head",
                  row_tile=row_tile, col_tile=col_tile)      # (Np, Wc) lane-padded, pad lanes 0

    # h = dropout(h) -> identity in eval mode
    W_out, a_out = params["out"]
    nclass = W_out.shape[1]
    hd_in = W_out.shape[0]
    # keep the hidden output lane-padded; zero-pad W_out's input rows instead of slicing h
    W_out_p = jnp.pad(W_out, ((0, h.shape[1] - hd_in), (0, 0)))
    out = gat_layer(h, W_out_p, a_out[0, :nclass][None, :], a_out[0, nclass:][None, :],
                    adj_i8, alpha=alpha, mode="out",
                    row_tile=row_tile, col_tile=col_tile)                # (Np, Wc) lane-padded
    return out[:N, :nclass]


def init_params(key, nfeat, nhid, nclass, nheads):
    def xavier_normal(k, shape, gain=1.414):
        fan_in, fan_out = shape
        std = gain * (2.0 / (fan_in + fan_out)) ** 0.5
        return std * jax.random.normal(k, shape, dtype=jnp.float32)

    keys = jax.random.split(key, 2 * nheads + 2)
    heads = []
    for h in range(nheads):
        W = xavier_normal(keys[2 * h], (nfeat, nhid))
        a = xavier_normal(keys[2 * h + 1], (1, 2 * nhid))
        heads.append((W, a))
    W_out = xavier_normal(keys[-2], (nhid * nheads, nclass))
    a_out = xavier_normal(keys[-1], (1, 2 * nclass))
    return {"heads": heads, "out": (W_out, a_out)}


if __name__ == "__main__":
    N, nfeat, nhid, nclass, nheads = 256, 64, 8, 8, 4
    alpha = 0.2

    key = jax.random.PRNGKey(0)
    kx, kadj, kp = jax.random.split(key, 3)

    x = jax.random.normal(kx, (N, nfeat), dtype=jnp.float32)
    adj = (jax.random.uniform(kadj, (N, N)) < 0.1).astype(jnp.float32)
    adj = jnp.maximum(adj, jnp.eye(N, dtype=jnp.float32))   # self-loops => rowsum > 0

    params = init_params(kp, nfeat, nhid, nclass, nheads)

    # small tiles so the demo exercises both grid axes (2 row tiles x 2 col tiles)
    fwd = jax.jit(functools.partial(spgat_forward, alpha=alpha, row_tile=128, col_tile=128))
    out = jax.block_until_ready(fwd(x, adj, params))

    assert out.shape == (N, nclass)
    assert bool(jnp.all(jnp.isfinite(out)))
    # rows of log_softmax should exponentiate-and-sum to ~1
    assert bool(jnp.allclose(jnp.sum(jnp.exp(out), axis=1), 1.0, atol=1e-4))
    print("KERNEL_OK")
</pallas_src>

<mosaic_0001>
module attributes {stable_mosaic.version = 11 : i64} {
  func.func @_proj_kernel(%arg0: i32, %arg1: memref<128x64xf32, #tpu.memory_space<vmem>>, %arg2: memref<64x128xf32, #tpu.memory_space<vmem>>, %arg3: memref<128x8xf32, #tpu.memory_space<vmem>>, %arg4: memref<128x128xbf16, #tpu.memory_space<vmem>>, %arg5: memref<128x8xf32, #tpu.memory_space<vmem>>, %arg6: memref<128x8xf32, #tpu.memory_space<vmem>>) attributes {dimension_semantics = [#tpu.dimension_semantics<parallel>], iteration_bounds = array<i64: 2>, scalar_prefetch = 0 : i64, scratch_operands = 0 : i64, tpu.core_type = #tpu.core_type<tc>, window_params = [{transform_indices = @transform_0, window_bounds = array<i64: 128, 64>}, {pipeline_mode = #tpu.pipeline_mode<synchronous>, transform_indices = @transform_1, window_bounds = array<i64: 64, 128>}, {pipeline_mode = #tpu.pipeline_mode<synchronous>, transform_indices = @transform_2, window_bounds = array<i64: 128, 8>}, {transform_indices = @transform_3, window_bounds = array<i64: 128, 128>}, {transform_indices = @transform_4, window_bounds = array<i64: 128, 8>}, {transform_indices = @transform_5, window_bounds = array<i64: 128, 8>}]} {
    %c0 = arith.constant 0 : index
    %c0_0 = arith.constant 0 : index
    %0 = vector.load %arg1[%c0, %c0_0] : memref<128x64xf32, #tpu.memory_space<vmem>>, vector<128x64xf32>
    %c0_1 = arith.constant 0 : index
    %c0_2 = arith.constant 0 : index
    %1 = vector.load %arg2[%c0_1, %c0_2] : memref<64x128xf32, #tpu.memory_space<vmem>>, vector<64x128xf32>
    %cst = arith.constant dense<0.000000e+00> : vector<128x128xf32>
    %2 = tpu.matmul %0, %1, %cst {dimension_numbers = #tpu.dot_dimension_numbers<[1], [0], [0], [1], [0, 0, 1, 1], [], []>} : vector<128x64xf32>, vector<64x128xf32>, vector<128x128xf32> -> vector<128x128xf32>
    %c0_3 = arith.constant 0 : index
    %c0_4 = arith.constant 0 : index
    %3 = vector.load %arg3[%c0_3, %c0_4] : memref<128x8xf32, #tpu.memory_space<vmem>>, vector<128x8xf32>
    %cst_5 = arith.constant dense<0.000000e+00> : vector<128x8xf32>
    %4 = tpu.matmul %2, %3, %cst_5 {dimension_numbers = #tpu.dot_dimension_numbers<[1], [0], [0], [1], [0, 0, 1, 1], [], []>} : vector<128x128xf32>, vector<128x8xf32>, vector<128x8xf32> -> vector<128x8xf32>
    %cst_6 = arith.constant -4.000000e+01 : f32
    %5 = vector.broadcast %cst_6 : f32 to vector<128x8xf32>
    %6 = arith.maximumf %4, %5 : vector<128x8xf32>
    %cst_7 = arith.constant 4.000000e+01 : f32
    %7 = vector.broadcast %cst_7 : f32 to vector<128x8xf32>
    %8 = arith.minimumf %6, %7 : vector<128x8xf32>
    %9 = vector.extract_strided_slice %8 {offsets = [0, 0], sizes = [128, 4], strides = [1, 1]} : vector<128x8xf32> to vector<128x4xf32>
    %10 = vector.extract_strided_slice %8 {offsets = [0, 4], sizes = [128, 4], strides = [1, 1]} : vector<128x8xf32> to vector<128x4xf32>
    %cst_8 = arith.constant 2.000000e-01 : f32
    %11 = vector.broadcast %cst_8 : f32 to vector<128x4xf32>
    %12 = arith.mulf %11, %9 : vector<128x4xf32>
    %13 = tpu.concatenate %9, %12 in 1 : vector<128x4xf32>, vector<128x4xf32> -> vector<128x8xf32>
    %cst_9 = arith.constant 0.000000e+00 : f32
    %14 = vector.broadcast %cst_9 : f32 to vector<128x8xf32>
    %15 = arith.subf %14, %13 : vector<128x8xf32>
    %16 = math.exp %15 : vector<128x8xf32>
    %c0_10 = arith.constant 0 : index
    %c0_11 = arith.constant 0 : index
    %17 = vector.load %arg5[%c0_10, %c0_11] : memref<128x8xf32, #tpu.memory_space<vmem>>, vector<128x8xf32>
    tpu.vector_store %arg5[%c0_10, %c0_11], %16 {strides = array<i32>} : memref<128x8xf32, #tpu.memory_space<vmem>>, vector<128x8xf32>,
    %cst_12 = arith.constant 2.000000e-01 : f32
    %18 = vector.broadcast %cst_12 : f32 to vector<128x4xf32>
    %19 = arith.mulf %18, %10 : vector<128x4xf32>
    %20 = tpu.concatenate %10, %19 in 1 : vector<128x4xf32>, vector<128x4xf32> -> vector<128x8xf32>
    %cst_13 = arith.constant 0.000000e+00 : f32
    %21 = vector.broadcast %cst_13 : f32 to vector<128x8xf32>
    %22 = arith.subf %21, %20 : vector<128x8xf32>
    %23 = math.exp %22 : vector<128x8xf32>
    %c0_14 = arith.constant 0 : index
    %c0_15 = arith.constant 0 : index
    %24 = vector.load %arg6[%c0_14, %c0_15] : memref<128x8xf32, #tpu.memory_space<vmem>>, vector<128x8xf32>
    tpu.vector_store %arg6[%c0_14, %c0_15], %23 {strides = array<i32>} : memref<128x8xf32, #tpu.memory_space<vmem>>, vector<128x8xf32>,
    %25 = tpu.iota {dimensions = array<i32: 1>} : vector<128x128xi32>
    %c32_i32 = arith.constant 32 : i32
    %26 = vector.broadcast %c32_i32 : i32 to vector<128x128xi32>
    %27 = arith.cmpi eq, %25, %26 : vector<128x128xi32>
    %28 = arith.extui %27 : vector<128x128xi1> to vector<128x128xi32>
    %29 = arith.sitofp %28 : vector<128x128xi32> to vector<128x128xf32>
    %30 = arith.addf %2, %29 : vector<128x128xf32>
    %31 = arith.truncf %30 : vector<128x128xf32> to vector<128x128xbf16>
    %c0_16 = arith.constant 0 : index
    %c0_17 = arith.constant 0 : index
    %32 = vector.load %arg4[%c0_16, %c0_17] : memref<128x128xbf16, #tpu.memory_space<vmem>>, vector<128x128xbf16>
    tpu.vector_store %arg4[%c0_16, %c0_17], %31 {strides = array<i32>} : memref<128x128xbf16, #tpu.memory_space<vmem>>, vector<128x128xbf16>,
    return
  }
  func.func @transform_0(%arg0: i32) -> (i32, i32) {
    %c0_i32 = arith.constant 0 : i32
    %c0_i32_0 = arith.constant 0 : i32
    return %arg0, %c0_i32 : i32, i32
  }
  func.func @transform_1(%arg0: i32) -> (i32, i32) {
    %c0_i32 = arith.constant 0 : i32
    %c0_i32_0 = arith.constant 0 : i32
    %c0_i32_1 = arith.constant 0 : i32
    return %c0_i32, %c0_i32_0 : i32, i32
  }
  func.func @transform_2(%arg0: i32) -> (i32, i32) {
    %c0_i32 = arith.constant 0 : i32
    %c0_i32_0 = arith.constant 0 : i32
    %c0_i32_1 = arith.constant 0 : i32
    return %c0_i32, %c0_i32_0 : i32, i32
  }
  func.func @transform_3(%arg0: i32) -> (i32, i32) {
    %c0_i32 = arith.constant 0 : i32
    %c0_i32_0 = arith.constant 0 : i32
    return %arg0, %c0_i32 : i32, i32
  }
  func.func @transform_4(%arg0: i32) -> (i32, i32) {
    %c0_i32 = arith.constant 0 : i32
    %c0_i32_0 = arith.constant 0 : i32
    return %arg0, %c0_i32 : i32, i32
  }
  func.func @transform_5(%arg0: i32) -> (i32, i32) {
    %c0_i32 = arith.constant 0 : i32
    %c0_i32_0 = arith.constant 0 : i32
    return %arg0, %c0_i32 : i32, i32
  }
}

module attributes {stable_mosaic.version = 11 : i64} {
  func.func @_attn_kernel(%arg0: i32, %arg1: i32, %arg2: memref<128x8xf32, #tpu.memory_space<vmem>>, %arg3: memref<8x128xf32, #tpu.memory_space<vmem>>, %arg4: memref<128x128xbf16, #tpu.memory_space<vmem>>, %arg5: memref<128x128xi8, #tpu.memory_space<vmem>>, %arg6: memref<128x128xf32, #tpu.memory_space<vmem>>, %arg7: memref<4x128x128xf32, #tpu.memory_space<vmem>>) attributes {dimension_semantics = [#tpu.dimension_semantics<parallel>, #tpu.dimension_semantics<arbitrary>], iteration_bounds = array<i64: 2, 2>, scalar_prefetch = 0 : i64, scratch_operands = 1 : i64, tpu.core_type = #tpu.core_type<tc>, window_params = [{transform_indices = @transform_0, window_bounds = array<i64: 128, 8>}, {transform_indices = @transform_1, window_bounds = array<i64: 8, 128>}, {transform_indices = @transform_2, window_bounds = array<i64: 128, 128>}, {transform_indices = @transform_3, window_bounds = array<i64: 128, 128>}, {transform_indices = @transform_4, window_bounds = array<i64: 128, 128>}]} {
    %c0_i32 = arith.constant 0 : i32
    %0 = arith.cmpi eq, %arg1, %c0_i32 : i32
    %1 = arith.extui %0 : i1 to i32
    %c0_i32_0 = arith.constant 0 : i32
    %2 = arith.cmpi ne, %1, %c0_i32_0 : i32
    scf.if %2 {
      %cst_41 = arith.constant 0.000000e+00 : f32
      %104 = vector.broadcast %cst_41 : f32 to vector<4x128x128xf32>
      %c0_42 = arith.constant 0 : index
      %c0_43 = arith.constant 0 : index
      %c0_44 = arith.constant 0 : index
      %105 = vector.load %arg7[%c0_42, %c0_43, %c0_44] : memref<4x128x128xf32, #tpu.memory_space<vmem>>, vector<4x128x128xf32>
      tpu.vector_store %arg7[%c0_42, %c0_43, %c0_44], %104 {strides = array<i32>} : memref<4x128x128xf32, #tpu.memory_space<vmem>>, vector<4x128x128xf32>,
    } else {
    }
    %c0 = arith.constant 0 : index
    %c0_1 = arith.constant 0 : index
    %3 = vector.load %arg5[%c0, %c0_1] : memref<128x128xi8, #tpu.memory_space<vmem>>, vector<128x128xi8>
    %c0_i8 = arith.constant 0 : i8
    %4 = vector.broadcast %c0_i8 : i8 to vector<128x128xi8>
    %5 = arith.cmpi ne, %3, %4 : vector<128x128xi8>
    %c0_2 = arith.constant 0 : index
    %c0_3 = arith.constant 0 : index
    %6 = vector.load %arg2[%c0_2, %c0_3] : memref<128x8xf32, #tpu.memory_space<vmem>>, vector<128x8xf32>
    %c0_4 = arith.constant 0 : index
    %c0_5 = arith.constant 0 : index
    %7 = vector.load %arg3[%c0_4, %c0_5] : memref<8x128xf32, #tpu.memory_space<vmem>>, vector<8x128xf32>
    %c0_6 = arith.constant 0 : index
    %c0_7 = arith.constant 0 : index
    %8 = vector.load %arg4[%c0_6, %c0_7] : memref<128x128xbf16, #tpu.memory_space<vmem>>, vector<128x128xbf16>
    %9 = vector.extract_strided_slice %6 {offsets = [0, 0], sizes = [128, 1], strides = [1, 1]} : vector<128x8xf32> to vector<128x1xf32>
    %10 = vector.extract_strided_slice %7 {offsets = [0, 0], sizes = [1, 128], strides = [1, 1]} : vector<8x128xf32> to vector<1x128xf32>
    %11 = vector.broadcast %9 : vector<128x1xf32> to vector<128x128xf32>
    %12 = vector.broadcast %10 : vector<1x128xf32> to vector<128x128xf32>
    %13 = arith.mulf %11, %12 : vector<128x128xf32>
    %14 = vector.extract_strided_slice %6 {offsets = [0, 4], sizes = [128, 1], strides = [1, 1]} : vector<128x8xf32> to vector<128x1xf32>
    %15 = vector.extract_strided_slice %7 {offsets = [4, 0], sizes = [1, 128], strides = [1, 1]} : vector<8x128xf32> to vector<1x128xf32>
    %16 = vector.broadcast %14 : vector<128x1xf32> to vector<128x128xf32>
    %17 = vector.broadcast %15 : vector<1x128xf32> to vector<128x128xf32>
    %18 = arith.mulf %16, %17 : vector<128x128xf32>
    %cst = arith.constant 1.000000e+00 : f32
    %19 = vector.broadcast %cst : f32 to vector<128x128xf32>
    %20 = arith.cmpf olt, %13, %19 : vector<128x128xf32>
    %21 = arith.select %20, %13, %18 : vector<128x128xi1>, vector<128x128xf32>
    %cst_8 = arith.constant 0.000000e+00 : f32
    %22 = vector.broadcast %cst_8 : f32 to vector<128x128xf32>
    %23 = arith.select %5, %21, %22 : vector<128x128xi1>, vector<128x128xf32>
    %c0_9 = arith.constant 0 : index
    %c0_10 = arith.constant 0 : index
    %c0_11 = arith.constant 0 : index
    %24 = vector.load %arg7[%c0_9, %c0_10, %c0_11] : memref<4x128x128xf32, #tpu.memory_space<vmem>>, vector<1x128x128xf32>
    %25 = vector.shape_cast %24 : vector<1x128x128xf32> to vector<128x128xf32>
    %26 = arith.truncf %23 : vector<128x128xf32> to vector<128x128xbf16>
    %cst_12 = arith.constant dense<0.000000e+00> : vector<128x128xf32>
    %27 = tpu.matmul %26, %8, %cst_12 {dimension_numbers = #tpu.dot_dimension_numbers<[1], [0], [0], [1], [0, 0, 1, 1], [], []>} : vector<128x128xbf16>, vector<128x128xbf16>, vector<128x128xf32> -> vector<128x128xf32>
    %28 = arith.addf %25, %27 : vector<128x128xf32>
    %c0_13 = arith.constant 0 : index
    %c0_14 = arith.constant 0 : index
    %c0_15 = arith.constant 0 : index
    %29 = vector.load %arg7[%c0_13, %c0_14, %c0_15] : memref<4x128x128xf32, #tpu.memory_space<vmem>>, vector<1x128x128xf32>
    %30 = vector.shape_cast %29 : vector<1x128x128xf32> to vector<128x128xf32>
    %31 = vector.shape_cast %28 : vector<128x128xf32> to vector<1x128x128xf32>
    tpu.vector_store %arg7[%c0_13, %c0_14, %c0_15], %31 {strides = array<i32>} : memref<4x128x128xf32, #tpu.memory_space<vmem>>, vector<1x128x128xf32>,
    %32 = vector.extract_strided_slice %6 {offsets = [0, 1], sizes = [128, 1], strides = [1, 1]} : vector<128x8xf32> to vector<128x1xf32>
    %33 = vector.extract_strided_slice %7 {offsets = [1, 0], sizes = [1, 128], strides = [1, 1]} : vector<8x128xf32> to vector<1x128xf32>
    %34 = vector.broadcast %32 : vector<128x1xf32> to vector<128x128xf32>
    %35 = vector.broadcast %33 : vector<1x128xf32> to vector<128x128xf32>
    %36 = arith.mulf %34, %35 : vector<128x128xf32>
    %37 = vector.extract_strided_slice %6 {offsets = [0, 5], sizes = [128, 1], strides = [1, 1]} : vector<128x8xf32> to vector<128x1xf32>
    %38 = vector.extract_strided_slice %7 {offsets = [5, 0], sizes = [1, 128], strides = [1, 1]} : vector<8x128xf32> to vector<1x128xf32>
    %39 = vector.broadcast %37 : vector<128x1xf32> to vector<128x128xf32>
    %40 = vector.broadcast %38 : vector<1x128xf32> to vector<128x128xf32>
    %41 = arith.mulf %39, %40 : vector<128x128xf32>
    %cst_16 = arith.constant 1.000000e+00 : f32
    %42 = vector.broadcast %cst_16 : f32 to vector<128x128xf32>
    %43 = arith.cmpf olt, %36, %42 : vector<128x128xf32>
    %44 = arith.select %43, %36, %41 : vector<128x128xi1>, vector<128x128xf32>
    %cst_17 = arith.constant 0.000000e+00 : f32
    %45 = vector.broadcast %cst_17 : f32 to vector<128x128xf32>
    %46 = arith.select %5, %44, %45 : vector<128x128xi1>, vector<128x128xf32>
    %c1 = arith.constant 1 : index
    %c0_18 = arith.constant 0 : index
    %c0_19 = arith.constant 0 : index
    %47 = vector.load %arg7[%c1, %c0_18, %c0_19] : memref<4x128x128xf32, #tpu.memory_space<vmem>>, vector<1x128x128xf32>
    %48 = vector.shape_cast %47 : vector<1x128x128xf32> to vector<128x128xf32>
    %49 = arith.truncf %46 : vector<128x128xf32> to vector<128x128xbf16>
    %cst_20 = arith.constant dense<0.000000e+00> : vector<128x128xf32>
    %50 = tpu.matmul %49, %8, %cst_20 {dimension_numbers = #tpu.dot_dimension_numbers<[1], [0], [0], [1], [0, 0, 1, 1], [], []>} : vector<128x128xbf16>, vector<128x128xbf16>, vector<128x128xf32> -> vector<128x128xf32>
    %51 = arith.addf %48, %50 : vector<128x128xf32>
    %c1_21 = arith.constant 1 : index
    %c0_22 = arith.constant 0 : index
    %c0_23 = arith.constant 0 : index
    %52 = vector.load %arg7[%c1_21, %c0_22, %c0_23] : memref<4x128x128xf32, #tpu.memory_space<vmem>>, vector<1x128x128xf32>
    %53 = vector.shape_cast %52 : vector<1x128x128xf32> to vector<128x128xf32>
    %54 = vector.shape_cast %51 : vector<128x128xf32> to vector<1x128x128xf32>
    tpu.vector_store %arg7[%c1_21, %c0_22, %c0_23], %54 {strides = array<i32>} : memref<4x128x128xf32, #tpu.memory_space<vmem>>, vector<1x128x128xf32>,
    %55 = vector.extract_strided_slice %6 {offsets = [0, 2], sizes = [128, 1], strides = [1, 1]} : vector<128x8xf32> to vector<128x1xf32>
    %56 = vector.extract_strided_slice %7 {offsets = [2, 0], sizes = [1, 128], strides = [1, 1]} : vector<8x128xf32> to vector<1x128xf32>
    %57 = vector.broadcast %55 : vector<128x1xf32> to vector<128x128xf32>
    %58 = vector.broadcast %56 : vector<1x128xf32> to vector<128x128xf32>
    %59 = arith.mulf %57, %58 : vector<128x128xf32>
    %60 = vector.extract_strided_slice %6 {offsets = [0, 6], sizes = [128, 1], strides = [1, 1]} : vector<128x8xf32> to vector<128x1xf32>
    %61 = vector.extract_strided_slice %7 {offsets = [6, 0], sizes = [1, 128], strides = [1, 1]} : vector<8x128xf32> to vector<1x128xf32>
    %62 = vector.broadcast %60 : vector<128x1xf32> to vector<128x128xf32>
    %63 = vector.broadcast %61 : vector<1x128xf32> to vector<128x128xf32>
    %64 = arith.mulf %62, %63 : vector<128x128xf32>
    %cst_24 = arith.constant 1.000000e+00 : f32
    %65 = vector.broadcast %cst_24 : f32 to vector<128x128xf32>
    %66 = arith.cmpf olt, %59, %65 : vector<128x128xf32>
    %67 = arith.select %66, %59, %64 : vector<128x128xi1>, vector<128x128xf32>
    %cst_25 = arith.constant 0.000000e+00 : f32
    %68 = vector.broadcast %cst_25 : f32 to vector<128x128xf32>
    %69 = arith.select %5, %67, %68 : vector<128x128xi1>, vector<128x128xf32>
    %c2 = arith.constant 2 : index
    %c0_26 = arith.constant 0 : index
    %c0_27 = arith.constant 0 : index
    %70 = vector.load %arg7[%c2, %c0_26, %c0_27] : memref<4x128x128xf32, #tpu.memory_space<vmem>>, vector<1x128x128xf32>
    %71 = vector.shape_cast %70 : vector<1x128x128xf32> to vector<128x128xf32>
    %72 = arith.truncf %69 : vector<128x128xf32> to vector<128x128xbf16>
    %cst_28 = arith.constant dense<0.000000e+00> : vector<128x128xf32>
    %73 = tpu.matmul %72, %8, %cst_28 {dimension_numbers = #tpu.dot_dimension_numbers<[1], [0], [0], [1], [0, 0, 1, 1], [], []>} : vector<128x128xbf16>, vector<128x128xbf16>, vector<128x128xf32> -> vector<128x128xf32>
    %74 = arith.addf %71, %73 : vector<128x128xf32>
    %c2_29 = arith.constant 2 : index
    %c0_30 = arith.constant 0 : index
    %c0_31 = arith.constant 0 : index
    %75 = vector.load %arg7[%c2_29, %c0_30, %c0_31] : memref<4x128x128xf32, #tpu.memory_space<vmem>>, vector<1x128x128xf32>
    %76 = vector.shape_cast %75 : vector<1x128x128xf32> to vector<128x128xf32>
    %77 = vector.shape_cast %74 : vector<128x128xf32> to vector<1x128x128xf32>
    tpu.vector_store %arg7[%c2_29, %c0_30, %c0_31], %77 {strides = array<i32>} : memref<4x128x128xf32, #tpu.memory_space<vmem>>, vector<1x128x128xf32>,
    %78 = vector.extract_strided_slice %6 {offsets = [0, 3], sizes = [128, 1], strides = [1, 1]} : vector<128x8xf32> to vector<128x1xf32>
    %79 = vector.extract_strided_slice %7 {offsets = [3, 0], sizes = [1, 128], strides = [1, 1]} : vector<8x128xf32> to vector<1x128xf32>
    %80 = vector.broadcast %78 : vector<128x1xf32> to vector<128x128xf32>
    %81 = vector.broadcast %79 : vector<1x128xf32> to vector<128x128xf32>
    %82 = arith.mulf %80, %81 : vector<128x128xf32>
    %83 = vector.extract_strided_slice %6 {offsets = [0, 7], sizes = [128, 1], strides = [1, 1]} : vector<128x8xf32> to vector<128x1xf32>
    %84 = vector.extract_strided_slice %7 {offsets = [7, 0], sizes = [1, 128], strides = [1, 1]} : vector<8x128xf32> to vector<1x128xf32>
    %85 = vector.broadcast %83 : vector<128x1xf32> to vector<128x128xf32>
    %86 = vector.broadcast %84 : vector<1x128xf32> to vector<128x128xf32>
    %87 = arith.mulf %85, %86 : vector<128x128xf32>
    %cst_32 = arith.constant 1.000000e+00 : f32
    %88 = vector.broadcast %cst_32 : f32 to vector<128x128xf32>
    %89 = arith.cmpf olt, %82, %88 : vector<128x128xf32>
    %90 = arith.select %89, %82, %87 : vector<128x128xi1>, vector<128x128xf32>
    %cst_33 = arith.constant 0.000000e+00 : f32
    %91 = vector.broadcast %cst_33 : f32 to vector<128x128xf32>
    %92 = arith.select %5, %90, %91 : vector<128x128xi1>, vector<128x128xf32>
    %c3 = arith.constant 3 : index
    %c0_34 = arith.constant 0 : index
    %c0_35 = arith.constant 0 : index
    %93 = vector.load %arg7[%c3, %c0_34, %c0_35] : memref<4x128x128xf32, #tpu.memory_space<vmem>>, vector<1x128x128xf32>
    %94 = vector.shape_cast %93 : vector<1x128x128xf32> to vector<128x128xf32>
    %95 = arith.truncf %92 : vector<128x128xf32> to vector<128x128xbf16>
    %cst_36 = arith.constant dense<0.000000e+00> : vector<128x128xf32>
    %96 = tpu.matmul %95, %8, %cst_36 {dimension_numbers = #tpu.dot_dimension_numbers<[1], [0], [0], [1], [0, 0, 1, 1], [], []>} : vector<128x128xbf16>, vector<128x128xbf16>, vector<128x128xf32> -> vector<128x128xf32>
    %97 = arith.addf %94, %96 : vector<128x128xf32>
    %c3_37 = arith.constant 3 : index
    %c0_38 = arith.constant 0 : index
    %c0_39 = arith.constant 0 : index
    %98 = vector.load %arg7[%c3_37, %c0_38, %c0_39] : memref<4x128x128xf32, #tpu.memory_space<vmem>>, vector<1x128x128xf32>
    %99 = vector.shape_cast %98 : vector<1x128x128xf32> to vector<128x128xf32>
    %100 = vector.shape_cast %97 : vector<128x128xf32> to vector<1x128x128xf32>
    tpu.vector_store %arg7[%c3_37, %c0_38, %c0_39], %100 {strides = array<i32>} : memref<4x128x128xf32, #tpu.memory_space<vmem>>, vector<1x128x128xf32>,
    %c1_i32 = arith.constant 1 : i32
    %101 = arith.cmpi eq, %arg1, %c1_i32 : i32
    %102 = arith.extui %101 : i1 to i32
    %c0_i32_40 = arith.constant 0 : i32
    %103 = arith.cmpi ne, %102, %c0_i32_40 : i32
    scf.if %103 {
      %104 = tpu.iota {dimensions = array<i32: 1>} : vector<128x128xi32>
      %cst_41 = arith.constant 0.000000e+00 : f32
      %105 = vector.broadcast %cst_41 : f32 to vector<128x128xf32>
      %c0_42 = arith.constant 0 : index
      %c0_43 = arith.constant 0 : index
      %c0_44 = arith.constant 0 : index
      %106 = vector.load %arg7[%c0_42, %c0_43, %c0_44] : memref<4x128x128xf32, #tpu.memory_space<vmem>>, vector<1x128x128xf32>
      %107 = vector.shape_cast %106 : vector<1x128x128xf32> to vector<128x128xf32>
      %108 = vector.extract_strided_slice %107 {offsets = [0, 32], sizes = [128, 1], strides = [1, 1]} : vector<128x128xf32> to vector<128x1xf32>
      %cst_45 = arith.constant 1.000000e-36 : f32
      %109 = vector.broadcast %cst_45 : f32 to vector<128x1xf32>
      %110 = arith.maximumf %108, %109 : vector<128x1xf32>
      %cst_46 = arith.constant 1.000000e+00 : f32
      %111 = vector.broadcast %cst_46 : f32 to vector<128x1xf32>
      %112 = arith.divf %111, %110 : vector<128x1xf32>
      %113 = vector.broadcast %112 : vector<128x1xf32> to vector<128x128xf32>
      %114 = arith.mulf %107, %113 : vector<128x128xf32>
      %cst_47 = arith.constant 0.000000e+00 : f32
      %115 = vector.broadcast %cst_47 : f32 to vector<128x128xf32>
      %116 = arith.cmpf ogt, %114, %115 : vector<128x128xf32>
      %117 = math.exp %114 : vector<128x128xf32>
      %cst_48 = arith.constant 1.000000e+00 : f32
      %118 = vector.broadcast %cst_48 : f32 to vector<128x128xf32>
      %119 = arith.subf %117, %118 : vector<128x128xf32>
      %120 = arith.select %116, %114, %119 : vector<128x128xi1>, vector<128x128xf32>
      %c0_i32_49 = arith.constant 0 : i32
      %121 = vector.broadcast %c0_i32_49 : i32 to vector<128x128xi32>
      %122 = arith.cmpi sge, %104, %121 : vector<128x128xi32>
      %c8_i32 = arith.constant 8 : i32
      %123 = vector.broadcast %c8_i32 : i32 to vector<128x128xi32>
      %124 = arith.cmpi slt, %104, %123 : vector<128x128xi32>
      %125 = arith.andi %122, %124 : vector<128x128xi1>
      %126 = arith.select %125, %120, %105 : vector<128x128xi1>, vector<128x128xf32>
      %c1_50 = arith.constant 1 : index
      %c0_51 = arith.constant 0 : index
      %c0_52 = arith.constant 0 : index
      %127 = vector.load %arg7[%c1_50, %c0_51, %c0_52] : memref<4x128x128xf32, #tpu.memory_space<vmem>>, vector<1x128x128xf32>
      %128 = vector.shape_cast %127 : vector<1x128x128xf32> to vector<128x128xf32>
      %129 = vector.extract_strided_slice %128 {offsets = [0, 32], sizes = [128, 1], strides = [1, 1]} : vector<128x128xf32> to vector<128x1xf32>
      %cst_53 = arith.constant 1.000000e-36 : f32
      %130 = vector.broadcast %cst_53 : f32 to vector<128x1xf32>
      %131 = arith.maximumf %129, %130 : vector<128x1xf32>
      %cst_54 = arith.constant 1.000000e+00 : f32
      %132 = vector.broadcast %cst_54 : f32 to vector<128x1xf32>
      %133 = arith.divf %132, %131 : vector<128x1xf32>
      %134 = vector.broadcast %133 : vector<128x1xf32> to vector<128x128xf32>
      %135 = arith.mulf %128, %134 : vector<128x128xf32>
      %cst_55 = arith.constant 0.000000e+00 : f32
      %136 = vector.broadcast %cst_55 : f32 to vector<128x128xf32>
      %137 = arith.cmpf ogt, %135, %136 : vector<128x128xf32>
      %138 = math.exp %135 : vector<128x128xf32>
      %cst_56 = arith.constant 1.000000e+00 : f32
      %139 = vector.broadcast %cst_56 : f32 to vector<128x128xf32>
      %140 = arith.subf %138, %139 : vector<128x128xf32>
      %141 = arith.select %137, %135, %140 : vector<128x128xi1>, vector<128x128xf32>
      %c8_i32_57 = arith.constant 8 : i32
      %142 = vector.broadcast %c8_i32_57 : i32 to vector<128x128xi32>
      %143 = arith.cmpi sge, %104, %142 : vector<128x128xi32>
      %c16_i32 = arith.constant 16 : i32
      %144 = vector.broadcast %c16_i32 : i32 to vector<128x128xi32>
      %145 = arith.cmpi slt, %104, %144 : vector<128x128xi32>
      %146 = arith.andi %143, %145 : vector<128x128xi1>
      %147 = arith.select %146, %141, %126 : vector<128x128xi1>, vector<128x128xf32>
      %c2_58 = arith.constant 2 : index
      %c0_59 = arith.constant 0 : index
      %c0_60 = arith.constant 0 : index
      %148 = vector.load %arg7[%c2_58, %c0_59, %c0_60] : memref<4x128x128xf32, #tpu.memory_space<vmem>>, vector<1x128x128xf32>
      %149 = vector.shape_cast %148 : vector<1x128x128xf32> to vector<128x128xf32>
      %150 = vector.extract_strided_slice %149 {offsets = [0, 32], sizes = [128, 1], strides = [1, 1]} : vector<128x128xf32> to vector<128x1xf32>
      %cst_61 = arith.constant 1.000000e-36 : f32
      %151 = vector.broadcast %cst_61 : f32 to vector<128x1xf32>
      %152 = arith.maximumf %150, %151 : vector<128x1xf32>
      %cst_62 = arith.constant 1.000000e+00 : f32
      %153 = vector.broadcast %cst_62 : f32 to vector<128x1xf32>
      %154 = arith.divf %153, %152 : vector<128x1xf32>
      %155 = vector.broadcast %154 : vector<128x1xf32> to vector<128x128xf32>
      %156 = arith.mulf %149, %155 : vector<128x128xf32>
      %cst_63 = arith.constant 0.000000e+00 : f32
      %157 = vector.broadcast %cst_63 : f32 to vector<128x128xf32>
      %158 = arith.cmpf ogt, %156, %157 : vector<128x128xf32>
      %159 = math.exp %156 : vector<128x128xf32>
      %cst_64 = arith.constant 1.000000e+00 : f32
      %160 = vector.broadcast %cst_64 : f32 to vector<128x128xf32>
      %161 = arith.subf %159, %160 : vector<128x128xf32>
      %162 = arith.select %158, %156, %161 : vector<128x128xi1>, vector<128x128xf32>
      %c16_i32_65 = arith.constant 16 : i32
      %163 = vector.broadcast %c16_i32_65 : i32 to vector<128x128xi32>
      %164 = arith.cmpi sge, %104, %163 : vector<128x128xi32>
      %c24_i32 = arith.constant 24 : i32
      %165 = vector.broadcast %c24_i32 : i32 to vector<128x128xi32>
      %166 = arith.cmpi slt, %104, %165 : vector<128x128xi32>
      %167 = arith.andi %164, %166 : vector<128x128xi1>
      %168 = arith.select %167, %162, %147 : vector<128x128xi1>, vector<128x128xf32>
      %c3_66 = arith.constant 3 : index
      %c0_67 = arith.constant 0 : index
      %c0_68 = arith.constant 0 : index
      %169 = vector.load %arg7[%c3_66, %c0_67, %c0_68] : memref<4x128x128xf32, #tpu.memory_space<vmem>>, vector<1x128x128xf32>
      %170 = vector.shape_cast %169 : vector<1x128x128xf32> to vector<128x128xf32>
      %171 = vector.extract_strided_slice %170 {offsets = [0, 32], sizes = [128, 1], strides = [1, 1]} : vector<128x128xf32> to vector<128x1xf32>
      %cst_69 = arith.constant 1.000000e-36 : f32
      %172 = vector.broadcast %cst_69 : f32 to vector<128x1xf32>
      %173 = arith.maximumf %171, %172 : vector<128x1xf32>
      %cst_70 = arith.constant 1.000000e+00 : f32
      %174 = vector.broadcast %cst_70 : f32 to vector<128x1xf32>
      %175 = arith.divf %174, %173 : vector<128x1xf32>
      %176 = vector.broadcast %175 : vector<128x1xf32> to vector<128x128xf32>
      %177 = arith.mulf %170, %176 : vector<128x128xf32>
      %cst_71 = arith.constant 0.000000e+00 : f32
      %178 = vector.broadcast %cst_71 : f32 to vector<128x128xf32>
      %179 = arith.cmpf ogt, %177, %178 : vector<128x128xf32>
      %180 = math.exp %177 : vector<128x128xf32>
      %cst_72 = arith.constant 1.000000e+00 : f32
      %181 = vector.broadcast %cst_72 : f32 to vector<128x128xf32>
      %182 = arith.subf %180, %181 : vector<128x128xf32>
      %183 = arith.select %179, %177, %182 : vector<128x128xi1>, vector<128x128xf32>
      %c24_i32_73 = arith.constant 24 : i32
      %184 = vector.broadcast %c24_i32_73 : i32 to vector<128x128xi32>
      %185 = arith.cmpi sge, %104, %184 : vector<128x128xi32>
      %c32_i32 = arith.constant 32 : i32
      %186 = vector.broadcast %c32_i32 : i32 to vector<128x128xi32>
      %187 = arith.cmpi slt, %104, %186 : vector<128x128xi32>
      %188 = arith.andi %185, %187 : vector<128x128xi1>
      %189 = arith.select %188, %183, %168 : vector<128x128xi1>, vector<128x128xf32>
      %c0_74 = arith.constant 0 : index
      %c0_75 = arith.constant 0 : index
      %190 = vector.load %arg6[%c0_74, %c0_75] : memref<128x128xf32, #tpu.memory_space<vmem>>, vector<128x128xf32>
      tpu.vector_store %arg6[%c0_74, %c0_75], %189 {strides = array<i32>} : memref<128x128xf32, #tpu.memory_space<vmem>>, vector<128x128xf32>,
    } else {
    }
    return
  }
  func.func @transform_0(%arg0: i32, %arg1: i32) -> (i32, i32) {
    %c0_i32 = arith.constant 0 : i32
    %c0_i32_0 = arith.constant 0 : i32
    return %arg0, %c0_i32 : i32, i32
  }
  func.func @transform_1(%arg0: i32, %arg1: i32) -> (i32, i32) {
    %c0_i32 = arith.constant 0 : i32
    %c0_i32_0 = arith.constant 0 : i32
    return %c0_i32, %arg1 : i32, i32
  }
  func.func @transform_2(%arg0: i32, %arg1: i32) -> (i32, i32) {
    %c0_i32 = arith.constant 0 : i32
    %c0_i32_0 = arith.constant 0 : i32
    return %arg1, %c0_i32 : i32, i32
  }
  func.func @transform_3(%arg0: i32, %arg1: i32) -> (i32, i32) {
    %c0_i32 = arith.constant 0 : i32
    return %arg0, %arg1 : i32, i32
  }
  func.func @transform_4(%arg0: i32, %arg1: i32) -> (i32, i32) {
    %c0_i32 = arith.constant 0 : i32
    %c0_i32_0 = arith.constant 0 : i32
    return %arg0, %c0_i32 : i32, i32
  }
}

module attributes {stable_mosaic.version = 11 : i64} {
  func.func @_proj_kernel(%arg0: i32, %arg1: memref<128x128xf32, #tpu.memory_space<vmem>>, %arg2: memref<128x128xf32, #tpu.memory_space<vmem>>, %arg3: memref<128x2xf32, #tpu.memory_space<vmem>>, %arg4: memref<128x128xbf16, #tpu.memory_space<vmem>>, %arg5: memref<128x2xf32, #tpu.memory_space<vmem>>, %arg6: memref<128x2xf32, #tpu.memory_space<vmem>>) attributes {dimension_semantics = [#tpu.dimension_semantics<parallel>], iteration_bounds = array<i64: 2>, scalar_prefetch = 0 : i64, scratch_operands = 0 : i64, tpu.core_type = #tpu.core_type<tc>, window_params = [{transform_indices = @transform_0, window_bounds = array<i64: 128, 128>}, {pipeline_mode = #tpu.pipeline_mode<synchronous>, transform_indices = @transform_1, window_bounds = array<i64: 128, 128>}, {pipeline_mode = #tpu.pipeline_mode<synchronous>, transform_indices = @transform_2, window_bounds = array<i64: 128, 2>}, {transform_indices = @transform_3, window_bounds = array<i64: 128, 128>}, {transform_indices = @transform_4, window_bounds = array<i64: 128, 2>}, {transform_indices = @transform_5, window_bounds = array<i64: 128, 2>}]} {
    %c0 = arith.constant 0 : index
    %c0_0 = arith.constant 0 : index
    %0 = vector.load %arg1[%c0, %c0_0] : memref<128x128xf32, #tpu.memory_space<vmem>>, vector<128x128xf32>
    %c0_1 = arith.constant 0 : index
    %c0_2 = arith.constant 0 : index
    %1 = vector.load %arg2[%c0_1, %c0_2] : memref<128x128xf32, #tpu.memory_space<vmem>>, vector<128x128xf32>
    %cst = arith.constant dense<0.000000e+00> : vector<128x128xf32>
    %2 = tpu.matmul %0, %1, %cst {dimension_numbers = #tpu.dot_dimension_numbers<[1], [0], [0], [1], [0, 0, 1, 1], [], []>} : vector<128x128xf32>, vector<128x128xf32>, vector<128x128xf32> -> vector<128x128xf32>
    %c0_3 = arith.constant 0 : index
    %c0_4 = arith.constant 0 : index
    %3 = vector.load %arg3[%c0_3, %c0_4] : memref<128x2xf32, #tpu.memory_space<vmem>>, vector<128x2xf32>
    %cst_5 = arith.constant dense<0.000000e+00> : vector<128x2xf32>
    %4 = tpu.matmul %2, %3, %cst_5 {dimension_numbers = #tpu.dot_dimension_numbers<[1], [0], [0], [1], [0, 0, 1, 1], [], []>} : vector<128x128xf32>, vector<128x2xf32>, vector<128x2xf32> -> vector<128x2xf32>
    %cst_6 = arith.constant -4.000000e+01 : f32
    %5 = vector.broadcast %cst_6 : f32 to vector<128x2xf32>
    %6 = arith.maximumf %4, %5 : vector<128x2xf32>
    %cst_7 = arith.constant 4.000000e+01 : f32
    %7 = vector.broadcast %cst_7 : f32 to vector<128x2xf32>
    %8 = arith.minimumf %6, %7 : vector<128x2xf32>
    %9 = vector.extract_strided_slice %8 {offsets = [0, 0], sizes = [128, 1], strides = [1, 1]} : vector<128x2xf32> to vector<128x1xf32>
    %10 = vector.extract_strided_slice %8 {offsets = [0, 1], sizes = [128, 1], strides = [1, 1]} : vector<128x2xf32> to vector<128x1xf32>
    %cst_8 = arith.constant 2.000000e-01 : f32
    %11 = vector.broadcast %cst_8 : f32 to vector<128x1xf32>
    %12 = arith.mulf %11, %9 : vector<128x1xf32>
    %13 = tpu.concatenate %9, %12 in 1 : vector<128x1xf32>, vector<128x1xf32> -> vector<128x2xf32>
    %cst_9 = arith.constant 0.000000e+00 : f32
    %14 = vector.broadcast %cst_9 : f32 to vector<128x2xf32>
    %15 = arith.subf %14, %13 : vector<128x2xf32>
    %16 = math.exp %15 : vector<128x2xf32>
    %c0_10 = arith.constant 0 : index
    %c0_11 = arith.constant 0 : index
    %17 = vector.load %arg5[%c0_10, %c0_11] : memref<128x2xf32, #tpu.memory_space<vmem>>, vector<128x2xf32>
    tpu.vector_store %arg5[%c0_10, %c0_11], %16 {strides = array<i32>} : memref<128x2xf32, #tpu.memory_space<vmem>>, vector<128x2xf32>,
    %cst_12 = arith.constant 2.000000e-01 : f32
    %18 = vector.broadcast %cst_12 : f32 to vector<128x1xf32>
    %19 = arith.mulf %18, %10 : vector<128x1xf32>
    %20 = tpu.concatenate %10, %19 in 1 : vector<128x1xf32>, vector<128x1xf32> -> vector<128x2xf32>
    %cst_13 = arith.constant 0.000000e+00 : f32
    %21 = vector.broadcast %cst_13 : f32 to vector<128x2xf32>
    %22 = arith.subf %21, %20 : vector<128x2xf32>
    %23 = math.exp %22 : vector<128x2xf32>
    %c0_14 = arith.constant 0 : index
    %c0_15 = arith.constant 0 : index
    %24 = vector.load %arg6[%c0_14, %c0_15] : memref<128x2xf32, #tpu.memory_space<vmem>>, vector<128x2xf32>
    tpu.vector_store %arg6[%c0_14, %c0_15], %23 {strides = array<i32>} : memref<128x2xf32, #tpu.memory_space<vmem>>, vector<128x2xf32>,
    %25 = tpu.iota {dimensions = array<i32: 1>} : vector<128x128xi32>
    %c8_i32 = arith.constant 8 : i32
    %26 = vector.broadcast %c8_i32 : i32 to vector<128x128xi32>
    %27 = arith.cmpi eq, %25, %26 : vector<128x128xi32>
    %28 = arith.extui %27 : vector<128x128xi1> to vector<128x128xi32>
    %29 = arith.sitofp %28 : vector<128x128xi32> to vector<128x128xf32>
    %30 = arith.addf %2, %29 : vector<128x128xf32>
    %31 = arith.truncf %30 : vector<128x128xf32> to vector<128x128xbf16>
    %c0_16 = arith.constant 0 : index
    %c0_17 = arith.constant 0 : index
    %32 = vector.load %arg4[%c0_16, %c0_17] : memref<128x128xbf16, #tpu.memory_space<vmem>>, vector<128x128xbf16>
    tpu.vector_store %arg4[%c0_16, %c0_17], %31 {strides = array<i32>} : memref<128x128xbf16, #tpu.memory_space<vmem>>, vector<128x128xbf16>,
    return
  }
  func.func @transform_0(%arg0: i32) -> (i32, i32) {
    %c0_i32 = arith.constant 0 : i32
    %c0_i32_0 = arith.constant 0 : i32
    return %arg0, %c0_i32 : i32, i32
  }
  func.func @transform_1(%arg0: i32) -> (i32, i32) {
    %c0_i32 = arith.constant 0 : i32
    %c0_i32_0 = arith.constant 0 : i32
    %c0_i32_1 = arith.constant 0 : i32
    return %c0_i32, %c0_i32_0 : i32, i32
  }
  func.func @transform_2(%arg0: i32) -> (i32, i32) {
    %c0_i32 = arith.constant 0 : i32
    %c0_i32_0 = arith.constant 0 : i32
    %c0_i32_1 = arith.constant 0 : i32
    return %c0_i32, %c0_i32_0 : i32, i32
  }
  func.func @transform_3(%arg0: i32) -> (i32, i32) {
    %c0_i32 = arith.constant 0 : i32
    %c0_i32_0 = arith.constant 0 : i32
    return %arg0, %c0_i32 : i32, i32
  }
  func.func @transform_4(%arg0: i32) -> (i32, i32) {
    %c0_i32 = arith.constant 0 : i32
    %c0_i32_0 = arith.constant 0 : i32
    return %arg0, %c0_i32 : i32, i32
  }
  func.func @transform_5(%arg0: i32) -> (i32, i32) {
    %c0_i32 = arith.constant 0 : i32
    %c0_i32_0 = arith.constant 0 : i32
    return %arg0, %c0_i32 : i32, i32
  }
}

module attributes {stable_mosaic.version = 11 : i64} {
  func.func @_attn_kernel(%arg0: i32, %arg1: i32, %arg2: memref<128x2xf32, #tpu.memory_space<vmem>>, %arg3: memref<2x128xf32, #tpu.memory_space<vmem>>, %arg4: memref<128x128xbf16, #tpu.memory_space<vmem>>, %arg5: memref<128x128xi8, #tpu.memory_space<vmem>>, %arg6: memref<128x128xf32, #tpu.memory_space<vmem>>, %arg7: memref<1x128x128xf32, #tpu.memory_space<vmem>>) attributes {dimension_semantics = [#tpu.dimension_semantics<parallel>, #tpu.dimension_semantics<arbitrary>], iteration_bounds = array<i64: 2, 2>, scalar_prefetch = 0 : i64, scratch_operands = 1 : i64, tpu.core_type = #tpu.core_type<tc>, window_params = [{transform_indices = @transform_0, window_bounds = array<i64: 128, 2>}, {transform_indices = @transform_1, window_bounds = array<i64: 2, 128>}, {transform_indices = @transform_2, window_bounds = array<i64: 128, 128>}, {transform_indices = @transform_3, window_bounds = array<i64: 128, 128>}, {transform_indices = @transform_4, window_bounds = array<i64: 128, 128>}]} {
    %c0_i32 = arith.constant 0 : i32
    %0 = arith.cmpi eq, %arg1, %c0_i32 : i32
    %1 = arith.extui %0 : i1 to i32
    %c0_i32_0 = arith.constant 0 : i32
    %2 = arith.cmpi ne, %1, %c0_i32_0 : i32
    scf.if %2 {
      %cst_17 = arith.constant 0.000000e+00 : f32
      %35 = vector.broadcast %cst_17 : f32 to vector<1x128x128xf32>
      %c0_18 = arith.constant 0 : index
      %c0_19 = arith.constant 0 : index
      %c0_20 = arith.constant 0 : index
      %36 = vector.load %arg7[%c0_18, %c0_19, %c0_20] : memref<1x128x128xf32, #tpu.memory_space<vmem>>, vector<1x128x128xf32>
      tpu.vector_store %arg7[%c0_18, %c0_19, %c0_20], %35 {strides = array<i32>} : memref<1x128x128xf32, #tpu.memory_space<vmem>>, vector<1x128x128xf32>,
    } else {
    }
    %c0 = arith.constant 0 : index
    %c0_1 = arith.constant 0 : index
    %3 = vector.load %arg5[%c0, %c0_1] : memref<128x128xi8, #tpu.memory_space<vmem>>, vector<128x128xi8>
    %c0_i8 = arith.constant 0 : i8
    %4 = vector.broadcast %c0_i8 : i8 to vector<128x128xi8>
    %5 = arith.cmpi ne, %3, %4 : vector<128x128xi8>
    %c0_2 = arith.constant 0 : index
    %c0_3 = arith.constant 0 : index
    %6 = vector.load %arg2[%c0_2, %c0_3] : memref<128x2xf32, #tpu.memory_space<vmem>>, vector<128x2xf32>
    %c0_4 = arith.constant 0 : index
    %c0_5 = arith.constant 0 : index
    %7 = vector.load %arg3[%c0_4, %c0_5] : memref<2x128xf32, #tpu.memory_space<vmem>>, vector<2x128xf32>
    %c0_6 = arith.constant 0 : index
    %c0_7 = arith.constant 0 : index
    %8 = vector.load %arg4[%c0_6, %c0_7] : memref<128x128xbf16, #tpu.memory_space<vmem>>, vector<128x128xbf16>
    %9 = vector.extract_strided_slice %6 {offsets = [0, 0], sizes = [128, 1], strides = [1, 1]} : vector<128x2xf32> to vector<128x1xf32>
    %10 = vector.extract_strided_slice %7 {offsets = [0, 0], sizes = [1, 128], strides = [1, 1]} : vector<2x128xf32> to vector<1x128xf32>
    %11 = vector.broadcast %9 : vector<128x1xf32> to vector<128x128xf32>
    %12 = vector.broadcast %10 : vector<1x128xf32> to vector<128x128xf32>
    %13 = arith.mulf %11, %12 : vector<128x128xf32>
    %14 = vector.extract_strided_slice %6 {offsets = [0, 1], sizes = [128, 1], strides = [1, 1]} : vector<128x2xf32> to vector<128x1xf32>
    %15 = vector.extract_strided_slice %7 {offsets = [1, 0], sizes = [1, 128], strides = [1, 1]} : vector<2x128xf32> to vector<1x128xf32>
    %16 = vector.broadcast %14 : vector<128x1xf32> to vector<128x128xf32>
    %17 = vector.broadcast %15 : vector<1x128xf32> to vector<128x128xf32>
    %18 = arith.mulf %16, %17 : vector<128x128xf32>
    %cst = arith.constant 1.000000e+00 : f32
    %19 = vector.broadcast %cst : f32 to vector<128x128xf32>
    %20 = arith.cmpf olt, %13, %19 : vector<128x128xf32>
    %21 = arith.select %20, %13, %18 : vector<128x128xi1>, vector<128x128xf32>
    %cst_8 = arith.constant 0.000000e+00 : f32
    %22 = vector.broadcast %cst_8 : f32 to vector<128x128xf32>
    %23 = arith.select %5, %21, %22 : vector<128x128xi1>, vector<128x128xf32>
    %c0_9 = arith.constant 0 : index
    %c0_10 = arith.constant 0 : index
    %c0_11 = arith.constant 0 : index
    %24 = vector.load %arg7[%c0_9, %c0_10, %c0_11] : memref<1x128x128xf32, #tpu.memory_space<vmem>>, vector<1x128x128xf32>
    %25 = vector.shape_cast %24 : vector<1x128x128xf32> to vector<128x128xf32>
    %26 = arith.truncf %23 : vector<128x128xf32> to vector<128x128xbf16>
    %cst_12 = arith.constant dense<0.000000e+00> : vector<128x128xf32>
    %27 = tpu.matmul %26, %8, %cst_12 {dimension_numbers = #tpu.dot_dimension_numbers<[1], [0], [0], [1], [0, 0, 1, 1], [], []>} : vector<128x128xbf16>, vector<128x128xbf16>, vector<128x128xf32> -> vector<128x128xf32>
    %28 = arith.addf %25, %27 : vector<128x128xf32>
    %c0_13 = arith.constant 0 : index
    %c0_14 = arith.constant 0 : index
    %c0_15 = arith.constant 0 : index
    %29 = vector.load %arg7[%c0_13, %c0_14, %c0_15] : memref<1x128x128xf32, #tpu.memory_space<vmem>>, vector<1x128x128xf32>
    %30 = vector.shape_cast %29 : vector<1x128x128xf32> to vector<128x128xf32>
    %31 = vector.shape_cast %28 : vector<128x128xf32> to vector<1x128x128xf32>
    tpu.vector_store %arg7[%c0_13, %c0_14, %c0_15], %31 {strides = array<i32>} : memref<1x128x128xf32, #tpu.memory_space<vmem>>, vector<1x128x128xf32>,
    %c1_i32 = arith.constant 1 : i32
    %32 = arith.cmpi eq, %arg1, %c1_i32 : i32
    %33 = arith.extui %32 : i1 to i32
    %c0_i32_16 = arith.constant 0 : i32
    %34 = arith.cmpi ne, %33, %c0_i32_16 : i32
    scf.if %34 {
      %35 = tpu.iota {dimensions = array<i32: 1>} : vector<128x128xi32>
      %cst_17 = arith.constant 0.000000e+00 : f32
      %36 = vector.broadcast %cst_17 : f32 to vector<128x128xf32>
      %c0_18 = arith.constant 0 : index
      %c0_19 = arith.constant 0 : index
      %c0_20 = arith.constant 0 : index
      %37 = vector.load %arg7[%c0_18, %c0_19, %c0_20] : memref<1x128x128xf32, #tpu.memory_space<vmem>>, vector<1x128x128xf32>
      %38 = vector.shape_cast %37 : vector<1x128x128xf32> to vector<128x128xf32>
      %39 = vector.extract_strided_slice %38 {offsets = [0, 8], sizes = [128, 1], strides = [1, 1]} : vector<128x128xf32> to vector<128x1xf32>
      %cst_21 = arith.constant 1.000000e-36 : f32
      %40 = vector.broadcast %cst_21 : f32 to vector<128x1xf32>
      %41 = arith.maximumf %39, %40 : vector<128x1xf32>
      %cst_22 = arith.constant 1.000000e+00 : f32
      %42 = vector.broadcast %cst_22 : f32 to vector<128x1xf32>
      %43 = arith.divf %42, %41 : vector<128x1xf32>
      %44 = vector.broadcast %43 : vector<128x1xf32> to vector<128x128xf32>
      %45 = arith.mulf %38, %44 : vector<128x128xf32>
      %cst_23 = arith.constant 0.000000e+00 : f32
      %46 = vector.broadcast %cst_23 : f32 to vector<128x128xf32>
      %47 = arith.cmpf ogt, %45, %46 : vector<128x128xf32>
      %48 = math.exp %45 : vector<128x128xf32>
      %cst_24 = arith.constant 1.000000e+00 : f32
      %49 = vector.broadcast %cst_24 : f32 to vector<128x128xf32>
      %50 = arith.subf %48, %49 : vector<128x128xf32>
      %51 = arith.select %47, %45, %50 : vector<128x128xi1>, vector<128x128xf32>
      %c0_i32_25 = arith.constant 0 : i32
      %52 = vector.broadcast %c0_i32_25 : i32 to vector<128x128xi32>
      %53 = arith.cmpi sge, %35, %52 : vector<128x128xi32>
      %c8_i32 = arith.constant 8 : i32
      %54 = vector.broadcast %c8_i32 : i32 to vector<128x128xi32>
      %55 = arith.cmpi slt, %35, %54 : vector<128x128xi32>
      %56 = arith.andi %53, %55 : vector<128x128xi1>
      %57 = arith.select %56, %51, %36 : vector<128x128xi1>, vector<128x128xf32>
      %c8_i32_26 = arith.constant 8 : i32
      %58 = vector.broadcast %c8_i32_26 : i32 to vector<128x128xi32>
      %59 = arith.cmpi slt, %35, %58 : vector<128x128xi32>
      %cst_27 = arith.constant 0xFF800000 : f32
      %60 = vector.broadcast %cst_27 : f32 to vector<128x128xf32>
      %61 = arith.select %59, %57, %60 : vector<128x128xi1>, vector<128x128xf32>
      %cst_28 = arith.constant dense<0xFF800000> : vector<128xf32>
      %62 = vector.multi_reduction <maximumf>, %61, %cst_28 [1] : vector<128x128xf32> to vector<128xf32>
      %63 = vector.shape_cast %62 : vector<128xf32> to vector<128x1xf32>
      %64 = vector.broadcast %63 : vector<128x1xf32> to vector<128x128xf32>
      %65 = arith.subf %61, %64 : vector<128x128xf32>
      %66 = math.exp %65 : vector<128x128xf32>
      %cst_29 = arith.constant dense<0.000000e+00> : vector<128xf32>
      %67 = vector.multi_reduction <add>, %66, %cst_29 [1] : vector<128x128xf32> to vector<128xf32>
      %68 = vector.shape_cast %67 : vector<128xf32> to vector<128x1xf32>
      %69 = math.log %68 : vector<128x1xf32>
      %c8_i32_30 = arith.constant 8 : i32
      %70 = vector.broadcast %c8_i32_30 : i32 to vector<128x128xi32>
      %71 = arith.cmpi slt, %35, %70 : vector<128x128xi32>
      %72 = vector.broadcast %69 : vector<128x1xf32> to vector<128x128xf32>
      %73 = arith.subf %65, %72 : vector<128x128xf32>
      %cst_31 = arith.constant 0.000000e+00 : f32
      %74 = vector.broadcast %cst_31 : f32 to vector<128x128xf32>
      %75 = arith.select %71, %73, %74 : vector<128x128xi1>, vector<128x128xf32>
      %c0_32 = arith.constant 0 : index
      %c0_33 = arith.constant 0 : index
      %76 = vector.load %arg6[%c0_32, %c0_33] : memref<128x128xf32, #tpu.memory_space<vmem>>, vector<128x128xf32>
      tpu.vector_store %arg6[%c0_32, %c0_33], %75 {strides = array<i32>} : memref<128x128xf32, #tpu.memory_space<vmem>>, vector<128x128xf32>,
    } else {
    }
    return
  }
  func.func @transform_0(%arg0: i32, %arg1: i32) -> (i32, i32) {
    %c0_i32 = arith.constant 0 : i32
    %c0_i32_0 = arith.constant 0 : i32
    return %arg0, %c0_i32 : i32, i32
  }
  func.func @transform_1(%arg0: i32, %arg1: i32) -> (i32, i32) {
    %c0_i32 = arith.constant 0 : i32
    %c0_i32_0 = arith.constant 0 : i32
    return %c0_i32, %arg1 : i32, i32
  }
  func.func @transform_2(%arg0: i32, %arg1: i32) -> (i32, i32) {
    %c0_i32 = arith.constant 0 : i32
    %c0_i32_0 = arith.constant 0 : i32
    return %arg1, %c0_i32 : i32, i32
  }
  func.func @transform_3(%arg0: i32, %arg1: i32) -> (i32, i32) {
    %c0_i32 = arith.constant 0 : i32
    return %arg0, %arg1 : i32, i32
  }
  func.func @transform_4(%arg0: i32, %arg1: i32) -> (i32, i32) {
    %c0_i32 = arith.constant 0 : i32
    %c0_i32_0 = arith.constant 0 : i32
    return %arg0, %c0_i32 : i32, i32
  }
}

</mosaic_0001>

<llo_original>
// kernel: spgat_forward.4
$region0: #{spgat_forward.4}
  #allocation0 [shape = 'u32[]', space=smem, size = 0x4, offset = 0x4, fixed_abs, tag = 'smem constant byte address 0x4 - core index']
  #allocation1 [shape = 'u32[72,128]{1,0:T(1,128)}', space=vmem, size = 0x9000, scoped, tag = 'internal scratch']
  %s0 = inlined_call_operand.vmem [shape: f32[256,64], index: 0, kind: input, shape index: {}]
  %s1 = inlined_call_operand.vmem [shape: f32[64,128], index: 1, kind: input, shape index: {}]
  %s2 = inlined_call_operand.vmem [shape: f32[128,8], index: 2, kind: input, shape index: {}]
  %s3 = inlined_call_operand.vmem [shape: bf16[256,128], index: 3, kind: output, shape index: {0}]
  %s4 = inlined_call_operand.vmem [shape: f32[256,8], index: 4, kind: output, shape index: {1}]
  %s5 = inlined_call_operand.vmem [shape: f32[256,8], index: 5, kind: output, shape index: {2}]
  %6 = xla_tuple %s3, %s4, %s5
  %s7 = sld [smem:[#allocation0]]
  $region61: #{spgat_forward.4} parent=0
    _
  %s9 = ssub.s32 1, %s7
  %s10 = scalar_select 0, %s9, %s7
  loop: start=0, step=1, limit=4
  $region2: #{spgat_forward.4} parent=0 // loop_pre_header
    _
  $region3: #{spgat_forward.4} parent=0 // loop_header
    %s12 = sphi 0, %s16
    %p13 = scmp.ge.s32.totalorder %s12, 4
    %s22 = sphi 0, %s24
    %s25 = sphi 0, %s22
    %s26 = sphi 0, %s25
    %s42 = sphi 0, %s26
    %s46 = sphi 0, %s46
    %s48 = sphi 0, %s46
    %s49 = sphi 0, %s48
    %s63 = sphi 0, %s49
    %s67 = sphi 0, %s67
    %s69 = sphi 0, %s67
    %s70 = sphi 0, %s69
    %s84 = sphi 0, %s70
    %s90 = sphi 0, %s92
    %s93 = sphi 0, %s90
    %s94 = sphi 0, %s93
    %s110 = sphi 0, %s94
    %s116 = sphi 0, %s118
    %s119 = sphi 0, %s116
    %s120 = sphi 0, %s119
    %s136 = sphi 0, %s120
    %s142 = sphi 0, %s144
    %s145 = sphi 0, %s142
    %s146 = sphi 0, %s145
    %s162 = sphi 0, %s146
  $region4: #{spgat_forward.4} parent=0 // loop_header_branch
    %15 = sbr.rel (%p13) target = $region8
  $region5: #{spgat_forward.4} parent=0 // loop_body
    %s17 = ssub.s32 %s12, 1
    %s18 = ssub.s32 %s12, 2
    %s19 = sadd.s32 %s12, 1
    %s20 = ssub.s32 %s12, %s19
    %p21 = scmp.eq.s32.totalorder %s20, 0
    %s23 = sadd.s32 %s22, 1
    %s24 = scalar_select %p21, %s22, %s23
    %p27 = pneg %p21
    %p28 = scmp.eq.s32.totalorder %s12, 1
    %p29 = por %p27, %p28
    %p30 = scmp.ne.s32.totalorder %s22, %s25
    %p31 = scmp.eq.s32.totalorder %s12, 0
    %p32 = por %p30, %p31
    %p33 = scmp.ne.s32.totalorder %s22, %s25
    %p34 = scmp.eq.s32.totalorder %s17, 1
    %p35 = por %p33, %p34
    %p36 = scmp.ne.s32.totalorder %s25, %s26
    %p37 = scmp.eq.s32.totalorder %s17, 0
    %p38 = por %p36, %p37
    %p39 = scmp.ne.s32.totalorder %s25, %s26
    %p40 = scmp.eq.s32.totalorder %s18, 1
    %p41 = por %p39, %p40
    %p43 = scmp.ne.s32.totalorder %s26, %s42
    %p44 = scmp.eq.s32.totalorder %s18, 0
    %p45 = por %p43, %p44
    %s47 = sadd.s32 %s46, 1
    %p50 = scmp.eq.s32.totalorder %s12, 1
    %p51 = scmp.ne.s32.totalorder %s46, %s48
    %p52 = scmp.eq.s32.totalorder %s12, 0
    %p53 = por %p51, %p52
    %p54 = scmp.ne.s32.totalorder %s46, %s48
    %p55 = scmp.eq.s32.totalorder %s17, 1
    %p56 = por %p54, %p55
    %p57 = scmp.ne.s32.totalorder %s48, %s49
    %p58 = scmp.eq.s32.totalorder %s17, 0
    %p59 = por %p57, %p58
    %p60 = scmp.ne.s32.totalorder %s48, %s49
    %p61 = scmp.eq.s32.totalorder %s18, 1
    %p62 = por %p60, %p61
    %p64 = scmp.ne.s32.totalorder %s49, %s63
    %p65 = scmp.eq.s32.totalorder %s18, 0
    %p66 = por %p64, %p65
    %s68 = sadd.s32 %s67, 1
    %p71 = scmp.eq.s32.totalorder %s12, 1
    %p72 = scmp.ne.s32.totalorder %s67, %s69
    %p73 = scmp.eq.s32.totalorder %s12, 0
    %p74 = por %p72, %p73
    %p75 = scmp.ne.s32.totalorder %s67, %s69
    %p76 = scmp.eq.s32.totalorder %s17, 1
    %p77 = por %p75, %p76
    %p78 = scmp.ne.s32.totalorder %s69, %s70
    %p79 = scmp.eq.s32.totalorder %s17, 0
    %p80 = por %p78, %p79
    %p81 = scmp.ne.s32.totalorder %s69, %s70
    %p82 = scmp.eq.s32.totalorder %s18, 1
    %p83 = por %p81, %p82
    %p85 = scmp.ne.s32.totalorder %s70, %s84
    %p86 = scmp.eq.s32.totalorder %s18, 0
    %p87 = por %p85, %p86
    %s88 = ssub.s32 %s12, %s19
    %p89 = scmp.eq.s32.totalorder %s88, 0
    %s91 = sadd.s32 %s90, 1
    %s92 = scalar_select %p89, %s90, %s91
    %p95 = pneg %p89
    %p96 = scmp.eq.s32.totalorder %s12, 1
    %p97 = por %p95, %p96
    %p98 = scmp.ne.s32.totalorder %s90, %s93
    %p99 = scmp.eq.s32.totalorder %s12, 0
    %p100 = por %p98, %p99
    %p101 = scmp.ne.s32.totalorder %s90, %s93
    %p102 = scmp.eq.s32.totalorder %s17, 1
    %p103 = por %p101, %p102
    %p104 = scmp.ne.s32.totalorder %s93, %s94
    %p105 = scmp.eq.s32.totalorder %s17, 0
    %p106 = por %p104, %p105
    %p107 = scmp.ne.s32.totalorder %s93, %s94
    %p108 = scmp.eq.s32.totalorder %s18, 1
    %p109 = por %p107, %p108
    %p111 = scmp.ne.s32.totalorder %s94, %s110
    %p112 = scmp.eq.s32.totalorder %s18, 0
    %p113 = por %p111, %p112
    %s114 = ssub.s32 %s12, %s19
    %p115 = scmp.eq.s32.totalorder %s114, 0
    %s117 = sadd.s32 %s116, 1
    %s118 = scalar_select %p115, %s116, %s117
    %p121 = pneg %p115
    %p122 = scmp.eq.s32.totalorder %s12, 1
    %p123 = por %p121, %p122
    %p124 = scmp.ne.s32.totalorder %s116, %s119
    %p125 = scmp.eq.s32.totalorder %s12, 0
    %p126 = por %p124, %p125
    %p127 = scmp.ne.s32.totalorder %s116, %s119
    %p128 = scmp.eq.s32.totalorder %s17, 1
    %p129 = por %p127, %p128
    %p130 = scmp.ne.s32.totalorder %s119, %s120
    %p131 = scmp.eq.s32.totalorder %s17, 0
    %p132 = por %p130, %p131
    %p133 = scmp.ne.s32.totalorder %s119, %s120
    %p134 = scmp.eq.s32.totalorder %s18, 1
    %p135 = por %p133, %p134
    %p137 = scmp.ne.s32.totalorder %s120, %s136
    %p138 = scmp.eq.s32.totalorder %s18, 0
    %p139 = por %p137, %p138
    %s140 = ssub.s32 %s12, %s19
    %p141 = scmp.eq.s32.totalorder %s140, 0
    %s143 = sadd.s32 %s142, 1
    %s144 = scalar_select %p141, %s142, %s143
    %p147 = pneg %p141
    %p148 = scmp.eq.s32.totalorder %s12, 1
    %p149 = por %p147, %p148
    %p150 = scmp.ne.s32.totalorder %s142, %s145
    %p151 = scmp.eq.s32.totalorder %s12, 0
    %p152 = por %p150, %p151
    %p153 = scmp.ne.s32.totalorder %s142, %s145
    %p154 = scmp.eq.s32.totalorder %s17, 1
    %p155 = por %p153, %p154
    %p156 = scmp.ne.s32.totalorder %s145, %s146
    %p157 = scmp.eq.s32.totalorder %s17, 0
    %p158 = por %p156, %p157
    %p159 = scmp.ne.s32.totalorder %s145, %s146
    %p160 = scmp.eq.s32.totalorder %s18, 1
    %p161 = por %p159, %p160
    %p163 = scmp.ne.s32.totalorder %s146, %s162
    %p164 = scmp.eq.s32.totalorder %s18, 0
    %p165 = por %p163, %p164
    %p166 = scmp.le.s32.totalorder 1, %s12
    %p167 = scmp.lt.s32.totalorder %s12, 3
    %p168 = pnand %p166, %p167
    %p169 = pneg %p168
    // Predicated region
    $region9: #{spgat_forward.4} parent=5 // pred_check
      _
    $region10: #{spgat_forward.4} parent=5 // pred_check_branch
      %171 = sbr.rel (%p168) target = $region12
    $region11: #{spgat_forward.4} parent=5 // pred_region
      %s172 = ssub.s32 %s12, 1
      // Predicated region
      $region13: #{spgat_forward.4} parent=11 // pred_check
        %p173 = pneg %p59
      $region14: #{spgat_forward.4} parent=11 // pred_check_branch
        %175 = sbr.rel (%p173) target = $region16
      $region15: #{spgat_forward.4} parent=11 // pred_region
        _
      $region16: #{spgat_forward.4} parent=11 // pred_fallthru
        _
      // Predicated region
      $region17: #{spgat_forward.4} parent=11 // pred_check
        %p176 = pneg %p80
      $region18: #{spgat_forward.4} parent=11 // pred_check_branch
        %178 = sbr.rel (%p176) target = $region20
      $region19: #{spgat_forward.4} parent=11 // pred_region
        _
      $region20: #{spgat_forward.4} parent=11 // pred_fallthru
        _
    $region12: #{spgat_forward.4} parent=5 // pred_fallthru
      _
    %p179 = scmp.lt.s32.totalorder %s12, 2
    // Predicated region
    $region21: #{spgat_forward.4} parent=5 // pred_check
      %p180 = pneg %p179
    $region22: #{spgat_forward.4} parent=5 // pred_check_branch
      %182 = sbr.rel (%p180) target = $region24
    $region23: #{spgat_forward.4} parent=5 // pred_region
      // Predicated region
      $region25: #{spgat_forward.4} parent=23 // pred_check
        %p183 = pneg %p32
      $region26: #{spgat_forward.4} parent=23 // pred_check_branch
        %185 = sbr.rel (%p183) target = $region28
      $region27: #{spgat_forward.4} parent=23 // pred_region
        %s186 = smul.u32 16, %s12
        %p187 = scmp.lt.s32.totalorder %s186, 31
        %s188 = scalar_select %p187, %s186, 31
        %s189 = smul.addr %s188, 8
        %s190 = scalar_lea.vmem %s0, %s189
        %s191 = smul.u32 16, %s12
      $region28: #{spgat_forward.4} parent=23 // pred_fallthru
        _
    $region24: #{spgat_forward.4} parent=5 // pred_fallthru
      _
    %p192 = scmp.le.s32.totalorder 1, %s12
    %p193 = scmp.lt.s32.totalorder %s12, 3
    %p194 = pnand %p192, %p193
    %p195 = pneg %p194
    // Predicated region
    $region29: #{spgat_forward.4} parent=5 // pred_check
      _
    $region30: #{spgat_forward.4} parent=5 // pred_check_branch
      %197 = sbr.rel (%p194) target = $region32
    $region31: #{spgat_forward.4} parent=5 // pred_region
      %s198 = ssub.s32 %s12, 1
      %s199 = smul.u32 16, %s17
      %p200 = scmp.lt.s32.totalorder %s199, 31
      %s201 = scalar_select %p200, %s199, 31
      %s202 = smul.addr %s201, 8
      %s203 = scalar_lea.vmem %s0, %s202
      %p204 = pneg %p38
      %p205 = pneg %p35
      %p206 = pneg %p59
      %p207 = pneg %p56
      %p208 = pneg %p80
      %p209 = pneg %p77
      %p210 = pneg %p106
      %p211 = pneg %p103
      %s212 = smul.u32 16, %s17
      %p213 = scmp.lt.s32.totalorder %s212, 31
      %s214 = scalar_select %p213, %s212, 31
      %s215 = smul.addr %s214, 4
      %s216 = scalar_lea.vmem %s3, %s215
      %p217 = pneg %p132
      %p218 = pneg %p129
      %s219 = smul.u32 16, %s17
      %p220 = scmp.lt.s32.totalorder %s219, 31
      %s221 = scalar_select %p220, %s219, 31
      %s222 = smul.addr %s221, 8
      %s223 = scalar_lea.vmem %s4, %s222
      %p224 = pneg %p158
      %p225 = pneg %p155
      %s226 = smul.u32 16, %s17
      %p227 = scmp.lt.s32.totalorder %s226, 31
      %s228 = scalar_select %p227, %s226, 31
      %s229 = smul.addr %s228, 8
      %s230 = scalar_lea.vmem %s5, %s229
      %s231 = smul.u32 16, %s17
      %p232 = scmp.lt.s32.totalorder %s231, 31
      %s233 = scalar_select %p232, %s231, 31
      %s234 = smul.addr %s233, 8
      %s235 = scalar_lea.vmem %s0, %s234
      %s236 = smul.u32 16, %s17
      %s237 = smul.u32 16, %s17
      %p238 = scmp.lt.s32.totalorder %s237, 31
      %s239 = scalar_select %p238, %s237, 31
      %s240 = smul.addr %s239, 4
      %s241 = scalar_lea.vmem %s3, %s240
      %s242 = smul.u32 16, %s17
      %s243 = smul.u32 16, %s17
      %p244 = scmp.lt.s32.totalorder %s243, 31
      %s245 = scalar_select %p244, %s243, 31
      %s246 = smul.addr %s245, 8
      %s247 = scalar_lea.vmem %s4, %s246
      %s248 = smul.u32 16, %s17
      %s249 = smul.u32 16, %s17
      %p250 = scmp.lt.s32.totalorder %s249, 31
      %s251 = scalar_select %p250, %s249, 31
      %s252 = smul.addr %s251, 8
      %s253 = scalar_lea.vmem %s5, %s252
      %s254 = smul.u32 16, %s17
      %v255 = vld [vmem:[%s235] sm:$0xff]
      %v256 = vld [vmem:[%s235 + $0x8] sm:$0xff]
      %v257 = vld [vmem:[%s235 + $0x10] sm:$0xff]
      %v258 = vld [vmem:[%s235 + $0x18] sm:$0xff]
      %v259 = vld [vmem:[%s235 + $0x20] sm:$0xff]
      %v260 = vld [vmem:[%s235 + $0x28] sm:$0xff]
      %v261 = vld [vmem:[%s235 + $0x30] sm:$0xff]
      %v262 = vld [vmem:[%s235 + $0x38] sm:$0xff]
      %v263 = vld [vmem:[%s235 + $0x40] sm:$0xff]
      %v264 = vld [vmem:[%s235 + $0x48] sm:$0xff]
      %v265 = vld [vmem:[%s235 + $0x50] sm:$0xff]
      %v266 = vld [vmem:[%s235 + $0x58] sm:$0xff]
      %v267 = vld [vmem:[%s235 + $0x60] sm:$0xff]
      %v268 = vld [vmem:[%s235 + $0x68] sm:$0xff]
      %v269 = vld [vmem:[%s235 + $0x70] sm:$0xff]
      %v270 = vld [vmem:[%s235 + $0x78] sm:$0xff]
      %v271 = vld [vmem:[%s1] sm:$0xff]
      %v272 = vld [vmem:[%s1 + $0x8] sm:$0xff]
      %v273 = vld [vmem:[%s1 + $0x10] sm:$0xff]
      %v274 = vld [vmem:[%s1 + $0x18] sm:$0xff]
      %v275 = vld [vmem:[%s1 + $0x20] sm:$0xff]
      %v276 = vld [vmem:[%s1 + $0x28] sm:$0xff]
      %v277 = vld [vmem:[%s1 + $0x30] sm:$0xff]
      %v278 = vld [vmem:[%s1 + $0x38] sm:$0xff]
      %vm279 = vcmask 523264
      %v281 = vsel %vm279, %v255, 0
      %v284 = vsel %vm279, %v256, 0
      %v287 = vsel %vm279, %v257, 0
      %v290 = vsel %vm279, %v258, 0
      %v293 = vsel %vm279, %v259, 0
      %v296 = vsel %vm279, %v260, 0
      %v299 = vsel %vm279, %v261, 0
      %v302 = vsel %vm279, %v262, 0
      %v305 = vsel %vm279, %v263, 0
      %v308 = vsel %vm279, %v264, 0
      %v311 = vsel %vm279, %v265, 0
      %v314 = vsel %vm279, %v266, 0
      %v317 = vsel %vm279, %v267, 0
      %v320 = vsel %vm279, %v268, 0
      %v323 = vsel %vm279, %v269, 0
      %v326 = vsel %vm279, %v270, 0
      %328 = vmatpush.msra.mxu0 0.0
      %329 = vmatpush.msra.mxu0 0.0
      %330 = vmatpush.msra.mxu0 0.0
      %331 = vmatpush.msra.mxu0 0.0
      %332 = vmatpush.msra.mxu0 0.0
      %333 = vmatpush.msra.mxu0 0.0
      %334 = vmatpush.msra.mxu0 0.0
      %335 = vmatpush.msra.mxu0 0.0
      %336 = vmatpush.msra.mxu0 %v278
      %337 = vmatpush.msra.mxu0 %v277
      %338 = vmatpush.msra.mxu0 %v276
      %339 = vmatpush.msra.mxu0 %v275
      %340 = vmatpush.msra.mxu0 %v274
      %341 = vmatpush.msra.mxu0 %v273
      %342 = vmatpush.msra.mxu0 %v272
      %343 = vmatpush.msra.mxu0 %v271
      %344 = vmatmul.f32.gmra.mxu0 %v281
      %v345 = vpop.f32.mrf.mxu0
      %v346 = vadd.f32 0.0, %v345
      %347 = vmatmul.f32.gmra.mxu0 %v284
      %v348 = vpop.f32.mrf.mxu0
      %v349 = vadd.f32 0.0, %v348
      %350 = vmatmul.f32.gmra.mxu0 %v287
      %v351 = vpop.f32.mrf.mxu0
      %v352 = vadd.f32 0.0, %v351
      %353 = vmatmul.f32.gmra.mxu0 %v290
      %v354 = vpop.f32.mrf.mxu0
      %v355 = vadd.f32 0.0, %v354
      %356 = vmatmul.f32.gmra.mxu0 %v293
      %v357 = vpop.f32.mrf.mxu0
      %v358 = vadd.f32 0.0, %v357
      %359 = vmatmul.f32.gmra.mxu0 %v296
      %v360 = vpop.f32.mrf.mxu0
      %v361 = vadd.f32 0.0, %v360
      %362 = vmatmul.f32.gmra.mxu0 %v299
      %v363 = vpop.f32.mrf.mxu0
      %v364 = vadd.f32 0.0, %v363
      %365 = vmatmul.f32.gmra.mxu0 %v302
      %v366 = vpop.f32.mrf.mxu0
      %v367 = vadd.f32 0.0, %v366
      %368 = vmatmul.f32.gmra.mxu0 %v305
      %v369 = vpop.f32.mrf.mxu0
      %v370 = vadd.f32 0.0, %v369
      %371 = vmatmul.f32.gmra.mxu0 %v308
      %v372 = vpop.f32.mrf.mxu0
      %v373 = vadd.f32 0.0, %v372
      %374 = vmatmul.f32.gmra.mxu0 %v311
      %v375 = vpop.f32.mrf.mxu0
      %v376 = vadd.f32 0.0, %v375
      %377 = vmatmul.f32.gmra.mxu0 %v314
      %v378 = vpop.f32.mrf.mxu0
      %v379 = vadd.f32 0.0, %v378
      %380 = vmatmul.f32.gmra.mxu0 %v317
      %v381 = vpop.f32.mrf.mxu0
      %v382 = vadd.f32 0.0, %v381
      %383 = vmatmul.f32.gmra.mxu0 %v320
      %v384 = vpop.f32.mrf.mxu0
      %v385 = vadd.f32 0.0, %v384
      %386 = vmatmul.f32.gmra.mxu0 %v323
      %v387 = vpop.f32.mrf.mxu0
      %v388 = vadd.f32 0.0, %v387
      %389 = vmatmul.f32.gmra.mxu0 %v326
      %v390 = vpop.f32.mrf.mxu0
      %v391 = vadd.f32 0.0, %v390
      %392 = vdwg.mxu0
      %v393 = vld [vmem:[%s2] sm:$0xff]
      %v394 = vld [vmem:[%s2 + $0x8] sm:$0xff]
      %v395 = vld [vmem:[%s2 + $0x10] sm:$0xff]
      %v396 = vld [vmem:[%s2 + $0x18] sm:$0xff]
      %v397 = vld [vmem:[%s2 + $0x20] sm:$0xff]
      %v398 = vld [vmem:[%s2 + $0x28] sm:$0xff]
      %v399 = vld [vmem:[%s2 + $0x30] sm:$0xff]
      %v400 = vld [vmem:[%s2 + $0x38] sm:$0xff]
      %v401 = vld [vmem:[%s2 + $0x40] sm:$0xff]
      %v402 = vld [vmem:[%s2 + $0x48] sm:$0xff]
      %v403 = vld [vmem:[%s2 + $0x50] sm:$0xff]
      %v404 = vld [vmem:[%s2 + $0x58] sm:$0xff]
      %v405 = vld [vmem:[%s2 + $0x60] sm:$0xff]
      %v406 = vld [vmem:[%s2 + $0x68] sm:$0xff]
      %v407 = vld [vmem:[%s2 + $0x70] sm:$0xff]
      %v408 = vld [vmem:[%s2 + $0x78] sm:$0xff]
      %409 = vmatpush.msra.mxu0 %v408
      %410 = vmatpush.msra.mxu0 %v407
      %411 = vmatpush.msra.mxu0 %v406
      %412 = vmatpush.msra.mxu0 %v405
      %413 = vmatpush.msra.mxu0 %v404
      %414 = vmatpush.msra.mxu0 %v403
      %415 = vmatpush.msra.mxu0 %v402
      %416 = vmatpush.msra.mxu0 %v401
      %417 = vmatpush.msra.mxu0 %v400
      %418 = vmatpush.msra.mxu0 %v399
      %419 = vmatpush.msra.mxu0 %v398
      %420 = vmatpush.msra.mxu0 %v397
      %421 = vmatpush.msra.mxu0 %v396
      %422 = vmatpush.msra.mxu0 %v395
      %423 = vmatpush.msra.mxu0 %v394
      %424 = vmatpush.msra.mxu0 %v393
      %425 = vmatmul.f32.gmra.mxu0 %v346
      %v426 = vpop.f32.mrf.mxu0
      %v427 = vadd.f32 0.0, %v426
      %428 = vmatmul.f32.gmra.mxu0 %v349
      %v429 = vpop.f32.mrf.mxu0
      %v430 = vadd.f32 0.0, %v429
      %431 = vmatmul.f32.gmra.mxu0 %v352
      %v432 = vpop.f32.mrf.mxu0
      %v433 = vadd.f32 0.0, %v432
      %434 = vmatmul.f32.gmra.mxu0 %v355
      %v435 = vpop.f32.mrf.mxu0
      %v436 = vadd.f32 0.0, %v435
      %437 = vmatmul.f32.gmra.mxu0 %v358
      %v438 = vpop.f32.mrf.mxu0
      %v439 = vadd.f32 0.0, %v438
      %440 = vmatmul.f32.gmra.mxu0 %v361
      %v441 = vpop.f32.mrf.mxu0
      %v442 = vadd.f32 0.0, %v441
      %443 = vmatmul.f32.gmra.mxu0 %v364
      %v444 = vpop.f32.mrf.mxu0
      %v445 = vadd.f32 0.0, %v444
      %446 = vmatmul.f32.gmra.mxu0 %v367
      %v447 = vpop.f32.mrf.mxu0
      %v448 = vadd.f32 0.0, %v447
      %449 = vmatmul.f32.gmra.mxu0 %v370
      %v450 = vpop.f32.mrf.mxu0
      %v451 = vadd.f32 0.0, %v450
      %452 = vmatmul.f32.gmra.mxu0 %v373
      %v453 = vpop.f32.mrf.mxu0
      %v454 = vadd.f32 0.0, %v453
      %455 = vmatmul.f32.gmra.mxu0 %v376
      %v456 = vpop.f32.mrf.mxu0
      %v457 = vadd.f32 0.0, %v456
      %458 = vmatmul.f32.gmra.mxu0 %v379
      %v459 = vpop.f32.mrf.mxu0
      %v460 = vadd.f32 0.0, %v459
      %461 = vmatmul.f32.gmra.mxu0 %v382
      %v462 = vpop.f32.mrf.mxu0
      %v463 = vadd.f32 0.0, %v462
      %464 = vmatmul.f32.gmra.mxu0 %v385
      %v465 = vpop.f32.mrf.mxu0
      %v466 = vadd.f32 0.0, %v465
      %467 = vmatmul.f32.gmra.mxu0 %v388
      %v468 = vpop.f32.mrf.mxu0
      %v469 = vadd.f32 0.0, %v468
      %470 = vmatmul.f32.gmra.mxu0 %v391
      %v471 = vpop.f32.mrf.mxu0
      %v472 = vadd.f32 0.0, %v471
      %473 = vdwg.mxu0
      %v474 = vmax.f32 %v427, -40.0
      %v475 = vmax.f32 %v430, -40.0
      %v476 = vmax.f32 %v433, -40.0
      %v477 = vmax.f32 %v436, -40.0
      %v478 = vmax.f32 %v439, -40.0
      %v479 = vmax.f32 %v442, -40.0
      %v480 = vmax.f32 %v445, -40.0
      %v481 = vmax.f32 %v448, -40.0
      %v482 = vmax.f32 %v451, -40.0
      %v483 = vmax.f32 %v454, -40.0
      %v484 = vmax.f32 %v457, -40.0
      %v485 = vmax.f32 %v460, -40.0
      %v486 = vmax.f32 %v463, -40.0
      %v487 = vmax.f32 %v466, -40.0
      %v488 = vmax.f32 %v469, -40.0
      %v489 = vmax.f32 %v472, -40.0
      %v490 = vmin.f32 %v474, 40.0
      %v491 = vmin.f32 %v475, 40.0
      %v492 = vmin.f32 %v476, 40.0
      %v493 = vmin.f32 %v477, 40.0
      %v494 = vmin.f32 %v478, 40.0
      %v495 = vmin.f32 %v479, 40.0
      %v496 = vmin.f32 %v480, 40.0
      %v497 = vmin.f32 %v481, 40.0
      %v498 = vmin.f32 %v482, 40.0
      %v499 = vmin.f32 %v483, 40.0
      %v500 = vmin.f32 %v484, 40.0
      %v501 = vmin.f32 %v485, 40.0
      %v502 = vmin.f32 %v486, 40.0
      %v503 = vmin.f32 %v487, 40.0
      %v504 = vmin.f32 %v488, 40.0
      %v505 = vmin.f32 %v489, 40.0
      %v506 = vmul.f32 %v490, 0.2
      %v507 = vmul.f32 %v491, 0.2
      %v508 = vmul.f32 %v492, 0.2
      %v509 = vmul.f32 %v493, 0.2
      %v510 = vmul.f32 %v494, 0.2
      %v511 = vmul.f32 %v495, 0.2
      %v512 = vmul.f32 %v496, 0.2
      %v513 = vmul.f32 %v497, 0.2
      %v514 = vmul.f32 %v498, 0.2
      %v515 = vmul.f32 %v499, 0.2
      %v516 = vmul.f32 %v500, 0.2
      %v517 = vmul.f32 %v501, 0.2
      %v518 = vmul.f32 %v502, 0.2
      %v519 = vmul.f32 %v503, 0.2
      %v520 = vmul.f32 %v504, 0.2
      %v521 = vmul.f32 %v505, 0.2
      %538 = vrot.lane.b32.xlu0 %v506, 4
      %v539 = vpop.permute.xlu0 %538
      %540 = vrot.lane.b32.xlu0 %v507, 4
      %v541 = vpop.permute.xlu0 %540
      %542 = vrot.lane.b32.xlu0 %v508, 4
      %v543 = vpop.permute.xlu0 %542
      %544 = vrot.lane.b32.xlu0 %v509, 4
      %v545 = vpop.permute.xlu0 %544
      %546 = vrot.lane.b32.xlu0 %v510, 4
      %v547 = vpop.permute.xlu0 %546
      %548 = vrot.lane.b32.xlu0 %v511, 4
      %v549 = vpop.permute.xlu0 %548
      %550 = vrot.lane.b32.xlu0 %v512, 4
      %v551 = vpop.permute.xlu0 %550
      %552 = vrot.lane.b32.xlu0 %v513, 4
      %v553 = vpop.permute.xlu0 %552
      %554 = vrot.lane.b32.xlu0 %v514, 4
      %v555 = vpop.permute.xlu0 %554
      %556 = vrot.lane.b32.xlu0 %v515, 4
      %v557 = vpop.permute.xlu0 %556
      %558 = vrot.lane.b32.xlu0 %v516, 4
      %v559 = vpop.permute.xlu0 %558
      %560 = vrot.lane.b32.xlu0 %v517, 4
      %v561 = vpop.permute.xlu0 %560
      %562 = vrot.lane.b32.xlu0 %v518, 4
      %v563 = vpop.permute.xlu0 %562
      %564 = vrot.lane.b32.xlu0 %v519, 4
      %v565 = vpop.permute.xlu0 %564
      %566 = vrot.lane.b32.xlu0 %v520, 4
      %v567 = vpop.permute.xlu0 %566
      %568 = vrot.lane.b32.xlu0 %v521, 4
      %v569 = vpop.permute.xlu0 %568
      %vm586 = vcmask 31744
      %v587 = vsel %vm586, %v490, %v539
      %v588 = vsel %vm586, %v491, %v541
      %v589 = vsel %vm586, %v492, %v543
      %v590 = vsel %vm586, %v493, %v545
      %v591 = vsel %vm586, %v494, %v547
      %v592 = vsel %vm586, %v495, %v549
      %v593 = vsel %vm586, %v496, %v551
      %v594 = vsel %vm586, %v497, %v553
      %v595 = vsel %vm586, %v498, %v555
      %v596 = vsel %vm586, %v499, %v557
      %v597 = vsel %vm586, %v500, %v559
      %v598 = vsel %vm586, %v501, %v561
      %v599 = vsel %vm586, %v502, %v563
      %v600 = vsel %vm586, %v503, %v565
      %v601 = vsel %vm586, %v504, %v567
      %v602 = vsel %vm586, %v505, %v569
      %v603 = vsub.f32 0.0, %v587
      %v604 = vsub.f32 0.0, %v588
      %v605 = vsub.f32 0.0, %v589
      %v606 = vsub.f32 0.0, %v590
      %v607 = vsub.f32 0.0, %v591
      %v608 = vsub.f32 0.0, %v592
      %v609 = vsub.f32 0.0, %v593
      %v610 = vsub.f32 0.0, %v594
      %v611 = vsub.f32 0.0, %v595
      %v612 = vsub.f32 0.0, %v596
      %v613 = vsub.f32 0.0, %v597
      %v614 = vsub.f32 0.0, %v598
      %v615 = vsub.f32 0.0, %v599
      %v616 = vsub.f32 0.0, %v600
      %v617 = vsub.f32 0.0, %v601
      %v618 = vsub.f32 0.0, %v602
      %v619 = vmul.f32 %v603, 1.442695
      %v620 = vpow.pop %v619
      %v621 = vmul.f32 %v604, 1.442695
      %v622 = vpow.pop %v621
      %v623 = vmul.f32 %v605, 1.442695
      %v624 = vpow.pop %v623
      %v625 = vmul.f32 %v606, 1.442695
      %v626 = vpow.pop %v625
      %v627 = vmul.f32 %v607, 1.442695
      %v628 = vpow.pop %v627
      %v629 = vmul.f32 %v608, 1.442695
      %v630 = vpow.pop %v629
      %v631 = vmul.f32 %v609, 1.442695
      %v632 = vpow.pop %v631
      %v633 = vmul.f32 %v610, 1.442695
      %v634 = vpow.pop %v633
      %v635 = vmul.f32 %v611, 1.442695
      %v636 = vpow.pop %v635
      %v637 = vmul.f32 %v612, 1.442695
      %v638 = vpow.pop %v637
      %v639 = vmul.f32 %v613, 1.442695
      %v640 = vpow.pop %v639
      %v641 = vmul.f32 %v614, 1.442695
      %v642 = vpow.pop %v641
      %v643 = vmul.f32 %v615, 1.442695
      %v644 = vpow.pop %v643
      %v645 = vmul.f32 %v616, 1.442695
      %v646 = vpow.pop %v645
      %v647 = vmul.f32 %v617, 1.442695
      %v648 = vpow.pop %v647
      %v649 = vmul.f32 %v618, 1.442695
      %v650 = vpow.pop %v649
      %vm651 = vcmask 64512
      %652 = vst.msk [vmem:[%s247] sm:$0xff] %vm651, %v620
      %653 = vst.msk [vmem:[%s247 + $0x8] sm:$0xff] %vm651, %v622
      %654 = vst.msk [vmem:[%s247 + $0x10] sm:$0xff] %vm651, %v624
      %655 = vst.msk [vmem:[%s247 + $0x18] sm:$0xff] %vm651, %v626
      %656 = vst.msk [vmem:[%s247 + $0x20] sm:$0xff] %vm651, %v628
      %657 = vst.msk [vmem:[%s247 + $0x28] sm:$0xff] %vm651, %v630
      %658 = vst.msk [vmem:[%s247 + $0x30] sm:$0xff] %vm651, %v632
      %659 = vst.msk [vmem:[%s247 + $0x38] sm:$0xff] %vm651, %v634
      %660 = vst.msk [vmem:[%s247 + $0x40] sm:$0xff] %vm651, %v636
      %661 = vst.msk [vmem:[%s247 + $0x48] sm:$0xff] %vm651, %v638
      %662 = vst.msk [vmem:[%s247 + $0x50] sm:$0xff] %vm651, %v640
      %663 = vst.msk [vmem:[%s247 + $0x58] sm:$0xff] %vm651, %v642
      %664 = vst.msk [vmem:[%s247 + $0x60] sm:$0xff] %vm651, %v644
      %665 = vst.msk [vmem:[%s247 + $0x68] sm:$0xff] %vm651, %v646
      %666 = vst.msk [vmem:[%s247 + $0x70] sm:$0xff] %vm651, %v648
      %667 = vst.msk [vmem:[%s247 + $0x78] sm:$0xff] %vm651, %v650
      %684 = vrot.lane.b32.xlu0 %v490, 124
      %v685 = vpop.permute.xlu0 %684
      %686 = vrot.lane.b32.xlu0 %v491, 124
      %v687 = vpop.permute.xlu0 %686
      %688 = vrot.lane.b32.xlu0 %v492, 124
      %v689 = vpop.permute.xlu0 %688
      %690 = vrot.lane.b32.xlu0 %v493, 124
      %v691 = vpop.permute.xlu0 %690
      %692 = vrot.lane.b32.xlu0 %v494, 124
      %v693 = vpop.permute.xlu0 %692
      %694 = vrot.lane.b32.xlu0 %v495, 124
      %v695 = vpop.permute.xlu0 %694
      %696 = vrot.lane.b32.xlu0 %v496, 124
      %v697 = vpop.permute.xlu0 %696
      %698 = vrot.lane.b32.xlu0 %v497, 124
      %v699 = vpop.permute.xlu0 %698
      %700 = vrot.lane.b32.xlu0 %v498, 124
      %v701 = vpop.permute.xlu0 %700
      %702 = vrot.lane.b32.xlu0 %v499, 124
      %v703 = vpop.permute.xlu0 %702
      %704 = vrot.lane.b32.xlu0 %v500, 124
      %v705 = vpop.permute.xlu0 %704
      %706 = vrot.lane.b32.xlu0 %v501, 124
      %v707 = vpop.permute.xlu0 %706
      %708 = vrot.lane.b32.xlu0 %v502, 124
      %v709 = vpop.permute.xlu0 %708
      %710 = vrot.lane.b32.xlu0 %v503, 124
      %v711 = vpop.permute.xlu0 %710
      %712 = vrot.lane.b32.xlu0 %v504, 124
      %v713 = vpop.permute.xlu0 %712
      %714 = vrot.lane.b32.xlu0 %v505, 124
      %v715 = vpop.permute.xlu0 %714
      %v732 = vsel %vm586, %v685, %v506
      %v733 = vsel %vm586, %v687, %v507
      %v734 = vsel %vm586, %v689, %v508
      %v735 = vsel %vm586, %v691, %v509
      %v736 = vsel %vm586, %v693, %v510
      %v737 = vsel %vm586, %v695, %v511
      %v738 = vsel %vm586, %v697, %v512
      %v739 = vsel %vm586, %v699, %v513
      %v740 = vsel %vm586, %v701, %v514
      %v741 = vsel %vm586, %v703, %v515
      %v742 = vsel %vm586, %v705, %v516
      %v743 = vsel %vm586, %v707, %v517
      %v744 = vsel %vm586, %v709, %v518
      %v745 = vsel %vm586, %v711, %v519
      %v746 = vsel %vm586, %v713, %v520
      %v747 = vsel %vm586, %v715, %v521
      %v748 = vsub.f32 0.0, %v732
      %v749 = vsub.f32 0.0, %v733
      %v750 = vsub.f32 0.0, %v734
      %v751 = vsub.f32 0.0, %v735
      %v752 = vsub.f32 0.0, %v736
      %v753 = vsub.f32 0.0, %v737
      %v754 = vsub.f32 0.0, %v738
      %v755 = vsub.f32 0.0, %v739
      %v756 = vsub.f32 0.0, %v740
      %v757 = vsub.f32 0.0, %v741
      %v758 = vsub.f32 0.0, %v742
      %v759 = vsub.f32 0.0, %v743
      %v760 = vsub.f32 0.0, %v744
      %v761 = vsub.f32 0.0, %v745
      %v762 = vsub.f32 0.0, %v746
      %v763 = vsub.f32 0.0, %v747
      %v764 = vmul.f32 %v748, 1.442695
      %v765 = vpow.pop %v764
      %v766 = vmul.f32 %v749, 1.442695
      %v767 = vpow.pop %v766
      %v768 = vmul.f32 %v750, 1.442695
      %v769 = vpow.pop %v768
      %v770 = vmul.f32 %v751, 1.442695
      %v771 = vpow.pop %v770
      %v772 = vmul.f32 %v752, 1.442695
      %v773 = vpow.pop %v772
      %v774 = vmul.f32 %v753, 1.442695
      %v775 = vpow.pop %v774
      %v776 = vmul.f32 %v754, 1.442695
      %v777 = vpow.pop %v776
      %v778 = vmul.f32 %v755, 1.442695
      %v779 = vpow.pop %v778
      %v780 = vmul.f32 %v756, 1.442695
      %v781 = vpow.pop %v780
      %v782 = vmul.f32 %v757, 1.442695
      %v783 = vpow.pop %v782
      %v784 = vmul.f32 %v758, 1.442695
      %v785 = vpow.pop %v784
      %v786 = vmul.f32 %v759, 1.442695
      %v787 = vpow.pop %v786
      %v788 = vmul.f32 %v760, 1.442695
      %v789 = vpow.pop %v788
      %v790 = vmul.f32 %v761, 1.442695
      %v791 = vpow.pop %v790
      %v792 = vmul.f32 %v762, 1.442695
      %v793 = vpow.pop %v792
      %v794 = vmul.f32 %v763, 1.442695
      %v795 = vpow.pop %v794
      %796 = vst.msk [vmem:[%s253] sm:$0xff] %vm651, %v765
      %797 = vst.msk [vmem:[%s253 + $0x8] sm:$0xff] %vm651, %v767
      %798 = vst.msk [vmem:[%s253 + $0x10] sm:$0xff] %vm651, %v769
      %799 = vst.msk [vmem:[%s253 + $0x18] sm:$0xff] %vm651, %v771
      %800 = vst.msk [vmem:[%s253 + $0x20] sm:$0xff] %vm651, %v773
      %801 = vst.msk [vmem:[%s253 + $0x28] sm:$0xff] %vm651, %v775
      %802 = vst.msk [vmem:[%s253 + $0x30] sm:$0xff] %vm651, %v777
      %803 = vst.msk [vmem:[%s253 + $0x38] sm:$0xff] %vm651, %v779
      %804 = vst.msk [vmem:[%s253 + $0x40] sm:$0xff] %vm651, %v781
      %805 = vst.msk [vmem:[%s253 + $0x48] sm:$0xff] %vm651, %v783
      %806 = vst.msk [vmem:[%s253 + $0x50] sm:$0xff] %vm651, %v785
      %807 = vst.msk [vmem:[%s253 + $0x58] sm:$0xff] %vm651, %v787
      %808 = vst.msk [vmem:[%s253 + $0x60] sm:$0xff] %vm651, %v789
      %809 = vst.msk [vmem:[%s253 + $0x68] sm:$0xff] %vm651, %v791
      %810 = vst.msk [vmem:[%s253 + $0x70] sm:$0xff] %vm651, %v793
      %811 = vst.msk [vmem:[%s253 + $0x78] sm:$0xff] %vm651, %v795
      %v812 = vlaneseq
      %v813 = vand.u32 %v812, 127
      %vm814 = vcmp.eq.s32.totalorder %v813, 32
      %v815 = vsel %vm814, 1, 0
      %v816 = vcvt.s32.f32 %v815
      %v817 = vadd.f32 %v346, %v816
      %v818 = vadd.f32 %v349, %v816
      %v819 = vadd.f32 %v352, %v816
      %v820 = vadd.f32 %v355, %v816
      %v821 = vadd.f32 %v358, %v816
      %v822 = vadd.f32 %v361, %v816
      %v823 = vadd.f32 %v364, %v816
      %v824 = vadd.f32 %v367, %v816
      %v825 = vadd.f32 %v370, %v816
      %v826 = vadd.f32 %v373, %v816
      %v827 = vadd.f32 %v376, %v816
      %v828 = vadd.f32 %v379, %v816
      %v829 = vadd.f32 %v382, %v816
      %v830 = vadd.f32 %v385, %v816
      %v831 = vadd.f32 %v388, %v816
      %v832 = vadd.f32 %v391, %v816
      %v833 = vpack.c.bf16 %v817, %v817
      %v834 = vpack.c.bf16 %v818, %v818
      %v835 = vpack.c.bf16 %v819, %v819
      %v836 = vpack.c.bf16 %v820, %v820
      %v837 = vpack.c.bf16 %v821, %v821
      %v838 = vpack.c.bf16 %v822, %v822
      %v839 = vpack.c.bf16 %v823, %v823
      %v840 = vpack.c.bf16 %v824, %v824
      %v841 = vpack.c.bf16 %v825, %v825
      %v842 = vpack.c.bf16 %v826, %v826
      %v843 = vpack.c.bf16 %v827, %v827
      %v844 = vpack.c.bf16 %v828, %v828
      %v845 = vpack.c.bf16 %v829, %v829
      %v846 = vpack.c.bf16 %v830, %v830
      %v847 = vpack.c.bf16 %v831, %v831
      %v848 = vpack.c.bf16 %v832, %v832
      %849 = vst [vmem:[%s241] sm:$0xf] %v833
      %850 = vst [vmem:[%s241 + $0x4] sm:$0xf] %v834
      %851 = vst [vmem:[%s241 + $0x8] sm:$0xf] %v835
      %852 = vst [vmem:[%s241 + $0xc] sm:$0xf] %v836
      %853 = vst [vmem:[%s241 + $0x10] sm:$0xf] %v837
      %854 = vst [vmem:[%s241 + $0x14] sm:$0xf] %v838
      %855 = vst [vmem:[%s241 + $0x18] sm:$0xf] %v839
      %856 = vst [vmem:[%s241 + $0x1c] sm:$0xf] %v840
      %857 = vst [vmem:[%s241 + $0x20] sm:$0xf] %v841
      %858 = vst [vmem:[%s241 + $0x24] sm:$0xf] %v842
      %859 = vst [vmem:[%s241 + $0x28] sm:$0xf] %v843
      %860 = vst [vmem:[%s241 + $0x2c] sm:$0xf] %v844
      %861 = vst [vmem:[%s241 + $0x30] sm:$0xf] %v845
      %862 = vst [vmem:[%s241 + $0x34] sm:$0xf] %v846
      %863 = vst [vmem:[%s241 + $0x38] sm:$0xf] %v847
      %864 = vst [vmem:[%s241 + $0x3c] sm:$0xf] %v848
      %s865 = smul.u32 16, %s17
      %p866 = scmp.lt.s32.totalorder %s865, 31
      %s867 = scalar_select %p866, %s865, 31
      %s868 = smul.addr %s867, 4
      %s869 = scalar_lea.vmem %s3, %s868
      %s870 = smul.u32 16, %s17
      %p871 = scmp.lt.s32.totalorder %s870, 31
      %s872 = scalar_select %p871, %s870, 31
      %s873 = smul.addr %s872, 8
      %s874 = scalar_lea.vmem %s4, %s873
      %s875 = smul.u32 16, %s17
      %p876 = scmp.lt.s32.totalorder %s875, 31
      %s877 = scalar_select %p876, %s875, 31
      %s878 = smul.addr %s877, 8
      %s879 = scalar_lea.vmem %s5, %s878
      // Predicated region
      $region33: #{spgat_forward.4} parent=31 // pred_check
        %p880 = pneg %p103
      $region34: #{spgat_forward.4} parent=31 // pred_check_branch
        %882 = sbr.rel (%p880) target = $region36
      $region35: #{spgat_forward.4} parent=31 // pred_region
        %s883 = smul.u32 16, %s17
      $region36: #{spgat_forward.4} parent=31 // pred_fallthru
        _
      // Predicated region
      $region37: #{spgat_forward.4} parent=31 // pred_check
        %p884 = pneg %p129
      $region38: #{spgat_forward.4} parent=31 // pred_check_branch
        %886 = sbr.rel (%p884) target = $region40
      $region39: #{spgat_forward.4} parent=31 // pred_region
        %s887 = smul.u32 16, %s17
      $region40: #{spgat_forward.4} parent=31 // pred_fallthru
        _
      // Predicated region
      $region41: #{spgat_forward.4} parent=31 // pred_check
        %p888 = pneg %p155
      $region42: #{spgat_forward.4} parent=31 // pred_check_branch
        %890 = sbr.rel (%p888) target = $region44
      $region43: #{spgat_forward.4} parent=31 // pred_region
        %s891 = smul.u32 16, %s17
      $region44: #{spgat_forward.4} parent=31 // pred_fallthru
        _
    $region32: #{spgat_forward.4} parent=5 // pred_fallthru
      _
    %p892 = scmp.le.s32.totalorder 2, %s12
    // Predicated region
    $region45: #{spgat_forward.4} parent=5 // pred_check
      %p893 = pneg %p892
    $region46: #{spgat_forward.4} parent=5 // pred_check_branch
      %895 = sbr.rel (%p893) target = $region48
    $region47: #{spgat_forward.4} parent=5 // pred_region
      %s896 = ssub.s32 %s12, 2
      // Predicated region
      $region49: #{spgat_forward.4} parent=47 // pred_check
        %p897 = pneg %p109
      $region50: #{spgat_forward.4} parent=47 // pred_check_branch
        %899 = sbr.rel (%p897) target = $region52
      $region51: #{spgat_forward.4} parent=47 // pred_region
        %s900 = smul.u32 16, %s18
        %p901 = scmp.lt.s32.totalorder %s900, 31
        %s902 = scalar_select %p901, %s900, 31
        %s903 = smul.addr %s902, 4
        %s904 = scalar_lea.vmem %s3, %s903
      $region52: #{spgat_forward.4} parent=47 // pred_fallthru
        _
      // Predicated region
      $region53: #{spgat_forward.4} parent=47 // pred_check
        %p905 = pneg %p135
      $region54: #{spgat_forward.4} parent=47 // pred_check_branch
        %907 = sbr.rel (%p905) target = $region56
      $region55: #{spgat_forward.4} parent=47 // pred_region
        %s908 = smul.u32 16, %s18
        %p909 = scmp.lt.s32.totalorder %s908, 31
        %s910 = scalar_select %p909, %s908, 31
        %s911 = smul.addr %s910, 8
        %s912 = scalar_lea.vmem %s4, %s911
      $region56: #{spgat_forward.4} parent=47 // pred_fallthru
        _
      // Predicated region
      $region57: #{spgat_forward.4} parent=47 // pred_check
        %p913 = pneg %p161
      $region58: #{spgat_forward.4} parent=47 // pred_check_branch
        %915 = sbr.rel (%p913) target = $region60
      $region59: #{spgat_forward.4} parent=47 // pred_region
        %s916 = smul.u32 16, %s18
        %p917 = scmp.lt.s32.totalorder %s916, 31
        %s918 = scalar_select %p917, %s916, 31
        %s919 = smul.addr %s918, 8
        %s920 = scalar_lea.vmem %s5, %s919
      $region60: #{spgat_forward.4} parent=47 // pred_fallthru
        _
    $region48: #{spgat_forward.4} parent=5 // pred_fallthru
      _
  $region6: #{spgat_forward.4} parent=0 // loop_footer
    %s16 = sadd.s32 1, %s12
  $region7: #{spgat_forward.4} parent=0 // loop_footer_branch
    %11 = sbr.rel target = $region3
  $region8: #{spgat_forward.4} parent=0 // loop_exit
    _

// kernel: spgat_forward.6
$region0: #{spgat_forward.6}
  #allocation0 [shape = 'u32[]', space=smem, size = 0x4, offset = 0x4, fixed_abs, tag = 'smem constant byte address 0x4 - core index']
  #allocation1 [shape = 'u32[72,128]{1,0:T(1,128)}', space=vmem, size = 0x9000, scoped, tag = 'internal scratch']
  %s0 = inlined_call_operand.vmem [shape: f32[256,128], index: 0, kind: input, shape index: {}]
  %s1 = inlined_call_operand.vmem [shape: f32[128,128], index: 1, kind: input, shape index: {}]
  %s2 = inlined_call_operand.vmem [shape: f32[128,2], index: 2, kind: input, shape index: {}]
  %s3 = inlined_call_operand.vmem [shape: bf16[256,128], index: 3, kind: output, shape index: {0}]
  %s4 = inlined_call_operand.vmem [shape: f32[256,2], index: 4, kind: output, shape index: {1}]
  %s5 = inlined_call_operand.vmem [shape: f32[256,2], index: 5, kind: output, shape index: {2}]
  %6 = xla_tuple %s3, %s4, %s5
  %s7 = sld [smem:[#allocation0]]
  $region61: #{spgat_forward.6} parent=0
    _
  %s9 = ssub.s32 1, %s7
  %s10 = scalar_select 0, %s9, %s7
  loop: start=0, step=1, limit=4
  $region2: #{spgat_forward.6} parent=0 // loop_pre_header
    _
  $region3: #{spgat_forward.6} parent=0 // loop_header
    %s12 = sphi 0, %s16
    %p13 = scmp.ge.s32.totalorder %s12, 4
    %s22 = sphi 0, %s24
    %s25 = sphi 0, %s22
    %s26 = sphi 0, %s25
    %s42 = sphi 0, %s26
    %s46 = sphi 0, %s46
    %s48 = sphi 0, %s46
    %s49 = sphi 0, %s48
    %s63 = sphi 0, %s49
    %s67 = sphi 0, %s67
    %s69 = sphi 0, %s67
    %s70 = sphi 0, %s69
    %s84 = sphi 0, %s70
    %s90 = sphi 0, %s92
    %s93 = sphi 0, %s90
    %s94 = sphi 0, %s93
    %s110 = sphi 0, %s94
    %s116 = sphi 0, %s118
    %s119 = sphi 0, %s116
    %s120 = sphi 0, %s119
    %s136 = sphi 0, %s120
    %s142 = sphi 0, %s144
    %s145 = sphi 0, %s142
    %s146 = sphi 0, %s145
    %s162 = sphi 0, %s146
  $region4: #{spgat_forward.6} parent=0 // loop_header_branch
    %15 = sbr.rel (%p13) target = $region8
  $region5: #{spgat_forward.6} parent=0 // loop_body
    %s17 = ssub.s32 %s12, 1
    %s18 = ssub.s32 %s12, 2
    %s19 = sadd.s32 %s12, 1
    %s20 = ssub.s32 %s12, %s19
    %p21 = scmp.eq.s32.totalorder %s20, 0
    %s23 = sadd.s32 %s22, 1
    %s24 = scalar_select %p21, %s22, %s23
    %p27 = pneg %p21
    %p28 = scmp.eq.s32.totalorder %s12, 1
    %p29 = por %p27, %p28
    %p30 = scmp.ne.s32.totalorder %s22, %s25
    %p31 = scmp.eq.s32.totalorder %s12, 0
    %p32 = por %p30, %p31
    %p33 = scmp.ne.s32.totalorder %s22, %s25
    %p34 = scmp.eq.s32.totalorder %s17, 1
    %p35 = por %p33, %p34
    %p36 = scmp.ne.s32.totalorder %s25, %s26
    %p37 = scmp.eq.s32.totalorder %s17, 0
    %p38 = por %p36, %p37
    %p39 = scmp.ne.s32.totalorder %s25, %s26
    %p40 = scmp.eq.s32.totalorder %s18, 1
    %p41 = por %p39, %p40
    %p43 = scmp.ne.s32.totalorder %s26, %s42
    %p44 = scmp.eq.s32.totalorder %s18, 0
    %p45 = por %p43, %p44
    %s47 = sadd.s32 %s46, 1
    %p50 = scmp.eq.s32.totalorder %s12, 1
    %p51 = scmp.ne.s32.totalorder %s46, %s48
    %p52 = scmp.eq.s32.totalorder %s12, 0
    %p53 = por %p51, %p52
    %p54 = scmp.ne.s32.totalorder %s46, %s48
    %p55 = scmp.eq.s32.totalorder %s17, 1
    %p56 = por %p54, %p55
    %p57 = scmp.ne.s32.totalorder %s48, %s49
    %p58 = scmp.eq.s32.totalorder %s17, 0
    %p59 = por %p57, %p58
    %p60 = scmp.ne.s32.totalorder %s48, %s49
    %p61 = scmp.eq.s32.totalorder %s18, 1
    %p62 = por %p60, %p61
    %p64 = scmp.ne.s32.totalorder %s49, %s63
    %p65 = scmp.eq.s32.totalorder %s18, 0
    %p66 = por %p64, %p65
    %s68 = sadd.s32 %s67, 1
    %p71 = scmp.eq.s32.totalorder %s12, 1
    %p72 = scmp.ne.s32.totalorder %s67, %s69
    %p73 = scmp.eq.s32.totalorder %s12, 0
    %p74 = por %p72, %p73
    %p75 = scmp.ne.s32.totalorder %s67, %s69
    %p76 = scmp.eq.s32.totalorder %s17, 1
    %p77 = por %p75, %p76
    %p78 = scmp.ne.s32.totalorder %s69, %s70
    %p79 = scmp.eq.s32.totalorder %s17, 0
    %p80 = por %p78, %p79
    %p81 = scmp.ne.s32.totalorder %s69, %s70
    %p82 = scmp.eq.s32.totalorder %s18, 1
    %p83 = por %p81, %p82
    %p85 = scmp.ne.s32.totalorder %s70, %s84
    %p86 = scmp.eq.s32.totalorder %s18, 0
    %p87 = por %p85, %p86
    %s88 = ssub.s32 %s12, %s19
    %p89 = scmp.eq.s32.totalorder %s88, 0
    %s91 = sadd.s32 %s90, 1
    %s92 = scalar_select %p89, %s90, %s91
    %p95 = pneg %p89
    %p96 = scmp.eq.s32.totalorder %s12, 1
    %p97 = por %p95, %p96
    %p98 = scmp.ne.s32.totalorder %s90, %s93
    %p99 = scmp.eq.s32.totalorder %s12, 0
    %p100 = por %p98, %p99
    %p101 = scmp.ne.s32.totalorder %s90, %s93
    %p102 = scmp.eq.s32.totalorder %s17, 1
    %p103 = por %p101, %p102
    %p104 = scmp.ne.s32.totalorder %s93, %s94
    %p105 = scmp.eq.s32.totalorder %s17, 0
    %p106 = por %p104, %p105
    %p107 = scmp.ne.s32.totalorder %s93, %s94
    %p108 = scmp.eq.s32.totalorder %s18, 1
    %p109 = por %p107, %p108
    %p111 = scmp.ne.s32.totalorder %s94, %s110
    %p112 = scmp.eq.s32.totalorder %s18, 0
    %p113 = por %p111, %p112
    %s114 = ssub.s32 %s12, %s19
    %p115 = scmp.eq.s32.totalorder %s114, 0
    %s117 = sadd.s32 %s116, 1
    %s118 = scalar_select %p115, %s116, %s117
    %p121 = pneg %p115
    %p122 = scmp.eq.s32.totalorder %s12, 1
    %p123 = por %p121, %p122
    %p124 = scmp.ne.s32.totalorder %s116, %s119
    %p125 = scmp.eq.s32.totalorder %s12, 0
    %p126 = por %p124, %p125
    %p127 = scmp.ne.s32.totalorder %s116, %s119
    %p128 = scmp.eq.s32.totalorder %s17, 1
    %p129 = por %p127, %p128
    %p130 = scmp.ne.s32.totalorder %s119, %s120
    %p131 = scmp.eq.s32.totalorder %s17, 0
    %p132 = por %p130, %p131
    %p133 = scmp.ne.s32.totalorder %s119, %s120
    %p134 = scmp.eq.s32.totalorder %s18, 1
    %p135 = por %p133, %p134
    %p137 = scmp.ne.s32.totalorder %s120, %s136
    %p138 = scmp.eq.s32.totalorder %s18, 0
    %p139 = por %p137, %p138
    %s140 = ssub.s32 %s12, %s19
    %p141 = scmp.eq.s32.totalorder %s140, 0
    %s143 = sadd.s32 %s142, 1
    %s144 = scalar_select %p141, %s142, %s143
    %p147 = pneg %p141
    %p148 = scmp.eq.s32.totalorder %s12, 1
    %p149 = por %p147, %p148
    %p150 = scmp.ne.s32.totalorder %s142, %s145
    %p151 = scmp.eq.s32.totalorder %s12, 0
    %p152 = por %p150, %p151
    %p153 = scmp.ne.s32.totalorder %s142, %s145
    %p154 = scmp.eq.s32.totalorder %s17, 1
    %p155 = por %p153, %p154
    %p156 = scmp.ne.s32.totalorder %s145, %s146
    %p157 = scmp.eq.s32.totalorder %s17, 0
    %p158 = por %p156, %p157
    %p159 = scmp.ne.s32.totalorder %s145, %s146
    %p160 = scmp.eq.s32.totalorder %s18, 1
    %p161 = por %p159, %p160
    %p163 = scmp.ne.s32.totalorder %s146, %s162
    %p164 = scmp.eq.s32.totalorder %s18, 0
    %p165 = por %p163, %p164
    %p166 = scmp.le.s32.totalorder 1, %s12
    %p167 = scmp.lt.s32.totalorder %s12, 3
    %p168 = pnand %p166, %p167
    %p169 = pneg %p168
    // Predicated region
    $region9: #{spgat_forward.6} parent=5 // pred_check
      _
    $region10: #{spgat_forward.6} parent=5 // pred_check_branch
      %171 = sbr.rel (%p168) target = $region12
    $region11: #{spgat_forward.6} parent=5 // pred_region
      %s172 = ssub.s32 %s12, 1
      // Predicated region
      $region13: #{spgat_forward.6} parent=11 // pred_check
        %p173 = pneg %p59
      $region14: #{spgat_forward.6} parent=11 // pred_check_branch
        %175 = sbr.rel (%p173) target = $region16
      $region15: #{spgat_forward.6} parent=11 // pred_region
        _
      $region16: #{spgat_forward.6} parent=11 // pred_fallthru
        _
      // Predicated region
      $region17: #{spgat_forward.6} parent=11 // pred_check
        %p176 = pneg %p80
      $region18: #{spgat_forward.6} parent=11 // pred_check_branch
        %178 = sbr.rel (%p176) target = $region20
      $region19: #{spgat_forward.6} parent=11 // pred_region
        _
      $region20: #{spgat_forward.6} parent=11 // pred_fallthru
        _
    $region12: #{spgat_forward.6} parent=5 // pred_fallthru
      _
    %p179 = scmp.lt.s32.totalorder %s12, 2
    // Predicated region
    $region21: #{spgat_forward.6} parent=5 // pred_check
      %p180 = pneg %p179
    $region22: #{spgat_forward.6} parent=5 // pred_check_branch
      %182 = sbr.rel (%p180) target = $region24
    $region23: #{spgat_forward.6} parent=5 // pred_region
      // Predicated region
      $region25: #{spgat_forward.6} parent=23 // pred_check
        %p183 = pneg %p32
      $region26: #{spgat_forward.6} parent=23 // pred_check_branch
        %185 = sbr.rel (%p183) target = $region28
      $region27: #{spgat_forward.6} parent=23 // pred_region
        %s186 = smul.u32 16, %s12
        %p187 = scmp.lt.s32.totalorder %s186, 31
        %s188 = scalar_select %p187, %s186, 31
        %s189 = smul.addr %s188, 8
        %s190 = scalar_lea.vmem %s0, %s189
        %s191 = smul.u32 16, %s12
      $region28: #{spgat_forward.6} parent=23 // pred_fallthru
        _
    $region24: #{spgat_forward.6} parent=5 // pred_fallthru
      _
    %p192 = scmp.le.s32.totalorder 1, %s12
    %p193 = scmp.lt.s32.totalorder %s12, 3
    %p194 = pnand %p192, %p193
    %p195 = pneg %p194
    // Predicated region
    $region29: #{spgat_forward.6} parent=5 // pred_check
      _
    $region30: #{spgat_forward.6} parent=5 // pred_check_branch
      %197 = sbr.rel (%p194) target = $region32
    $region31: #{spgat_forward.6} parent=5 // pred_region
      %s198 = ssub.s32 %s12, 1
      %s199 = smul.u32 16, %s17
      %p200 = scmp.lt.s32.totalorder %s199, 31
      %s201 = scalar_select %p200, %s199, 31
      %s202 = smul.addr %s201, 8
      %s203 = scalar_lea.vmem %s0, %s202
      %p204 = pneg %p38
      %p205 = pneg %p35
      %p206 = pneg %p59
      %p207 = pneg %p56
      %p208 = pneg %p80
      %p209 = pneg %p77
      %p210 = pneg %p106
      %p211 = pneg %p103
      %s212 = smul.u32 16, %s17
      %p213 = scmp.lt.s32.totalorder %s212, 31
      %s214 = scalar_select %p213, %s212, 31
      %s215 = smul.addr %s214, 4
      %s216 = scalar_lea.vmem %s3, %s215
      %p217 = pneg %p132
      %p218 = pneg %p129
      %s219 = smul.u32 16, %s17
      %p220 = scmp.lt.s32.totalorder %s219, 31
      %s221 = scalar_select %p220, %s219, 31
      %s222 = smul.addr %s221, 8
      %s223 = scalar_lea.vmem %s4, %s222
      %p224 = pneg %p158
      %p225 = pneg %p155
      %s226 = smul.u32 16, %s17
      %p227 = scmp.lt.s32.totalorder %s226, 31
      %s228 = scalar_select %p227, %s226, 31
      %s229 = smul.addr %s228, 8
      %s230 = scalar_lea.vmem %s5, %s229
      %s231 = smul.u32 16, %s17
      %p232 = scmp.lt.s32.totalorder %s231, 31
      %s233 = scalar_select %p232, %s231, 31
      %s234 = smul.addr %s233, 8
      %s235 = scalar_lea.vmem %s0, %s234
      %s236 = smul.u32 16, %s17
      %s237 = smul.u32 16, %s17
      %p238 = scmp.lt.s32.totalorder %s237, 31
      %s239 = scalar_select %p238, %s237, 31
      %s240 = smul.addr %s239, 4
      %s241 = scalar_lea.vmem %s3, %s240
      %s242 = smul.u32 16, %s17
      %s243 = smul.u32 16, %s17
      %p244 = scmp.lt.s32.totalorder %s243, 31
      %s245 = scalar_select %p244, %s243, 31
      %s246 = smul.addr %s245, 8
      %s247 = scalar_lea.vmem %s4, %s246
      %s248 = smul.u32 16, %s17
      %s249 = smul.u32 16, %s17
      %p250 = scmp.lt.s32.totalorder %s249, 31
      %s251 = scalar_select %p250, %s249, 31
      %s252 = smul.addr %s251, 8
      %s253 = scalar_lea.vmem %s5, %s252
      %s254 = smul.u32 16, %s17
      %v255 = vld [vmem:[%s235] sm:$0xff]
      %v256 = vld [vmem:[%s235 + $0x8] sm:$0xff]
      %v257 = vld [vmem:[%s235 + $0x10] sm:$0xff]
      %v258 = vld [vmem:[%s235 + $0x18] sm:$0xff]
      %v259 = vld [vmem:[%s235 + $0x20] sm:$0xff]
      %v260 = vld [vmem:[%s235 + $0x28] sm:$0xff]
      %v261 = vld [vmem:[%s235 + $0x30] sm:$0xff]
      %v262 = vld [vmem:[%s235 + $0x38] sm:$0xff]
      %v263 = vld [vmem:[%s235 + $0x40] sm:$0xff]
      %v264 = vld [vmem:[%s235 + $0x48] sm:$0xff]
      %v265 = vld [vmem:[%s235 + $0x50] sm:$0xff]
      %v266 = vld [vmem:[%s235 + $0x58] sm:$0xff]
      %v267 = vld [vmem:[%s235 + $0x60] sm:$0xff]
      %v268 = vld [vmem:[%s235 + $0x68] sm:$0xff]
      %v269 = vld [vmem:[%s235 + $0x70] sm:$0xff]
      %v270 = vld [vmem:[%s235 + $0x78] sm:$0xff]
      %v271 = vld [vmem:[%s1] sm:$0xff]
      %v272 = vld [vmem:[%s1 + $0x8] sm:$0xff]
      %v273 = vld [vmem:[%s1 + $0x10] sm:$0xff]
      %v274 = vld [vmem:[%s1 + $0x18] sm:$0xff]
      %v275 = vld [vmem:[%s1 + $0x20] sm:$0xff]
      %v276 = vld [vmem:[%s1 + $0x28] sm:$0xff]
      %v277 = vld [vmem:[%s1 + $0x30] sm:$0xff]
      %v278 = vld [vmem:[%s1 + $0x38] sm:$0xff]
      %v279 = vld [vmem:[%s1 + $0x40] sm:$0xff]
      %v280 = vld [vmem:[%s1 + $0x48] sm:$0xff]
      %v281 = vld [vmem:[%s1 + $0x50] sm:$0xff]
      %v282 = vld [vmem:[%s1 + $0x58] sm:$0xff]
      %v283 = vld [vmem:[%s1 + $0x60] sm:$0xff]
      %v284 = vld [vmem:[%s1 + $0x68] sm:$0xff]
      %v285 = vld [vmem:[%s1 + $0x70] sm:$0xff]
      %v286 = vld [vmem:[%s1 + $0x78] sm:$0xff]
      %287 = vmatpush.msra.mxu0 %v286
      %288 = vmatpush.msra.mxu0 %v285
      %289 = vmatpush.msra.mxu0 %v284
      %290 = vmatpush.msra.mxu0 %v283
      %291 = vmatpush.msra.mxu0 %v282
      %292 = vmatpush.msra.mxu0 %v281
      %293 = vmatpush.msra.mxu0 %v280
      %294 = vmatpush.msra.mxu0 %v279
      %295 = vmatpush.msra.mxu0 %v278
      %296 = vmatpush.msra.mxu0 %v277
      %297 = vmatpush.msra.mxu0 %v276
      %298 = vmatpush.msra.mxu0 %v275
      %299 = vmatpush.msra.mxu0 %v274
      %300 = vmatpush.msra.mxu0 %v273
      %301 = vmatpush.msra.mxu0 %v272
      %302 = vmatpush.msra.mxu0 %v271
      %303 = vmatmul.f32.gmra.mxu0 %v255
      %v304 = vpop.f32.mrf.mxu0
      %v305 = vadd.f32 0.0, %v304
      %306 = vmatmul.f32.gmra.mxu0 %v256
      %v307 = vpop.f32.mrf.mxu0
      %v308 = vadd.f32 0.0, %v307
      %309 = vmatmul.f32.gmra.mxu0 %v257
      %v310 = vpop.f32.mrf.mxu0
      %v311 = vadd.f32 0.0, %v310
      %312 = vmatmul.f32.gmra.mxu0 %v258
      %v313 = vpop.f32.mrf.mxu0
      %v314 = vadd.f32 0.0, %v313
      %315 = vmatmul.f32.gmra.mxu0 %v259
      %v316 = vpop.f32.mrf.mxu0
      %v317 = vadd.f32 0.0, %v316
      %318 = vmatmul.f32.gmra.mxu0 %v260
      %v319 = vpop.f32.mrf.mxu0
      %v320 = vadd.f32 0.0, %v319
      %321 = vmatmul.f32.gmra.mxu0 %v261
      %v322 = vpop.f32.mrf.mxu0
      %v323 = vadd.f32 0.0, %v322
      %324 = vmatmul.f32.gmra.mxu0 %v262
      %v325 = vpop.f32.mrf.mxu0
      %v326 = vadd.f32 0.0, %v325
      %327 = vmatmul.f32.gmra.mxu0 %v263
      %v328 = vpop.f32.mrf.mxu0
      %v329 = vadd.f32 0.0, %v328
      %330 = vmatmul.f32.gmra.mxu0 %v264
      %v331 = vpop.f32.mrf.mxu0
      %v332 = vadd.f32 0.0, %v331
      %333 = vmatmul.f32.gmra.mxu0 %v265
      %v334 = vpop.f32.mrf.mxu0
      %v335 = vadd.f32 0.0, %v334
      %336 = vmatmul.f32.gmra.mxu0 %v266
      %v337 = vpop.f32.mrf.mxu0
      %v338 = vadd.f32 0.0, %v337
      %339 = vmatmul.f32.gmra.mxu0 %v267
      %v340 = vpop.f32.mrf.mxu0
      %v341 = vadd.f32 0.0, %v340
      %342 = vmatmul.f32.gmra.mxu0 %v268
      %v343 = vpop.f32.mrf.mxu0
      %v344 = vadd.f32 0.0, %v343
      %345 = vmatmul.f32.gmra.mxu0 %v269
      %v346 = vpop.f32.mrf.mxu0
      %v347 = vadd.f32 0.0, %v346
      %348 = vmatmul.f32.gmra.mxu0 %v270
      %v349 = vpop.f32.mrf.mxu0
      %v350 = vadd.f32 0.0, %v349
      %351 = vdwg.mxu0
      %v352 = vld [vmem:[%s2] sm:$0xff]
      %v353 = vld [vmem:[%s2 + $0x8] sm:$0xff]
      %v354 = vld [vmem:[%s2 + $0x10] sm:$0xff]
      %v355 = vld [vmem:[%s2 + $0x18] sm:$0xff]
      %v356 = vld [vmem:[%s2 + $0x20] sm:$0xff]
      %v357 = vld [vmem:[%s2 + $0x28] sm:$0xff]
      %v358 = vld [vmem:[%s2 + $0x30] sm:$0xff]
      %v359 = vld [vmem:[%s2 + $0x38] sm:$0xff]
      %v360 = vld [vmem:[%s2 + $0x40] sm:$0xff]
      %v361 = vld [vmem:[%s2 + $0x48] sm:$0xff]
      %v362 = vld [vmem:[%s2 + $0x50] sm:$0xff]
      %v363 = vld [vmem:[%s2 + $0x58] sm:$0xff]
      %v364 = vld [vmem:[%s2 + $0x60] sm:$0xff]
      %v365 = vld [vmem:[%s2 + $0x68] sm:$0xff]
      %v366 = vld [vmem:[%s2 + $0x70] sm:$0xff]
      %v367 = vld [vmem:[%s2 + $0x78] sm:$0xff]
      %368 = vmatpush.msra.mxu0 %v367
      %369 = vmatpush.msra.mxu0 %v366
      %370 = vmatpush.msra.mxu0 %v365
      %371 = vmatpush.msra.mxu0 %v364
      %372 = vmatpush.msra.mxu0 %v363
      %373 = vmatpush.msra.mxu0 %v362
      %374 = vmatpush.msra.mxu0 %v361
      %375 = vmatpush.msra.mxu0 %v360
      %376 = vmatpush.msra.mxu0 %v359
      %377 = vmatpush.msra.mxu0 %v358
      %378 = vmatpush.msra.mxu0 %v357
      %379 = vmatpush.msra.mxu0 %v356
      %380 = vmatpush.msra.mxu0 %v355
      %381 = vmatpush.msra.mxu0 %v354
      %382 = vmatpush.msra.mxu0 %v353
      %383 = vmatpush.msra.mxu0 %v352
      %384 = vmatmul.f32.gmra.mxu0 %v305
      %v385 = vpop.f32.mrf.mxu0
      %v386 = vadd.f32 0.0, %v385
      %387 = vmatmul.f32.gmra.mxu0 %v308
      %v388 = vpop.f32.mrf.mxu0
      %v389 = vadd.f32 0.0, %v388
      %390 = vmatmul.f32.gmra.mxu0 %v311
      %v391 = vpop.f32.mrf.mxu0
      %v392 = vadd.f32 0.0, %v391
      %393 = vmatmul.f32.gmra.mxu0 %v314
      %v394 = vpop.f32.mrf.mxu0
      %v395 = vadd.f32 0.0, %v394
      %396 = vmatmul.f32.gmra.mxu0 %v317
      %v397 = vpop.f32.mrf.mxu0
      %v398 = vadd.f32 0.0, %v397
      %399 = vmatmul.f32.gmra.mxu0 %v320
      %v400 = vpop.f32.mrf.mxu0
      %v401 = vadd.f32 0.0, %v400
      %402 = vmatmul.f32.gmra.mxu0 %v323
      %v403 = vpop.f32.mrf.mxu0
      %v404 = vadd.f32 0.0, %v403
      %405 = vmatmul.f32.gmra.mxu0 %v326
      %v406 = vpop.f32.mrf.mxu0
      %v407 = vadd.f32 0.0, %v406
      %408 = vmatmul.f32.gmra.mxu0 %v329
      %v409 = vpop.f32.mrf.mxu0
      %v410 = vadd.f32 0.0, %v409
      %411 = vmatmul.f32.gmra.mxu0 %v332
      %v412 = vpop.f32.mrf.mxu0
      %v413 = vadd.f32 0.0, %v412
      %414 = vmatmul.f32.gmra.mxu0 %v335
      %v415 = vpop.f32.mrf.mxu0
      %v416 = vadd.f32 0.0, %v415
      %417 = vmatmul.f32.gmra.mxu0 %v338
      %v418 = vpop.f32.mrf.mxu0
      %v419 = vadd.f32 0.0, %v418
      %420 = vmatmul.f32.gmra.mxu0 %v341
      %v421 = vpop.f32.mrf.mxu0
      %v422 = vadd.f32 0.0, %v421
      %423 = vmatmul.f32.gmra.mxu0 %v344
      %v424 = vpop.f32.mrf.mxu0
      %v425 = vadd.f32 0.0, %v424
      %426 = vmatmul.f32.gmra.mxu0 %v347
      %v427 = vpop.f32.mrf.mxu0
      %v428 = vadd.f32 0.0, %v427
      %429 = vmatmul.f32.gmra.mxu0 %v350
      %v430 = vpop.f32.mrf.mxu0
      %v431 = vadd.f32 0.0, %v430
      %432 = vdwg.mxu0
      %v433 = vmax.f32 %v386, -40.0
      %v434 = vmax.f32 %v389, -40.0
      %v435 = vmax.f32 %v392, -40.0
      %v436 = vmax.f32 %v395, -40.0
      %v437 = vmax.f32 %v398, -40.0
      %v438 = vmax.f32 %v401, -40.0
      %v439 = vmax.f32 %v404, -40.0
      %v440 = vmax.f32 %v407, -40.0
      %v441 = vmax.f32 %v410, -40.0
      %v442 = vmax.f32 %v413, -40.0
      %v443 = vmax.f32 %v416, -40.0
      %v444 = vmax.f32 %v419, -40.0
      %v445 = vmax.f32 %v422, -40.0
      %v446 = vmax.f32 %v425, -40.0
      %v447 = vmax.f32 %v428, -40.0
      %v448 = vmax.f32 %v431, -40.0
      %v449 = vmin.f32 %v433, 40.0
      %v450 = vmin.f32 %v434, 40.0
      %v451 = vmin.f32 %v435, 40.0
      %v452 = vmin.f32 %v436, 40.0
      %v453 = vmin.f32 %v437, 40.0
      %v454 = vmin.f32 %v438, 40.0
      %v455 = vmin.f32 %v439, 40.0
      %v456 = vmin.f32 %v440, 40.0
      %v457 = vmin.f32 %v441, 40.0
      %v458 = vmin.f32 %v442, 40.0
      %v459 = vmin.f32 %v443, 40.0
      %v460 = vmin.f32 %v444, 40.0
      %v461 = vmin.f32 %v445, 40.0
      %v462 = vmin.f32 %v446, 40.0
      %v463 = vmin.f32 %v447, 40.0
      %v464 = vmin.f32 %v448, 40.0
      %v465 = vmul.f32 %v449, 0.2
      %v466 = vmul.f32 %v450, 0.2
      %v467 = vmul.f32 %v451, 0.2
      %v468 = vmul.f32 %v452, 0.2
      %v469 = vmul.f32 %v453, 0.2
      %v470 = vmul.f32 %v454, 0.2
      %v471 = vmul.f32 %v455, 0.2
      %v472 = vmul.f32 %v456, 0.2
      %v473 = vmul.f32 %v457, 0.2
      %v474 = vmul.f32 %v458, 0.2
      %v475 = vmul.f32 %v459, 0.2
      %v476 = vmul.f32 %v460, 0.2
      %v477 = vmul.f32 %v461, 0.2
      %v478 = vmul.f32 %v462, 0.2
      %v479 = vmul.f32 %v463, 0.2
      %v480 = vmul.f32 %v464, 0.2
      %497 = vrot.lane.b32.xlu0 %v465, 1
      %v498 = vpop.permute.xlu0 %497
      %499 = vrot.lane.b32.xlu0 %v466, 1
      %v500 = vpop.permute.xlu0 %499
      %501 = vrot.lane.b32.xlu0 %v467, 1
      %v502 = vpop.permute.xlu0 %501
      %503 = vrot.lane.b32.xlu0 %v468, 1
      %v504 = vpop.permute.xlu0 %503
      %505 = vrot.lane.b32.xlu0 %v469, 1
      %v506 = vpop.permute.xlu0 %505
      %507 = vrot.lane.b32.xlu0 %v470, 1
      %v508 = vpop.permute.xlu0 %507
      %509 = vrot.lane.b32.xlu0 %v471, 1
      %v510 = vpop.permute.xlu0 %509
      %511 = vrot.lane.b32.xlu0 %v472, 1
      %v512 = vpop.permute.xlu0 %511
      %513 = vrot.lane.b32.xlu0 %v473, 1
      %v514 = vpop.permute.xlu0 %513
      %515 = vrot.lane.b32.xlu0 %v474, 1
      %v516 = vpop.permute.xlu0 %515
      %517 = vrot.lane.b32.xlu0 %v475, 1
      %v518 = vpop.permute.xlu0 %517
      %519 = vrot.lane.b32.xlu0 %v476, 1
      %v520 = vpop.permute.xlu0 %519
      %521 = vrot.lane.b32.xlu0 %v477, 1
      %v522 = vpop.permute.xlu0 %521
      %523 = vrot.lane.b32.xlu0 %v478, 1
      %v524 = vpop.permute.xlu0 %523
      %525 = vrot.lane.b32.xlu0 %v479, 1
      %v526 = vpop.permute.xlu0 %525
      %527 = vrot.lane.b32.xlu0 %v480, 1
      %v528 = vpop.permute.xlu0 %527
      %vm545 = vcmask 7168
      %v546 = vsel %vm545, %v449, %v498
      %v547 = vsel %vm545, %v450, %v500
      %v548 = vsel %vm545, %v451, %v502
      %v549 = vsel %vm545, %v452, %v504
      %v550 = vsel %vm545, %v453, %v506
      %v551 = vsel %vm545, %v454, %v508
      %v552 = vsel %vm545, %v455, %v510
      %v553 = vsel %vm545, %v456, %v512
      %v554 = vsel %vm545, %v457, %v514
      %v555 = vsel %vm545, %v458, %v516
      %v556 = vsel %vm545, %v459, %v518
      %v557 = vsel %vm545, %v460, %v520
      %v558 = vsel %vm545, %v461, %v522
      %v559 = vsel %vm545, %v462, %v524
      %v560 = vsel %vm545, %v463, %v526
      %v561 = vsel %vm545, %v464, %v528
      %v562 = vsub.f32 0.0, %v546
      %v563 = vsub.f32 0.0, %v547
      %v564 = vsub.f32 0.0, %v548
      %v565 = vsub.f32 0.0, %v549
      %v566 = vsub.f32 0.0, %v550
      %v567 = vsub.f32 0.0, %v551
      %v568 = vsub.f32 0.0, %v552
      %v569 = vsub.f32 0.0, %v553
      %v570 = vsub.f32 0.0, %v554
      %v571 = vsub.f32 0.0, %v555
      %v572 = vsub.f32 0.0, %v556
      %v573 = vsub.f32 0.0, %v557
      %v574 = vsub.f32 0.0, %v558
      %v575 = vsub.f32 0.0, %v559
      %v576 = vsub.f32 0.0, %v560
      %v577 = vsub.f32 0.0, %v561
      %v578 = vmul.f32 %v562, 1.442695
      %v579 = vpow.pop %v578
      %v580 = vmul.f32 %v563, 1.442695
      %v581 = vpow.pop %v580
      %v582 = vmul.f32 %v564, 1.442695
      %v583 = vpow.pop %v582
      %v584 = vmul.f32 %v565, 1.442695
      %v585 = vpow.pop %v584
      %v586 = vmul.f32 %v566, 1.442695
      %v587 = vpow.pop %v586
      %v588 = vmul.f32 %v567, 1.442695
      %v589 = vpow.pop %v588
      %v590 = vmul.f32 %v568, 1.442695
      %v591 = vpow.pop %v590
      %v592 = vmul.f32 %v569, 1.442695
      %v593 = vpow.pop %v592
      %v594 = vmul.f32 %v570, 1.442695
      %v595 = vpow.pop %v594
      %v596 = vmul.f32 %v571, 1.442695
      %v597 = vpow.pop %v596
      %v598 = vmul.f32 %v572, 1.442695
      %v599 = vpow.pop %v598
      %v600 = vmul.f32 %v573, 1.442695
      %v601 = vpow.pop %v600
      %v602 = vmul.f32 %v574, 1.442695
      %v603 = vpow.pop %v602
      %v604 = vmul.f32 %v575, 1.442695
      %v605 = vpow.pop %v604
      %v606 = vmul.f32 %v576, 1.442695
      %v607 = vpow.pop %v606
      %v608 = vmul.f32 %v577, 1.442695
      %v609 = vpow.pop %v608
      %vm610 = vcmask 15360
      %611 = vst.msk [vmem:[%s247] sm:$0xff] %vm610, %v579
      %612 = vst.msk [vmem:[%s247 + $0x8] sm:$0xff] %vm610, %v581
      %613 = vst.msk [vmem:[%s247 + $0x10] sm:$0xff] %vm610, %v583
      %614 = vst.msk [vmem:[%s247 + $0x18] sm:$0xff] %vm610, %v585
      %615 = vst.msk [vmem:[%s247 + $0x20] sm:$0xff] %vm610, %v587
      %616 = vst.msk [vmem:[%s247 + $0x28] sm:$0xff] %vm610, %v589
      %617 = vst.msk [vmem:[%s247 + $0x30] sm:$0xff] %vm610, %v591
      %618 = vst.msk [vmem:[%s247 + $0x38] sm:$0xff] %vm610, %v593
      %619 = vst.msk [vmem:[%s247 + $0x40] sm:$0xff] %vm610, %v595
      %620 = vst.msk [vmem:[%s247 + $0x48] sm:$0xff] %vm610, %v597
      %621 = vst.msk [vmem:[%s247 + $0x50] sm:$0xff] %vm610, %v599
      %622 = vst.msk [vmem:[%s247 + $0x58] sm:$0xff] %vm610, %v601
      %623 = vst.msk [vmem:[%s247 + $0x60] sm:$0xff] %vm610, %v603
      %624 = vst.msk [vmem:[%s247 + $0x68] sm:$0xff] %vm610, %v605
      %625 = vst.msk [vmem:[%s247 + $0x70] sm:$0xff] %vm610, %v607
      %626 = vst.msk [vmem:[%s247 + $0x78] sm:$0xff] %vm610, %v609
      %643 = vrot.lane.b32.xlu0 %v449, 127
      %v644 = vpop.permute.xlu0 %643
      %645 = vrot.lane.b32.xlu0 %v450, 127
      %v646 = vpop.permute.xlu0 %645
      %647 = vrot.lane.b32.xlu0 %v451, 127
      %v648 = vpop.permute.xlu0 %647
      %649 = vrot.lane.b32.xlu0 %v452, 127
      %v650 = vpop.permute.xlu0 %649
      %651 = vrot.lane.b32.xlu0 %v453, 127
      %v652 = vpop.permute.xlu0 %651
      %653 = vrot.lane.b32.xlu0 %v454, 127
      %v654 = vpop.permute.xlu0 %653
      %655 = vrot.lane.b32.xlu0 %v455, 127
      %v656 = vpop.permute.xlu0 %655
      %657 = vrot.lane.b32.xlu0 %v456, 127
      %v658 = vpop.permute.xlu0 %657
      %659 = vrot.lane.b32.xlu0 %v457, 127
      %v660 = vpop.permute.xlu0 %659
      %661 = vrot.lane.b32.xlu0 %v458, 127
      %v662 = vpop.permute.xlu0 %661
      %663 = vrot.lane.b32.xlu0 %v459, 127
      %v664 = vpop.permute.xlu0 %663
      %665 = vrot.lane.b32.xlu0 %v460, 127
      %v666 = vpop.permute.xlu0 %665
      %667 = vrot.lane.b32.xlu0 %v461, 127
      %v668 = vpop.permute.xlu0 %667
      %669 = vrot.lane.b32.xlu0 %v462, 127
      %v670 = vpop.permute.xlu0 %669
      %671 = vrot.lane.b32.xlu0 %v463, 127
      %v672 = vpop.permute.xlu0 %671
      %673 = vrot.lane.b32.xlu0 %v464, 127
      %v674 = vpop.permute.xlu0 %673
      %v691 = vsel %vm545, %v644, %v465
      %v692 = vsel %vm545, %v646, %v466
      %v693 = vsel %vm545, %v648, %v467
      %v694 = vsel %vm545, %v650, %v468
      %v695 = vsel %vm545, %v652, %v469
      %v696 = vsel %vm545, %v654, %v470
      %v697 = vsel %vm545, %v656, %v471
      %v698 = vsel %vm545, %v658, %v472
      %v699 = vsel %vm545, %v660, %v473
      %v700 = vsel %vm545, %v662, %v474
      %v701 = vsel %vm545, %v664, %v475
      %v702 = vsel %vm545, %v666, %v476
      %v703 = vsel %vm545, %v668, %v477
      %v704 = vsel %vm545, %v670, %v478
      %v705 = vsel %vm545, %v672, %v479
      %v706 = vsel %vm545, %v674, %v480
      %v707 = vsub.f32 0.0, %v691
      %v708 = vsub.f32 0.0, %v692
      %v709 = vsub.f32 0.0, %v693
      %v710 = vsub.f32 0.0, %v694
      %v711 = vsub.f32 0.0, %v695
      %v712 = vsub.f32 0.0, %v696
      %v713 = vsub.f32 0.0, %v697
      %v714 = vsub.f32 0.0, %v698
      %v715 = vsub.f32 0.0, %v699
      %v716 = vsub.f32 0.0, %v700
      %v717 = vsub.f32 0.0, %v701
      %v718 = vsub.f32 0.0, %v702
      %v719 = vsub.f32 0.0, %v703
      %v720 = vsub.f32 0.0, %v704
      %v721 = vsub.f32 0.0, %v705
      %v722 = vsub.f32 0.0, %v706
      %v723 = vmul.f32 %v707, 1.442695
      %v724 = vpow.pop %v723
      %v725 = vmul.f32 %v708, 1.442695
      %v726 = vpow.pop %v725
      %v727 = vmul.f32 %v709, 1.442695
      %v728 = vpow.pop %v727
      %v729 = vmul.f32 %v710, 1.442695
      %v730 = vpow.pop %v729
      %v731 = vmul.f32 %v711, 1.442695
      %v732 = vpow.pop %v731
      %v733 = vmul.f32 %v712, 1.442695
      %v734 = vpow.pop %v733
      %v735 = vmul.f32 %v713, 1.442695
      %v736 = vpow.pop %v735
      %v737 = vmul.f32 %v714, 1.442695
      %v738 = vpow.pop %v737
      %v739 = vmul.f32 %v715, 1.442695
      %v740 = vpow.pop %v739
      %v741 = vmul.f32 %v716, 1.442695
      %v742 = vpow.pop %v741
      %v743 = vmul.f32 %v717, 1.442695
      %v744 = vpow.pop %v743
      %v745 = vmul.f32 %v718, 1.442695
      %v746 = vpow.pop %v745
      %v747 = vmul.f32 %v719, 1.442695
      %v748 = vpow.pop %v747
      %v749 = vmul.f32 %v720, 1.442695
      %v750 = vpow.pop %v749
      %v751 = vmul.f32 %v721, 1.442695
      %v752 = vpow.pop %v751
      %v753 = vmul.f32 %v722, 1.442695
      %v754 = vpow.pop %v753
      %755 = vst.msk [vmem:[%s253] sm:$0xff] %vm610, %v724
      %756 = vst.msk [vmem:[%s253 + $0x8] sm:$0xff] %vm610, %v726
      %757 = vst.msk [vmem:[%s253 + $0x10] sm:$0xff] %vm610, %v728
      %758 = vst.msk [vmem:[%s253 + $0x18] sm:$0xff] %vm610, %v730
      %759 = vst.msk [vmem:[%s253 + $0x20] sm:$0xff] %vm610, %v732
      %760 = vst.msk [vmem:[%s253 + $0x28] sm:$0xff] %vm610, %v734
      %761 = vst.msk [vmem:[%s253 + $0x30] sm:$0xff] %vm610, %v736
      %762 = vst.msk [vmem:[%s253 + $0x38] sm:$0xff] %vm610, %v738
      %763 = vst.msk [vmem:[%s253 + $0x40] sm:$0xff] %vm610, %v740
      %764 = vst.msk [vmem:[%s253 + $0x48] sm:$0xff] %vm610, %v742
      %765 = vst.msk [vmem:[%s253 + $0x50] sm:$0xff] %vm610, %v744
      %766 = vst.msk [vmem:[%s253 + $0x58] sm:$0xff] %vm610, %v746
      %767 = vst.msk [vmem:[%s253 + $0x60] sm:$0xff] %vm610, %v748
      %768 = vst.msk [vmem:[%s253 + $0x68] sm:$0xff] %vm610, %v750
      %769 = vst.msk [vmem:[%s253 + $0x70] sm:$0xff] %vm610, %v752
      %770 = vst.msk [vmem:[%s253 + $0x78] sm:$0xff] %vm610, %v754
      %v771 = vlaneseq
      %v772 = vand.u32 %v771, 127
      %vm773 = vcmp.eq.s32.totalorder %v772, 8
      %v774 = vsel %vm773, 1, 0
      %v775 = vcvt.s32.f32 %v774
      %v776 = vadd.f32 %v305, %v775
      %v777 = vadd.f32 %v308, %v775
      %v778 = vadd.f32 %v311, %v775
      %v779 = vadd.f32 %v314, %v775
      %v780 = vadd.f32 %v317, %v775
      %v781 = vadd.f32 %v320, %v775
      %v782 = vadd.f32 %v323, %v775
      %v783 = vadd.f32 %v326, %v775
      %v784 = vadd.f32 %v329, %v775
      %v785 = vadd.f32 %v332, %v775
      %v786 = vadd.f32 %v335, %v775
      %v787 = vadd.f32 %v338, %v775
      %v788 = vadd.f32 %v341, %v775
      %v789 = vadd.f32 %v344, %v775
      %v790 = vadd.f32 %v347, %v775
      %v791 = vadd.f32 %v350, %v775
      %v792 = vpack.c.bf16 %v776, %v776
      %v793 = vpack.c.bf16 %v777, %v777
      %v794 = vpack.c.bf16 %v778, %v778
      %v795 = vpack.c.bf16 %v779, %v779
      %v796 = vpack.c.bf16 %v780, %v780
      %v797 = vpack.c.bf16 %v781, %v781
      %v798 = vpack.c.bf16 %v782, %v782
      %v799 = vpack.c.bf16 %v783, %v783
      %v800 = vpack.c.bf16 %v784, %v784
      %v801 = vpack.c.bf16 %v785, %v785
      %v802 = vpack.c.bf16 %v786, %v786
      %v803 = vpack.c.bf16 %v787, %v787
      %v804 = vpack.c.bf16 %v788, %v788
      %v805 = vpack.c.bf16 %v789, %v789
      %v806 = vpack.c.bf16 %v790, %v790
      %v807 = vpack.c.bf16 %v791, %v791
      %808 = vst [vmem:[%s241] sm:$0xf] %v792
      %809 = vst [vmem:[%s241 + $0x4] sm:$0xf] %v793
      %810 = vst [vmem:[%s241 + $0x8] sm:$0xf] %v794
      %811 = vst [vmem:[%s241 + $0xc] sm:$0xf] %v795
      %812 = vst [vmem:[%s241 + $0x10] sm:$0xf] %v796
      %813 = vst [vmem:[%s241 + $0x14] sm:$0xf] %v797
      %814 = vst [vmem:[%s241 + $0x18] sm:$0xf] %v798
      %815 = vst [vmem:[%s241 + $0x1c] sm:$0xf] %v799
      %816 = vst [vmem:[%s241 + $0x20] sm:$0xf] %v800
      %817 = vst [vmem:[%s241 + $0x24] sm:$0xf] %v801
      %818 = vst [vmem:[%s241 + $0x28] sm:$0xf] %v802
      %819 = vst [vmem:[%s241 + $0x2c] sm:$0xf] %v803
      %820 = vst [vmem:[%s241 + $0x30] sm:$0xf] %v804
      %821 = vst [vmem:[%s241 + $0x34] sm:$0xf] %v805
      %822 = vst [vmem:[%s241 + $0x38] sm:$0xf] %v806
      %823 = vst [vmem:[%s241 + $0x3c] sm:$0xf] %v807
      %s824 = smul.u32 16, %s17
      %p825 = scmp.lt.s32.totalorder %s824, 31
      %s826 = scalar_select %p825, %s824, 31
      %s827 = smul.addr %s826, 4
      %s828 = scalar_lea.vmem %s3, %s827
      %s829 = smul.u32 16, %s17
      %p830 = scmp.lt.s32.totalorder %s829, 31
      %s831 = scalar_select %p830, %s829, 31
      %s832 = smul.addr %s831, 8
      %s833 = scalar_lea.vmem %s4, %s832
      %s834 = smul.u32 16, %s17
      %p835 = scmp.lt.s32.totalorder %s834, 31
      %s836 = scalar_select %p835, %s834, 31
      %s837 = smul.addr %s836, 8
      %s838 = scalar_lea.vmem %s5, %s837
      // Predicated region
      $region33: #{spgat_forward.6} parent=31 // pred_check
        %p839 = pneg %p103
      $region34: #{spgat_forward.6} parent=31 // pred_check_branch
        %841 = sbr.rel (%p839) target = $region36
      $region35: #{spgat_forward.6} parent=31 // pred_region
        %s842 = smul.u32 16, %s17
      $region36: #{spgat_forward.6} parent=31 // pred_fallthru
        _
      // Predicated region
      $region37: #{spgat_forward.6} parent=31 // pred_check
        %p843 = pneg %p129
      $region38: #{spgat_forward.6} parent=31 // pred_check_branch
        %845 = sbr.rel (%p843) target = $region40
      $region39: #{spgat_forward.6} parent=31 // pred_region
        %s846 = smul.u32 16, %s17
      $region40: #{spgat_forward.6} parent=31 // pred_fallthru
        _
      // Predicated region
      $region41: #{spgat_forward.6} parent=31 // pred_check
        %p847 = pneg %p155
      $region42: #{spgat_forward.6} parent=31 // pred_check_branch
        %849 = sbr.rel (%p847) target = $region44
      $region43: #{spgat_forward.6} parent=31 // pred_region
        %s850 = smul.u32 16, %s17
      $region44: #{spgat_forward.6} parent=31 // pred_fallthru
        _
    $region32: #{spgat_forward.6} parent=5 // pred_fallthru
      _
    %p851 = scmp.le.s32.totalorder 2, %s12
    // Predicated region
    $region45: #{spgat_forward.6} parent=5 // pred_check
      %p852 = pneg %p851
    $region46: #{spgat_forward.6} parent=5 // pred_check_branch
      %854 = sbr.rel (%p852) target = $region48
    $region47: #{spgat_forward.6} parent=5 // pred_region
      %s855 = ssub.s32 %s12, 2
      // Predicated region
      $region49: #{spgat_forward.6} parent=47 // pred_check
        %p856 = pneg %p109
      $region50: #{spgat_forward.6} parent=47 // pred_check_branch
        %858 = sbr.rel (%p856) target = $region52
      $region51: #{spgat_forward.6} parent=47 // pred_region
        %s859 = smul.u32 16, %s18
        %p860 = scmp.lt.s32.totalorder %s859, 31
        %s861 = scalar_select %p860, %s859, 31
        %s862 = smul.addr %s861, 4
        %s863 = scalar_lea.vmem %s3, %s862
      $region52: #{spgat_forward.6} parent=47 // pred_fallthru
        _
      // Predicated region
      $region53: #{spgat_forward.6} parent=47 // pred_check
        %p864 = pneg %p135
      $region54: #{spgat_forward.6} parent=47 // pred_check_branch
        %866 = sbr.rel (%p864) target = $region56
      $region55: #{spgat_forward.6} parent=47 // pred_region
        %s867 = smul.u32 16, %s18
        %p868 = scmp.lt.s32.totalorder %s867, 31
        %s869 = scalar_select %p868, %s867, 31
        %s870 = smul.addr %s869, 8
        %s871 = scalar_lea.vmem %s4, %s870
      $region56: #{spgat_forward.6} parent=47 // pred_fallthru
        _
      // Predicated region
      $region57: #{spgat_forward.6} parent=47 // pred_check
        %p872 = pneg %p161
      $region58: #{spgat_forward.6} parent=47 // pred_check_branch
        %874 = sbr.rel (%p872) target = $region60
      $region59: #{spgat_forward.6} parent=47 // pred_region
        %s875 = smul.u32 16, %s18
        %p876 = scmp.lt.s32.totalorder %s875, 31
        %s877 = scalar_select %p876, %s875, 31
        %s878 = smul.addr %s877, 8
        %s879 = scalar_lea.vmem %s5, %s878
      $region60: #{spgat_forward.6} parent=47 // pred_fallthru
        _
    $region48: #{spgat_forward.6} parent=5 // pred_fallthru
      _
  $region6: #{spgat_forward.6} parent=0 // loop_footer
    %s16 = sadd.s32 1, %s12
  $region7: #{spgat_forward.6} parent=0 // loop_footer_branch
    %11 = sbr.rel target = $region3
  $region8: #{spgat_forward.6} parent=0 // loop_exit
    _

// kernel: spgat_forward.7
$region0: #{spgat_forward.7}
  #allocation0 [shape = 'u32[]', space=smem, size = 0x4, offset = 0x4, fixed_abs, tag = 'smem constant byte address 0x4 - core index']
  #allocation1 [shape = 'u32[72,128]{1,0:T(1,128)}', space=vmem, size = 0x9000, scoped, tag = 'internal scratch']
  #allocation2 [shape = 'f32[1,128,128]{2,1,0:T(8,128)}', space=vmem, size = 0x10000, scoped, tag = 'scratch operand']
  %s0 = inlined_call_operand.vmem [shape: f32[256,2], index: 0, kind: input, shape index: {}]
  %s1 = inlined_call_operand.vmem [shape: f32[2,256], index: 1, kind: input, shape index: {}]
  %s2 = inlined_call_operand.vmem [shape: bf16[256,128], index: 2, kind: input, shape index: {}]
  %s3 = inlined_call_operand.vmem [shape: s8[256,256], index: 3, kind: input, shape index: {}]
  %s4 = inlined_call_operand.vmem [shape: f32[256,128], index: 4, kind: output, shape index: {}]
  %s5 = sld [smem:[#allocation0]]
  $region95: #{spgat_forward.7} parent=0
    _
  %s7 = ssub.s32 1, %s5
  %s8 = scalar_select 0, %s7, %s5
  $region1: #{spgat_forward.7} parent=0
    #allocation3 [shape = 'u8[32768]{0}', space=vmem, size = 0x8000, scoped, tag = 'input window, operand 3']
    loop: start=0, step=1, limit=6
    $region2: #{spgat_forward.7} parent=1 // loop_pre_header
      _
    $region3: #{spgat_forward.7} parent=1 // loop_header
      %s10 = sphi 0, %s14
      %p11 = scmp.ge.s32.totalorder %s10, 6
      %s17 = sphi 0, %s29
      %s18 = sphi 0, %s25
      %s19 = sphi 0, %s17
      %s20 = sphi 0, %s18
      %s21 = sphi 0, %s19
      %s22 = sphi 0, %s20
      %s32 = sphi 0, %s34
      %s35 = sphi 0, %s32
      %s36 = sphi 0, %s35
      %s52 = sphi 0, %s36
      %s58 = sphi 0, %s60
      %s61 = sphi 0, %s58
      %s62 = sphi 0, %s61
      %s78 = sphi 0, %s62
      %s84 = sphi 0, %s86
      %s87 = sphi 0, %s84
      %s88 = sphi 0, %s87
      %s104 = sphi 0, %s88
      %s112 = sphi 0, %s114
      %s115 = sphi 0, %s112
      %s116 = sphi 0, %s115
      %s132 = sphi 0, %s116
      %s138 = sphi 0, %s140
      %s141 = sphi 0, %s138
      %s142 = sphi 0, %s141
      %s158 = sphi 0, %s142
    $region4: #{spgat_forward.7} parent=1 // loop_header_branch
      %13 = sbr.rel (%p11) target = $region8
    $region5: #{spgat_forward.7} parent=1 // loop_body
      %s15 = ssub.s32 %s10, 1
      %s16 = ssub.s32 %s10, 2
      %s23 = sadd.s32 1, %s18
      %p24 = scmp.ge.s32.totalorder %s23, 2
      %s25 = scalar_select %p24, 0, %s23
      %s26 = sadd.s32 1, %s17
      %s27 = scalar_select %p24, %s26, %s17
      %p28 = scmp.ge.s32.totalorder %s27, 2
      %s29 = scalar_select %p28, 0, %s27
      %s30 = ssub.s32 %s17, %s29
      %p31 = scmp.eq.s32.totalorder %s30, 0
      %s33 = sadd.s32 %s32, 1
      %s34 = scalar_select %p31, %s32, %s33
      %p37 = pneg %p31
      %p38 = scmp.eq.s32.totalorder %s10, 3
      %p39 = por %p37, %p38
      %p40 = scmp.ne.s32.totalorder %s32, %s35
      %p41 = scmp.eq.s32.totalorder %s10, 0
      %p42 = por %p40, %p41
      %p43 = scmp.ne.s32.totalorder %s32, %s35
      %p44 = scmp.eq.s32.totalorder %s15, 3
      %p45 = por %p43, %p44
      %p46 = scmp.ne.s32.totalorder %s35, %s36
      %p47 = scmp.eq.s32.totalorder %s15, 0
      %p48 = por %p46, %p47
      %p49 = scmp.ne.s32.totalorder %s35, %s36
      %p50 = scmp.eq.s32.totalorder %s16, 3
      %p51 = por %p49, %p50
      %p53 = scmp.ne.s32.totalorder %s36, %s52
      %p54 = scmp.eq.s32.totalorder %s16, 0
      %p55 = por %p53, %p54
      %s56 = ssub.s32 %s18, %s25
      %p57 = scmp.eq.s32.totalorder %s56, 0
      %s59 = sadd.s32 %s58, 1
      %s60 = scalar_select %p57, %s58, %s59
      %p63 = pneg %p57
      %p64 = scmp.eq.s32.totalorder %s10, 3
      %p65 = por %p63, %p64
      %p66 = scmp.ne.s32.totalorder %s58, %s61
      %p67 = scmp.eq.s32.totalorder %s10, 0
      %p68 = por %p66, %p67
      %p69 = scmp.ne.s32.totalorder %s58, %s61
      %p70 = scmp.eq.s32.totalorder %s15, 3
      %p71 = por %p69, %p70
      %p72 = scmp.ne.s32.totalorder %s61, %s62
      %p73 = scmp.eq.s32.totalorder %s15, 0
      %p74 = por %p72, %p73
      %p75 = scmp.ne.s32.totalorder %s61, %s62
      %p76 = scmp.eq.s32.totalorder %s16, 3
      %p77 = por %p75, %p76
      %p79 = scmp.ne.s32.totalorder %s62, %s78
      %p80 = scmp.eq.s32.totalorder %s16, 0
      %p81 = por %p79, %p80
      %s82 = ssub.s32 %s18, %s25
      %p83 = scmp.eq.s32.totalorder %s82, 0
      %s85 = sadd.s32 %s84, 1
      %s86 = scalar_select %p83, %s84, %s85
      %p89 = pneg %p83
      %p90 = scmp.eq.s32.totalorder %s10, 3
      %p91 = por %p89, %p90
      %p92 = scmp.ne.s32.totalorder %s84, %s87
      %p93 = scmp.eq.s32.totalorder %s10, 0
      %p94 = por %p92, %p93
      %p95 = scmp.ne.s32.totalorder %s84, %s87
      %p96 = scmp.eq.s32.totalorder %s15, 3
      %p97 = por %p95, %p96
      %p98 = scmp.ne.s32.totalorder %s87, %s88
      %p99 = scmp.eq.s32.totalorder %s15, 0
      %p100 = por %p98, %p99
      %p101 = scmp.ne.s32.totalorder %s87, %s88
      %p102 = scmp.eq.s32.totalorder %s16, 3
      %p103 = por %p101, %p102
      %p105 = scmp.ne.s32.totalorder %s88, %s104
      %p106 = scmp.eq.s32.totalorder %s16, 0
      %p107 = por %p105, %p106
      %s108 = ssub.s32 %s17, %s29
      %s109 = ssub.s32 %s18, %s25
      %s110 = sor.u32 %s108, %s109
      %p111 = scmp.eq.s32.totalorder %s110, 0
      %s113 = sadd.s32 %s112, 1
      %s114 = scalar_select %p111, %s112, %s113
      %p117 = pneg %p111
      %p118 = scmp.eq.s32.totalorder %s10, 3
      %p119 = por %p117, %p118
      %p120 = scmp.ne.s32.totalorder %s112, %s115
      %p121 = scmp.eq.s32.totalorder %s10, 0
      %p122 = por %p120, %p121
      %p123 = scmp.ne.s32.totalorder %s112, %s115
      %p124 = scmp.eq.s32.totalorder %s15, 3
      %p125 = por %p123, %p124
      %p126 = scmp.ne.s32.totalorder %s115, %s116
      %p127 = scmp.eq.s32.totalorder %s15, 0
      %p128 = por %p126, %p127
      %p129 = scmp.ne.s32.totalorder %s115, %s116
      %p130 = scmp.eq.s32.totalorder %s16, 3
      %p131 = por %p129, %p130
      %p133 = scmp.ne.s32.totalorder %s116, %s132
      %p134 = scmp.eq.s32.totalorder %s16, 0
      %p135 = por %p133, %p134
      %s136 = ssub.s32 %s17, %s29
      %p137 = scmp.eq.s32.totalorder %s136, 0
      %s139 = sadd.s32 %s138, 1
      %s140 = scalar_select %p137, %s138, %s139
      %p143 = pneg %p137
      %p144 = scmp.eq.s32.totalorder %s10, 3
      %p145 = por %p143, %p144
      %p146 = scmp.ne.s32.totalorder %s138, %s141
      %p147 = scmp.eq.s32.totalorder %s10, 0
      %p148 = por %p146, %p147
      %p149 = scmp.ne.s32.totalorder %s138, %s141
      %p150 = scmp.eq.s32.totalorder %s15, 3
      %p151 = por %p149, %p150
      %p152 = scmp.ne.s32.totalorder %s141, %s142
      %p153 = scmp.eq.s32.totalorder %s15, 0
      %p154 = por %p152, %p153
      %p155 = scmp.ne.s32.totalorder %s141, %s142
      %p156 = scmp.eq.s32.totalorder %s16, 3
      %p157 = por %p155, %p156
      %p159 = scmp.ne.s32.totalorder %s142, %s158
      %p160 = scmp.eq.s32.totalorder %s16, 0
      %p161 = por %p159, %p160
      %p162 = scmp.le.s32.totalorder 1, %s10
      %p163 = scmp.lt.s32.totalorder %s10, 5
      %p164 = pnand %p162, %p163
      %p165 = pneg %p164
      // Predicated region
      $region9: #{spgat_forward.7} parent=5 // pred_check
        _
      $region10: #{spgat_forward.7} parent=5 // pred_check_branch
        %167 = sbr.rel (%p164) target = $region12
      $region11: #{spgat_forward.7} parent=5 // pred_region
        %s168 = ssub.s32 %s10, 1
      $region12: #{spgat_forward.7} parent=5 // pred_fallthru
        _
      %p169 = scmp.lt.s32.totalorder %s10, 4
      // Predicated region
      $region13: #{spgat_forward.7} parent=5 // pred_check
        %p170 = pneg %p169
      $region14: #{spgat_forward.7} parent=5 // pred_check_branch
        %172 = sbr.rel (%p170) target = $region16
      $region15: #{spgat_forward.7} parent=5 // pred_region
        // Predicated region
        $region17: #{spgat_forward.7} parent=15 // pred_check
          %p173 = pneg %p42
        $region18: #{spgat_forward.7} parent=15 // pred_check_branch
          %175 = sbr.rel (%p173) target = $region20
        $region19: #{spgat_forward.7} parent=15 // pred_region
          %s176 = smul.u32 16, %s17
          %p177 = scmp.lt.s32.totalorder %s176, 31
          %s178 = scalar_select %p177, %s176, 31
          %s179 = smul.addr %s178, 8
          %s180 = scalar_lea.vmem %s0, %s179
          %s181 = smul.u32 16, %s17
        $region20: #{spgat_forward.7} parent=15 // pred_fallthru
          _
        // Predicated region
        $region21: #{spgat_forward.7} parent=15 // pred_check
          %p182 = pneg %p68
        $region22: #{spgat_forward.7} parent=15 // pred_check_branch
          %184 = sbr.rel (%p182) target = $region24
        $region23: #{spgat_forward.7} parent=15 // pred_region
          %p185 = scmp.lt.s32.totalorder %s18, 1
          %s186 = scalar_select %p185, %s18, 1
          %s187 = smul.addr %s186, 2
          %s188 = scalar_lea.vmem %s1, %s187
        $region24: #{spgat_forward.7} parent=15 // pred_fallthru
          _
        // Predicated region
        $region25: #{spgat_forward.7} parent=15 // pred_check
          %p189 = pneg %p94
        $region26: #{spgat_forward.7} parent=15 // pred_check_branch
          %191 = sbr.rel (%p189) target = $region28
        $region27: #{spgat_forward.7} parent=15 // pred_region
          %s192 = smul.u32 16, %s18
          %p193 = scmp.lt.s32.totalorder %s192, 31
          %s194 = scalar_select %p193, %s192, 31
          %s195 = smul.addr %s194, 4
          %s196 = scalar_lea.vmem %s2, %s195
          %s197 = smul.u32 16, %s18
        $region28: #{spgat_forward.7} parent=15 // pred_fallthru
          _
        // Predicated region
        $region29: #{spgat_forward.7} parent=15 // pred_check
          %p198 = pneg %p122
        $region30: #{spgat_forward.7} parent=15 // pred_check_branch
          %200 = sbr.rel (%p198) target = $region32
        $region31: #{spgat_forward.7} parent=15 // pred_region
          %s201 = sand.u32 %s112, 1
          %s202 = sand.u32 %s112, 1
          %s203 = smul.addr %s202, 32
          %s204 = scalar_lea.vmem [#allocation3], %s203
          %s205 = smul.u32 4, %s17
          %s206 = smul.addr %s205, 2
          %s207 = sadd.s32 %s18, %s206
          %s208 = smul.addr %s207, 8
          %s209 = scalar_lea.vmem %s3, %s208
          // Predicated region
          $region33: #{spgat_forward.7} parent=31 // pred_check
            _
          $region34: #{spgat_forward.7} parent=31 // pred_check_branch
            %211 = sbr.rel (0) target = $region36
          $region35: #{spgat_forward.7} parent=31 // pred_region
            // Predicated region
            $region37: #{spgat_forward.7} parent=35 // pred_check
              _
            $region38: #{spgat_forward.7} parent=35 // pred_check_branch
              %213 = sbr.rel (0) target = $region40
            $region39: #{spgat_forward.7} parent=35 // pred_region
              // Predicated region
              $region52: #{spgat_forward.7} parent=39 // pred_check
                _
              $region53: #{spgat_forward.7} parent=39 // pred_check_branch
                %235 = sbr.rel (0) target = $region55
              $region54: #{spgat_forward.7} parent=39 // pred_region
                loop: start=0, step=1, limit=1
                $region56: #{spgat_forward.7} parent=54 // loop_pre_header
                  _
                $region57: #{spgat_forward.7} parent=54 // loop_header
                  %s237 = sphi 0, %s241
                  %p238 = scmp.ge.s32.totalorder %s237, 1
                  %s242 = sphi %s209, %s209
                  %s243 = sphi %s204, %s204
                $region58: #{spgat_forward.7} parent=54 // loop_header_branch
                  %240 = sbr.rel (%p238) target = $region62
                $region59: #{spgat_forward.7} parent=54 // loop_body
                  %v244 = vld [vmem:[%s242] sm:$0xff]
                  %245 = vst [vmem:[%s243] sm:$0xff] %v244
                  %v246 = vld [vmem:[%s242 + $0x10] sm:$0xff]
                  %247 = vst [vmem:[%s243 + $0x8] sm:$0xff] %v246
                  %v248 = vld [vmem:[%s242 + $0x20] sm:$0xff]
                  %249 = vst [vmem:[%s243 + $0x10] sm:$0xff] %v248
                  %v250 = vld [vmem:[%s242 + $0x30] sm:$0xff]
                  %251 = vst [vmem:[%s243 + $0x18] sm:$0xff] %v250
                $region60: #{spgat_forward.7} parent=54 // loop_footer
                  %s241 = sadd.s32 1, %s237
                $region61: #{spgat_forward.7} parent=54 // loop_footer_branch
                  %236 = sbr.rel target = $region57
                $region62: #{spgat_forward.7} parent=54 // loop_exit
                  _
              $region55: #{spgat_forward.7} parent=39 // pred_fallthru
                _
              // Predicated region
              $region63: #{spgat_forward.7} parent=39 // pred_check
                _
              $region64: #{spgat_forward.7} parent=39 // pred_check_branch
                %253 = sbr.rel target = $region66
              $region65: #{spgat_forward.7} parent=39 // pred_region
                _
              $region66: #{spgat_forward.7} parent=39 // pred_fallthru
                _
            $region40: #{spgat_forward.7} parent=35 // pred_fallthru
              _
            // Predicated region
            $region41: #{spgat_forward.7} parent=35 // pred_check
              _
            $region42: #{spgat_forward.7} parent=35 // pred_check_branch
              %215 = sbr.rel target = $region44
            $region43: #{spgat_forward.7} parent=35 // pred_region
              %s217 = ssub.s32 256, 1
              loop: start=0, step=1, limit=1
              $region45: #{spgat_forward.7} parent=43 // loop_pre_header
                _
              $region46: #{spgat_forward.7} parent=43 // loop_header
                %s219 = sphi 0, %s223
                %p220 = scmp.ge.s32.totalorder %s219, 1
                %s224 = sphi %s209, %s209
                %s225 = sphi %s204, %s204
              $region47: #{spgat_forward.7} parent=43 // loop_header_branch
                %222 = sbr.rel (%p220) target = $region51
              $region48: #{spgat_forward.7} parent=43 // loop_body
                %v226 = vld [vmem:[%s224] sm:%s217]
                %227 = vst [vmem:[%s225] sm:%s217] %v226
                %v228 = vld [vmem:[%s224 + $0x10] sm:%s217]
                %229 = vst [vmem:[%s225 + $0x8] sm:%s217] %v228
                %v230 = vld [vmem:[%s224 + $0x20] sm:%s217]
                %231 = vst [vmem:[%s225 + $0x10] sm:%s217] %v230
                %v232 = vld [vmem:[%s224 + $0x30] sm:%s217]
                %233 = vst [vmem:[%s225 + $0x18] sm:%s217] %v232
              $region49: #{spgat_forward.7} parent=43 // loop_footer
                %s223 = sadd.s32 1, %s219
              $region50: #{spgat_forward.7} parent=43 // loop_footer_branch
                %218 = sbr.rel target = $region46
              $region51: #{spgat_forward.7} parent=43 // loop_exit
                _
            $region44: #{spgat_forward.7} parent=35 // pred_fallthru
              _
          $region36: #{spgat_forward.7} parent=31 // pred_fallthru
            _
          %254 = vnop
        $region32: #{spgat_forward.7} parent=15 // pred_fallthru
          _
      $region16: #{spgat_forward.7} parent=5 // pred_fallthru
        _
      %p255 = scmp.le.s32.totalorder 1, %s10
      %p256 = scmp.lt.s32.totalorder %s10, 5
      %p257 = pnand %p255, %p256
      %p258 = pneg %p257
      // Predicated region
      $region67: #{spgat_forward.7} parent=5 // pred_check
        _
      $region68: #{spgat_forward.7} parent=5 // pred_check_branch
        %260 = sbr.rel (%p257) target = $region70
      $region69: #{spgat_forward.7} parent=5 // pred_region
        %s261 = ssub.s32 %s10, 1
        %s262 = sand.u32 %s115, 1
        %s263 = sand.u32 %s115, 1
        %s264 = smul.addr %s263, 32
        %s265 = scalar_lea.vmem [#allocation3], %s264
        // Predicated region
        $region71: #{spgat_forward.7} parent=69 // pred_check
          %p266 = pneg %p128
        $region72: #{spgat_forward.7} parent=69 // pred_check_branch
          %268 = sbr.rel (%p266) target = $region74
        $region73: #{spgat_forward.7} parent=69 // pred_region
          _
        $region74: #{spgat_forward.7} parent=69 // pred_fallthru
          _
        %s269 = smul.u32 16, %s19
        %p270 = scmp.lt.s32.totalorder %s269, 31
        %s271 = scalar_select %p270, %s269, 31
        %s272 = smul.addr %s271, 8
        %s273 = scalar_lea.vmem %s0, %s272
        %p274 = pneg %p48
        %p275 = pneg %p45
        %p276 = scmp.lt.s32.totalorder %s20, 1
        %s277 = scalar_select %p276, %s20, 1
        %s278 = smul.addr %s277, 2
        %s279 = scalar_lea.vmem %s1, %s278
        %p280 = pneg %p74
        %p281 = pneg %p71
        %s282 = smul.u32 16, %s20
        %p283 = scmp.lt.s32.totalorder %s282, 31
        %s284 = scalar_select %p283, %s282, 31
        %s285 = smul.addr %s284, 4
        %s286 = scalar_lea.vmem %s2, %s285
        %p287 = pneg %p100
        %p288 = pneg %p97
        %s289 = sand.u32 %s115, 1
        %s290 = sand.u32 %s115, 1
        %s291 = smul.addr %s290, 32
        %s292 = scalar_lea.vmem [#allocation3], %s291
        %p293 = pneg %p128
        %p294 = pneg %p125
        %p295 = pneg %p154
        %p296 = pneg %p151
        %s297 = smul.u32 16, %s19
        %p298 = scmp.lt.s32.totalorder %s297, 31
        %s299 = scalar_select %p298, %s297, 31
        %s300 = smul.addr %s299, 8
        %s301 = scalar_lea.vmem %s4, %s300
        %s302 = smul.u32 16, %s19
        %p303 = scmp.lt.s32.totalorder %s302, 31
        %s304 = scalar_select %p303, %s302, 31
        %s305 = smul.addr %s304, 8
        %s306 = scalar_lea.vmem %s0, %s305
        %s307 = smul.u32 16, %s19
        %p308 = scmp.lt.s32.totalorder %s20, 1
        %s309 = scalar_select %p308, %s20, 1
        %s310 = smul.addr %s309, 2
        %s311 = scalar_lea.vmem %s1, %s310
        %s312 = smul.u32 16, %s20
        %p313 = scmp.lt.s32.totalorder %s312, 31
        %s314 = scalar_select %p313, %s312, 31
        %s315 = smul.addr %s314, 4
        %s316 = scalar_lea.vmem %s2, %s315
        %s317 = smul.u32 16, %s20
        %s318 = smul.u32 4, %s19
        %s319 = smul.u32 16, %s19
        %p320 = scmp.lt.s32.totalorder %s319, 31
        %s321 = scalar_select %p320, %s319, 31
        %s322 = smul.addr %s321, 8
        %s323 = scalar_lea.vmem %s4, %s322
        %s324 = smul.u32 16, %s19
        %p327 = scmp.eq.s32.totalorder %s20, 0
        // Predicated region
        $region75: #{spgat_forward.7} parent=69 // pred_check
          %p328 = pneg %p327
        $region76: #{spgat_forward.7} parent=69 // pred_check_branch
          %330 = sbr.rel (%p328) target = $region78
        $region77: #{spgat_forward.7} parent=69 // pred_region
          %331 = vst [vmem:[#allocation2] sm:$0xff] 0.0
          %332 = vst [vmem:[#allocation2 + $0x8] sm:$0xff] 0.0
          %333 = vst [vmem:[#allocation2 + $0x10] sm:$0xff] 0.0
          %334 = vst [vmem:[#allocation2 + $0x18] sm:$0xff] 0.0
          %335 = vst [vmem:[#allocation2 + $0x20] sm:$0xff] 0.0
          %336 = vst [vmem:[#allocation2 + $0x28] sm:$0xff] 0.0
          %337 = vst [vmem:[#allocation2 + $0x30] sm:$0xff] 0.0
          %338 = vst [vmem:[#allocation2 + $0x38] sm:$0xff] 0.0
          %339 = vst [vmem:[#allocation2 + $0x40] sm:$0xff] 0.0
          %340 = vst [vmem:[#allocation2 + $0x48] sm:$0xff] 0.0
          %341 = vst [vmem:[#allocation2 + $0x50] sm:$0xff] 0.0
          %342 = vst [vmem:[#allocation2 + $0x58] sm:$0xff] 0.0
          %343 = vst [vmem:[#allocation2 + $0x60] sm:$0xff] 0.0
          %344 = vst [vmem:[#allocation2 + $0x68] sm:$0xff] 0.0
          %345 = vst [vmem:[#allocation2 + $0x70] sm:$0xff] 0.0
          %346 = vst [vmem:[#allocation2 + $0x78] sm:$0xff] 0.0
        $region78: #{spgat_forward.7} parent=69 // pred_fallthru
          _
        %v347 = vld [vmem:[%s265] sm:$0xff]
        %v348 = vld [vmem:[%s265 + $0x8] sm:$0xff]
        %v349 = vld [vmem:[%s265 + $0x10] sm:$0xff]
        %v350 = vld [vmem:[%s265 + $0x18] sm:$0xff]
        %vm351 = vnez %v347
        %vm352 = vnez %v348
        %vm353 = vnez %v349
        %vm354 = vnez %v350
        %v355 = vld [vmem:[%s306] sm:$0xff]
        %v356 = vld [vmem:[%s306 + $0x8] sm:$0xff]
        %v357 = vld [vmem:[%s306 + $0x10] sm:$0xff]
        %v358 = vld [vmem:[%s306 + $0x18] sm:$0xff]
        %v359 = vld [vmem:[%s306 + $0x20] sm:$0xff]
        %v360 = vld [vmem:[%s306 + $0x28] sm:$0xff]
        %v361 = vld [vmem:[%s306 + $0x30] sm:$0xff]
        %v362 = vld [vmem:[%s306 + $0x38] sm:$0xff]
        %v363 = vld [vmem:[%s306 + $0x40] sm:$0xff]
        %v364 = vld [vmem:[%s306 + $0x48] sm:$0xff]
        %v365 = vld [vmem:[%s306 + $0x50] sm:$0xff]
        %v366 = vld [vmem:[%s306 + $0x58] sm:$0xff]
        %v367 = vld [vmem:[%s306 + $0x60] sm:$0xff]
        %v368 = vld [vmem:[%s306 + $0x68] sm:$0xff]
        %v369 = vld [vmem:[%s306 + $0x70] sm:$0xff]
        %v370 = vld [vmem:[%s306 + $0x78] sm:$0xff]
        %v371 = vld [vmem:[%s311] sm:$0x3]
        %v372 = vld [vmem:[%s316] sm:$0xf]
        %v373 = vld [vmem:[%s316 + $0x4] sm:$0xf]
        %v374 = vld [vmem:[%s316 + $0x8] sm:$0xf]
        %v375 = vld [vmem:[%s316 + $0xc] sm:$0xf]
        %v376 = vld [vmem:[%s316 + $0x10] sm:$0xf]
        %v377 = vld [vmem:[%s316 + $0x14] sm:$0xf]
        %v378 = vld [vmem:[%s316 + $0x18] sm:$0xf]
        %v379 = vld [vmem:[%s316 + $0x1c] sm:$0xf]
        %v380 = vld [vmem:[%s316 + $0x20] sm:$0xf]
        %v381 = vld [vmem:[%s316 + $0x24] sm:$0xf]
        %v382 = vld [vmem:[%s316 + $0x28] sm:$0xf]
        %v383 = vld [vmem:[%s316 + $0x2c] sm:$0xf]
        %v384 = vld [vmem:[%s316 + $0x30] sm:$0xf]
        %v385 = vld [vmem:[%s316 + $0x34] sm:$0xf]
        %v386 = vld [vmem:[%s316 + $0x38] sm:$0xf]
        %v387 = vld [vmem:[%s316 + $0x3c] sm:$0xf]
        %389 = vset.pattern.permute.xlu0 0
        %390 = vperm.xlu0 %389, %v355
        %v391 = vpop.permute.xlu0 %390
        %394 = vset.pattern.permute.xlu0 0
        %395 = vperm.xlu0 %394, %v356
        %v396 = vpop.permute.xlu0 %395
        %399 = vset.pattern.permute.xlu0 0
        %400 = vperm.xlu0 %399, %v357
        %v401 = vpop.permute.xlu0 %400
        %404 = vset.pattern.permute.xlu0 0
        %405 = vperm.xlu0 %404, %v358
        %v406 = vpop.permute.xlu0 %405
        %409 = vset.pattern.permute.xlu0 0
        %410 = vperm.xlu0 %409, %v359
        %v411 = vpop.permute.xlu0 %410
        %414 = vset.pattern.permute.xlu0 0
        %415 = vperm.xlu0 %414, %v360
        %v416 = vpop.permute.xlu0 %415
        %419 = vset.pattern.permute.xlu0 0
        %420 = vperm.xlu0 %419, %v361
        %v421 = vpop.permute.xlu0 %420
        %424 = vset.pattern.permute.xlu0 0
        %425 = vperm.xlu0 %424, %v362
        %v426 = vpop.permute.xlu0 %425
        %429 = vset.pattern.permute.xlu0 0
        %430 = vperm.xlu0 %429, %v363
        %v431 = vpop.permute.xlu0 %430
        %434 = vset.pattern.permute.xlu0 0
        %435 = vperm.xlu0 %434, %v364
        %v436 = vpop.permute.xlu0 %435
        %439 = vset.pattern.permute.xlu0 0
        %440 = vperm.xlu0 %439, %v365
        %v441 = vpop.permute.xlu0 %440
        %444 = vset.pattern.permute.xlu0 0
        %445 = vperm.xlu0 %444, %v366
        %v446 = vpop.permute.xlu0 %445
        %449 = vset.pattern.permute.xlu0 0
        %450 = vperm.xlu0 %449, %v367
        %v451 = vpop.permute.xlu0 %450
        %454 = vset.pattern.permute.xlu0 0
        %455 = vperm.xlu0 %454, %v368
        %v456 = vpop.permute.xlu0 %455
        %459 = vset.pattern.permute.xlu0 0
        %460 = vperm.xlu0 %459, %v369
        %v461 = vpop.permute.xlu0 %460
        %464 = vset.pattern.permute.xlu0 0
        %465 = vperm.xlu0 %464, %v370
        %v466 = vpop.permute.xlu0 %465
        %v468 = vperm.slane %v371, 0
        %v469 = vmul.f32 %v391, %v468
        %v470 = vmul.f32 %v396, %v468
        %v471 = vmul.f32 %v401, %v468
        %v472 = vmul.f32 %v406, %v468
        %v473 = vmul.f32 %v411, %v468
        %v474 = vmul.f32 %v416, %v468
        %v475 = vmul.f32 %v421, %v468
        %v476 = vmul.f32 %v426, %v468
        %v477 = vmul.f32 %v431, %v468
        %v478 = vmul.f32 %v436, %v468
        %v479 = vmul.f32 %v441, %v468
        %v480 = vmul.f32 %v446, %v468
        %v481 = vmul.f32 %v451, %v468
        %v482 = vmul.f32 %v456, %v468
        %v483 = vmul.f32 %v461, %v468
        %v484 = vmul.f32 %v466, %v468
        %485 = vset.pattern.permute.xlu0 1
        %486 = vperm.xlu0 %485, %v355
        %v487 = vpop.permute.xlu0 %486
        %489 = vset.pattern.permute.xlu0 1
        %490 = vperm.xlu0 %489, %v356
        %v491 = vpop.permute.xlu0 %490
        %493 = vset.pattern.permute.xlu0 1
        %494 = vperm.xlu0 %493, %v357
        %v495 = vpop.permute.xlu0 %494
        %497 = vset.pattern.permute.xlu0 1
        %498 = vperm.xlu0 %497, %v358
        %v499 = vpop.permute.xlu0 %498
        %501 = vset.pattern.permute.xlu0 1
        %502 = vperm.xlu0 %501, %v359
        %v503 = vpop.permute.xlu0 %502
        %505 = vset.pattern.permute.xlu0 1
        %506 = vperm.xlu0 %505, %v360
        %v507 = vpop.permute.xlu0 %506
        %509 = vset.pattern.permute.xlu0 1
        %510 = vperm.xlu0 %509, %v361
        %v511 = vpop.permute.xlu0 %510
        %513 = vset.pattern.permute.xlu0 1
        %514 = vperm.xlu0 %513, %v362
        %v515 = vpop.permute.xlu0 %514
        %517 = vset.pattern.permute.xlu0 1
        %518 = vperm.xlu0 %517, %v363
        %v519 = vpop.permute.xlu0 %518
        %521 = vset.pattern.permute.xlu0 1
        %522 = vperm.xlu0 %521, %v364
        %v523 = vpop.permute.xlu0 %522
        %525 = vset.pattern.permute.xlu0 1
        %526 = vperm.xlu0 %525, %v365
        %v527 = vpop.permute.xlu0 %526
        %529 = vset.pattern.permute.xlu0 1
        %530 = vperm.xlu0 %529, %v366
        %v531 = vpop.permute.xlu0 %530
        %533 = vset.pattern.permute.xlu0 1
        %534 = vperm.xlu0 %533, %v367
        %v535 = vpop.permute.xlu0 %534
        %537 = vset.pattern.permute.xlu0 1
        %538 = vperm.xlu0 %537, %v368
        %v539 = vpop.permute.xlu0 %538
        %541 = vset.pattern.permute.xlu0 1
        %542 = vperm.xlu0 %541, %v369
        %v543 = vpop.permute.xlu0 %542
        %545 = vset.pattern.permute.xlu0 1
        %546 = vperm.xlu0 %545, %v370
        %v547 = vpop.permute.xlu0 %546
        %v549 = vperm.slane %v371, 1
        %v550 = vmul.f32 %v487, %v549
        %v551 = vmul.f32 %v491, %v549
        %v552 = vmul.f32 %v495, %v549
        %v553 = vmul.f32 %v499, %v549
        %v554 = vmul.f32 %v503, %v549
        %v555 = vmul.f32 %v507, %v549
        %v556 = vmul.f32 %v511, %v549
        %v557 = vmul.f32 %v515, %v549
        %v558 = vmul.f32 %v519, %v549
        %v559 = vmul.f32 %v523, %v549
        %v560 = vmul.f32 %v527, %v549
        %v561 = vmul.f32 %v531, %v549
        %v562 = vmul.f32 %v535, %v549
        %v563 = vmul.f32 %v539, %v549
        %v564 = vmul.f32 %v543, %v549
        %v565 = vmul.f32 %v547, %v549
        %vm566 = vcmp.lt.f32.partialorder %v469, 1.0
        %vm567 = vcmp.lt.f32.partialorder %v470, 1.0
        %vm568 = vcmp.lt.f32.partialorder %v471, 1.0
        %vm569 = vcmp.lt.f32.partialorder %v472, 1.0
        %vm570 = vcmp.lt.f32.partialorder %v473, 1.0
        %vm571 = vcmp.lt.f32.partialorder %v474, 1.0
        %vm572 = vcmp.lt.f32.partialorder %v475, 1.0
        %vm573 = vcmp.lt.f32.partialorder %v476, 1.0
        %vm574 = vcmp.lt.f32.partialorder %v477, 1.0
        %vm575 = vcmp.lt.f32.partialorder %v478, 1.0
        %vm576 = vcmp.lt.f32.partialorder %v479, 1.0
        %vm577 = vcmp.lt.f32.partialorder %v480, 1.0
        %vm578 = vcmp.lt.f32.partialorder %v481, 1.0
        %vm579 = vcmp.lt.f32.partialorder %v482, 1.0
        %vm580 = vcmp.lt.f32.partialorder %v483, 1.0
        %vm581 = vcmp.lt.f32.partialorder %v484, 1.0
        %v582 = vsel %vm566, %v469, %v550
        %v583 = vsel %vm567, %v470, %v551
        %v584 = vsel %vm568, %v471, %v552
        %v585 = vsel %vm569, %v472, %v553
        %v586 = vsel %vm570, %v473, %v554
        %v587 = vsel %vm571, %v474, %v555
        %v588 = vsel %vm572, %v475, %v556
        %v589 = vsel %vm573, %v476, %v557
        %v590 = vsel %vm574, %v477, %v558
        %v591 = vsel %vm575, %v478, %v559
        %v592 = vsel %vm576, %v479, %v560
        %v593 = vsel %vm577, %v480, %v561
        %v594 = vsel %vm578, %v481, %v562
        %v595 = vsel %vm579, %v482, %v563
        %v596 = vsel %vm580, %v483, %v564
        %v597 = vsel %vm581, %v484, %v565
        %v598 = vsel %vm351, 16843009, 0
        %v599 = vsel %vm352, 16843009, 0
        %v600 = vsel %vm353, 16843009, 0
        %v601 = vsel %vm354, 16843009, 0
        %v602 = vunpack.c.0.s8 %v598
        %v603 = vunpack.c.1.s8 %v598
        %v604 = vunpack.c.2.s8 %v598
        %v605 = vunpack.c.3.s8 %v598
        %v606 = vunpack.c.0.s8 %v599
        %v607 = vunpack.c.1.s8 %v599
        %v608 = vunpack.c.2.s8 %v599
        %v609 = vunpack.c.3.s8 %v599
        %v610 = vunpack.c.0.s8 %v600
        %v611 = vunpack.c.1.s8 %v600
        %v612 = vunpack.c.2.s8 %v600
        %v613 = vunpack.c.3.s8 %v600
        %v614 = vunpack.c.0.s8 %v601
        %v615 = vunpack.c.1.s8 %v601
        %v616 = vunpack.c.2.s8 %v601
        %v617 = vunpack.c.3.s8 %v601
        %v618 = vpack.c.b16 %v602, %v602
        %v619 = vpack.c.b8 %v618, %v618
        %v620 = vpack.c.b16 %v603, %v603
        %v621 = vpack.c.b8 %v620, %v620
        %v622 = vpack.c.b16 %v604, %v604
        %v623 = vpack.c.b8 %v622, %v622
        %v624 = vpack.c.b16 %v605, %v605
        %v625 = vpack.c.b8 %v624, %v624
        %v626 = vpack.c.b16 %v606, %v606
        %v627 = vpack.c.b8 %v626, %v626
        %v628 = vpack.c.b16 %v607, %v607
        %v629 = vpack.c.b8 %v628, %v628
        %v630 = vpack.c.b16 %v608, %v608
        %v631 = vpack.c.b8 %v630, %v630
        %v632 = vpack.c.b16 %v609, %v609
        %v633 = vpack.c.b8 %v632, %v632
        %v634 = vpack.c.b16 %v610, %v610
        %v635 = vpack.c.b8 %v634, %v634
        %v636 = vpack.c.b16 %v611, %v611
        %v637 = vpack.c.b8 %v636, %v636
        %v638 = vpack.c.b16 %v612, %v612
        %v639 = vpack.c.b8 %v638, %v638
        %v640 = vpack.c.b16 %v613, %v613
        %v641 = vpack.c.b8 %v640, %v640
        %v642 = vpack.c.b16 %v614, %v614
        %v643 = vpack.c.b8 %v642, %v642
        %v644 = vpack.c.b16 %v615, %v615
        %v645 = vpack.c.b8 %v644, %v644
        %v646 = vpack.c.b16 %v616, %v616
        %v647 = vpack.c.b8 %v646, %v646
        %v648 = vpack.c.b16 %v617, %v617
        %v649 = vpack.c.b8 %v648, %v648
        %vm650 = vnez %v619
        %vm651 = vnez %v621
        %vm652 = vnez %v623
        %vm653 = vnez %v625
        %vm654 = vnez %v627
        %vm655 = vnez %v629
        %vm656 = vnez %v631
        %vm657 = vnez %v633
        %vm658 = vnez %v635
        %vm659 = vnez %v637
        %vm660 = vnez %v639
        %vm661 = vnez %v641
        %vm662 = vnez %v643
        %vm663 = vnez %v645
        %vm664 = vnez %v647
        %vm665 = vnez %v649
        %v666 = vsel %vm650, 16843009, 0
        %v667 = vsel %vm651, 16843009, 0
        %v668 = vsel %vm652, 16843009, 0
        %v669 = vsel %vm653, 16843009, 0
        %v670 = vsel %vm654, 16843009, 0
        %v671 = vsel %vm655, 16843009, 0
        %v672 = vsel %vm656, 16843009, 0
        %v673 = vsel %vm657, 16843009, 0
        %v674 = vsel %vm658, 16843009, 0
        %v675 = vsel %vm659, 16843009, 0
        %v676 = vsel %vm660, 16843009, 0
        %v677 = vsel %vm661, 16843009, 0
        %v678 = vsel %vm662, 16843009, 0
        %v679 = vsel %vm663, 16843009, 0
        %v680 = vsel %vm664, 16843009, 0
        %v681 = vsel %vm665, 16843009, 0
        %v682 = vunpack.c.0.s8 %v666
        %v683 = vunpack.c.0.s8 %v667
        %v684 = vunpack.c.0.s8 %v668
        %v685 = vunpack.c.0.s8 %v669
        %v686 = vunpack.c.0.s8 %v670
        %v687 = vunpack.c.0.s8 %v671
        %v688 = vunpack.c.0.s8 %v672
        %v689 = vunpack.c.0.s8 %v673
        %v690 = vunpack.c.0.s8 %v674
        %v691 = vunpack.c.0.s8 %v675
        %v692 = vunpack.c.0.s8 %v676
        %v693 = vunpack.c.0.s8 %v677
        %v694 = vunpack.c.0.s8 %v678
        %v695 = vunpack.c.0.s8 %v679
        %v696 = vunpack.c.0.s8 %v680
        %v697 = vunpack.c.0.s8 %v681
        %vm698 = vcmp.ne.s32.totalorder %v682, 0
        %vm699 = vcmp.ne.s32.totalorder %v683, 0
        %vm700 = vcmp.ne.s32.totalorder %v684, 0
        %vm701 = vcmp.ne.s32.totalorder %v685, 0
        %vm702 = vcmp.ne.s32.totalorder %v686, 0
        %vm703 = vcmp.ne.s32.totalorder %v687, 0
        %vm704 = vcmp.ne.s32.totalorder %v688, 0
        %vm705 = vcmp.ne.s32.totalorder %v689, 0
        %vm706 = vcmp.ne.s32.totalorder %v690, 0
        %vm707 = vcmp.ne.s32.totalorder %v691, 0
        %vm708 = vcmp.ne.s32.totalorder %v692, 0
        %vm709 = vcmp.ne.s32.totalorder %v693, 0
        %vm710 = vcmp.ne.s32.totalorder %v694, 0
        %vm711 = vcmp.ne.s32.totalorder %v695, 0
        %vm712 = vcmp.ne.s32.totalorder %v696, 0
        %vm713 = vcmp.ne.s32.totalorder %v697, 0
        %v714 = vsel %vm698, %v582, 0.0
        %v715 = vsel %vm699, %v583, 0.0
        %v716 = vsel %vm700, %v584, 0.0
        %v717 = vsel %vm701, %v585, 0.0
        %v718 = vsel %vm702, %v586, 0.0
        %v719 = vsel %vm703, %v587, 0.0
        %v720 = vsel %vm704, %v588, 0.0
        %v721 = vsel %vm705, %v589, 0.0
        %v722 = vsel %vm706, %v590, 0.0
        %v723 = vsel %vm707, %v591, 0.0
        %v724 = vsel %vm708, %v592, 0.0
        %v725 = vsel %vm709, %v593, 0.0
        %v726 = vsel %vm710, %v594, 0.0
        %v727 = vsel %vm711, %v595, 0.0
        %v728 = vsel %vm712, %v596, 0.0
        %v729 = vsel %vm713, %v597, 0.0
        %v730 = vld [vmem:[#allocation2] sm:$0xff]
        %v731 = vld [vmem:[#allocation2 + $0x8] sm:$0xff]
        %v732 = vld [vmem:[#allocation2 + $0x10] sm:$0xff]
        %v733 = vld [vmem:[#allocation2 + $0x18] sm:$0xff]
        %v734 = vld [vmem:[#allocation2 + $0x20] sm:$0xff]
        %v735 = vld [vmem:[#allocation2 + $0x28] sm:$0xff]
        %v736 = vld [vmem:[#allocation2 + $0x30] sm:$0xff]
        %v737 = vld [vmem:[#allocation2 + $0x38] sm:$0xff]
        %v738 = vld [vmem:[#allocation2 + $0x40] sm:$0xff]
        %v739 = vld [vmem:[#allocation2 + $0x48] sm:$0xff]
        %v740 = vld [vmem:[#allocation2 + $0x50] sm:$0xff]
        %v741 = vld [vmem:[#allocation2 + $0x58] sm:$0xff]
        %v742 = vld [vmem:[#allocation2 + $0x60] sm:$0xff]
        %v743 = vld [vmem:[#allocation2 + $0x68] sm:$0xff]
        %v744 = vld [vmem:[#allocation2 + $0x70] sm:$0xff]
        %v745 = vld [vmem:[#allocation2 + $0x78] sm:$0xff]
        %v746 = vpack.c.bf16 %v715, %v714
        %v747 = vpack.c.bf16 %v717, %v716
        %v748 = vpack.c.bf16 %v719, %v718
        %v749 = vpack.c.bf16 %v721, %v720
        %v750 = vpack.c.bf16 %v723, %v722
        %v751 = vpack.c.bf16 %v725, %v724
        %v752 = vpack.c.bf16 %v727, %v726
        %v753 = vpack.c.bf16 %v729, %v728
        %v770 = vunpack.c.l.b16 %v372
        %v771 = vunpack.c.l.b16 %v373
        %v772 = vunpack.c.l.b16 %v374
        %v773 = vunpack.c.l.b16 %v375
        %v774 = vunpack.c.l.b16 %v376
        %v775 = vunpack.c.l.b16 %v377
        %v776 = vunpack.c.l.b16 %v378
        %v777 = vunpack.c.l.b16 %v379
        %v778 = vunpack.c.l.b16 %v380
        %v779 = vunpack.c.l.b16 %v381
        %v780 = vunpack.c.l.b16 %v382
        %v781 = vunpack.c.l.b16 %v383
        %v782 = vunpack.c.l.b16 %v384
        %v783 = vunpack.c.l.b16 %v385
        %v784 = vunpack.c.l.b16 %v386
        %v785 = vunpack.c.l.b16 %v387
        %v786 = vpack.c.b16 %v771, %v770
        %v787 = vpack.c.b16 %v773, %v772
        %v788 = vpack.c.b16 %v775, %v774
        %v789 = vpack.c.b16 %v777, %v776
        %v790 = vpack.c.b16 %v779, %v778
        %v791 = vpack.c.b16 %v781, %v780
        %v792 = vpack.c.b16 %v783, %v782
        %v793 = vpack.c.b16 %v785, %v784
        %802 = vmatpush.bf16.msra.mxu0 %v793
        %803 = vmatpush.bf16.msra.mxu0 %v792
        %804 = vmatpush.bf16.msra.mxu0 %v791
        %805 = vmatpush.bf16.msra.mxu0 %v790
        %806 = vmatpush.bf16.msra.mxu0 %v789
        %807 = vmatpush.bf16.msra.mxu0 %v788
        %808 = vmatpush.bf16.msra.mxu0 %v787
        %809 = vmatpush.bf16.msra.mxu0 %v786
        %810 = vmatmul.bf16.gmra.mxu0 %v746
        %v811 = vpop.f32.mrf.mxu0
        %v812 = vadd.f32 0.0, %v811
        %v813 = vpop.f32.mrf.mxu0
        %v814 = vadd.f32 0.0, %v813
        %815 = vmatmul.bf16.gmra.mxu0 %v747
        %v816 = vpop.f32.mrf.mxu0
        %v817 = vadd.f32 0.0, %v816
        %v818 = vpop.f32.mrf.mxu0
        %v819 = vadd.f32 0.0, %v818
        %820 = vmatmul.bf16.gmra.mxu0 %v748
        %v821 = vpop.f32.mrf.mxu0
        %v822 = vadd.f32 0.0, %v821
        %v823 = vpop.f32.mrf.mxu0
        %v824 = vadd.f32 0.0, %v823
        %825 = vmatmul.bf16.gmra.mxu0 %v749
        %v826 = vpop.f32.mrf.mxu0
        %v827 = vadd.f32 0.0, %v826
        %v828 = vpop.f32.mrf.mxu0
        %v829 = vadd.f32 0.0, %v828
        %830 = vmatmul.bf16.gmra.mxu0 %v750
        %v831 = vpop.f32.mrf.mxu0
        %v832 = vadd.f32 0.0, %v831
        %v833 = vpop.f32.mrf.mxu0
        %v834 = vadd.f32 0.0, %v833
        %835 = vmatmul.bf16.gmra.mxu0 %v751
        %v836 = vpop.f32.mrf.mxu0
        %v837 = vadd.f32 0.0, %v836
        %v838 = vpop.f32.mrf.mxu0
        %v839 = vadd.f32 0.0, %v838
        %840 = vmatmul.bf16.gmra.mxu0 %v752
        %v841 = vpop.f32.mrf.mxu0
        %v842 = vadd.f32 0.0, %v841
        %v843 = vpop.f32.mrf.mxu0
        %v844 = vadd.f32 0.0, %v843
        %845 = vmatmul.bf16.gmra.mxu0 %v753
        %v846 = vpop.f32.mrf.mxu0
        %v847 = vadd.f32 0.0, %v846
        %v848 = vpop.f32.mrf.mxu0
        %v849 = vadd.f32 0.0, %v848
        %850 = vdwg.mxu0
        %v851 = vadd.f32 %v730, %v812
        %v852 = vadd.f32 %v731, %v814
        %v853 = vadd.f32 %v732, %v817
        %v854 = vadd.f32 %v733, %v819
        %v855 = vadd.f32 %v734, %v822
        %v856 = vadd.f32 %v735, %v824
        %v857 = vadd.f32 %v736, %v827
        %v858 = vadd.f32 %v737, %v829
        %v859 = vadd.f32 %v738, %v832
        %v860 = vadd.f32 %v739, %v834
        %v861 = vadd.f32 %v740, %v837
        %v862 = vadd.f32 %v741, %v839
        %v863 = vadd.f32 %v742, %v842
        %v864 = vadd.f32 %v743, %v844
        %v865 = vadd.f32 %v744, %v847
        %v866 = vadd.f32 %v745, %v849
        %867 = vst [vmem:[#allocation2] sm:$0xff] %v851
        %868 = vst [vmem:[#allocation2 + $0x8] sm:$0xff] %v852
        %869 = vst [vmem:[#allocation2 + $0x10] sm:$0xff] %v853
        %870 = vst [vmem:[#allocation2 + $0x18] sm:$0xff] %v854
        %871 = vst [vmem:[#allocation2 + $0x20] sm:$0xff] %v855
        %872 = vst [vmem:[#allocation2 + $0x28] sm:$0xff] %v856
        %873 = vst [vmem:[#allocation2 + $0x30] sm:$0xff] %v857
        %874 = vst [vmem:[#allocation2 + $0x38] sm:$0xff] %v858
        %875 = vst [vmem:[#allocation2 + $0x40] sm:$0xff] %v859
        %876 = vst [vmem:[#allocation2 + $0x48] sm:$0xff] %v860
        %877 = vst [vmem:[#allocation2 + $0x50] sm:$0xff] %v861
        %878 = vst [vmem:[#allocation2 + $0x58] sm:$0xff] %v862
        %879 = vst [vmem:[#allocation2 + $0x60] sm:$0xff] %v863
        %880 = vst [vmem:[#allocation2 + $0x68] sm:$0xff] %v864
        %881 = vst [vmem:[#allocation2 + $0x70] sm:$0xff] %v865
        %882 = vst [vmem:[#allocation2 + $0x78] sm:$0xff] %v866
        %p883 = scmp.eq.s32.totalorder %s20, 1
        // Predicated region
        $region79: #{spgat_forward.7} parent=69 // pred_check
          %p884 = pneg %p883
        $region80: #{spgat_forward.7} parent=69 // pred_check_branch
          %886 = sbr.rel (%p884) target = $region82
        $region81: #{spgat_forward.7} parent=69 // pred_region
          %v887 = vlaneseq
          %v888 = vand.u32 %v887, 127
          %v889 = vld [vmem:[#allocation2] sm:$0xff]
          %v890 = vld [vmem:[#allocation2 + $0x8] sm:$0xff]
          %v891 = vld [vmem:[#allocation2 + $0x10] sm:$0xff]
          %v892 = vld [vmem:[#allocation2 + $0x18] sm:$0xff]
          %v893 = vld [vmem:[#allocation2 + $0x20] sm:$0xff]
          %v894 = vld [vmem:[#allocation2 + $0x28] sm:$0xff]
          %v895 = vld [vmem:[#allocation2 + $0x30] sm:$0xff]
          %v896 = vld [vmem:[#allocation2 + $0x38] sm:$0xff]
          %v897 = vld [vmem:[#allocation2 + $0x40] sm:$0xff]
          %v898 = vld [vmem:[#allocation2 + $0x48] sm:$0xff]
          %v899 = vld [vmem:[#allocation2 + $0x50] sm:$0xff]
          %v900 = vld [vmem:[#allocation2 + $0x58] sm:$0xff]
          %v901 = vld [vmem:[#allocation2 + $0x60] sm:$0xff]
          %v902 = vld [vmem:[#allocation2 + $0x68] sm:$0xff]
          %v903 = vld [vmem:[#allocation2 + $0x70] sm:$0xff]
          %v904 = vld [vmem:[#allocation2 + $0x78] sm:$0xff]
          %v905 = vmax.f32 %v889, 1e-36
          %v906 = vmax.f32 %v890, 1e-36
          %v907 = vmax.f32 %v891, 1e-36
          %v908 = vmax.f32 %v892, 1e-36
          %v909 = vmax.f32 %v893, 1e-36
          %v910 = vmax.f32 %v894, 1e-36
          %v911 = vmax.f32 %v895, 1e-36
          %v912 = vmax.f32 %v896, 1e-36
          %v913 = vmax.f32 %v897, 1e-36
          %v914 = vmax.f32 %v898, 1e-36
          %v915 = vmax.f32 %v899, 1e-36
          %v916 = vmax.f32 %v900, 1e-36
          %v917 = vmax.f32 %v901, 1e-36
          %v918 = vmax.f32 %v902, 1e-36
          %v919 = vmax.f32 %v903, 1e-36
          %v920 = vmax.f32 %v904, 1e-36
          %v921 = vrcp.pop %v905
          %v922 = vmul.f32 %v905, %v921
          %v923 = vsub.f32 1.0, %v922
          %v924 = vmul.f32 %v921, %v923
          %v925 = vadd.f32 %v921, %v924
          %vm926 = vweird.f32 %v905
          %vm927 = vweird.f32 %v921
          %vm928 = vmor %vm926, %vm927
          %v929 = vsel %vm928, %v921, %v925
          %v930 = vand.u32 2147483647, %v905
          %vm931 = vcmp.eq.f32.partialorder %v930, 8.507059e+37
          %v932 = vand.u32 %v905, 2147483648
          %v933 = vor.u32 1.1754944e-38, %v932
          %v934 = vsel %vm931, %v933, %v929
          %v935 = vmul.f32 1.0, %v934
          %v936 = vrcp.pop %v906
          %v937 = vmul.f32 %v906, %v936
          %v938 = vsub.f32 1.0, %v937
          %v939 = vmul.f32 %v936, %v938
          %v940 = vadd.f32 %v936, %v939
          %vm941 = vweird.f32 %v906
          %vm942 = vweird.f32 %v936
          %vm943 = vmor %vm941, %vm942
          %v944 = vsel %vm943, %v936, %v940
          %v945 = vand.u32 2147483647, %v906
          %vm946 = vcmp.eq.f32.partialorder %v945, 8.507059e+37
          %v947 = vand.u32 %v906, 2147483648
          %v948 = vor.u32 1.1754944e-38, %v947
          %v949 = vsel %vm946, %v948, %v944
          %v950 = vmul.f32 1.0, %v949
          %v951 = vrcp.pop %v907
          %v952 = vmul.f32 %v907, %v951
          %v953 = vsub.f32 1.0, %v952
          %v954 = vmul.f32 %v951, %v953
          %v955 = vadd.f32 %v951, %v954
          %vm956 = vweird.f32 %v907
          %vm957 = vweird.f32 %v951
          %vm958 = vmor %vm956, %vm957
          %v959 = vsel %vm958, %v951, %v955
          %v960 = vand.u32 2147483647, %v907
          %vm961 = vcmp.eq.f32.partialorder %v960, 8.507059e+37
          %v962 = vand.u32 %v907, 2147483648
          %v963 = vor.u32 1.1754944e-38, %v962
          %v964 = vsel %vm961, %v963, %v959
          %v965 = vmul.f32 1.0, %v964
          %v966 = vrcp.pop %v908
          %v967 = vmul.f32 %v908, %v966
          %v968 = vsub.f32 1.0, %v967
          %v969 = vmul.f32 %v966, %v968
          %v970 = vadd.f32 %v966, %v969
          %vm971 = vweird.f32 %v908
          %vm972 = vweird.f32 %v966
          %vm973 = vmor %vm971, %vm972
          %v974 = vsel %vm973, %v966, %v970
          %v975 = vand.u32 2147483647, %v908
          %vm976 = vcmp.eq.f32.partialorder %v975, 8.507059e+37
          %v977 = vand.u32 %v908, 2147483648
          %v978 = vor.u32 1.1754944e-38, %v977
          %v979 = vsel %vm976, %v978, %v974
          %v980 = vmul.f32 1.0, %v979
          %v981 = vrcp.pop %v909
          %v982 = vmul.f32 %v909, %v981
          %v983 = vsub.f32 1.0, %v982
          %v984 = vmul.f32 %v981, %v983
          %v985 = vadd.f32 %v981, %v984
          %vm986 = vweird.f32 %v909
          %vm987 = vweird.f32 %v981
          %vm988 = vmor %vm986, %vm987
          %v989 = vsel %vm988, %v981, %v985
          %v990 = vand.u32 2147483647, %v909
          %vm991 = vcmp.eq.f32.partialorder %v990, 8.507059e+37
          %v992 = vand.u32 %v909, 2147483648
          %v993 = vor.u32 1.1754944e-38, %v992
          %v994 = vsel %vm991, %v993, %v989
          %v995 = vmul.f32 1.0, %v994
          %v996 = vrcp.pop %v910
          %v997 = vmul.f32 %v910, %v996
          %v998 = vsub.f32 1.0, %v997
          %v999 = vmul.f32 %v996, %v998
          %v1000 = vadd.f32 %v996, %v999
          %vm1001 = vweird.f32 %v910
          %vm1002 = vweird.f32 %v996
          %vm1003 = vmor %vm1001, %vm1002
          %v1004 = vsel %vm1003, %v996, %v1000
          %v1005 = vand.u32 2147483647, %v910
          %vm1006 = vcmp.eq.f32.partialorder %v1005, 8.507059e+37
          %v1007 = vand.u32 %v910, 2147483648
          %v1008 = vor.u32 1.1754944e-38, %v1007
          %v1009 = vsel %vm1006, %v1008, %v1004
          %v1010 = vmul.f32 1.0, %v1009
          %v1011 = vrcp.pop %v911
          %v1012 = vmul.f32 %v911, %v1011
          %v1013 = vsub.f32 1.0, %v1012
          %v1014 = vmul.f32 %v1011, %v1013
          %v1015 = vadd.f32 %v1011, %v1014
          %vm1016 = vweird.f32 %v911
          %vm1017 = vweird.f32 %v1011
          %vm1018 = vmor %vm1016, %vm1017
          %v1019 = vsel %vm1018, %v1011, %v1015
          %v1020 = vand.u32 2147483647, %v911
          %vm1021 = vcmp.eq.f32.partialorder %v1020, 8.507059e+37
          %v1022 = vand.u32 %v911, 2147483648
          %v1023 = vor.u32 1.1754944e-38, %v1022
          %v1024 = vsel %vm1021, %v1023, %v1019
          %v1025 = vmul.f32 1.0, %v1024
          %v1026 = vrcp.pop %v912
          %v1027 = vmul.f32 %v912, %v1026
          %v1028 = vsub.f32 1.0, %v1027
          %v1029 = vmul.f32 %v1026, %v1028
          %v1030 = vadd.f32 %v1026, %v1029
          %vm1031 = vweird.f32 %v912
          %vm1032 = vweird.f32 %v1026
          %vm1033 = vmor %vm1031, %vm1032
          %v1034 = vsel %vm1033, %v1026, %v1030
          %v1035 = vand.u32 2147483647, %v912
          %vm1036 = vcmp.eq.f32.partialorder %v1035, 8.507059e+37
          %v1037 = vand.u32 %v912, 2147483648
          %v1038 = vor.u32 1.1754944e-38, %v1037
          %v1039 = vsel %vm1036, %v1038, %v1034
          %v1040 = vmul.f32 1.0, %v1039
          %v1041 = vrcp.pop %v913
          %v1042 = vmul.f32 %v913, %v1041
          %v1043 = vsub.f32 1.0, %v1042
          %v1044 = vmul.f32 %v1041, %v1043
          %v1045 = vadd.f32 %v1041, %v1044
          %vm1046 = vweird.f32 %v913
          %vm1047 = vweird.f32 %v1041
          %vm1048 = vmor %vm1046, %vm1047
          %v1049 = vsel %vm1048, %v1041, %v1045
          %v1050 = vand.u32 2147483647, %v913
          %vm1051 = vcmp.eq.f32.partialorder %v1050, 8.507059e+37
          %v1052 = vand.u32 %v913, 2147483648
          %v1053 = vor.u32 1.1754944e-38, %v1052
          %v1054 = vsel %vm1051, %v1053, %v1049
          %v1055 = vmul.f32 1.0, %v1054
          %v1056 = vrcp.pop %v914
          %v1057 = vmul.f32 %v914, %v1056
          %v1058 = vsub.f32 1.0, %v1057
          %v1059 = vmul.f32 %v1056, %v1058
          %v1060 = vadd.f32 %v1056, %v1059
          %vm1061 = vweird.f32 %v914
          %vm1062 = vweird.f32 %v1056
          %vm1063 = vmor %vm1061, %vm1062
          %v1064 = vsel %vm1063, %v1056, %v1060
          %v1065 = vand.u32 2147483647, %v914
          %vm1066 = vcmp.eq.f32.partialorder %v1065, 8.507059e+37
          %v1067 = vand.u32 %v914, 2147483648
          %v1068 = vor.u32 1.1754944e-38, %v1067
          %v1069 = vsel %vm1066, %v1068, %v1064
          %v1070 = vmul.f32 1.0, %v1069
          %v1071 = vrcp.pop %v915
          %v1072 = vmul.f32 %v915, %v1071
          %v1073 = vsub.f32 1.0, %v1072
          %v1074 = vmul.f32 %v1071, %v1073
          %v1075 = vadd.f32 %v1071, %v1074
          %vm1076 = vweird.f32 %v915
          %vm1077 = vweird.f32 %v1071
          %vm1078 = vmor %vm1076, %vm1077
          %v1079 = vsel %vm1078, %v1071, %v1075
          %v1080 = vand.u32 2147483647, %v915
          %vm1081 = vcmp.eq.f32.partialorder %v1080, 8.507059e+37
          %v1082 = vand.u32 %v915, 2147483648
          %v1083 = vor.u32 1.1754944e-38, %v1082
          %v1084 = vsel %vm1081, %v1083, %v1079
          %v1085 = vmul.f32 1.0, %v1084
          %v1086 = vrcp.pop %v916
          %v1087 = vmul.f32 %v916, %v1086
          %v1088 = vsub.f32 1.0, %v1087
          %v1089 = vmul.f32 %v1086, %v1088
          %v1090 = vadd.f32 %v1086, %v1089
          %vm1091 = vweird.f32 %v916
          %vm1092 = vweird.f32 %v1086
          %vm1093 = vmor %vm1091, %vm1092
          %v1094 = vsel %vm1093, %v1086, %v1090
          %v1095 = vand.u32 2147483647, %v916
          %vm1096 = vcmp.eq.f32.partialorder %v1095, 8.507059e+37
          %v1097 = vand.u32 %v916, 2147483648
          %v1098 = vor.u32 1.1754944e-38, %v1097
          %v1099 = vsel %vm1096, %v1098, %v1094
          %v1100 = vmul.f32 1.0, %v1099
          %v1101 = vrcp.pop %v917
          %v1102 = vmul.f32 %v917, %v1101
          %v1103 = vsub.f32 1.0, %v1102
          %v1104 = vmul.f32 %v1101, %v1103
          %v1105 = vadd.f32 %v1101, %v1104
          %vm1106 = vweird.f32 %v917
          %vm1107 = vweird.f32 %v1101
          %vm1108 = vmor %vm1106, %vm1107
          %v1109 = vsel %vm1108, %v1101, %v1105
          %v1110 = vand.u32 2147483647, %v917
          %vm1111 = vcmp.eq.f32.partialorder %v1110, 8.507059e+37
          %v1112 = vand.u32 %v917, 2147483648
          %v1113 = vor.u32 1.1754944e-38, %v1112
          %v1114 = vsel %vm1111, %v1113, %v1109
          %v1115 = vmul.f32 1.0, %v1114
          %v1116 = vrcp.pop %v918
          %v1117 = vmul.f32 %v918, %v1116
          %v1118 = vsub.f32 1.0, %v1117
          %v1119 = vmul.f32 %v1116, %v1118
          %v1120 = vadd.f32 %v1116, %v1119
          %vm1121 = vweird.f32 %v918
          %vm1122 = vweird.f32 %v1116
          %vm1123 = vmor %vm1121, %vm1122
          %v1124 = vsel %vm1123, %v1116, %v1120
          %v1125 = vand.u32 2147483647, %v918
          %vm1126 = vcmp.eq.f32.partialorder %v1125, 8.507059e+37
          %v1127 = vand.u32 %v918, 2147483648
          %v1128 = vor.u32 1.1754944e-38, %v1127
          %v1129 = vsel %vm1126, %v1128, %v1124
          %v1130 = vmul.f32 1.0, %v1129
          %v1131 = vrcp.pop %v919
          %v1132 = vmul.f32 %v919, %v1131
          %v1133 = vsub.f32 1.0, %v1132
          %v1134 = vmul.f32 %v1131, %v1133
          %v1135 = vadd.f32 %v1131, %v1134
          %vm1136 = vweird.f32 %v919
          %vm1137 = vweird.f32 %v1131
          %vm1138 = vmor %vm1136, %vm1137
          %v1139 = vsel %vm1138, %v1131, %v1135
          %v1140 = vand.u32 2147483647, %v919
          %vm1141 = vcmp.eq.f32.partialorder %v1140, 8.507059e+37
          %v1142 = vand.u32 %v919, 2147483648
          %v1143 = vor.u32 1.1754944e-38, %v1142
          %v1144 = vsel %vm1141, %v1143, %v1139
          %v1145 = vmul.f32 1.0, %v1144
          %v1146 = vrcp.pop %v920
          %v1147 = vmul.f32 %v920, %v1146
          %v1148 = vsub.f32 1.0, %v1147
          %v1149 = vmul.f32 %v1146, %v1148
          %v1150 = vadd.f32 %v1146, %v1149
          %vm1151 = vweird.f32 %v920
          %vm1152 = vweird.f32 %v1146
          %vm1153 = vmor %vm1151, %vm1152
          %v1154 = vsel %vm1153, %v1146, %v1150
          %v1155 = vand.u32 2147483647, %v920
          %vm1156 = vcmp.eq.f32.partialorder %v1155, 8.507059e+37
          %v1157 = vand.u32 %v920, 2147483648
          %v1158 = vor.u32 1.1754944e-38, %v1157
          %v1159 = vsel %vm1156, %v1158, %v1154
          %v1160 = vmul.f32 1.0, %v1159
          %1162 = vset.pattern.permute.xlu0 8
          %1163 = vperm.xlu0 %1162, %v935
          %v1164 = vpop.permute.xlu0 %1163
          %1167 = vset.pattern.permute.xlu0 8
          %1168 = vperm.xlu0 %1167, %v950
          %v1169 = vpop.permute.xlu0 %1168
          %1172 = vset.pattern.permute.xlu0 8
          %1173 = vperm.xlu0 %1172, %v965
          %v1174 = vpop.permute.xlu0 %1173
          %1177 = vset.pattern.permute.xlu0 8
          %1178 = vperm.xlu0 %1177, %v980
          %v1179 = vpop.permute.xlu0 %1178
          %1182 = vset.pattern.permute.xlu0 8
          %1183 = vperm.xlu0 %1182, %v995
          %v1184 = vpop.permute.xlu0 %1183
          %1187 = vset.pattern.permute.xlu0 8
          %1188 = vperm.xlu0 %1187, %v1010
          %v1189 = vpop.permute.xlu0 %1188
          %1192 = vset.pattern.permute.xlu0 8
          %1193 = vperm.xlu0 %1192, %v1025
          %v1194 = vpop.permute.xlu0 %1193
          %1197 = vset.pattern.permute.xlu0 8
          %1198 = vperm.xlu0 %1197, %v1040
          %v1199 = vpop.permute.xlu0 %1198
          %1202 = vset.pattern.permute.xlu0 8
          %1203 = vperm.xlu0 %1202, %v1055
          %v1204 = vpop.permute.xlu0 %1203
          %1207 = vset.pattern.permute.xlu0 8
          %1208 = vperm.xlu0 %1207, %v1070
          %v1209 = vpop.permute.xlu0 %1208
          %1212 = vset.pattern.permute.xlu0 8
          %1213 = vperm.xlu0 %1212, %v1085
          %v1214 = vpop.permute.xlu0 %1213
          %1217 = vset.pattern.permute.xlu0 8
          %1218 = vperm.xlu0 %1217, %v1100
          %v1219 = vpop.permute.xlu0 %1218
          %1222 = vset.pattern.permute.xlu0 8
          %1223 = vperm.xlu0 %1222, %v1115
          %v1224 = vpop.permute.xlu0 %1223
          %1227 = vset.pattern.permute.xlu0 8
          %1228 = vperm.xlu0 %1227, %v1130
          %v1229 = vpop.permute.xlu0 %1228
          %1232 = vset.pattern.permute.xlu0 8
          %1233 = vperm.xlu0 %1232, %v1145
          %v1234 = vpop.permute.xlu0 %1233
          %1237 = vset.pattern.permute.xlu0 8
          %1238 = vperm.xlu0 %1237, %v1160
          %v1239 = vpop.permute.xlu0 %1238
          %v1241 = vmul.f32 %v889, %v1164
          %v1242 = vmul.f32 %v890, %v1169
          %v1243 = vmul.f32 %v891, %v1174
          %v1244 = vmul.f32 %v892, %v1179
          %v1245 = vmul.f32 %v893, %v1184
          %v1246 = vmul.f32 %v894, %v1189
          %v1247 = vmul.f32 %v895, %v1194
          %v1248 = vmul.f32 %v896, %v1199
          %v1249 = vmul.f32 %v897, %v1204
          %v1250 = vmul.f32 %v898, %v1209
          %v1251 = vmul.f32 %v899, %v1214
          %v1252 = vmul.f32 %v900, %v1219
          %v1253 = vmul.f32 %v901, %v1224
          %v1254 = vmul.f32 %v902, %v1229
          %v1255 = vmul.f32 %v903, %v1234
          %v1256 = vmul.f32 %v904, %v1239
          %vm1257 = vcmp.gt.f32.partialorder %v1241, 0.0
          %vm1258 = vcmp.gt.f32.partialorder %v1242, 0.0
          %vm1259 = vcmp.gt.f32.partialorder %v1243, 0.0
          %vm1260 = vcmp.gt.f32.partialorder %v1244, 0.0
          %vm1261 = vcmp.gt.f32.partialorder %v1245, 0.0
          %vm1262 = vcmp.gt.f32.partialorder %v1246, 0.0
          %vm1263 = vcmp.gt.f32.partialorder %v1247, 0.0
          %vm1264 = vcmp.gt.f32.partialorder %v1248, 0.0
          %vm1265 = vcmp.gt.f32.partialorder %v1249, 0.0
          %vm1266 = vcmp.gt.f32.partialorder %v1250, 0.0
          %vm1267 = vcmp.gt.f32.partialorder %v1251, 0.0
          %vm1268 = vcmp.gt.f32.partialorder %v1252, 0.0
          %vm1269 = vcmp.gt.f32.partialorder %v1253, 0.0
          %vm1270 = vcmp.gt.f32.partialorder %v1254, 0.0
          %vm1271 = vcmp.gt.f32.partialorder %v1255, 0.0
          %vm1272 = vcmp.gt.f32.partialorder %v1256, 0.0
          %v1273 = vmul.f32 %v1241, 1.442695
          %v1274 = vpow.pop %v1273
          %v1275 = vmul.f32 %v1242, 1.442695
          %v1276 = vpow.pop %v1275
          %v1277 = vmul.f32 %v1243, 1.442695
          %v1278 = vpow.pop %v1277
          %v1279 = vmul.f32 %v1244, 1.442695
          %v1280 = vpow.pop %v1279
          %v1281 = vmul.f32 %v1245, 1.442695
          %v1282 = vpow.pop %v1281
          %v1283 = vmul.f32 %v1246, 1.442695
          %v1284 = vpow.pop %v1283
          %v1285 = vmul.f32 %v1247, 1.442695
          %v1286 = vpow.pop %v1285
          %v1287 = vmul.f32 %v1248, 1.442695
          %v1288 = vpow.pop %v1287
          %v1289 = vmul.f32 %v1249, 1.442695
          %v1290 = vpow.pop %v1289
          %v1291 = vmul.f32 %v1250, 1.442695
          %v1292 = vpow.pop %v1291
          %v1293 = vmul.f32 %v1251, 1.442695
          %v1294 = vpow.pop %v1293
          %v1295 = vmul.f32 %v1252, 1.442695
          %v1296 = vpow.pop %v1295
          %v1297 = vmul.f32 %v1253, 1.442695
          %v1298 = vpow.pop %v1297
          %v1299 = vmul.f32 %v1254, 1.442695
          %v1300 = vpow.pop %v1299
          %v1301 = vmul.f32 %v1255, 1.442695
          %v1302 = vpow.pop %v1301
          %v1303 = vmul.f32 %v1256, 1.442695
          %v1304 = vpow.pop %v1303
          %v1305 = vsub.f32 %v1274, 1.0
          %v1306 = vsub.f32 %v1276, 1.0
          %v1307 = vsub.f32 %v1278, 1.0
          %v1308 = vsub.f32 %v1280, 1.0
          %v1309 = vsub.f32 %v1282, 1.0
          %v1310 = vsub.f32 %v1284, 1.0
          %v1311 = vsub.f32 %v1286, 1.0
          %v1312 = vsub.f32 %v1288, 1.0
          %v1313 = vsub.f32 %v1290, 1.0
          %v1314 = vsub.f32 %v1292, 1.0
          %v1315 = vsub.f32 %v1294, 1.0
          %v1316 = vsub.f32 %v1296, 1.0
          %v1317 = vsub.f32 %v1298, 1.0
          %v1318 = vsub.f32 %v1300, 1.0
          %v1319 = vsub.f32 %v1302, 1.0
          %v1320 = vsub.f32 %v1304, 1.0
          %v1321 = vsel %vm1257, %v1241, %v1305
          %v1322 = vsel %vm1258, %v1242, %v1306
          %v1323 = vsel %vm1259, %v1243, %v1307
          %v1324 = vsel %vm1260, %v1244, %v1308
          %v1325 = vsel %vm1261, %v1245, %v1309
          %v1326 = vsel %vm1262, %v1246, %v1310
          %v1327 = vsel %vm1263, %v1247, %v1311
          %v1328 = vsel %vm1264, %v1248, %v1312
          %v1329 = vsel %vm1265, %v1249, %v1313
          %v1330 = vsel %vm1266, %v1250, %v1314
          %v1331 = vsel %vm1267, %v1251, %v1315
          %v1332 = vsel %vm1268, %v1252, %v1316
          %v1333 = vsel %vm1269, %v1253, %v1317
          %v1334 = vsel %vm1270, %v1254, %v1318
          %v1335 = vsel %vm1271, %v1255, %v1319
          %v1336 = vsel %vm1272, %v1256, %v1320
          %vm1337 = vcmp.ge.s32.totalorder %v888, 0
          %vm1338 = vcmp.lt.s32.totalorder %v888, 8
          %vm1339 = vmand %vm1337, %vm1338
          %v1340 = vsel %vm1339, %v1321, 0.0
          %v1341 = vsel %vm1339, %v1322, 0.0
          %v1342 = vsel %vm1339, %v1323, 0.0
          %v1343 = vsel %vm1339, %v1324, 0.0
          %v1344 = vsel %vm1339, %v1325, 0.0
          %v1345 = vsel %vm1339, %v1326, 0.0
          %v1346 = vsel %vm1339, %v1327, 0.0
          %v1347 = vsel %vm1339, %v1328, 0.0
          %v1348 = vsel %vm1339, %v1329, 0.0
          %v1349 = vsel %vm1339, %v1330, 0.0
          %v1350 = vsel %vm1339, %v1331, 0.0
          %v1351 = vsel %vm1339, %v1332, 0.0
          %v1352 = vsel %vm1339, %v1333, 0.0
          %v1353 = vsel %vm1339, %v1334, 0.0
          %v1354 = vsel %vm1339, %v1335, 0.0
          %v1355 = vsel %vm1339, %v1336, 0.0
          %v1356 = vsel %vm1338, %v1340, -inf
          %v1357 = vsel %vm1338, %v1341, -inf
          %v1358 = vsel %vm1338, %v1342, -inf
          %v1359 = vsel %vm1338, %v1343, -inf
          %v1360 = vsel %vm1338, %v1344, -inf
          %v1361 = vsel %vm1338, %v1345, -inf
          %v1362 = vsel %vm1338, %v1346, -inf
          %v1363 = vsel %vm1338, %v1347, -inf
          %v1364 = vsel %vm1338, %v1348, -inf
          %v1365 = vsel %vm1338, %v1349, -inf
          %v1366 = vsel %vm1338, %v1350, -inf
          %v1367 = vsel %vm1338, %v1351, -inf
          %v1368 = vsel %vm1338, %v1352, -inf
          %v1369 = vsel %vm1338, %v1353, -inf
          %v1370 = vsel %vm1338, %v1354, -inf
          %v1371 = vsel %vm1338, %v1355, -inf
          %1372 = vmax.xlane.f32.xlu0 %v1356
          %v1373 = vpop.xlane.xlu0 %1372
          %1374 = vmax.xlane.f32.xlu0 %v1357
          %v1375 = vpop.xlane.xlu0 %1374
          %1376 = vmax.xlane.f32.xlu0 %v1358
          %v1377 = vpop.xlane.xlu0 %1376
          %1378 = vmax.xlane.f32.xlu0 %v1359
          %v1379 = vpop.xlane.xlu0 %1378
          %1380 = vmax.xlane.f32.xlu0 %v1360
          %v1381 = vpop.xlane.xlu0 %1380
          %1382 = vmax.xlane.f32.xlu0 %v1361
          %v1383 = vpop.xlane.xlu0 %1382
          %1384 = vmax.xlane.f32.xlu0 %v1362
          %v1385 = vpop.xlane.xlu0 %1384
          %1386 = vmax.xlane.f32.xlu0 %v1363
          %v1387 = vpop.xlane.xlu0 %1386
          %1388 = vmax.xlane.f32.xlu0 %v1364
          %v1389 = vpop.xlane.xlu0 %1388
          %1390 = vmax.xlane.f32.xlu0 %v1365
          %v1391 = vpop.xlane.xlu0 %1390
          %1392 = vmax.xlane.f32.xlu0 %v1366
          %v1393 = vpop.xlane.xlu0 %1392
          %1394 = vmax.xlane.f32.xlu0 %v1367
          %v1395 = vpop.xlane.xlu0 %1394
          %1396 = vmax.xlane.f32.xlu0 %v1368
          %v1397 = vpop.xlane.xlu0 %1396
          %1398 = vmax.xlane.f32.xlu0 %v1369
          %v1399 = vpop.xlane.xlu0 %1398
          %1400 = vmax.xlane.f32.xlu0 %v1370
          %v1401 = vpop.xlane.xlu0 %1400
          %1402 = vmax.xlane.f32.xlu0 %v1371
          %v1403 = vpop.xlane.xlu0 %1402
          %v1404 = vsub.f32 %v1356, %v1373
          %v1405 = vsub.f32 %v1357, %v1375
          %v1406 = vsub.f32 %v1358, %v1377
          %v1407 = vsub.f32 %v1359, %v1379
          %v1408 = vsub.f32 %v1360, %v1381
          %v1409 = vsub.f32 %v1361, %v1383
          %v1410 = vsub.f32 %v1362, %v1385
          %v1411 = vsub.f32 %v1363, %v1387
          %v1412 = vsub.f32 %v1364, %v1389
          %v1413 = vsub.f32 %v1365, %v1391
          %v1414 = vsub.f32 %v1366, %v1393
          %v1415 = vsub.f32 %v1367, %v1395
          %v1416 = vsub.f32 %v1368, %v1397
          %v1417 = vsub.f32 %v1369, %v1399
          %v1418 = vsub.f32 %v1370, %v1401
          %v1419 = vsub.f32 %v1371, %v1403
          %v1420 = vmul.f32 %v1404, 1.442695
          %v1421 = vpow.pop %v1420
          %v1422 = vmul.f32 %v1405, 1.442695
          %v1423 = vpow.pop %v1422
          %v1424 = vmul.f32 %v1406, 1.442695
          %v1425 = vpow.pop %v1424
          %v1426 = vmul.f32 %v1407, 1.442695
          %v1427 = vpow.pop %v1426
          %v1428 = vmul.f32 %v1408, 1.442695
          %v1429 = vpow.pop %v1428
          %v1430 = vmul.f32 %v1409, 1.442695
          %v1431 = vpow.pop %v1430
          %v1432 = vmul.f32 %v1410, 1.442695
          %v1433 = vpow.pop %v1432
          %v1434 = vmul.f32 %v1411, 1.442695
          %v1435 = vpow.pop %v1434
          %v1436 = vmul.f32 %v1412, 1.442695
          %v1437 = vpow.pop %v1436
          %v1438 = vmul.f32 %v1413, 1.442695
          %v1439 = vpow.pop %v1438
          %v1440 = vmul.f32 %v1414, 1.442695
          %v1441 = vpow.pop %v1440
          %v1442 = vmul.f32 %v1415, 1.442695
          %v1443 = vpow.pop %v1442
          %v1444 = vmul.f32 %v1416, 1.442695
          %v1445 = vpow.pop %v1444
          %v1446 = vmul.f32 %v1417, 1.442695
          %v1447 = vpow.pop %v1446
          %v1448 = vmul.f32 %v1418, 1.442695
          %v1449 = vpow.pop %v1448
          %v1450 = vmul.f32 %v1419, 1.442695
          %v1451 = vpow.pop %v1450
          %1452 = vadd.xlane.f32.xlu0 %v1421
          %v1453 = vpop.xlane.xlu0 %1452
          %1454 = vadd.xlane.f32.xlu0 %v1423
          %v1455 = vpop.xlane.xlu0 %1454
          %1456 = vadd.xlane.f32.xlu0 %v1425
          %v1457 = vpop.xlane.xlu0 %1456
          %1458 = vadd.xlane.f32.xlu0 %v1427
          %v1459 = vpop.xlane.xlu0 %1458
          %1460 = vadd.xlane.f32.xlu0 %v1429
          %v1461 = vpop.xlane.xlu0 %1460
          %1462 = vadd.xlane.f32.xlu0 %v1431
          %v1463 = vpop.xlane.xlu0 %1462
          %1464 = vadd.xlane.f32.xlu0 %v1433
          %v1465 = vpop.xlane.xlu0 %1464
          %1466 = vadd.xlane.f32.xlu0 %v1435
          %v1467 = vpop.xlane.xlu0 %1466
          %1468 = vadd.xlane.f32.xlu0 %v1437
          %v1469 = vpop.xlane.xlu0 %1468
          %1470 = vadd.xlane.f32.xlu0 %v1439
          %v1471 = vpop.xlane.xlu0 %1470
          %1472 = vadd.xlane.f32.xlu0 %v1441
          %v1473 = vpop.xlane.xlu0 %1472
          %1474 = vadd.xlane.f32.xlu0 %v1443
          %v1475 = vpop.xlane.xlu0 %1474
          %1476 = vadd.xlane.f32.xlu0 %v1445
          %v1477 = vpop.xlane.xlu0 %1476
          %1478 = vadd.xlane.f32.xlu0 %v1447
          %v1479 = vpop.xlane.xlu0 %1478
          %1480 = vadd.xlane.f32.xlu0 %v1449
          %v1481 = vpop.xlane.xlu0 %1480
          %1482 = vadd.xlane.f32.xlu0 %v1451
          %v1483 = vpop.xlane.xlu0 %1482
          %v1484 = vlog2.pop %v1453
          %v1485 = vmul.f32 %v1484, 0.6931472
          %v1486 = vlog2.pop %v1455
          %v1487 = vmul.f32 %v1486, 0.6931472
          %v1488 = vlog2.pop %v1457
          %v1489 = vmul.f32 %v1488, 0.6931472
          %v1490 = vlog2.pop %v1459
          %v1491 = vmul.f32 %v1490, 0.6931472
          %v1492 = vlog2.pop %v1461
          %v1493 = vmul.f32 %v1492, 0.6931472
          %v1494 = vlog2.pop %v1463
          %v1495 = vmul.f32 %v1494, 0.6931472
          %v1496 = vlog2.pop %v1465
          %v1497 = vmul.f32 %v1496, 0.6931472
          %v1498 = vlog2.pop %v1467
          %v1499 = vmul.f32 %v1498, 0.6931472
          %v1500 = vlog2.pop %v1469
          %v1501 = vmul.f32 %v1500, 0.6931472
          %v1502 = vlog2.pop %v1471
          %v1503 = vmul.f32 %v1502, 0.6931472
          %v1504 = vlog2.pop %v1473
          %v1505 = vmul.f32 %v1504, 0.6931472
          %v1506 = vlog2.pop %v1475
          %v1507 = vmul.f32 %v1506, 0.6931472
          %v1508 = vlog2.pop %v1477
          %v1509 = vmul.f32 %v1508, 0.6931472
          %v1510 = vlog2.pop %v1479
          %v1511 = vmul.f32 %v1510, 0.6931472
          %v1512 = vlog2.pop %v1481
          %v1513 = vmul.f32 %v1512, 0.6931472
          %v1514 = vlog2.pop %v1483
          %v1515 = vmul.f32 %v1514, 0.6931472
          %v1516 = vsub.f32 %v1404, %v1485
          %v1517 = vsub.f32 %v1405, %v1487
          %v1518 = vsub.f32 %v1406, %v1489
          %v1519 = vsub.f32 %v1407, %v1491
          %v1520 = vsub.f32 %v1408, %v1493
          %v1521 = vsub.f32 %v1409, %v1495
          %v1522 = vsub.f32 %v1410, %v1497
          %v1523 = vsub.f32 %v1411, %v1499
          %v1524 = vsub.f32 %v1412, %v1501
          %v1525 = vsub.f32 %v1413, %v1503
          %v1526 = vsub.f32 %v1414, %v1505
          %v1527 = vsub.f32 %v1415, %v1507
          %v1528 = vsub.f32 %v1416, %v1509
          %v1529 = vsub.f32 %v1417, %v1511
          %v1530 = vsub.f32 %v1418, %v1513
          %v1531 = vsub.f32 %v1419, %v1515
          %v1532 = vsel %vm1338, %v1516, 0.0
          %v1533 = vsel %vm1338, %v1517, 0.0
          %v1534 = vsel %vm1338, %v1518, 0.0
          %v1535 = vsel %vm1338, %v1519, 0.0
          %v1536 = vsel %vm1338, %v1520, 0.0
          %v1537 = vsel %vm1338, %v1521, 0.0
          %v1538 = vsel %vm1338, %v1522, 0.0
          %v1539 = vsel %vm1338, %v1523, 0.0
          %v1540 = vsel %vm1338, %v1524, 0.0
          %v1541 = vsel %vm1338, %v1525, 0.0
          %v1542 = vsel %vm1338, %v1526, 0.0
          %v1543 = vsel %vm1338, %v1527, 0.0
          %v1544 = vsel %vm1338, %v1528, 0.0
          %v1545 = vsel %vm1338, %v1529, 0.0
          %v1546 = vsel %vm1338, %v1530, 0.0
          %v1547 = vsel %vm1338, %v1531, 0.0
          %1548 = vst [vmem:[%s323] sm:$0xff] %v1532
          %1549 = vst [vmem:[%s323 + $0x8] sm:$0xff] %v1533
          %1550 = vst [vmem:[%s323 + $0x10] sm:$0xff] %v1534
          %1551 = vst [vmem:[%s323 + $0x18] sm:$0xff] %v1535
          %1552 = vst [vmem:[%s323 + $0x20] sm:$0xff] %v1536
          %1553 = vst [vmem:[%s323 + $0x28] sm:$0xff] %v1537
          %1554 = vst [vmem:[%s323 + $0x30] sm:$0xff] %v1538
          %1555 = vst [vmem:[%s323 + $0x38] sm:$0xff] %v1539
          %1556 = vst [vmem:[%s323 + $0x40] sm:$0xff] %v1540
          %1557 = vst [vmem:[%s323 + $0x48] sm:$0xff] %v1541
          %1558 = vst [vmem:[%s323 + $0x50] sm:$0xff] %v1542
          %1559 = vst [vmem:[%s323 + $0x58] sm:$0xff] %v1543
          %1560 = vst [vmem:[%s323 + $0x60] sm:$0xff] %v1544
          %1561 = vst [vmem:[%s323 + $0x68] sm:$0xff] %v1545
          %1562 = vst [vmem:[%s323 + $0x70] sm:$0xff] %v1546
          %1563 = vst [vmem:[%s323 + $0x78] sm:$0xff] %v1547
        $region82: #{spgat_forward.7} parent=69 // pred_fallthru
          _
        %s1564 = smul.u32 16, %s19
        %p1565 = scmp.lt.s32.totalorder %s1564, 31
        %s1566 = scalar_select %p1565, %s1564, 31
        %s1567 = smul.addr %s1566, 8
        %s1568 = scalar_lea.vmem %s4, %s1567
        // Predicated region
        $region83: #{spgat_forward.7} parent=69 // pred_check
          %p1569 = pneg %p151
        $region84: #{spgat_forward.7} parent=69 // pred_check_branch
          %1571 = sbr.rel (%p1569) target = $region86
        $region85: #{spgat_forward.7} parent=69 // pred_region
          %s1572 = smul.u32 16, %s19
        $region86: #{spgat_forward.7} parent=69 // pred_fallthru
          _
      $region70: #{spgat_forward.7} parent=5 // pred_fallthru
        _
      %p1573 = scmp.le.s32.totalorder 2, %s10
      // Predicated region
      $region87: #{spgat_forward.7} parent=5 // pred_check
        %p1574 = pneg %p1573
      $region88: #{spgat_forward.7} parent=5 // pred_check_branch
        %1576 = sbr.rel (%p1574) target = $region90
      $region89: #{spgat_forward.7} parent=5 // pred_region
        %s1577 = ssub.s32 %s10, 2
        // Predicated region
        $region91: #{spgat_forward.7} parent=89 // pred_check
          %p1578 = pneg %p157
        $region92: #{spgat_forward.7} parent=89 // pred_check_branch
          %1580 = sbr.rel (%p1578) target = $region94
        $region93: #{spgat_forward.7} parent=89 // pred_region
          %s1581 = smul.u32 16, %s21
          %p1582 = scmp.lt.s32.totalorder %s1581, 31
          %s1583 = scalar_select %p1582, %s1581, 31
          %s1584 = smul.addr %s1583, 8
          %s1585 = scalar_lea.vmem %s4, %s1584
        $region94: #{spgat_forward.7} parent=89 // pred_fallthru
          _
      $region90: #{spgat_forward.7} parent=5 // pred_fallthru
        _
    $region6: #{spgat_forward.7} parent=1 // loop_footer
      %s14 = sadd.s32 1, %s10
    $region7: #{spgat_forward.7} parent=1 // loop_footer_branch
      %9 = sbr.rel target = $region3
    $region8: #{spgat_forward.7} parent=1 // loop_exit
      _

// kernel: spgat_forward.5
$region0: #{spgat_forward.5}
  #allocation0 [shape = 'u32[]', space=smem, size = 0x4, offset = 0x4, fixed_abs, tag = 'smem constant byte address 0x4 - core index']
  #allocation1 [shape = 'u32[72,128]{1,0:T(1,128)}', space=vmem, size = 0x9000, scoped, tag = 'internal scratch']
  #allocation2 [shape = 'f32[4,128,128]{2,1,0:T(8,128)}', space=vmem, size = 0x40000, scoped, tag = 'scratch operand']
  %s0 = inlined_call_operand.vmem [shape: f32[256,8], index: 0, kind: input, shape index: {}]
  %s1 = inlined_call_operand.vmem [shape: f32[8,256], index: 1, kind: input, shape index: {}]
  %s2 = inlined_call_operand.vmem [shape: bf16[256,128], index: 2, kind: input, shape index: {}]
  %s3 = inlined_call_operand.vmem [shape: s8[256,256], index: 3, kind: input, shape index: {}]
  %s4 = inlined_call_operand.vmem [shape: f32[256,128], index: 4, kind: output, shape index: {}]
  %s5 = sld [smem:[#allocation0]]
  $region95: #{spgat_forward.5} parent=0
    _
  %s7 = ssub.s32 1, %s5
  %s8 = scalar_select 0, %s7, %s5
  $region1: #{spgat_forward.5} parent=0
    #allocation3 [shape = 'u8[32768]{0}', space=vmem, size = 0x8000, scoped, tag = 'input window, operand 3']
    loop: start=0, step=1, limit=6
    $region2: #{spgat_forward.5} parent=1 // loop_pre_header
      _
    $region3: #{spgat_forward.5} parent=1 // loop_header
      %s10 = sphi 0, %s14
      %p11 = scmp.ge.s32.totalorder %s10, 6
      %s17 = sphi 0, %s29
      %s18 = sphi 0, %s25
      %s19 = sphi 0, %s17
      %s20 = sphi 0, %s18
      %s21 = sphi 0, %s19
      %s22 = sphi 0, %s20
      %s32 = sphi 0, %s34
      %s35 = sphi 0, %s32
      %s36 = sphi 0, %s35
      %s52 = sphi 0, %s36
      %s58 = sphi 0, %s60
      %s61 = sphi 0, %s58
      %s62 = sphi 0, %s61
      %s78 = sphi 0, %s62
      %s84 = sphi 0, %s86
      %s87 = sphi 0, %s84
      %s88 = sphi 0, %s87
      %s104 = sphi 0, %s88
      %s112 = sphi 0, %s114
      %s115 = sphi 0, %s112
      %s116 = sphi 0, %s115
      %s132 = sphi 0, %s116
      %s138 = sphi 0, %s140
      %s141 = sphi 0, %s138
      %s142 = sphi 0, %s141
      %s158 = sphi 0, %s142
    $region4: #{spgat_forward.5} parent=1 // loop_header_branch
      %13 = sbr.rel (%p11) target = $region8
    $region5: #{spgat_forward.5} parent=1 // loop_body
      %s15 = ssub.s32 %s10, 1
      %s16 = ssub.s32 %s10, 2
      %s23 = sadd.s32 1, %s18
      %p24 = scmp.ge.s32.totalorder %s23, 2
      %s25 = scalar_select %p24, 0, %s23
      %s26 = sadd.s32 1, %s17
      %s27 = scalar_select %p24, %s26, %s17
      %p28 = scmp.ge.s32.totalorder %s27, 2
      %s29 = scalar_select %p28, 0, %s27
      %s30 = ssub.s32 %s17, %s29
      %p31 = scmp.eq.s32.totalorder %s30, 0
      %s33 = sadd.s32 %s32, 1
      %s34 = scalar_select %p31, %s32, %s33
      %p37 = pneg %p31
      %p38 = scmp.eq.s32.totalorder %s10, 3
      %p39 = por %p37, %p38
      %p40 = scmp.ne.s32.totalorder %s32, %s35
      %p41 = scmp.eq.s32.totalorder %s10, 0
      %p42 = por %p40, %p41
      %p43 = scmp.ne.s32.totalorder %s32, %s35
      %p44 = scmp.eq.s32.totalorder %s15, 3
      %p45 = por %p43, %p44
      %p46 = scmp.ne.s32.totalorder %s35, %s36
      %p47 = scmp.eq.s32.totalorder %s15, 0
      %p48 = por %p46, %p47
      %p49 = scmp.ne.s32.totalorder %s35, %s36
      %p50 = scmp.eq.s32.totalorder %s16, 3
      %p51 = por %p49, %p50
      %p53 = scmp.ne.s32.totalorder %s36, %s52
      %p54 = scmp.eq.s32.totalorder %s16, 0
      %p55 = por %p53, %p54
      %s56 = ssub.s32 %s18, %s25
      %p57 = scmp.eq.s32.totalorder %s56, 0
      %s59 = sadd.s32 %s58, 1
      %s60 = scalar_select %p57, %s58, %s59
      %p63 = pneg %p57
      %p64 = scmp.eq.s32.totalorder %s10, 3
      %p65 = por %p63, %p64
      %p66 = scmp.ne.s32.totalorder %s58, %s61
      %p67 = scmp.eq.s32.totalorder %s10, 0
      %p68 = por %p66, %p67
      %p69 = scmp.ne.s32.totalorder %s58, %s61
      %p70 = scmp.eq.s32.totalorder %s15, 3
      %p71 = por %p69, %p70
      %p72 = scmp.ne.s32.totalorder %s61, %s62
      %p73 = scmp.eq.s32.totalorder %s15, 0
      %p74 = por %p72, %p73
      %p75 = scmp.ne.s32.totalorder %s61, %s62
      %p76 = scmp.eq.s32.totalorder %s16, 3
      %p77 = por %p75, %p76
      %p79 = scmp.ne.s32.totalorder %s62, %s78
      %p80 = scmp.eq.s32.totalorder %s16, 0
      %p81 = por %p79, %p80
      %s82 = ssub.s32 %s18, %s25
      %p83 = scmp.eq.s32.totalorder %s82, 0
      %s85 = sadd.s32 %s84, 1
      %s86 = scalar_select %p83, %s84, %s85
      %p89 = pneg %p83
      %p90 = scmp.eq.s32.totalorder %s10, 3
      %p91 = por %p89, %p90
      %p92 = scmp.ne.s32.totalorder %s84, %s87
      %p93 = scmp.eq.s32.totalorder %s10, 0
      %p94 = por %p92, %p93
      %p95 = scmp.ne.s32.totalorder %s84, %s87
      %p96 = scmp.eq.s32.totalorder %s15, 3
      %p97 = por %p95, %p96
      %p98 = scmp.ne.s32.totalorder %s87, %s88
      %p99 = scmp.eq.s32.totalorder %s15, 0
      %p100 = por %p98, %p99
      %p101 = scmp.ne.s32.totalorder %s87, %s88
      %p102 = scmp.eq.s32.totalorder %s16, 3
      %p103 = por %p101, %p102
      %p105 = scmp.ne.s32.totalorder %s88, %s104
      %p106 = scmp.eq.s32.totalorder %s16, 0
      %p107 = por %p105, %p106
      %s108 = ssub.s32 %s17, %s29
      %s109 = ssub.s32 %s18, %s25
      %s110 = sor.u32 %s108, %s109
      %p111 = scmp.eq.s32.totalorder %s110, 0
      %s113 = sadd.s32 %s112, 1
      %s114 = scalar_select %p111, %s112, %s113
      %p117 = pneg %p111
      %p118 = scmp.eq.s32.totalorder %s10, 3
      %p119 = por %p117, %p118
      %p120 = scmp.ne.s32.totalorder %s112, %s115
      %p121 = scmp.eq.s32.totalorder %s10, 0
      %p122 = por %p120, %p121
      %p123 = scmp.ne.s32.totalorder %s112, %s115
      %p124 = scmp.eq.s32.totalorder %s15, 3
      %p125 = por %p123, %p124
      %p126 = scmp.ne.s32.totalorder %s115, %s116
      %p127 = scmp.eq.s32.totalorder %s15, 0
      %p128 = por %p126, %p127
      %p129 = scmp.ne.s32.totalorder %s115, %s116
      %p130 = scmp.eq.s32.totalorder %s16, 3
      %p131 = por %p129, %p130
      %p133 = scmp.ne.s32.totalorder %s116, %s132
      %p134 = scmp.eq.s32.totalorder %s16, 0
      %p135 = por %p133, %p134
      %s136 = ssub.s32 %s17, %s29
      %p137 = scmp.eq.s32.totalorder %s136, 0
      %s139 = sadd.s32 %s138, 1
      %s140 = scalar_select %p137, %s138, %s139
      %p143 = pneg %p137
      %p144 = scmp.eq.s32.totalorder %s10, 3
      %p145 = por %p143, %p144
      %p146 = scmp.ne.s32.totalorder %s138, %s141
      %p147 = scmp.eq.s32.totalorder %s10, 0
      %p148 = por %p146, %p147
      %p149 = scmp.ne.s32.totalorder %s138, %s141
      %p150 = scmp.eq.s32.totalorder %s15, 3
      %p151 = por %p149, %p150
      %p152 = scmp.ne.s32.totalorder %s141, %s142
      %p153 = scmp.eq.s32.totalorder %s15, 0
      %p154 = por %p152, %p153
      %p155 = scmp.ne.s32.totalorder %s141, %s142
      %p156 = scmp.eq.s32.totalorder %s16, 3
      %p157 = por %p155, %p156
      %p159 = scmp.ne.s32.totalorder %s142, %s158
      %p160 = scmp.eq.s32.totalorder %s16, 0
      %p161 = por %p159, %p160
      %p162 = scmp.le.s32.totalorder 1, %s10
      %p163 = scmp.lt.s32.totalorder %s10, 5
      %p164 = pnand %p162, %p163
      %p165 = pneg %p164
      // Predicated region
      $region9: #{spgat_forward.5} parent=5 // pred_check
        _
      $region10: #{spgat_forward.5} parent=5 // pred_check_branch
        %167 = sbr.rel (%p164) target = $region12
      $region11: #{spgat_forward.5} parent=5 // pred_region
        %s168 = ssub.s32 %s10, 1
      $region12: #{spgat_forward.5} parent=5 // pred_fallthru
        _
      %p169 = scmp.lt.s32.totalorder %s10, 4
      // Predicated region
      $region13: #{spgat_forward.5} parent=5 // pred_check
        %p170 = pneg %p169
      $region14: #{spgat_forward.5} parent=5 // pred_check_branch
        %172 = sbr.rel (%p170) target = $region16
      $region15: #{spgat_forward.5} parent=5 // pred_region
        // Predicated region
        $region17: #{spgat_forward.5} parent=15 // pred_check
          %p173 = pneg %p42
        $region18: #{spgat_forward.5} parent=15 // pred_check_branch
          %175 = sbr.rel (%p173) target = $region20
        $region19: #{spgat_forward.5} parent=15 // pred_region
          %s176 = smul.u32 16, %s17
          %p177 = scmp.lt.s32.totalorder %s176, 31
          %s178 = scalar_select %p177, %s176, 31
          %s179 = smul.addr %s178, 8
          %s180 = scalar_lea.vmem %s0, %s179
          %s181 = smul.u32 16, %s17
        $region20: #{spgat_forward.5} parent=15 // pred_fallthru
          _
        // Predicated region
        $region21: #{spgat_forward.5} parent=15 // pred_check
          %p182 = pneg %p68
        $region22: #{spgat_forward.5} parent=15 // pred_check_branch
          %184 = sbr.rel (%p182) target = $region24
        $region23: #{spgat_forward.5} parent=15 // pred_region
          %p185 = scmp.lt.s32.totalorder %s18, 1
          %s186 = scalar_select %p185, %s18, 1
          %s187 = smul.addr %s186, 8
          %s188 = scalar_lea.vmem %s1, %s187
        $region24: #{spgat_forward.5} parent=15 // pred_fallthru
          _
        // Predicated region
        $region25: #{spgat_forward.5} parent=15 // pred_check
          %p189 = pneg %p94
        $region26: #{spgat_forward.5} parent=15 // pred_check_branch
          %191 = sbr.rel (%p189) target = $region28
        $region27: #{spgat_forward.5} parent=15 // pred_region
          %s192 = smul.u32 16, %s18
          %p193 = scmp.lt.s32.totalorder %s192, 31
          %s194 = scalar_select %p193, %s192, 31
          %s195 = smul.addr %s194, 4
          %s196 = scalar_lea.vmem %s2, %s195
          %s197 = smul.u32 16, %s18
        $region28: #{spgat_forward.5} parent=15 // pred_fallthru
          _
        // Predicated region
        $region29: #{spgat_forward.5} parent=15 // pred_check
          %p198 = pneg %p122
        $region30: #{spgat_forward.5} parent=15 // pred_check_branch
          %200 = sbr.rel (%p198) target = $region32
        $region31: #{spgat_forward.5} parent=15 // pred_region
          %s201 = sand.u32 %s112, 1
          %s202 = sand.u32 %s112, 1
          %s203 = smul.addr %s202, 32
          %s204 = scalar_lea.vmem [#allocation3], %s203
          %s205 = smul.u32 4, %s17
          %s206 = smul.addr %s205, 2
          %s207 = sadd.s32 %s18, %s206
          %s208 = smul.addr %s207, 8
          %s209 = scalar_lea.vmem %s3, %s208
          // Predicated region
          $region33: #{spgat_forward.5} parent=31 // pred_check
            _
          $region34: #{spgat_forward.5} parent=31 // pred_check_branch
            %211 = sbr.rel (0) target = $region36
          $region35: #{spgat_forward.5} parent=31 // pred_region
            // Predicated region
            $region37: #{spgat_forward.5} parent=35 // pred_check
              _
            $region38: #{spgat_forward.5} parent=35 // pred_check_branch
              %213 = sbr.rel (0) target = $region40
            $region39: #{spgat_forward.5} parent=35 // pred_region
              // Predicated region
              $region52: #{spgat_forward.5} parent=39 // pred_check
                _
              $region53: #{spgat_forward.5} parent=39 // pred_check_branch
                %235 = sbr.rel (0) target = $region55
              $region54: #{spgat_forward.5} parent=39 // pred_region
                loop: start=0, step=1, limit=1
                $region56: #{spgat_forward.5} parent=54 // loop_pre_header
                  _
                $region57: #{spgat_forward.5} parent=54 // loop_header
                  %s237 = sphi 0, %s241
                  %p238 = scmp.ge.s32.totalorder %s237, 1
                  %s242 = sphi %s209, %s209
                  %s243 = sphi %s204, %s204
                $region58: #{spgat_forward.5} parent=54 // loop_header_branch
                  %240 = sbr.rel (%p238) target = $region62
                $region59: #{spgat_forward.5} parent=54 // loop_body
                  %v244 = vld [vmem:[%s242] sm:$0xff]
                  %245 = vst [vmem:[%s243] sm:$0xff] %v244
                  %v246 = vld [vmem:[%s242 + $0x10] sm:$0xff]
                  %247 = vst [vmem:[%s243 + $0x8] sm:$0xff] %v246
                  %v248 = vld [vmem:[%s242 + $0x20] sm:$0xff]
                  %249 = vst [vmem:[%s243 + $0x10] sm:$0xff] %v248
                  %v250 = vld [vmem:[%s242 + $0x30] sm:$0xff]
                  %251 = vst [vmem:[%s243 + $0x18] sm:$0xff] %v250
                $region60: #{spgat_forward.5} parent=54 // loop_footer
                  %s241 = sadd.s32 1, %s237
                $region61: #{spgat_forward.5} parent=54 // loop_footer_branch
                  %236 = sbr.rel target = $region57
                $region62: #{spgat_forward.5} parent=54 // loop_exit
                  _
              $region55: #{spgat_forward.5} parent=39 // pred_fallthru
                _
              // Predicated region
              $region63: #{spgat_forward.5} parent=39 // pred_check
                _
              $region64: #{spgat_forward.5} parent=39 // pred_check_branch
                %253 = sbr.rel target = $region66
              $region65: #{spgat_forward.5} parent=39 // pred_region
                _
              $region66: #{spgat_forward.5} parent=39 // pred_fallthru
                _
            $region40: #{spgat_forward.5} parent=35 // pred_fallthru
              _
            // Predicated region
            $region41: #{spgat_forward.5} parent=35 // pred_check
              _
            $region42: #{spgat_forward.5} parent=35 // pred_check_branch
              %215 = sbr.rel target = $region44
            $region43: #{spgat_forward.5} parent=35 // pred_region
              %s217 = ssub.s32 256, 1
              loop: start=0, step=1, limit=1
              $region45: #{spgat_forward.5} parent=43 // loop_pre_header
                _
              $region46: #{spgat_forward.5} parent=43 // loop_header
                %s219 = sphi 0, %s223
                %p220 = scmp.ge.s32.totalorder %s219, 1
                %s224 = sphi %s209, %s209
                %s225 = sphi %s204, %s204
              $region47: #{spgat_forward.5} parent=43 // loop_header_branch
                %222 = sbr.rel (%p220) target = $region51
              $region48: #{spgat_forward.5} parent=43 // loop_body
                %v226 = vld [vmem:[%s224] sm:%s217]
                %227 = vst [vmem:[%s225] sm:%s217] %v226
                %v228 = vld [vmem:[%s224 + $0x10] sm:%s217]
                %229 = vst [vmem:[%s225 + $0x8] sm:%s217] %v228
                %v230 = vld [vmem:[%s224 + $0x20] sm:%s217]
                %231 = vst [vmem:[%s225 + $0x10] sm:%s217] %v230
                %v232 = vld [vmem:[%s224 + $0x30] sm:%s217]
                %233 = vst [vmem:[%s225 + $0x18] sm:%s217] %v232
              $region49: #{spgat_forward.5} parent=43 // loop_footer
                %s223 = sadd.s32 1, %s219
              $region50: #{spgat_forward.5} parent=43 // loop_footer_branch
                %218 = sbr.rel target = $region46
              $region51: #{spgat_forward.5} parent=43 // loop_exit
                _
            $region44: #{spgat_forward.5} parent=35 // pred_fallthru
              _
          $region36: #{spgat_forward.5} parent=31 // pred_fallthru
            _
          %254 = vnop
        $region32: #{spgat_forward.5} parent=15 // pred_fallthru
          _
      $region16: #{spgat_forward.5} parent=5 // pred_fallthru
        _
      %p255 = scmp.le.s32.totalorder 1, %s10
      %p256 = scmp.lt.s32.totalorder %s10, 5
      %p257 = pnand %p255, %p256
      %p258 = pneg %p257
      // Predicated region
      $region67: #{spgat_forward.5} parent=5 // pred_check
        _
      $region68: #{spgat_forward.5} parent=5 // pred_check_branch
        %260 = sbr.rel (%p257) target = $region70
      $region69: #{spgat_forward.5} parent=5 // pred_region
        %s261 = ssub.s32 %s10, 1
        %s262 = sand.u32 %s115, 1
        %s263 = sand.u32 %s115, 1
        %s264 = smul.addr %s263, 32
        %s265 = scalar_lea.vmem [#allocation3], %s264
        // Predicated region
        $region71: #{spgat_forward.5} parent=69 // pred_check
          %p266 = pneg %p128
        $region72: #{spgat_forward.5} parent=69 // pred_check_branch
          %268 = sbr.rel (%p266) target = $region74
        $region73: #{spgat_forward.5} parent=69 // pred_region
          _
        $region74: #{spgat_forward.5} parent=69 // pred_fallthru
          _
        %s269 = smul.u32 16, %s19
        %p270 = scmp.lt.s32.totalorder %s269, 31
        %s271 = scalar_select %p270, %s269, 31
        %s272 = smul.addr %s271, 8
        %s273 = scalar_lea.vmem %s0, %s272
        %p274 = pneg %p48
        %p275 = pneg %p45
        %p276 = scmp.lt.s32.totalorder %s20, 1
        %s277 = scalar_select %p276, %s20, 1
        %s278 = smul.addr %s277, 8
        %s279 = scalar_lea.vmem %s1, %s278
        %p280 = pneg %p74
        %p281 = pneg %p71
        %s282 = smul.u32 16, %s20
        %p283 = scmp.lt.s32.totalorder %s282, 31
        %s284 = scalar_select %p283, %s282, 31
        %s285 = smul.addr %s284, 4
        %s286 = scalar_lea.vmem %s2, %s285
        %p287 = pneg %p100
        %p288 = pneg %p97
        %s289 = sand.u32 %s115, 1
        %s290 = sand.u32 %s115, 1
        %s291 = smul.addr %s290, 32
        %s292 = scalar_lea.vmem [#allocation3], %s291
        %p293 = pneg %p128
        %p294 = pneg %p125
        %p295 = pneg %p154
        %p296 = pneg %p151
        %s297 = smul.u32 16, %s19
        %p298 = scmp.lt.s32.totalorder %s297, 31
        %s299 = scalar_select %p298, %s297, 31
        %s300 = smul.addr %s299, 8
        %s301 = scalar_lea.vmem %s4, %s300
        %s302 = smul.u32 16, %s19
        %p303 = scmp.lt.s32.totalorder %s302, 31
        %s304 = scalar_select %p303, %s302, 31
        %s305 = smul.addr %s304, 8
        %s306 = scalar_lea.vmem %s0, %s305
        %s307 = smul.u32 16, %s19
        %p308 = scmp.lt.s32.totalorder %s20, 1
        %s309 = scalar_select %p308, %s20, 1
        %s310 = smul.addr %s309, 8
        %s311 = scalar_lea.vmem %s1, %s310
        %s312 = smul.u32 16, %s20
        %p313 = scmp.lt.s32.totalorder %s312, 31
        %s314 = scalar_select %p313, %s312, 31
        %s315 = smul.addr %s314, 4
        %s316 = scalar_lea.vmem %s2, %s315
        %s317 = smul.u32 16, %s20
        %s318 = smul.u32 4, %s19
        %s319 = smul.u32 16, %s19
        %p320 = scmp.lt.s32.totalorder %s319, 31
        %s321 = scalar_select %p320, %s319, 31
        %s322 = smul.addr %s321, 8
        %s323 = scalar_lea.vmem %s4, %s322
        %s324 = smul.u32 16, %s19
        %p327 = scmp.eq.s32.totalorder %s20, 0
        // Predicated region
        $region75: #{spgat_forward.5} parent=69 // pred_check
          %p328 = pneg %p327
        $region76: #{spgat_forward.5} parent=69 // pred_check_branch
          %330 = sbr.rel (%p328) target = $region78
        $region77: #{spgat_forward.5} parent=69 // pred_region
          %331 = vst [vmem:[#allocation2] sm:$0xff] 0.0
          %332 = vst [vmem:[#allocation2 + $0x8] sm:$0xff] 0.0
          %333 = vst [vmem:[#allocation2 + $0x10] sm:$0xff] 0.0
          %334 = vst [vmem:[#allocation2 + $0x18] sm:$0xff] 0.0
          %335 = vst [vmem:[#allocation2 + $0x20] sm:$0xff] 0.0
          %336 = vst [vmem:[#allocation2 + $0x28] sm:$0xff] 0.0
          %337 = vst [vmem:[#allocation2 + $0x30] sm:$0xff] 0.0
          %338 = vst [vmem:[#allocation2 + $0x38] sm:$0xff] 0.0
          %339 = vst [vmem:[#allocation2 + $0x40] sm:$0xff] 0.0
          %340 = vst [vmem:[#allocation2 + $0x48] sm:$0xff] 0.0
          %341 = vst [vmem:[#allocation2 + $0x50] sm:$0xff] 0.0
          %342 = vst [vmem:[#allocation2 + $0x58] sm:$0xff] 0.0
          %343 = vst [vmem:[#allocation2 + $0x60] sm:$0xff] 0.0
          %344 = vst [vmem:[#allocation2 + $0x68] sm:$0xff] 0.0
          %345 = vst [vmem:[#allocation2 + $0x70] sm:$0xff] 0.0
          %346 = vst [vmem:[#allocation2 + $0x78] sm:$0xff] 0.0
          %347 = vst [vmem:[#allocation2 + $0x80] sm:$0xff] 0.0
          %348 = vst [vmem:[#allocation2 + $0x88] sm:$0xff] 0.0
          %349 = vst [vmem:[#allocation2 + $0x90] sm:$0xff] 0.0
          %350 = vst [vmem:[#allocation2 + $0x98] sm:$0xff] 0.0
          %351 = vst [vmem:[#allocation2 + $0xa0] sm:$0xff] 0.0
          %352 = vst [vmem:[#allocation2 + $0xa8] sm:$0xff] 0.0
          %353 = vst [vmem:[#allocation2 + $0xb0] sm:$0xff] 0.0
          %354 = vst [vmem:[#allocation2 + $0xb8] sm:$0xff] 0.0
          %355 = vst [vmem:[#allocation2 + $0xc0] sm:$0xff] 0.0
          %356 = vst [vmem:[#allocation2 + $0xc8] sm:$0xff] 0.0
          %357 = vst [vmem:[#allocation2 + $0xd0] sm:$0xff] 0.0
          %358 = vst [vmem:[#allocation2 + $0xd8] sm:$0xff] 0.0
          %359 = vst [vmem:[#allocation2 + $0xe0] sm:$0xff] 0.0
          %360 = vst [vmem:[#allocation2 + $0xe8] sm:$0xff] 0.0
          %361 = vst [vmem:[#allocation2 + $0xf0] sm:$0xff] 0.0
          %362 = vst [vmem:[#allocation2 + $0xf8] sm:$0xff] 0.0
          %363 = vst [vmem:[#allocation2 + $0x100] sm:$0xff] 0.0
          %364 = vst [vmem:[#allocation2 + $0x108] sm:$0xff] 0.0
          %365 = vst [vmem:[#allocation2 + $0x110] sm:$0xff] 0.0
          %366 = vst [vmem:[#allocation2 + $0x118] sm:$0xff] 0.0
          %367 = vst [vmem:[#allocation2 + $0x120] sm:$0xff] 0.0
          %368 = vst [vmem:[#allocation2 + $0x128] sm:$0xff] 0.0
          %369 = vst [vmem:[#allocation2 + $0x130] sm:$0xff] 0.0
          %370 = vst [vmem:[#allocation2 + $0x138] sm:$0xff] 0.0
          %371 = vst [vmem:[#allocation2 + $0x140] sm:$0xff] 0.0
          %372 = vst [vmem:[#allocation2 + $0x148] sm:$0xff] 0.0
          %373 = vst [vmem:[#allocation2 + $0x150] sm:$0xff] 0.0
          %374 = vst [vmem:[#allocation2 + $0x158] sm:$0xff] 0.0
          %375 = vst [vmem:[#allocation2 + $0x160] sm:$0xff] 0.0
          %376 = vst [vmem:[#allocation2 + $0x168] sm:$0xff] 0.0
          %377 = vst [vmem:[#allocation2 + $0x170] sm:$0xff] 0.0
          %378 = vst [vmem:[#allocation2 + $0x178] sm:$0xff] 0.0
          %379 = vst [vmem:[#allocation2 + $0x180] sm:$0xff] 0.0
          %380 = vst [vmem:[#allocation2 + $0x188] sm:$0xff] 0.0
          %381 = vst [vmem:[#allocation2 + $0x190] sm:$0xff] 0.0
          %382 = vst [vmem:[#allocation2 + $0x198] sm:$0xff] 0.0
          %383 = vst [vmem:[#allocation2 + $0x1a0] sm:$0xff] 0.0
          %384 = vst [vmem:[#allocation2 + $0x1a8] sm:$0xff] 0.0
          %385 = vst [vmem:[#allocation2 + $0x1b0] sm:$0xff] 0.0
          %386 = vst [vmem:[#allocation2 + $0x1b8] sm:$0xff] 0.0
          %387 = vst [vmem:[#allocation2 + $0x1c0] sm:$0xff] 0.0
          %388 = vst [vmem:[#allocation2 + $0x1c8] sm:$0xff] 0.0
          %389 = vst [vmem:[#allocation2 + $0x1d0] sm:$0xff] 0.0
          %390 = vst [vmem:[#allocation2 + $0x1d8] sm:$0xff] 0.0
          %391 = vst [vmem:[#allocation2 + $0x1e0] sm:$0xff] 0.0
          %392 = vst [vmem:[#allocation2 + $0x1e8] sm:$0xff] 0.0
          %393 = vst [vmem:[#allocation2 + $0x1f0] sm:$0xff] 0.0
          %394 = vst [vmem:[#allocation2 + $0x1f8] sm:$0xff] 0.0
        $region78: #{spgat_forward.5} parent=69 // pred_fallthru
          _
        %v395 = vld [vmem:[%s265] sm:$0xff]
        %v396 = vld [vmem:[%s265 + $0x8] sm:$0xff]
        %v397 = vld [vmem:[%s265 + $0x10] sm:$0xff]
        %v398 = vld [vmem:[%s265 + $0x18] sm:$0xff]
        %vm399 = vnez %v395
        %vm400 = vnez %v396
        %vm401 = vnez %v397
        %vm402 = vnez %v398
        %v403 = vld [vmem:[%s306] sm:$0xff]
        %v404 = vld [vmem:[%s306 + $0x8] sm:$0xff]
        %v405 = vld [vmem:[%s306 + $0x10] sm:$0xff]
        %v406 = vld [vmem:[%s306 + $0x18] sm:$0xff]
        %v407 = vld [vmem:[%s306 + $0x20] sm:$0xff]
        %v408 = vld [vmem:[%s306 + $0x28] sm:$0xff]
        %v409 = vld [vmem:[%s306 + $0x30] sm:$0xff]
        %v410 = vld [vmem:[%s306 + $0x38] sm:$0xff]
        %v411 = vld [vmem:[%s306 + $0x40] sm:$0xff]
        %v412 = vld [vmem:[%s306 + $0x48] sm:$0xff]
        %v413 = vld [vmem:[%s306 + $0x50] sm:$0xff]
        %v414 = vld [vmem:[%s306 + $0x58] sm:$0xff]
        %v415 = vld [vmem:[%s306 + $0x60] sm:$0xff]
        %v416 = vld [vmem:[%s306 + $0x68] sm:$0xff]
        %v417 = vld [vmem:[%s306 + $0x70] sm:$0xff]
        %v418 = vld [vmem:[%s306 + $0x78] sm:$0xff]
        %v419 = vld [vmem:[%s311] sm:$0xff]
        %v420 = vld [vmem:[%s316] sm:$0xf]
        %v421 = vld [vmem:[%s316 + $0x4] sm:$0xf]
        %v422 = vld [vmem:[%s316 + $0x8] sm:$0xf]
        %v423 = vld [vmem:[%s316 + $0xc] sm:$0xf]
        %v424 = vld [vmem:[%s316 + $0x10] sm:$0xf]
        %v425 = vld [vmem:[%s316 + $0x14] sm:$0xf]
        %v426 = vld [vmem:[%s316 + $0x18] sm:$0xf]
        %v427 = vld [vmem:[%s316 + $0x1c] sm:$0xf]
        %v428 = vld [vmem:[%s316 + $0x20] sm:$0xf]
        %v429 = vld [vmem:[%s316 + $0x24] sm:$0xf]
        %v430 = vld [vmem:[%s316 + $0x28] sm:$0xf]
        %v431 = vld [vmem:[%s316 + $0x2c] sm:$0xf]
        %v432 = vld [vmem:[%s316 + $0x30] sm:$0xf]
        %v433 = vld [vmem:[%s316 + $0x34] sm:$0xf]
        %v434 = vld [vmem:[%s316 + $0x38] sm:$0xf]
        %v435 = vld [vmem:[%s316 + $0x3c] sm:$0xf]
        %437 = vset.pattern.permute.xlu0 0
        %438 = vperm.xlu0 %437, %v403
        %v439 = vpop.permute.xlu0 %438
        %442 = vset.pattern.permute.xlu0 0
        %443 = vperm.xlu0 %442, %v404
        %v444 = vpop.permute.xlu0 %443
        %447 = vset.pattern.permute.xlu0 0
        %448 = vperm.xlu0 %447, %v405
        %v449 = vpop.permute.xlu0 %448
        %452 = vset.pattern.permute.xlu0 0
        %453 = vperm.xlu0 %452, %v406
        %v454 = vpop.permute.xlu0 %453
        %457 = vset.pattern.permute.xlu0 0
        %458 = vperm.xlu0 %457, %v407
        %v459 = vpop.permute.xlu0 %458
        %462 = vset.pattern.permute.xlu0 0
        %463 = vperm.xlu0 %462, %v408
        %v464 = vpop.permute.xlu0 %463
        %467 = vset.pattern.permute.xlu0 0
        %468 = vperm.xlu0 %467, %v409
        %v469 = vpop.permute.xlu0 %468
        %472 = vset.pattern.permute.xlu0 0
        %473 = vperm.xlu0 %472, %v410
        %v474 = vpop.permute.xlu0 %473
        %477 = vset.pattern.permute.xlu0 0
        %478 = vperm.xlu0 %477, %v411
        %v479 = vpop.permute.xlu0 %478
        %482 = vset.pattern.permute.xlu0 0
        %483 = vperm.xlu0 %482, %v412
        %v484 = vpop.permute.xlu0 %483
        %487 = vset.pattern.permute.xlu0 0
        %488 = vperm.xlu0 %487, %v413
        %v489 = vpop.permute.xlu0 %488
        %492 = vset.pattern.permute.xlu0 0
        %493 = vperm.xlu0 %492, %v414
        %v494 = vpop.permute.xlu0 %493
        %497 = vset.pattern.permute.xlu0 0
        %498 = vperm.xlu0 %497, %v415
        %v499 = vpop.permute.xlu0 %498
        %502 = vset.pattern.permute.xlu0 0
        %503 = vperm.xlu0 %502, %v416
        %v504 = vpop.permute.xlu0 %503
        %507 = vset.pattern.permute.xlu0 0
        %508 = vperm.xlu0 %507, %v417
        %v509 = vpop.permute.xlu0 %508
        %512 = vset.pattern.permute.xlu0 0
        %513 = vperm.xlu0 %512, %v418
        %v514 = vpop.permute.xlu0 %513
        %v516 = vperm.slane %v419, 0
        %v517 = vmul.f32 %v439, %v516
        %v518 = vmul.f32 %v444, %v516
        %v519 = vmul.f32 %v449, %v516
        %v520 = vmul.f32 %v454, %v516
        %v521 = vmul.f32 %v459, %v516
        %v522 = vmul.f32 %v464, %v516
        %v523 = vmul.f32 %v469, %v516
        %v524 = vmul.f32 %v474, %v516
        %v525 = vmul.f32 %v479, %v516
        %v526 = vmul.f32 %v484, %v516
        %v527 = vmul.f32 %v489, %v516
        %v528 = vmul.f32 %v494, %v516
        %v529 = vmul.f32 %v499, %v516
        %v530 = vmul.f32 %v504, %v516
        %v531 = vmul.f32 %v509, %v516
        %v532 = vmul.f32 %v514, %v516
        %533 = vset.pattern.permute.xlu0 4
        %534 = vperm.xlu0 %533, %v403
        %v535 = vpop.permute.xlu0 %534
        %537 = vset.pattern.permute.xlu0 4
        %538 = vperm.xlu0 %537, %v404
        %v539 = vpop.permute.xlu0 %538
        %541 = vset.pattern.permute.xlu0 4
        %542 = vperm.xlu0 %541, %v405
        %v543 = vpop.permute.xlu0 %542
        %545 = vset.pattern.permute.xlu0 4
        %546 = vperm.xlu0 %545, %v406
        %v547 = vpop.permute.xlu0 %546
        %549 = vset.pattern.permute.xlu0 4
        %550 = vperm.xlu0 %549, %v407
        %v551 = vpop.permute.xlu0 %550
        %553 = vset.pattern.permute.xlu0 4
        %554 = vperm.xlu0 %553, %v408
        %v555 = vpop.permute.xlu0 %554
        %557 = vset.pattern.permute.xlu0 4
        %558 = vperm.xlu0 %557, %v409
        %v559 = vpop.permute.xlu0 %558
        %561 = vset.pattern.permute.xlu0 4
        %562 = vperm.xlu0 %561, %v410
        %v563 = vpop.permute.xlu0 %562
        %565 = vset.pattern.permute.xlu0 4
        %566 = vperm.xlu0 %565, %v411
        %v567 = vpop.permute.xlu0 %566
        %569 = vset.pattern.permute.xlu0 4
        %570 = vperm.xlu0 %569, %v412
        %v571 = vpop.permute.xlu0 %570
        %573 = vset.pattern.permute.xlu0 4
        %574 = vperm.xlu0 %573, %v413
        %v575 = vpop.permute.xlu0 %574
        %577 = vset.pattern.permute.xlu0 4
        %578 = vperm.xlu0 %577, %v414
        %v579 = vpop.permute.xlu0 %578
        %581 = vset.pattern.permute.xlu0 4
        %582 = vperm.xlu0 %581, %v415
        %v583 = vpop.permute.xlu0 %582
        %585 = vset.pattern.permute.xlu0 4
        %586 = vperm.xlu0 %585, %v416
        %v587 = vpop.permute.xlu0 %586
        %589 = vset.pattern.permute.xlu0 4
        %590 = vperm.xlu0 %589, %v417
        %v591 = vpop.permute.xlu0 %590
        %593 = vset.pattern.permute.xlu0 4
        %594 = vperm.xlu0 %593, %v418
        %v595 = vpop.permute.xlu0 %594
        %v597 = vperm.slane %v419, 4
        %v598 = vmul.f32 %v535, %v597
        %v599 = vmul.f32 %v539, %v597
        %v600 = vmul.f32 %v543, %v597
        %v601 = vmul.f32 %v547, %v597
        %v602 = vmul.f32 %v551, %v597
        %v603 = vmul.f32 %v555, %v597
        %v604 = vmul.f32 %v559, %v597
        %v605 = vmul.f32 %v563, %v597
        %v606 = vmul.f32 %v567, %v597
        %v607 = vmul.f32 %v571, %v597
        %v608 = vmul.f32 %v575, %v597
        %v609 = vmul.f32 %v579, %v597
        %v610 = vmul.f32 %v583, %v597
        %v611 = vmul.f32 %v587, %v597
        %v612 = vmul.f32 %v591, %v597
        %v613 = vmul.f32 %v595, %v597
        %vm614 = vcmp.lt.f32.partialorder %v517, 1.0
        %vm615 = vcmp.lt.f32.partialorder %v518, 1.0
        %vm616 = vcmp.lt.f32.partialorder %v519, 1.0
        %vm617 = vcmp.lt.f32.partialorder %v520, 1.0
        %vm618 = vcmp.lt.f32.partialorder %v521, 1.0
        %vm619 = vcmp.lt.f32.partialorder %v522, 1.0
        %vm620 = vcmp.lt.f32.partialorder %v523, 1.0
        %vm621 = vcmp.lt.f32.partialorder %v524, 1.0
        %vm622 = vcmp.lt.f32.partialorder %v525, 1.0
        %vm623 = vcmp.lt.f32.partialorder %v526, 1.0
        %vm624 = vcmp.lt.f32.partialorder %v527, 1.0
        %vm625 = vcmp.lt.f32.partialorder %v528, 1.0
        %vm626 = vcmp.lt.f32.partialorder %v529, 1.0
        %vm627 = vcmp.lt.f32.partialorder %v530, 1.0
        %vm628 = vcmp.lt.f32.partialorder %v531, 1.0
        %vm629 = vcmp.lt.f32.partialorder %v532, 1.0
        %v630 = vsel %vm614, %v517, %v598
        %v631 = vsel %vm615, %v518, %v599
        %v632 = vsel %vm616, %v519, %v600
        %v633 = vsel %vm617, %v520, %v601
        %v634 = vsel %vm618, %v521, %v602
        %v635 = vsel %vm619, %v522, %v603
        %v636 = vsel %vm620, %v523, %v604
        %v637 = vsel %vm621, %v524, %v605
        %v638 = vsel %vm622, %v525, %v606
        %v639 = vsel %vm623, %v526, %v607
        %v640 = vsel %vm624, %v527, %v608
        %v641 = vsel %vm625, %v528, %v609
        %v642 = vsel %vm626, %v529, %v610
        %v643 = vsel %vm627, %v530, %v611
        %v644 = vsel %vm628, %v531, %v612
        %v645 = vsel %vm629, %v532, %v613
        %v646 = vsel %vm399, 16843009, 0
        %v647 = vsel %vm400, 16843009, 0
        %v648 = vsel %vm401, 16843009, 0
        %v649 = vsel %vm402, 16843009, 0
        %v650 = vunpack.c.0.s8 %v646
        %v651 = vunpack.c.1.s8 %v646
        %v652 = vunpack.c.2.s8 %v646
        %v653 = vunpack.c.3.s8 %v646
        %v654 = vunpack.c.0.s8 %v647
        %v655 = vunpack.c.1.s8 %v647
        %v656 = vunpack.c.2.s8 %v647
        %v657 = vunpack.c.3.s8 %v647
        %v658 = vunpack.c.0.s8 %v648
        %v659 = vunpack.c.1.s8 %v648
        %v660 = vunpack.c.2.s8 %v648
        %v661 = vunpack.c.3.s8 %v648
        %v662 = vunpack.c.0.s8 %v649
        %v663 = vunpack.c.1.s8 %v649
        %v664 = vunpack.c.2.s8 %v649
        %v665 = vunpack.c.3.s8 %v649
        %v666 = vpack.c.b16 %v650, %v650
        %v667 = vpack.c.b8 %v666, %v666
        %v668 = vpack.c.b16 %v651, %v651
        %v669 = vpack.c.b8 %v668, %v668
        %v670 = vpack.c.b16 %v652, %v652
        %v671 = vpack.c.b8 %v670, %v670
        %v672 = vpack.c.b16 %v653, %v653
        %v673 = vpack.c.b8 %v672, %v672
        %v674 = vpack.c.b16 %v654, %v654
        %v675 = vpack.c.b8 %v674, %v674
        %v676 = vpack.c.b16 %v655, %v655
        %v677 = vpack.c.b8 %v676, %v676
        %v678 = vpack.c.b16 %v656, %v656
        %v679 = vpack.c.b8 %v678, %v678
        %v680 = vpack.c.b16 %v657, %v657
        %v681 = vpack.c.b8 %v680, %v680
        %v682 = vpack.c.b16 %v658, %v658
        %v683 = vpack.c.b8 %v682, %v682
        %v684 = vpack.c.b16 %v659, %v659
        %v685 = vpack.c.b8 %v684, %v684
        %v686 = vpack.c.b16 %v660, %v660
        %v687 = vpack.c.b8 %v686, %v686
        %v688 = vpack.c.b16 %v661, %v661
        %v689 = vpack.c.b8 %v688, %v688
        %v690 = vpack.c.b16 %v662, %v662
        %v691 = vpack.c.b8 %v690, %v690
        %v692 = vpack.c.b16 %v663, %v663
        %v693 = vpack.c.b8 %v692, %v692
        %v694 = vpack.c.b16 %v664, %v664
        %v695 = vpack.c.b8 %v694, %v694
        %v696 = vpack.c.b16 %v665, %v665
        %v697 = vpack.c.b8 %v696, %v696
        %vm698 = vnez %v667
        %vm699 = vnez %v669
        %vm700 = vnez %v671
        %vm701 = vnez %v673
        %vm702 = vnez %v675
        %vm703 = vnez %v677
        %vm704 = vnez %v679
        %vm705 = vnez %v681
        %vm706 = vnez %v683
        %vm707 = vnez %v685
        %vm708 = vnez %v687
        %vm709 = vnez %v689
        %vm710 = vnez %v691
        %vm711 = vnez %v693
        %vm712 = vnez %v695
        %vm713 = vnez %v697
        %v714 = vsel %vm698, 16843009, 0
        %v715 = vsel %vm699, 16843009, 0
        %v716 = vsel %vm700, 16843009, 0
        %v717 = vsel %vm701, 16843009, 0
        %v718 = vsel %vm702, 16843009, 0
        %v719 = vsel %vm703, 16843009, 0
        %v720 = vsel %vm704, 16843009, 0
        %v721 = vsel %vm705, 16843009, 0
        %v722 = vsel %vm706, 16843009, 0
        %v723 = vsel %vm707, 16843009, 0
        %v724 = vsel %vm708, 16843009, 0
        %v725 = vsel %vm709, 16843009, 0
        %v726 = vsel %vm710, 16843009, 0
        %v727 = vsel %vm711, 16843009, 0
        %v728 = vsel %vm712, 16843009, 0
        %v729 = vsel %vm713, 16843009, 0
        %v730 = vunpack.c.0.s8 %v714
        %v731 = vunpack.c.0.s8 %v715
        %v732 = vunpack.c.0.s8 %v716
        %v733 = vunpack.c.0.s8 %v717
        %v734 = vunpack.c.0.s8 %v718
        %v735 = vunpack.c.0.s8 %v719
        %v736 = vunpack.c.0.s8 %v720
        %v737 = vunpack.c.0.s8 %v721
        %v738 = vunpack.c.0.s8 %v722
        %v739 = vunpack.c.0.s8 %v723
        %v740 = vunpack.c.0.s8 %v724
        %v741 = vunpack.c.0.s8 %v725
        %v742 = vunpack.c.0.s8 %v726
        %v743 = vunpack.c.0.s8 %v727
        %v744 = vunpack.c.0.s8 %v728
        %v745 = vunpack.c.0.s8 %v729
        %vm746 = vcmp.ne.s32.totalorder %v730, 0
        %vm747 = vcmp.ne.s32.totalorder %v731, 0
        %vm748 = vcmp.ne.s32.totalorder %v732, 0
        %vm749 = vcmp.ne.s32.totalorder %v733, 0
        %vm750 = vcmp.ne.s32.totalorder %v734, 0
        %vm751 = vcmp.ne.s32.totalorder %v735, 0
        %vm752 = vcmp.ne.s32.totalorder %v736, 0
        %vm753 = vcmp.ne.s32.totalorder %v737, 0
        %vm754 = vcmp.ne.s32.totalorder %v738, 0
        %vm755 = vcmp.ne.s32.totalorder %v739, 0
        %vm756 = vcmp.ne.s32.totalorder %v740, 0
        %vm757 = vcmp.ne.s32.totalorder %v741, 0
        %vm758 = vcmp.ne.s32.totalorder %v742, 0
        %vm759 = vcmp.ne.s32.totalorder %v743, 0
        %vm760 = vcmp.ne.s32.totalorder %v744, 0
        %vm761 = vcmp.ne.s32.totalorder %v745, 0
        %v762 = vsel %vm746, %v630, 0.0
        %v763 = vsel %vm747, %v631, 0.0
        %v764 = vsel %vm748, %v632, 0.0
        %v765 = vsel %vm749, %v633, 0.0
        %v766 = vsel %vm750, %v634, 0.0
        %v767 = vsel %vm751, %v635, 0.0
        %v768 = vsel %vm752, %v636, 0.0
        %v769 = vsel %vm753, %v637, 0.0
        %v770 = vsel %vm754, %v638, 0.0
        %v771 = vsel %vm755, %v639, 0.0
        %v772 = vsel %vm756, %v640, 0.0
        %v773 = vsel %vm757, %v641, 0.0
        %v774 = vsel %vm758, %v642, 0.0
        %v775 = vsel %vm759, %v643, 0.0
        %v776 = vsel %vm760, %v644, 0.0
        %v777 = vsel %vm761, %v645, 0.0
        %v778 = vld [vmem:[#allocation2] sm:$0xff]
        %v779 = vld [vmem:[#allocation2 + $0x8] sm:$0xff]
        %v780 = vld [vmem:[#allocation2 + $0x10] sm:$0xff]
        %v781 = vld [vmem:[#allocation2 + $0x18] sm:$0xff]
        %v782 = vld [vmem:[#allocation2 + $0x20] sm:$0xff]
        %v783 = vld [vmem:[#allocation2 + $0x28] sm:$0xff]
        %v784 = vld [vmem:[#allocation2 + $0x30] sm:$0xff]
        %v785 = vld [vmem:[#allocation2 + $0x38] sm:$0xff]
        %v786 = vld [vmem:[#allocation2 + $0x40] sm:$0xff]
        %v787 = vld [vmem:[#allocation2 + $0x48] sm:$0xff]
        %v788 = vld [vmem:[#allocation2 + $0x50] sm:$0xff]
        %v789 = vld [vmem:[#allocation2 + $0x58] sm:$0xff]
        %v790 = vld [vmem:[#allocation2 + $0x60] sm:$0xff]
        %v791 = vld [vmem:[#allocation2 + $0x68] sm:$0xff]
        %v792 = vld [vmem:[#allocation2 + $0x70] sm:$0xff]
        %v793 = vld [vmem:[#allocation2 + $0x78] sm:$0xff]
        %v794 = vpack.c.bf16 %v763, %v762
        %v795 = vpack.c.bf16 %v765, %v764
        %v796 = vpack.c.bf16 %v767, %v766
        %v797 = vpack.c.bf16 %v769, %v768
        %v798 = vpack.c.bf16 %v771, %v770
        %v799 = vpack.c.bf16 %v773, %v772
        %v800 = vpack.c.bf16 %v775, %v774
        %v801 = vpack.c.bf16 %v777, %v776
        %v818 = vunpack.c.l.b16 %v420
        %v819 = vunpack.c.l.b16 %v421
        %v820 = vunpack.c.l.b16 %v422
        %v821 = vunpack.c.l.b16 %v423
        %v822 = vunpack.c.l.b16 %v424
        %v823 = vunpack.c.l.b16 %v425
        %v824 = vunpack.c.l.b16 %v426
        %v825 = vunpack.c.l.b16 %v427
        %v826 = vunpack.c.l.b16 %v428
        %v827 = vunpack.c.l.b16 %v429
        %v828 = vunpack.c.l.b16 %v430
        %v829 = vunpack.c.l.b16 %v431
        %v830 = vunpack.c.l.b16 %v432
        %v831 = vunpack.c.l.b16 %v433
        %v832 = vunpack.c.l.b16 %v434
        %v833 = vunpack.c.l.b16 %v435
        %v834 = vpack.c.b16 %v819, %v818
        %v835 = vpack.c.b16 %v821, %v820
        %v836 = vpack.c.b16 %v823, %v822
        %v837 = vpack.c.b16 %v825, %v824
        %v838 = vpack.c.b16 %v827, %v826
        %v839 = vpack.c.b16 %v829, %v828
        %v840 = vpack.c.b16 %v831, %v830
        %v841 = vpack.c.b16 %v833, %v832
        %850 = vmatpush.bf16.msra.mxu0 %v841
        %851 = vmatpush.bf16.msra.mxu0 %v840
        %852 = vmatpush.bf16.msra.mxu0 %v839
        %853 = vmatpush.bf16.msra.mxu0 %v838
        %854 = vmatpush.bf16.msra.mxu0 %v837
        %855 = vmatpush.bf16.msra.mxu0 %v836
        %856 = vmatpush.bf16.msra.mxu0 %v835
        %857 = vmatpush.bf16.msra.mxu0 %v834
        %858 = vmatmul.bf16.gmra.mxu0 %v794
        %v859 = vpop.f32.mrf.mxu0
        %v860 = vadd.f32 0.0, %v859
        %v861 = vpop.f32.mrf.mxu0
        %v862 = vadd.f32 0.0, %v861
        %863 = vmatmul.bf16.gmra.mxu0 %v795
        %v864 = vpop.f32.mrf.mxu0
        %v865 = vadd.f32 0.0, %v864
        %v866 = vpop.f32.mrf.mxu0
        %v867 = vadd.f32 0.0, %v866
        %868 = vmatmul.bf16.gmra.mxu0 %v796
        %v869 = vpop.f32.mrf.mxu0
        %v870 = vadd.f32 0.0, %v869
        %v871 = vpop.f32.mrf.mxu0
        %v872 = vadd.f32 0.0, %v871
        %873 = vmatmul.bf16.gmra.mxu0 %v797
        %v874 = vpop.f32.mrf.mxu0
        %v875 = vadd.f32 0.0, %v874
        %v876 = vpop.f32.mrf.mxu0
        %v877 = vadd.f32 0.0, %v876
        %878 = vmatmul.bf16.gmra.mxu0 %v798
        %v879 = vpop.f32.mrf.mxu0
        %v880 = vadd.f32 0.0, %v879
        %v881 = vpop.f32.mrf.mxu0
        %v882 = vadd.f32 0.0, %v881
        %883 = vmatmul.bf16.gmra.mxu0 %v799
        %v884 = vpop.f32.mrf.mxu0
        %v885 = vadd.f32 0.0, %v884
        %v886 = vpop.f32.mrf.mxu0
        %v887 = vadd.f32 0.0, %v886
        %888 = vmatmul.bf16.gmra.mxu0 %v800
        %v889 = vpop.f32.mrf.mxu0
        %v890 = vadd.f32 0.0, %v889
        %v891 = vpop.f32.mrf.mxu0
        %v892 = vadd.f32 0.0, %v891
        %893 = vmatmul.bf16.gmra.mxu0 %v801
        %v894 = vpop.f32.mrf.mxu0
        %v895 = vadd.f32 0.0, %v894
        %v896 = vpop.f32.mrf.mxu0
        %v897 = vadd.f32 0.0, %v896
        %898 = vdwg.mxu0
        %v899 = vadd.f32 %v778, %v860
        %v900 = vadd.f32 %v779, %v862
        %v901 = vadd.f32 %v780, %v865
        %v902 = vadd.f32 %v781, %v867
        %v903 = vadd.f32 %v782, %v870
        %v904 = vadd.f32 %v783, %v872
        %v905 = vadd.f32 %v784, %v875
        %v906 = vadd.f32 %v785, %v877
        %v907 = vadd.f32 %v786, %v880
        %v908 = vadd.f32 %v787, %v882
        %v909 = vadd.f32 %v788, %v885
        %v910 = vadd.f32 %v789, %v887
        %v911 = vadd.f32 %v790, %v890
        %v912 = vadd.f32 %v791, %v892
        %v913 = vadd.f32 %v792, %v895
        %v914 = vadd.f32 %v793, %v897
        %915 = vst [vmem:[#allocation2] sm:$0xff] %v899
        %916 = vst [vmem:[#allocation2 + $0x8] sm:$0xff] %v900
        %917 = vst [vmem:[#allocation2 + $0x10] sm:$0xff] %v901
        %918 = vst [vmem:[#allocation2 + $0x18] sm:$0xff] %v902
        %919 = vst [vmem:[#allocation2 + $0x20] sm:$0xff] %v903
        %920 = vst [vmem:[#allocation2 + $0x28] sm:$0xff] %v904
        %921 = vst [vmem:[#allocation2 + $0x30] sm:$0xff] %v905
        %922 = vst [vmem:[#allocation2 + $0x38] sm:$0xff] %v906
        %923 = vst [vmem:[#allocation2 + $0x40] sm:$0xff] %v907
        %924 = vst [vmem:[#allocation2 + $0x48] sm:$0xff] %v908
        %925 = vst [vmem:[#allocation2 + $0x50] sm:$0xff] %v909
        %926 = vst [vmem:[#allocation2 + $0x58] sm:$0xff] %v910
        %927 = vst [vmem:[#allocation2 + $0x60] sm:$0xff] %v911
        %928 = vst [vmem:[#allocation2 + $0x68] sm:$0xff] %v912
        %929 = vst [vmem:[#allocation2 + $0x70] sm:$0xff] %v913
        %930 = vst [vmem:[#allocation2 + $0x78] sm:$0xff] %v914
        %931 = vset.pattern.permute.xlu0 1
        %932 = vperm.xlu0 %931, %v403
        %v933 = vpop.permute.xlu0 %932
        %935 = vset.pattern.permute.xlu0 1
        %936 = vperm.xlu0 %935, %v404
        %v937 = vpop.permute.xlu0 %936
        %939 = vset.pattern.permute.xlu0 1
        %940 = vperm.xlu0 %939, %v405
        %v941 = vpop.permute.xlu0 %940
        %943 = vset.pattern.permute.xlu0 1
        %944 = vperm.xlu0 %943, %v406
        %v945 = vpop.permute.xlu0 %944
        %947 = vset.pattern.permute.xlu0 1
        %948 = vperm.xlu0 %947, %v407
        %v949 = vpop.permute.xlu0 %948
        %951 = vset.pattern.permute.xlu0 1
        %952 = vperm.xlu0 %951, %v408
        %v953 = vpop.permute.xlu0 %952
        %955 = vset.pattern.permute.xlu0 1
        %956 = vperm.xlu0 %955, %v409
        %v957 = vpop.permute.xlu0 %956
        %959 = vset.pattern.permute.xlu0 1
        %960 = vperm.xlu0 %959, %v410
        %v961 = vpop.permute.xlu0 %960
        %963 = vset.pattern.permute.xlu0 1
        %964 = vperm.xlu0 %963, %v411
        %v965 = vpop.permute.xlu0 %964
        %967 = vset.pattern.permute.xlu0 1
        %968 = vperm.xlu0 %967, %v412
        %v969 = vpop.permute.xlu0 %968
        %971 = vset.pattern.permute.xlu0 1
        %972 = vperm.xlu0 %971, %v413
        %v973 = vpop.permute.xlu0 %972
        %975 = vset.pattern.permute.xlu0 1
        %976 = vperm.xlu0 %975, %v414
        %v977 = vpop.permute.xlu0 %976
        %979 = vset.pattern.permute.xlu0 1
        %980 = vperm.xlu0 %979, %v415
        %v981 = vpop.permute.xlu0 %980
        %983 = vset.pattern.permute.xlu0 1
        %984 = vperm.xlu0 %983, %v416
        %v985 = vpop.permute.xlu0 %984
        %987 = vset.pattern.permute.xlu0 1
        %988 = vperm.xlu0 %987, %v417
        %v989 = vpop.permute.xlu0 %988
        %991 = vset.pattern.permute.xlu0 1
        %992 = vperm.xlu0 %991, %v418
        %v993 = vpop.permute.xlu0 %992
        %v995 = vperm.slane %v419, 1
        %v996 = vmul.f32 %v933, %v995
        %v997 = vmul.f32 %v937, %v995
        %v998 = vmul.f32 %v941, %v995
        %v999 = vmul.f32 %v945, %v995
        %v1000 = vmul.f32 %v949, %v995
        %v1001 = vmul.f32 %v953, %v995
        %v1002 = vmul.f32 %v957, %v995
        %v1003 = vmul.f32 %v961, %v995
        %v1004 = vmul.f32 %v965, %v995
        %v1005 = vmul.f32 %v969, %v995
        %v1006 = vmul.f32 %v973, %v995
        %v1007 = vmul.f32 %v977, %v995
        %v1008 = vmul.f32 %v981, %v995
        %v1009 = vmul.f32 %v985, %v995
        %v1010 = vmul.f32 %v989, %v995
        %v1011 = vmul.f32 %v993, %v995
        %1012 = vset.pattern.permute.xlu0 5
        %1013 = vperm.xlu0 %1012, %v403
        %v1014 = vpop.permute.xlu0 %1013
        %1016 = vset.pattern.permute.xlu0 5
        %1017 = vperm.xlu0 %1016, %v404
        %v1018 = vpop.permute.xlu0 %1017
        %1020 = vset.pattern.permute.xlu0 5
        %1021 = vperm.xlu0 %1020, %v405
        %v1022 = vpop.permute.xlu0 %1021
        %1024 = vset.pattern.permute.xlu0 5
        %1025 = vperm.xlu0 %1024, %v406
        %v1026 = vpop.permute.xlu0 %1025
        %1028 = vset.pattern.permute.xlu0 5
        %1029 = vperm.xlu0 %1028, %v407
        %v1030 = vpop.permute.xlu0 %1029
        %1032 = vset.pattern.permute.xlu0 5
        %1033 = vperm.xlu0 %1032, %v408
        %v1034 = vpop.permute.xlu0 %1033
        %1036 = vset.pattern.permute.xlu0 5
        %1037 = vperm.xlu0 %1036, %v409
        %v1038 = vpop.permute.xlu0 %1037
        %1040 = vset.pattern.permute.xlu0 5
        %1041 = vperm.xlu0 %1040, %v410
        %v1042 = vpop.permute.xlu0 %1041
        %1044 = vset.pattern.permute.xlu0 5
        %1045 = vperm.xlu0 %1044, %v411
        %v1046 = vpop.permute.xlu0 %1045
        %1048 = vset.pattern.permute.xlu0 5
        %1049 = vperm.xlu0 %1048, %v412
        %v1050 = vpop.permute.xlu0 %1049
        %1052 = vset.pattern.permute.xlu0 5
        %1053 = vperm.xlu0 %1052, %v413
        %v1054 = vpop.permute.xlu0 %1053
        %1056 = vset.pattern.permute.xlu0 5
        %1057 = vperm.xlu0 %1056, %v414
        %v1058 = vpop.permute.xlu0 %1057
        %1060 = vset.pattern.permute.xlu0 5
        %1061 = vperm.xlu0 %1060, %v415
        %v1062 = vpop.permute.xlu0 %1061
        %1064 = vset.pattern.permute.xlu0 5
        %1065 = vperm.xlu0 %1064, %v416
        %v1066 = vpop.permute.xlu0 %1065
        %1068 = vset.pattern.permute.xlu0 5
        %1069 = vperm.xlu0 %1068, %v417
        %v1070 = vpop.permute.xlu0 %1069
        %1072 = vset.pattern.permute.xlu0 5
        %1073 = vperm.xlu0 %1072, %v418
        %v1074 = vpop.permute.xlu0 %1073
        %v1076 = vperm.slane %v419, 5
        %v1077 = vmul.f32 %v1014, %v1076
        %v1078 = vmul.f32 %v1018, %v1076
        %v1079 = vmul.f32 %v1022, %v1076
        %v1080 = vmul.f32 %v1026, %v1076
        %v1081 = vmul.f32 %v1030, %v1076
        %v1082 = vmul.f32 %v1034, %v1076
        %v1083 = vmul.f32 %v1038, %v1076
        %v1084 = vmul.f32 %v1042, %v1076
        %v1085 = vmul.f32 %v1046, %v1076
        %v1086 = vmul.f32 %v1050, %v1076
        %v1087 = vmul.f32 %v1054, %v1076
        %v1088 = vmul.f32 %v1058, %v1076
        %v1089 = vmul.f32 %v1062, %v1076
        %v1090 = vmul.f32 %v1066, %v1076
        %v1091 = vmul.f32 %v1070, %v1076
        %v1092 = vmul.f32 %v1074, %v1076
        %vm1093 = vcmp.lt.f32.partialorder %v996, 1.0
        %vm1094 = vcmp.lt.f32.partialorder %v997, 1.0
        %vm1095 = vcmp.lt.f32.partialorder %v998, 1.0
        %vm1096 = vcmp.lt.f32.partialorder %v999, 1.0
        %vm1097 = vcmp.lt.f32.partialorder %v1000, 1.0
        %vm1098 = vcmp.lt.f32.partialorder %v1001, 1.0
        %vm1099 = vcmp.lt.f32.partialorder %v1002, 1.0
        %vm1100 = vcmp.lt.f32.partialorder %v1003, 1.0
        %vm1101 = vcmp.lt.f32.partialorder %v1004, 1.0
        %vm1102 = vcmp.lt.f32.partialorder %v1005, 1.0
        %vm1103 = vcmp.lt.f32.partialorder %v1006, 1.0
        %vm1104 = vcmp.lt.f32.partialorder %v1007, 1.0
        %vm1105 = vcmp.lt.f32.partialorder %v1008, 1.0
        %vm1106 = vcmp.lt.f32.partialorder %v1009, 1.0
        %vm1107 = vcmp.lt.f32.partialorder %v1010, 1.0
        %vm1108 = vcmp.lt.f32.partialorder %v1011, 1.0
        %v1109 = vsel %vm1093, %v996, %v1077
        %v1110 = vsel %vm1094, %v997, %v1078
        %v1111 = vsel %vm1095, %v998, %v1079
        %v1112 = vsel %vm1096, %v999, %v1080
        %v1113 = vsel %vm1097, %v1000, %v1081
        %v1114 = vsel %vm1098, %v1001, %v1082
        %v1115 = vsel %vm1099, %v1002, %v1083
        %v1116 = vsel %vm1100, %v1003, %v1084
        %v1117 = vsel %vm1101, %v1004, %v1085
        %v1118 = vsel %vm1102, %v1005, %v1086
        %v1119 = vsel %vm1103, %v1006, %v1087
        %v1120 = vsel %vm1104, %v1007, %v1088
        %v1121 = vsel %vm1105, %v1008, %v1089
        %v1122 = vsel %vm1106, %v1009, %v1090
        %v1123 = vsel %vm1107, %v1010, %v1091
        %v1124 = vsel %vm1108, %v1011, %v1092
        %v1125 = vsel %vm746, %v1109, 0.0
        %v1126 = vsel %vm747, %v1110, 0.0
        %v1127 = vsel %vm748, %v1111, 0.0
        %v1128 = vsel %vm749, %v1112, 0.0
        %v1129 = vsel %vm750, %v1113, 0.0
        %v1130 = vsel %vm751, %v1114, 0.0
        %v1131 = vsel %vm752, %v1115, 0.0
        %v1132 = vsel %vm753, %v1116, 0.0
        %v1133 = vsel %vm754, %v1117, 0.0
        %v1134 = vsel %vm755, %v1118, 0.0
        %v1135 = vsel %vm756, %v1119, 0.0
        %v1136 = vsel %vm757, %v1120, 0.0
        %v1137 = vsel %vm758, %v1121, 0.0
        %v1138 = vsel %vm759, %v1122, 0.0
        %v1139 = vsel %vm760, %v1123, 0.0
        %v1140 = vsel %vm761, %v1124, 0.0
        %s1141 = scalar_lea.vmem [#allocation2], 128
        %v1142 = vld [vmem:[%s1141] sm:$0xff]
        %v1143 = vld [vmem:[%s1141 + $0x8] sm:$0xff]
        %v1144 = vld [vmem:[%s1141 + $0x10] sm:$0xff]
        %v1145 = vld [vmem:[%s1141 + $0x18] sm:$0xff]
        %v1146 = vld [vmem:[%s1141 + $0x20] sm:$0xff]
        %v1147 = vld [vmem:[%s1141 + $0x28] sm:$0xff]
        %v1148 = vld [vmem:[%s1141 + $0x30] sm:$0xff]
        %v1149 = vld [vmem:[%s1141 + $0x38] sm:$0xff]
        %v1150 = vld [vmem:[%s1141 + $0x40] sm:$0xff]
        %v1151 = vld [vmem:[%s1141 + $0x48] sm:$0xff]
        %v1152 = vld [vmem:[%s1141 + $0x50] sm:$0xff]
        %v1153 = vld [vmem:[%s1141 + $0x58] sm:$0xff]
        %v1154 = vld [vmem:[%s1141 + $0x60] sm:$0xff]
        %v1155 = vld [vmem:[%s1141 + $0x68] sm:$0xff]
        %v1156 = vld [vmem:[%s1141 + $0x70] sm:$0xff]
        %v1157 = vld [vmem:[%s1141 + $0x78] sm:$0xff]
        %v1158 = vpack.c.bf16 %v1126, %v1125
        %v1159 = vpack.c.bf16 %v1128, %v1127
        %v1160 = vpack.c.bf16 %v1130, %v1129
        %v1161 = vpack.c.bf16 %v1132, %v1131
        %v1162 = vpack.c.bf16 %v1134, %v1133
        %v1163 = vpack.c.bf16 %v1136, %v1135
        %v1164 = vpack.c.bf16 %v1138, %v1137
        %v1165 = vpack.c.bf16 %v1140, %v1139
        %1166 = vmatpush.bf16.msra.mxu0 %v841
        %1167 = vmatpush.bf16.msra.mxu0 %v840
        %1168 = vmatpush.bf16.msra.mxu0 %v839
        %1169 = vmatpush.bf16.msra.mxu0 %v838
        %1170 = vmatpush.bf16.msra.mxu0 %v837
        %1171 = vmatpush.bf16.msra.mxu0 %v836
        %1172 = vmatpush.bf16.msra.mxu0 %v835
        %1173 = vmatpush.bf16.msra.mxu0 %v834
        %1174 = vmatmul.bf16.gmra.mxu0 %v1158
        %v1175 = vpop.f32.mrf.mxu0
        %v1176 = vadd.f32 0.0, %v1175
        %v1177 = vpop.f32.mrf.mxu0
        %v1178 = vadd.f32 0.0, %v1177
        %1179 = vmatmul.bf16.gmra.mxu0 %v1159
        %v1180 = vpop.f32.mrf.mxu0
        %v1181 = vadd.f32 0.0, %v1180
        %v1182 = vpop.f32.mrf.mxu0
        %v1183 = vadd.f32 0.0, %v1182
        %1184 = vmatmul.bf16.gmra.mxu0 %v1160
        %v1185 = vpop.f32.mrf.mxu0
        %v1186 = vadd.f32 0.0, %v1185
        %v1187 = vpop.f32.mrf.mxu0
        %v1188 = vadd.f32 0.0, %v1187
        %1189 = vmatmul.bf16.gmra.mxu0 %v1161
        %v1190 = vpop.f32.mrf.mxu0
        %v1191 = vadd.f32 0.0, %v1190
        %v1192 = vpop.f32.mrf.mxu0
        %v1193 = vadd.f32 0.0, %v1192
        %1194 = vmatmul.bf16.gmra.mxu0 %v1162
        %v1195 = vpop.f32.mrf.mxu0
        %v1196 = vadd.f32 0.0, %v1195
        %v1197 = vpop.f32.mrf.mxu0
        %v1198 = vadd.f32 0.0, %v1197
        %1199 = vmatmul.bf16.gmra.mxu0 %v1163
        %v1200 = vpop.f32.mrf.mxu0
        %v1201 = vadd.f32 0.0, %v1200
        %v1202 = vpop.f32.mrf.mxu0
        %v1203 = vadd.f32 0.0, %v1202
        %1204 = vmatmul.bf16.gmra.mxu0 %v1164
        %v1205 = vpop.f32.mrf.mxu0
        %v1206 = vadd.f32 0.0, %v1205
        %v1207 = vpop.f32.mrf.mxu0
        %v1208 = vadd.f32 0.0, %v1207
        %1209 = vmatmul.bf16.gmra.mxu0 %v1165
        %v1210 = vpop.f32.mrf.mxu0
        %v1211 = vadd.f32 0.0, %v1210
        %v1212 = vpop.f32.mrf.mxu0
        %v1213 = vadd.f32 0.0, %v1212
        %1214 = vdwg.mxu0
        %v1215 = vadd.f32 %v1142, %v1176
        %v1216 = vadd.f32 %v1143, %v1178
        %v1217 = vadd.f32 %v1144, %v1181
        %v1218 = vadd.f32 %v1145, %v1183
        %v1219 = vadd.f32 %v1146, %v1186
        %v1220 = vadd.f32 %v1147, %v1188
        %v1221 = vadd.f32 %v1148, %v1191
        %v1222 = vadd.f32 %v1149, %v1193
        %v1223 = vadd.f32 %v1150, %v1196
        %v1224 = vadd.f32 %v1151, %v1198
        %v1225 = vadd.f32 %v1152, %v1201
        %v1226 = vadd.f32 %v1153, %v1203
        %v1227 = vadd.f32 %v1154, %v1206
        %v1228 = vadd.f32 %v1155, %v1208
        %v1229 = vadd.f32 %v1156, %v1211
        %v1230 = vadd.f32 %v1157, %v1213
        %1231 = vst [vmem:[%s1141] sm:$0xff] %v1215
        %1232 = vst [vmem:[%s1141 + $0x8] sm:$0xff] %v1216
        %1233 = vst [vmem:[%s1141 + $0x10] sm:$0xff] %v1217
        %1234 = vst [vmem:[%s1141 + $0x18] sm:$0xff] %v1218
        %1235 = vst [vmem:[%s1141 + $0x20] sm:$0xff] %v1219
        %1236 = vst [vmem:[%s1141 + $0x28] sm:$0xff] %v1220
        %1237 = vst [vmem:[%s1141 + $0x30] sm:$0xff] %v1221
        %1238 = vst [vmem:[%s1141 + $0x38] sm:$0xff] %v1222
        %1239 = vst [vmem:[%s1141 + $0x40] sm:$0xff] %v1223
        %1240 = vst [vmem:[%s1141 + $0x48] sm:$0xff] %v1224
        %1241 = vst [vmem:[%s1141 + $0x50] sm:$0xff] %v1225
        %1242 = vst [vmem:[%s1141 + $0x58] sm:$0xff] %v1226
        %1243 = vst [vmem:[%s1141 + $0x60] sm:$0xff] %v1227
        %1244 = vst [vmem:[%s1141 + $0x68] sm:$0xff] %v1228
        %1245 = vst [vmem:[%s1141 + $0x70] sm:$0xff] %v1229
        %1246 = vst [vmem:[%s1141 + $0x78] sm:$0xff] %v1230
        %1247 = vset.pattern.permute.xlu0 2
        %1248 = vperm.xlu0 %1247, %v403
        %v1249 = vpop.permute.xlu0 %1248
        %1251 = vset.pattern.permute.xlu0 2
        %1252 = vperm.xlu0 %1251, %v404
        %v1253 = vpop.permute.xlu0 %1252
        %1255 = vset.pattern.permute.xlu0 2
        %1256 = vperm.xlu0 %1255, %v405
        %v1257 = vpop.permute.xlu0 %1256
        %1259 = vset.pattern.permute.xlu0 2
        %1260 = vperm.xlu0 %1259, %v406
        %v1261 = vpop.permute.xlu0 %1260
        %1263 = vset.pattern.permute.xlu0 2
        %1264 = vperm.xlu0 %1263, %v407
        %v1265 = vpop.permute.xlu0 %1264
        %1267 = vset.pattern.permute.xlu0 2
        %1268 = vperm.xlu0 %1267, %v408
        %v1269 = vpop.permute.xlu0 %1268
        %1271 = vset.pattern.permute.xlu0 2
        %1272 = vperm.xlu0 %1271, %v409
        %v1273 = vpop.permute.xlu0 %1272
        %1275 = vset.pattern.permute.xlu0 2
        %1276 = vperm.xlu0 %1275, %v410
        %v1277 = vpop.permute.xlu0 %1276
        %1279 = vset.pattern.permute.xlu0 2
        %1280 = vperm.xlu0 %1279, %v411
        %v1281 = vpop.permute.xlu0 %1280
        %1283 = vset.pattern.permute.xlu0 2
        %1284 = vperm.xlu0 %1283, %v412
        %v1285 = vpop.permute.xlu0 %1284
        %1287 = vset.pattern.permute.xlu0 2
        %1288 = vperm.xlu0 %1287, %v413
        %v1289 = vpop.permute.xlu0 %1288
        %1291 = vset.pattern.permute.xlu0 2
        %1292 = vperm.xlu0 %1291, %v414
        %v1293 = vpop.permute.xlu0 %1292
        %1295 = vset.pattern.permute.xlu0 2
        %1296 = vperm.xlu0 %1295, %v415
        %v1297 = vpop.permute.xlu0 %1296
        %1299 = vset.pattern.permute.xlu0 2
        %1300 = vperm.xlu0 %1299, %v416
        %v1301 = vpop.permute.xlu0 %1300
        %1303 = vset.pattern.permute.xlu0 2
        %1304 = vperm.xlu0 %1303, %v417
        %v1305 = vpop.permute.xlu0 %1304
        %1307 = vset.pattern.permute.xlu0 2
        %1308 = vperm.xlu0 %1307, %v418
        %v1309 = vpop.permute.xlu0 %1308
        %v1311 = vperm.slane %v419, 2
        %v1312 = vmul.f32 %v1249, %v1311
        %v1313 = vmul.f32 %v1253, %v1311
        %v1314 = vmul.f32 %v1257, %v1311
        %v1315 = vmul.f32 %v1261, %v1311
        %v1316 = vmul.f32 %v1265, %v1311
        %v1317 = vmul.f32 %v1269, %v1311
        %v1318 = vmul.f32 %v1273, %v1311
        %v1319 = vmul.f32 %v1277, %v1311
        %v1320 = vmul.f32 %v1281, %v1311
        %v1321 = vmul.f32 %v1285, %v1311
        %v1322 = vmul.f32 %v1289, %v1311
        %v1323 = vmul.f32 %v1293, %v1311
        %v1324 = vmul.f32 %v1297, %v1311
        %v1325 = vmul.f32 %v1301, %v1311
        %v1326 = vmul.f32 %v1305, %v1311
        %v1327 = vmul.f32 %v1309, %v1311
        %1328 = vset.pattern.permute.xlu0 6
        %1329 = vperm.xlu0 %1328, %v403
        %v1330 = vpop.permute.xlu0 %1329
        %1332 = vset.pattern.permute.xlu0 6
        %1333 = vperm.xlu0 %1332, %v404
        %v1334 = vpop.permute.xlu0 %1333
        %1336 = vset.pattern.permute.xlu0 6
        %1337 = vperm.xlu0 %1336, %v405
        %v1338 = vpop.permute.xlu0 %1337
        %1340 = vset.pattern.permute.xlu0 6
        %1341 = vperm.xlu0 %1340, %v406
        %v1342 = vpop.permute.xlu0 %1341
        %1344 = vset.pattern.permute.xlu0 6
        %1345 = vperm.xlu0 %1344, %v407
        %v1346 = vpop.permute.xlu0 %1345
        %1348 = vset.pattern.permute.xlu0 6
        %1349 = vperm.xlu0 %1348, %v408
        %v1350 = vpop.permute.xlu0 %1349
        %1352 = vset.pattern.permute.xlu0 6
        %1353 = vperm.xlu0 %1352, %v409
        %v1354 = vpop.permute.xlu0 %1353
        %1356 = vset.pattern.permute.xlu0 6
        %1357 = vperm.xlu0 %1356, %v410
        %v1358 = vpop.permute.xlu0 %1357
        %1360 = vset.pattern.permute.xlu0 6
        %1361 = vperm.xlu0 %1360, %v411
        %v1362 = vpop.permute.xlu0 %1361
        %1364 = vset.pattern.permute.xlu0 6
        %1365 = vperm.xlu0 %1364, %v412
        %v1366 = vpop.permute.xlu0 %1365
        %1368 = vset.pattern.permute.xlu0 6
        %1369 = vperm.xlu0 %1368, %v413
        %v1370 = vpop.permute.xlu0 %1369
        %1372 = vset.pattern.permute.xlu0 6
        %1373 = vperm.xlu0 %1372, %v414
        %v1374 = vpop.permute.xlu0 %1373
        %1376 = vset.pattern.permute.xlu0 6
        %1377 = vperm.xlu0 %1376, %v415
        %v1378 = vpop.permute.xlu0 %1377
        %1380 = vset.pattern.permute.xlu0 6
        %1381 = vperm.xlu0 %1380, %v416
        %v1382 = vpop.permute.xlu0 %1381
        %1384 = vset.pattern.permute.xlu0 6
        %1385 = vperm.xlu0 %1384, %v417
        %v1386 = vpop.permute.xlu0 %1385
        %1388 = vset.pattern.permute.xlu0 6
        %1389 = vperm.xlu0 %1388, %v418
        %v1390 = vpop.permute.xlu0 %1389
        %v1392 = vperm.slane %v419, 6
        %v1393 = vmul.f32 %v1330, %v1392
        %v1394 = vmul.f32 %v1334, %v1392
        %v1395 = vmul.f32 %v1338, %v1392
        %v1396 = vmul.f32 %v1342, %v1392
        %v1397 = vmul.f32 %v1346, %v1392
        %v1398 = vmul.f32 %v1350, %v1392
        %v1399 = vmul.f32 %v1354, %v1392
        %v1400 = vmul.f32 %v1358, %v1392
        %v1401 = vmul.f32 %v1362, %v1392
        %v1402 = vmul.f32 %v1366, %v1392
        %v1403 = vmul.f32 %v1370, %v1392
        %v1404 = vmul.f32 %v1374, %v1392
        %v1405 = vmul.f32 %v1378, %v1392
        %v1406 = vmul.f32 %v1382, %v1392
        %v1407 = vmul.f32 %v1386, %v1392
        %v1408 = vmul.f32 %v1390, %v1392
        %vm1409 = vcmp.lt.f32.partialorder %v1312, 1.0
        %vm1410 = vcmp.lt.f32.partialorder %v1313, 1.0
        %vm1411 = vcmp.lt.f32.partialorder %v1314, 1.0
        %vm1412 = vcmp.lt.f32.partialorder %v1315, 1.0
        %vm1413 = vcmp.lt.f32.partialorder %v1316, 1.0
        %vm1414 = vcmp.lt.f32.partialorder %v1317, 1.0
        %vm1415 = vcmp.lt.f32.partialorder %v1318, 1.0
        %vm1416 = vcmp.lt.f32.partialorder %v1319, 1.0
        %vm1417 = vcmp.lt.f32.partialorder %v1320, 1.0
        %vm1418 = vcmp.lt.f32.partialorder %v1321, 1.0
        %vm1419 = vcmp.lt.f32.partialorder %v1322, 1.0
        %vm1420 = vcmp.lt.f32.partialorder %v1323, 1.0
        %vm1421 = vcmp.lt.f32.partialorder %v1324, 1.0
        %vm1422 = vcmp.lt.f32.partialorder %v1325, 1.0
        %vm1423 = vcmp.lt.f32.partialorder %v1326, 1.0
        %vm1424 = vcmp.lt.f32.partialorder %v1327, 1.0
        %v1425 = vsel %vm1409, %v1312, %v1393
        %v1426 = vsel %vm1410, %v1313, %v1394
        %v1427 = vsel %vm1411, %v1314, %v1395
        %v1428 = vsel %vm1412, %v1315, %v1396
        %v1429 = vsel %vm1413, %v1316, %v1397
        %v1430 = vsel %vm1414, %v1317, %v1398
        %v1431 = vsel %vm1415, %v1318, %v1399
        %v1432 = vsel %vm1416, %v1319, %v1400
        %v1433 = vsel %vm1417, %v1320, %v1401
        %v1434 = vsel %vm1418, %v1321, %v1402
        %v1435 = vsel %vm1419, %v1322, %v1403
        %v1436 = vsel %vm1420, %v1323, %v1404
        %v1437 = vsel %vm1421, %v1324, %v1405
        %v1438 = vsel %vm1422, %v1325, %v1406
        %v1439 = vsel %vm1423, %v1326, %v1407
        %v1440 = vsel %vm1424, %v1327, %v1408
        %v1441 = vsel %vm746, %v1425, 0.0
        %v1442 = vsel %vm747, %v1426, 0.0
        %v1443 = vsel %vm748, %v1427, 0.0
        %v1444 = vsel %vm749, %v1428, 0.0
        %v1445 = vsel %vm750, %v1429, 0.0
        %v1446 = vsel %vm751, %v1430, 0.0
        %v1447 = vsel %vm752, %v1431, 0.0
        %v1448 = vsel %vm753, %v1432, 0.0
        %v1449 = vsel %vm754, %v1433, 0.0
        %v1450 = vsel %vm755, %v1434, 0.0
        %v1451 = vsel %vm756, %v1435, 0.0
        %v1452 = vsel %vm757, %v1436, 0.0
        %v1453 = vsel %vm758, %v1437, 0.0
        %v1454 = vsel %vm759, %v1438, 0.0
        %v1455 = vsel %vm760, %v1439, 0.0
        %v1456 = vsel %vm761, %v1440, 0.0
        %s1457 = scalar_lea.vmem [#allocation2], 256
        %v1458 = vld [vmem:[%s1457] sm:$0xff]
        %v1459 = vld [vmem:[%s1457 + $0x8] sm:$0xff]
        %v1460 = vld [vmem:[%s1457 + $0x10] sm:$0xff]
        %v1461 = vld [vmem:[%s1457 + $0x18] sm:$0xff]
        %v1462 = vld [vmem:[%s1457 + $0x20] sm:$0xff]
        %v1463 = vld [vmem:[%s1457 + $0x28] sm:$0xff]
        %v1464 = vld [vmem:[%s1457 + $0x30] sm:$0xff]
        %v1465 = vld [vmem:[%s1457 + $0x38] sm:$0xff]
        %v1466 = vld [vmem:[%s1457 + $0x40] sm:$0xff]
        %v1467 = vld [vmem:[%s1457 + $0x48] sm:$0xff]
        %v1468 = vld [vmem:[%s1457 + $0x50] sm:$0xff]
        %v1469 = vld [vmem:[%s1457 + $0x58] sm:$0xff]
        %v1470 = vld [vmem:[%s1457 + $0x60] sm:$0xff]
        %v1471 = vld [vmem:[%s1457 + $0x68] sm:$0xff]
        %v1472 = vld [vmem:[%s1457 + $0x70] sm:$0xff]
        %v1473 = vld [vmem:[%s1457 + $0x78] sm:$0xff]
        %v1474 = vpack.c.bf16 %v1442, %v1441
        %v1475 = vpack.c.bf16 %v1444, %v1443
        %v1476 = vpack.c.bf16 %v1446, %v1445
        %v1477 = vpack.c.bf16 %v1448, %v1447
        %v1478 = vpack.c.bf16 %v1450, %v1449
        %v1479 = vpack.c.bf16 %v1452, %v1451
        %v1480 = vpack.c.bf16 %v1454, %v1453
        %v1481 = vpack.c.bf16 %v1456, %v1455
        %1482 = vmatpush.bf16.msra.mxu0 %v841
        %1483 = vmatpush.bf16.msra.mxu0 %v840
        %1484 = vmatpush.bf16.msra.mxu0 %v839
        %1485 = vmatpush.bf16.msra.mxu0 %v838
        %1486 = vmatpush.bf16.msra.mxu0 %v837
        %1487 = vmatpush.bf16.msra.mxu0 %v836
        %1488 = vmatpush.bf16.msra.mxu0 %v835
        %1489 = vmatpush.bf16.msra.mxu0 %v834
        %1490 = vmatmul.bf16.gmra.mxu0 %v1474
        %v1491 = vpop.f32.mrf.mxu0
        %v1492 = vadd.f32 0.0, %v1491
        %v1493 = vpop.f32.mrf.mxu0
        %v1494 = vadd.f32 0.0, %v1493
        %1495 = vmatmul.bf16.gmra.mxu0 %v1475
        %v1496 = vpop.f32.mrf.mxu0
        %v1497 = vadd.f32 0.0, %v1496
        %v1498 = vpop.f32.mrf.mxu0
        %v1499 = vadd.f32 0.0, %v1498
        %1500 = vmatmul.bf16.gmra.mxu0 %v1476
        %v1501 = vpop.f32.mrf.mxu0
        %v1502 = vadd.f32 0.0, %v1501
        %v1503 = vpop.f32.mrf.mxu0
        %v1504 = vadd.f32 0.0, %v1503
        %1505 = vmatmul.bf16.gmra.mxu0 %v1477
        %v1506 = vpop.f32.mrf.mxu0
        %v1507 = vadd.f32 0.0, %v1506
        %v1508 = vpop.f32.mrf.mxu0
        %v1509 = vadd.f32 0.0, %v1508
        %1510 = vmatmul.bf16.gmra.mxu0 %v1478
        %v1511 = vpop.f32.mrf.mxu0
        %v1512 = vadd.f32 0.0, %v1511
        %v1513 = vpop.f32.mrf.mxu0
        %v1514 = vadd.f32 0.0, %v1513
        %1515 = vmatmul.bf16.gmra.mxu0 %v1479
        %v1516 = vpop.f32.mrf.mxu0
        %v1517 = vadd.f32 0.0, %v1516
        %v1518 = vpop.f32.mrf.mxu0
        %v1519 = vadd.f32 0.0, %v1518
        %1520 = vmatmul.bf16.gmra.mxu0 %v1480
        %v1521 = vpop.f32.mrf.mxu0
        %v1522 = vadd.f32 0.0, %v1521
        %v1523 = vpop.f32.mrf.mxu0
        %v1524 = vadd.f32 0.0, %v1523
        %1525 = vmatmul.bf16.gmra.mxu0 %v1481
        %v1526 = vpop.f32.mrf.mxu0
        %v1527 = vadd.f32 0.0, %v1526
        %v1528 = vpop.f32.mrf.mxu0
        %v1529 = vadd.f32 0.0, %v1528
        %1530 = vdwg.mxu0
        %v1531 = vadd.f32 %v1458, %v1492
        %v1532 = vadd.f32 %v1459, %v1494
        %v1533 = vadd.f32 %v1460, %v1497
        %v1534 = vadd.f32 %v1461, %v1499
        %v1535 = vadd.f32 %v1462, %v1502
        %v1536 = vadd.f32 %v1463, %v1504
        %v1537 = vadd.f32 %v1464, %v1507
        %v1538 = vadd.f32 %v1465, %v1509
        %v1539 = vadd.f32 %v1466, %v1512
        %v1540 = vadd.f32 %v1467, %v1514
        %v1541 = vadd.f32 %v1468, %v1517
        %v1542 = vadd.f32 %v1469, %v1519
        %v1543 = vadd.f32 %v1470, %v1522
        %v1544 = vadd.f32 %v1471, %v1524
        %v1545 = vadd.f32 %v1472, %v1527
        %v1546 = vadd.f32 %v1473, %v1529
        %1547 = vst [vmem:[%s1457] sm:$0xff] %v1531
        %1548 = vst [vmem:[%s1457 + $0x8] sm:$0xff] %v1532
        %1549 = vst [vmem:[%s1457 + $0x10] sm:$0xff] %v1533
        %1550 = vst [vmem:[%s1457 + $0x18] sm:$0xff] %v1534
        %1551 = vst [vmem:[%s1457 + $0x20] sm:$0xff] %v1535
        %1552 = vst [vmem:[%s1457 + $0x28] sm:$0xff] %v1536
        %1553 = vst [vmem:[%s1457 + $0x30] sm:$0xff] %v1537
        %1554 = vst [vmem:[%s1457 + $0x38] sm:$0xff] %v1538
        %1555 = vst [vmem:[%s1457 + $0x40] sm:$0xff] %v1539
        %1556 = vst [vmem:[%s1457 + $0x48] sm:$0xff] %v1540
        %1557 = vst [vmem:[%s1457 + $0x50] sm:$0xff] %v1541
        %1558 = vst [vmem:[%s1457 + $0x58] sm:$0xff] %v1542
        %1559 = vst [vmem:[%s1457 + $0x60] sm:$0xff] %v1543
        %1560 = vst [vmem:[%s1457 + $0x68] sm:$0xff] %v1544
        %1561 = vst [vmem:[%s1457 + $0x70] sm:$0xff] %v1545
        %1562 = vst [vmem:[%s1457 + $0x78] sm:$0xff] %v1546
        %1563 = vset.pattern.permute.xlu0 3
        %1564 = vperm.xlu0 %1563, %v403
        %v1565 = vpop.permute.xlu0 %1564
        %1567 = vset.pattern.permute.xlu0 3
        %1568 = vperm.xlu0 %1567, %v404
        %v1569 = vpop.permute.xlu0 %1568
        %1571 = vset.pattern.permute.xlu0 3
        %1572 = vperm.xlu0 %1571, %v405
        %v1573 = vpop.permute.xlu0 %1572
        %1575 = vset.pattern.permute.xlu0 3
        %1576 = vperm.xlu0 %1575, %v406
        %v1577 = vpop.permute.xlu0 %1576
        %1579 = vset.pattern.permute.xlu0 3
        %1580 = vperm.xlu0 %1579, %v407
        %v1581 = vpop.permute.xlu0 %1580
        %1583 = vset.pattern.permute.xlu0 3
        %1584 = vperm.xlu0 %1583, %v408
        %v1585 = vpop.permute.xlu0 %1584
        %1587 = vset.pattern.permute.xlu0 3
        %1588 = vperm.xlu0 %1587, %v409
        %v1589 = vpop.permute.xlu0 %1588
        %1591 = vset.pattern.permute.xlu0 3
        %1592 = vperm.xlu0 %1591, %v410
        %v1593 = vpop.permute.xlu0 %1592
        %1595 = vset.pattern.permute.xlu0 3
        %1596 = vperm.xlu0 %1595, %v411
        %v1597 = vpop.permute.xlu0 %1596
        %1599 = vset.pattern.permute.xlu0 3
        %1600 = vperm.xlu0 %1599, %v412
        %v1601 = vpop.permute.xlu0 %1600
        %1603 = vset.pattern.permute.xlu0 3
        %1604 = vperm.xlu0 %1603, %v413
        %v1605 = vpop.permute.xlu0 %1604
        %1607 = vset.pattern.permute.xlu0 3
        %1608 = vperm.xlu0 %1607, %v414
        %v1609 = vpop.permute.xlu0 %1608
        %1611 = vset.pattern.permute.xlu0 3
        %1612 = vperm.xlu0 %1611, %v415
        %v1613 = vpop.permute.xlu0 %1612
        %1615 = vset.pattern.permute.xlu0 3
        %1616 = vperm.xlu0 %1615, %v416
        %v1617 = vpop.permute.xlu0 %1616
        %1619 = vset.pattern.permute.xlu0 3
        %1620 = vperm.xlu0 %1619, %v417
        %v1621 = vpop.permute.xlu0 %1620
        %1623 = vset.pattern.permute.xlu0 3
        %1624 = vperm.xlu0 %1623, %v418
        %v1625 = vpop.permute.xlu0 %1624
        %v1627 = vperm.slane %v419, 3
        %v1628 = vmul.f32 %v1565, %v1627
        %v1629 = vmul.f32 %v1569, %v1627
        %v1630 = vmul.f32 %v1573, %v1627
        %v1631 = vmul.f32 %v1577, %v1627
        %v1632 = vmul.f32 %v1581, %v1627
        %v1633 = vmul.f32 %v1585, %v1627
        %v1634 = vmul.f32 %v1589, %v1627
        %v1635 = vmul.f32 %v1593, %v1627
        %v1636 = vmul.f32 %v1597, %v1627
        %v1637 = vmul.f32 %v1601, %v1627
        %v1638 = vmul.f32 %v1605, %v1627
        %v1639 = vmul.f32 %v1609, %v1627
        %v1640 = vmul.f32 %v1613, %v1627
        %v1641 = vmul.f32 %v1617, %v1627
        %v1642 = vmul.f32 %v1621, %v1627
        %v1643 = vmul.f32 %v1625, %v1627
        %1644 = vset.pattern.permute.xlu0 7
        %1645 = vperm.xlu0 %1644, %v403
        %v1646 = vpop.permute.xlu0 %1645
        %1648 = vset.pattern.permute.xlu0 7
        %1649 = vperm.xlu0 %1648, %v404
        %v1650 = vpop.permute.xlu0 %1649
        %1652 = vset.pattern.permute.xlu0 7
        %1653 = vperm.xlu0 %1652, %v405
        %v1654 = vpop.permute.xlu0 %1653
        %1656 = vset.pattern.permute.xlu0 7
        %1657 = vperm.xlu0 %1656, %v406
        %v1658 = vpop.permute.xlu0 %1657
        %1660 = vset.pattern.permute.xlu0 7
        %1661 = vperm.xlu0 %1660, %v407
        %v1662 = vpop.permute.xlu0 %1661
        %1664 = vset.pattern.permute.xlu0 7
        %1665 = vperm.xlu0 %1664, %v408
        %v1666 = vpop.permute.xlu0 %1665
        %1668 = vset.pattern.permute.xlu0 7
        %1669 = vperm.xlu0 %1668, %v409
        %v1670 = vpop.permute.xlu0 %1669
        %1672 = vset.pattern.permute.xlu0 7
        %1673 = vperm.xlu0 %1672, %v410
        %v1674 = vpop.permute.xlu0 %1673
        %1676 = vset.pattern.permute.xlu0 7
        %1677 = vperm.xlu0 %1676, %v411
        %v1678 = vpop.permute.xlu0 %1677
        %1680 = vset.pattern.permute.xlu0 7
        %1681 = vperm.xlu0 %1680, %v412
        %v1682 = vpop.permute.xlu0 %1681
        %1684 = vset.pattern.permute.xlu0 7
        %1685 = vperm.xlu0 %1684, %v413
        %v1686 = vpop.permute.xlu0 %1685
        %1688 = vset.pattern.permute.xlu0 7
        %1689 = vperm.xlu0 %1688, %v414
        %v1690 = vpop.permute.xlu0 %1689
        %1692 = vset.pattern.permute.xlu0 7
        %1693 = vperm.xlu0 %1692, %v415
        %v1694 = vpop.permute.xlu0 %1693
        %1696 = vset.pattern.permute.xlu0 7
        %1697 = vperm.xlu0 %1696, %v416
        %v1698 = vpop.permute.xlu0 %1697
        %1700 = vset.pattern.permute.xlu0 7
        %1701 = vperm.xlu0 %1700, %v417
        %v1702 = vpop.permute.xlu0 %1701
        %1704 = vset.pattern.permute.xlu0 7
        %1705 = vperm.xlu0 %1704, %v418
        %v1706 = vpop.permute.xlu0 %1705
        %v1708 = vperm.slane %v419, 7
        %v1709 = vmul.f32 %v1646, %v1708
        %v1710 = vmul.f32 %v1650, %v1708
        %v1711 = vmul.f32 %v1654, %v1708
        %v1712 = vmul.f32 %v1658, %v1708
        %v1713 = vmul.f32 %v1662, %v1708
        %v1714 = vmul.f32 %v1666, %v1708
        %v1715 = vmul.f32 %v1670, %v1708
        %v1716 = vmul.f32 %v1674, %v1708
        %v1717 = vmul.f32 %v1678, %v1708
        %v1718 = vmul.f32 %v1682, %v1708
        %v1719 = vmul.f32 %v1686, %v1708
        %v1720 = vmul.f32 %v1690, %v1708
        %v1721 = vmul.f32 %v1694, %v1708
        %v1722 = vmul.f32 %v1698, %v1708
        %v1723 = vmul.f32 %v1702, %v1708
        %v1724 = vmul.f32 %v1706, %v1708
        %vm1725 = vcmp.lt.f32.partialorder %v1628, 1.0
        %vm1726 = vcmp.lt.f32.partialorder %v1629, 1.0
        %vm1727 = vcmp.lt.f32.partialorder %v1630, 1.0
        %vm1728 = vcmp.lt.f32.partialorder %v1631, 1.0
        %vm1729 = vcmp.lt.f32.partialorder %v1632, 1.0
        %vm1730 = vcmp.lt.f32.partialorder %v1633, 1.0
        %vm1731 = vcmp.lt.f32.partialorder %v1634, 1.0
        %vm1732 = vcmp.lt.f32.partialorder %v1635, 1.0
        %vm1733 = vcmp.lt.f32.partialorder %v1636, 1.0
        %vm1734 = vcmp.lt.f32.partialorder %v1637, 1.0
        %vm1735 = vcmp.lt.f32.partialorder %v1638, 1.0
        %vm1736 = vcmp.lt.f32.partialorder %v1639, 1.0
        %vm1737 = vcmp.lt.f32.partialorder %v1640, 1.0
        %vm1738 = vcmp.lt.f32.partialorder %v1641, 1.0
        %vm1739 = vcmp.lt.f32.partialorder %v1642, 1.0
        %vm1740 = vcmp.lt.f32.partialorder %v1643, 1.0
        %v1741 = vsel %vm1725, %v1628, %v1709
        %v1742 = vsel %vm1726, %v1629, %v1710
        %v1743 = vsel %vm1727, %v1630, %v1711
        %v1744 = vsel %vm1728, %v1631, %v1712
        %v1745 = vsel %vm1729, %v1632, %v1713
        %v1746 = vsel %vm1730, %v1633, %v1714
        %v1747 = vsel %vm1731, %v1634, %v1715
        %v1748 = vsel %vm1732, %v1635, %v1716
        %v1749 = vsel %vm1733, %v1636, %v1717
        %v1750 = vsel %vm1734, %v1637, %v1718
        %v1751 = vsel %vm1735, %v1638, %v1719
        %v1752 = vsel %vm1736, %v1639, %v1720
        %v1753 = vsel %vm1737, %v1640, %v1721
        %v1754 = vsel %vm1738, %v1641, %v1722
        %v1755 = vsel %vm1739, %v1642, %v1723
        %v1756 = vsel %vm1740, %v1643, %v1724
        %v1757 = vsel %vm746, %v1741, 0.0
        %v1758 = vsel %vm747, %v1742, 0.0
        %v1759 = vsel %vm748, %v1743, 0.0
        %v1760 = vsel %vm749, %v1744, 0.0
        %v1761 = vsel %vm750, %v1745, 0.0
        %v1762 = vsel %vm751, %v1746, 0.0
        %v1763 = vsel %vm752, %v1747, 0.0
        %v1764 = vsel %vm753, %v1748, 0.0
        %v1765 = vsel %vm754, %v1749, 0.0
        %v1766 = vsel %vm755, %v1750, 0.0
        %v1767 = vsel %vm756, %v1751, 0.0
        %v1768 = vsel %vm757, %v1752, 0.0
        %v1769 = vsel %vm758, %v1753, 0.0
        %v1770 = vsel %vm759, %v1754, 0.0
        %v1771 = vsel %vm760, %v1755, 0.0
        %v1772 = vsel %vm761, %v1756, 0.0
        %s1773 = scalar_lea.vmem [#allocation2], 384
        %v1774 = vld [vmem:[%s1773] sm:$0xff]
        %v1775 = vld [vmem:[%s1773 + $0x8] sm:$0xff]
        %v1776 = vld [vmem:[%s1773 + $0x10] sm:$0xff]
        %v1777 = vld [vmem:[%s1773 + $0x18] sm:$0xff]
        %v1778 = vld [vmem:[%s1773 + $0x20] sm:$0xff]
        %v1779 = vld [vmem:[%s1773 + $0x28] sm:$0xff]
        %v1780 = vld [vmem:[%s1773 + $0x30] sm:$0xff]
        %v1781 = vld [vmem:[%s1773 + $0x38] sm:$0xff]
        %v1782 = vld [vmem:[%s1773 + $0x40] sm:$0xff]
        %v1783 = vld [vmem:[%s1773 + $0x48] sm:$0xff]
        %v1784 = vld [vmem:[%s1773 + $0x50] sm:$0xff]
        %v1785 = vld [vmem:[%s1773 + $0x58] sm:$0xff]
        %v1786 = vld [vmem:[%s1773 + $0x60] sm:$0xff]
        %v1787 = vld [vmem:[%s1773 + $0x68] sm:$0xff]
        %v1788 = vld [vmem:[%s1773 + $0x70] sm:$0xff]
        %v1789 = vld [vmem:[%s1773 + $0x78] sm:$0xff]
        %v1790 = vpack.c.bf16 %v1758, %v1757
        %v1791 = vpack.c.bf16 %v1760, %v1759
        %v1792 = vpack.c.bf16 %v1762, %v1761
        %v1793 = vpack.c.bf16 %v1764, %v1763
        %v1794 = vpack.c.bf16 %v1766, %v1765
        %v1795 = vpack.c.bf16 %v1768, %v1767
        %v1796 = vpack.c.bf16 %v1770, %v1769
        %v1797 = vpack.c.bf16 %v1772, %v1771
        %1798 = vmatpush.bf16.msra.mxu0 %v841
        %1799 = vmatpush.bf16.msra.mxu0 %v840
        %1800 = vmatpush.bf16.msra.mxu0 %v839
        %1801 = vmatpush.bf16.msra.mxu0 %v838
        %1802 = vmatpush.bf16.msra.mxu0 %v837
        %1803 = vmatpush.bf16.msra.mxu0 %v836
        %1804 = vmatpush.bf16.msra.mxu0 %v835
        %1805 = vmatpush.bf16.msra.mxu0 %v834
        %1806 = vmatmul.bf16.gmra.mxu0 %v1790
        %v1807 = vpop.f32.mrf.mxu0
        %v1808 = vadd.f32 0.0, %v1807
        %v1809 = vpop.f32.mrf.mxu0
        %v1810 = vadd.f32 0.0, %v1809
        %1811 = vmatmul.bf16.gmra.mxu0 %v1791
        %v1812 = vpop.f32.mrf.mxu0
        %v1813 = vadd.f32 0.0, %v1812
        %v1814 = vpop.f32.mrf.mxu0
        %v1815 = vadd.f32 0.0, %v1814
        %1816 = vmatmul.bf16.gmra.mxu0 %v1792
        %v1817 = vpop.f32.mrf.mxu0
        %v1818 = vadd.f32 0.0, %v1817
        %v1819 = vpop.f32.mrf.mxu0
        %v1820 = vadd.f32 0.0, %v1819
        %1821 = vmatmul.bf16.gmra.mxu0 %v1793
        %v1822 = vpop.f32.mrf.mxu0
        %v1823 = vadd.f32 0.0, %v1822
        %v1824 = vpop.f32.mrf.mxu0
        %v1825 = vadd.f32 0.0, %v1824
        %1826 = vmatmul.bf16.gmra.mxu0 %v1794
        %v1827 = vpop.f32.mrf.mxu0
        %v1828 = vadd.f32 0.0, %v1827
        %v1829 = vpop.f32.mrf.mxu0
        %v1830 = vadd.f32 0.0, %v1829
        %1831 = vmatmul.bf16.gmra.mxu0 %v1795
        %v1832 = vpop.f32.mrf.mxu0
        %v1833 = vadd.f32 0.0, %v1832
        %v1834 = vpop.f32.mrf.mxu0
        %v1835 = vadd.f32 0.0, %v1834
        %1836 = vmatmul.bf16.gmra.mxu0 %v1796
        %v1837 = vpop.f32.mrf.mxu0
        %v1838 = vadd.f32 0.0, %v1837
        %v1839 = vpop.f32.mrf.mxu0
        %v1840 = vadd.f32 0.0, %v1839
        %1841 = vmatmul.bf16.gmra.mxu0 %v1797
        %v1842 = vpop.f32.mrf.mxu0
        %v1843 = vadd.f32 0.0, %v1842
        %v1844 = vpop.f32.mrf.mxu0
        %v1845 = vadd.f32 0.0, %v1844
        %1846 = vdwg.mxu0
        %v1847 = vadd.f32 %v1774, %v1808
        %v1848 = vadd.f32 %v1775, %v1810
        %v1849 = vadd.f32 %v1776, %v1813
        %v1850 = vadd.f32 %v1777, %v1815
        %v1851 = vadd.f32 %v1778, %v1818
        %v1852 = vadd.f32 %v1779, %v1820
        %v1853 = vadd.f32 %v1780, %v1823
        %v1854 = vadd.f32 %v1781, %v1825
        %v1855 = vadd.f32 %v1782, %v1828
        %v1856 = vadd.f32 %v1783, %v1830
        %v1857 = vadd.f32 %v1784, %v1833
        %v1858 = vadd.f32 %v1785, %v1835
        %v1859 = vadd.f32 %v1786, %v1838
        %v1860 = vadd.f32 %v1787, %v1840
        %v1861 = vadd.f32 %v1788, %v1843
        %v1862 = vadd.f32 %v1789, %v1845
        %1863 = vst [vmem:[%s1773] sm:$0xff] %v1847
        %1864 = vst [vmem:[%s1773 + $0x8] sm:$0xff] %v1848
        %1865 = vst [vmem:[%s1773 + $0x10] sm:$0xff] %v1849
        %1866 = vst [vmem:[%s1773 + $0x18] sm:$0xff] %v1850
        %1867 = vst [vmem:[%s1773 + $0x20] sm:$0xff] %v1851
        %1868 = vst [vmem:[%s1773 + $0x28] sm:$0xff] %v1852
        %1869 = vst [vmem:[%s1773 + $0x30] sm:$0xff] %v1853
        %1870 = vst [vmem:[%s1773 + $0x38] sm:$0xff] %v1854
        %1871 = vst [vmem:[%s1773 + $0x40] sm:$0xff] %v1855
        %1872 = vst [vmem:[%s1773 + $0x48] sm:$0xff] %v1856
        %1873 = vst [vmem:[%s1773 + $0x50] sm:$0xff] %v1857
        %1874 = vst [vmem:[%s1773 + $0x58] sm:$0xff] %v1858
        %1875 = vst [vmem:[%s1773 + $0x60] sm:$0xff] %v1859
        %1876 = vst [vmem:[%s1773 + $0x68] sm:$0xff] %v1860
        %1877 = vst [vmem:[%s1773 + $0x70] sm:$0xff] %v1861
        %1878 = vst [vmem:[%s1773 + $0x78] sm:$0xff] %v1862
        %p1879 = scmp.eq.s32.totalorder %s20, 1
        // Predicated region
        $region79: #{spgat_forward.5} parent=69 // pred_check
          %p1880 = pneg %p1879
        $region80: #{spgat_forward.5} parent=69 // pred_check_branch
          %1882 = sbr.rel (%p1880) target = $region82
        $region81: #{spgat_forward.5} parent=69 // pred_region
          %v1883 = vlaneseq
          %v1884 = vand.u32 %v1883, 127
          %v1885 = vld [vmem:[#allocation2] sm:$0xff]
          %v1886 = vld [vmem:[#allocation2 + $0x8] sm:$0xff]
          %v1887 = vld [vmem:[#allocation2 + $0x10] sm:$0xff]
          %v1888 = vld [vmem:[#allocation2 + $0x18] sm:$0xff]
          %v1889 = vld [vmem:[#allocation2 + $0x20] sm:$0xff]
          %v1890 = vld [vmem:[#allocation2 + $0x28] sm:$0xff]
          %v1891 = vld [vmem:[#allocation2 + $0x30] sm:$0xff]
          %v1892 = vld [vmem:[#allocation2 + $0x38] sm:$0xff]
          %v1893 = vld [vmem:[#allocation2 + $0x40] sm:$0xff]
          %v1894 = vld [vmem:[#allocation2 + $0x48] sm:$0xff]
          %v1895 = vld [vmem:[#allocation2 + $0x50] sm:$0xff]
          %v1896 = vld [vmem:[#allocation2 + $0x58] sm:$0xff]
          %v1897 = vld [vmem:[#allocation2 + $0x60] sm:$0xff]
          %v1898 = vld [vmem:[#allocation2 + $0x68] sm:$0xff]
          %v1899 = vld [vmem:[#allocation2 + $0x70] sm:$0xff]
          %v1900 = vld [vmem:[#allocation2 + $0x78] sm:$0xff]
          %v1901 = vmax.f32 %v1885, 1e-36
          %v1902 = vmax.f32 %v1886, 1e-36
          %v1903 = vmax.f32 %v1887, 1e-36
          %v1904 = vmax.f32 %v1888, 1e-36
          %v1905 = vmax.f32 %v1889, 1e-36
          %v1906 = vmax.f32 %v1890, 1e-36
          %v1907 = vmax.f32 %v1891, 1e-36
          %v1908 = vmax.f32 %v1892, 1e-36
          %v1909 = vmax.f32 %v1893, 1e-36
          %v1910 = vmax.f32 %v1894, 1e-36
          %v1911 = vmax.f32 %v1895, 1e-36
          %v1912 = vmax.f32 %v1896, 1e-36
          %v1913 = vmax.f32 %v1897, 1e-36
          %v1914 = vmax.f32 %v1898, 1e-36
          %v1915 = vmax.f32 %v1899, 1e-36
          %v1916 = vmax.f32 %v1900, 1e-36
          %v1917 = vrcp.pop %v1901
          %v1918 = vmul.f32 %v1901, %v1917
          %v1919 = vsub.f32 1.0, %v1918
          %v1920 = vmul.f32 %v1917, %v1919
          %v1921 = vadd.f32 %v1917, %v1920
          %vm1922 = vweird.f32 %v1901
          %vm1923 = vweird.f32 %v1917
          %vm1924 = vmor %vm1922, %vm1923
          %v1925 = vsel %vm1924, %v1917, %v1921
          %v1926 = vand.u32 2147483647, %v1901
          %vm1927 = vcmp.eq.f32.partialorder %v1926, 8.507059e+37
          %v1928 = vand.u32 %v1901, 2147483648
          %v1929 = vor.u32 1.1754944e-38, %v1928
          %v1930 = vsel %vm1927, %v1929, %v1925
          %v1931 = vmul.f32 1.0, %v1930
          %v1932 = vrcp.pop %v1902
          %v1933 = vmul.f32 %v1902, %v1932
          %v1934 = vsub.f32 1.0, %v1933
          %v1935 = vmul.f32 %v1932, %v1934
          %v1936 = vadd.f32 %v1932, %v1935
          %vm1937 = vweird.f32 %v1902
          %vm1938 = vweird.f32 %v1932
          %vm1939 = vmor %vm1937, %vm1938
          %v1940 = vsel %vm1939, %v1932, %v1936
          %v1941 = vand.u32 2147483647, %v1902
          %vm1942 = vcmp.eq.f32.partialorder %v1941, 8.507059e+37
          %v1943 = vand.u32 %v1902, 2147483648
          %v1944 = vor.u32 1.1754944e-38, %v1943
          %v1945 = vsel %vm1942, %v1944, %v1940
          %v1946 = vmul.f32 1.0, %v1945
          %v1947 = vrcp.pop %v1903
          %v1948 = vmul.f32 %v1903, %v1947
          %v1949 = vsub.f32 1.0, %v1948
          %v1950 = vmul.f32 %v1947, %v1949
          %v1951 = vadd.f32 %v1947, %v1950
          %vm1952 = vweird.f32 %v1903
          %vm1953 = vweird.f32 %v1947
          %vm1954 = vmor %vm1952, %vm1953
          %v1955 = vsel %vm1954, %v1947, %v1951
          %v1956 = vand.u32 2147483647, %v1903
          %vm1957 = vcmp.eq.f32.partialorder %v1956, 8.507059e+37
          %v1958 = vand.u32 %v1903, 2147483648
          %v1959 = vor.u32 1.1754944e-38, %v1958
          %v1960 = vsel %vm1957, %v1959, %v1955
          %v1961 = vmul.f32 1.0, %v1960
          %v1962 = vrcp.pop %v1904
          %v1963 = vmul.f32 %v1904, %v1962
          %v1964 = vsub.f32 1.0, %v1963
          %v1965 = vmul.f32 %v1962, %v1964
          %v1966 = vadd.f32 %v1962, %v1965
          %vm1967 = vweird.f32 %v1904
          %vm1968 = vweird.f32 %v1962
          %vm1969 = vmor %vm1967, %vm1968
          %v1970 = vsel %vm1969, %v1962, %v1966
          %v1971 = vand.u32 2147483647, %v1904
          %vm1972 = vcmp.eq.f32.partialorder %v1971, 8.507059e+37
          %v1973 = vand.u32 %v1904, 2147483648
          %v1974 = vor.u32 1.1754944e-38, %v1973
          %v1975 = vsel %vm1972, %v1974, %v1970
          %v1976 = vmul.f32 1.0, %v1975
          %v1977 = vrcp.pop %v1905
          %v1978 = vmul.f32 %v1905, %v1977
          %v1979 = vsub.f32 1.0, %v1978
          %v1980 = vmul.f32 %v1977, %v1979
          %v1981 = vadd.f32 %v1977, %v1980
          %vm1982 = vweird.f32 %v1905
          %vm1983 = vweird.f32 %v1977
          %vm1984 = vmor %vm1982, %vm1983
          %v1985 = vsel %vm1984, %v1977, %v1981
          %v1986 = vand.u32 2147483647, %v1905
          %vm1987 = vcmp.eq.f32.partialorder %v1986, 8.507059e+37
          %v1988 = vand.u32 %v1905, 2147483648
          %v1989 = vor.u32 1.1754944e-38, %v1988
          %v1990 = vsel %vm1987, %v1989, %v1985
          %v1991 = vmul.f32 1.0, %v1990
          %v1992 = vrcp.pop %v1906
          %v1993 = vmul.f32 %v1906, %v1992
          %v1994 = vsub.f32 1.0, %v1993
          %v1995 = vmul.f32 %v1992, %v1994
          %v1996 = vadd.f32 %v1992, %v1995
          %vm1997 = vweird.f32 %v1906
          %vm1998 = vweird.f32 %v1992
          %vm1999 = vmor %vm1997, %vm1998
          %v2000 = vsel %vm1999, %v1992, %v1996
          %v2001 = vand.u32 2147483647, %v1906
          %vm2002 = vcmp.eq.f32.partialorder %v2001, 8.507059e+37
          %v2003 = vand.u32 %v1906, 2147483648
          %v2004 = vor.u32 1.1754944e-38, %v2003
          %v2005 = vsel %vm2002, %v2004, %v2000
          %v2006 = vmul.f32 1.0, %v2005
          %v2007 = vrcp.pop %v1907
          %v2008 = vmul.f32 %v1907, %v2007
          %v2009 = vsub.f32 1.0, %v2008
          %v2010 = vmul.f32 %v2007, %v2009
          %v2011 = vadd.f32 %v2007, %v2010
          %vm2012 = vweird.f32 %v1907
          %vm2013 = vweird.f32 %v2007
          %vm2014 = vmor %vm2012, %vm2013
          %v2015 = vsel %vm2014, %v2007, %v2011
          %v2016 = vand.u32 2147483647, %v1907
          %vm2017 = vcmp.eq.f32.partialorder %v2016, 8.507059e+37
          %v2018 = vand.u32 %v1907, 2147483648
          %v2019 = vor.u32 1.1754944e-38, %v2018
          %v2020 = vsel %vm2017, %v2019, %v2015
          %v2021 = vmul.f32 1.0, %v2020
          %v2022 = vrcp.pop %v1908
          %v2023 = vmul.f32 %v1908, %v2022
          %v2024 = vsub.f32 1.0, %v2023
          %v2025 = vmul.f32 %v2022, %v2024
          %v2026 = vadd.f32 %v2022, %v2025
          %vm2027 = vweird.f32 %v1908
          %vm2028 = vweird.f32 %v2022
          %vm2029 = vmor %vm2027, %vm2028
          %v2030 = vsel %vm2029, %v2022, %v2026
          %v2031 = vand.u32 2147483647, %v1908
          %vm2032 = vcmp.eq.f32.partialorder %v2031, 8.507059e+37
          %v2033 = vand.u32 %v1908, 2147483648
          %v2034 = vor.u32 1.1754944e-38, %v2033
          %v2035 = vsel %vm2032, %v2034, %v2030
          %v2036 = vmul.f32 1.0, %v2035
          %v2037 = vrcp.pop %v1909
          %v2038 = vmul.f32 %v1909, %v2037
          %v2039 = vsub.f32 1.0, %v2038
          %v2040 = vmul.f32 %v2037, %v2039
          %v2041 = vadd.f32 %v2037, %v2040
          %vm2042 = vweird.f32 %v1909
          %vm2043 = vweird.f32 %v2037
          %vm2044 = vmor %vm2042, %vm2043
          %v2045 = vsel %vm2044, %v2037, %v2041
          %v2046 = vand.u32 2147483647, %v1909
          %vm2047 = vcmp.eq.f32.partialorder %v2046, 8.507059e+37
          %v2048 = vand.u32 %v1909, 2147483648
          %v2049 = vor.u32 1.1754944e-38, %v2048
          %v2050 = vsel %vm2047, %v2049, %v2045
          %v2051 = vmul.f32 1.0, %v2050
          %v2052 = vrcp.pop %v1910
          %v2053 = vmul.f32 %v1910, %v2052
          %v2054 = vsub.f32 1.0, %v2053
          %v2055 = vmul.f32 %v2052, %v2054
          %v2056 = vadd.f32 %v2052, %v2055
          %vm2057 = vweird.f32 %v1910
          %vm2058 = vweird.f32 %v2052
          %vm2059 = vmor %vm2057, %vm2058
          %v2060 = vsel %vm2059, %v2052, %v2056
          %v2061 = vand.u32 2147483647, %v1910
          %vm2062 = vcmp.eq.f32.partialorder %v2061, 8.507059e+37
          %v2063 = vand.u32 %v1910, 2147483648
          %v2064 = vor.u32 1.1754944e-38, %v2063
          %v2065 = vsel %vm2062, %v2064, %v2060
          %v2066 = vmul.f32 1.0, %v2065
          %v2067 = vrcp.pop %v1911
          %v2068 = vmul.f32 %v1911, %v2067
          %v2069 = vsub.f32 1.0, %v2068
          %v2070 = vmul.f32 %v2067, %v2069
          %v2071 = vadd.f32 %v2067, %v2070
          %vm2072 = vweird.f32 %v1911
          %vm2073 = vweird.f32 %v2067
          %vm2074 = vmor %vm2072, %vm2073
          %v2075 = vsel %vm2074, %v2067, %v2071
          %v2076 = vand.u32 2147483647, %v1911
          %vm2077 = vcmp.eq.f32.partialorder %v2076, 8.507059e+37
          %v2078 = vand.u32 %v1911, 2147483648
          %v2079 = vor.u32 1.1754944e-38, %v2078
          %v2080 = vsel %vm2077, %v2079, %v2075
          %v2081 = vmul.f32 1.0, %v2080
          %v2082 = vrcp.pop %v1912
          %v2083 = vmul.f32 %v1912, %v2082
          %v2084 = vsub.f32 1.0, %v2083
          %v2085 = vmul.f32 %v2082, %v2084
          %v2086 = vadd.f32 %v2082, %v2085
          %vm2087 = vweird.f32 %v1912
          %vm2088 = vweird.f32 %v2082
          %vm2089 = vmor %vm2087, %vm2088
          %v2090 = vsel %vm2089, %v2082, %v2086
          %v2091 = vand.u32 2147483647, %v1912
          %vm2092 = vcmp.eq.f32.partialorder %v2091, 8.507059e+37
          %v2093 = vand.u32 %v1912, 2147483648
          %v2094 = vor.u32 1.1754944e-38, %v2093
          %v2095 = vsel %vm2092, %v2094, %v2090
          %v2096 = vmul.f32 1.0, %v2095
          %v2097 = vrcp.pop %v1913
          %v2098 = vmul.f32 %v1913, %v2097
          %v2099 = vsub.f32 1.0, %v2098
          %v2100 = vmul.f32 %v2097, %v2099
          %v2101 = vadd.f32 %v2097, %v2100
          %vm2102 = vweird.f32 %v1913
          %vm2103 = vweird.f32 %v2097
          %vm2104 = vmor %vm2102, %vm2103
          %v2105 = vsel %vm2104, %v2097, %v2101
          %v2106 = vand.u32 2147483647, %v1913
          %vm2107 = vcmp.eq.f32.partialorder %v2106, 8.507059e+37
          %v2108 = vand.u32 %v1913, 2147483648
          %v2109 = vor.u32 1.1754944e-38, %v2108
          %v2110 = vsel %vm2107, %v2109, %v2105
          %v2111 = vmul.f32 1.0, %v2110
          %v2112 = vrcp.pop %v1914
          %v2113 = vmul.f32 %v1914, %v2112
          %v2114 = vsub.f32 1.0, %v2113
          %v2115 = vmul.f32 %v2112, %v2114
          %v2116 = vadd.f32 %v2112, %v2115
          %vm2117 = vweird.f32 %v1914
          %vm2118 = vweird.f32 %v2112
          %vm2119 = vmor %vm2117, %vm2118
          %v2120 = vsel %vm2119, %v2112, %v2116
          %v2121 = vand.u32 2147483647, %v1914
          %vm2122 = vcmp.eq.f32.partialorder %v2121, 8.507059e+37
          %v2123 = vand.u32 %v1914, 2147483648
          %v2124 = vor.u32 1.1754944e-38, %v2123
          %v2125 = vsel %vm2122, %v2124, %v2120
          %v2126 = vmul.f32 1.0, %v2125
          %v2127 = vrcp.pop %v1915
          %v2128 = vmul.f32 %v1915, %v2127
          %v2129 = vsub.f32 1.0, %v2128
          %v2130 = vmul.f32 %v2127, %v2129
          %v2131 = vadd.f32 %v2127, %v2130
          %vm2132 = vweird.f32 %v1915
          %vm2133 = vweird.f32 %v2127
          %vm2134 = vmor %vm2132, %vm2133
          %v2135 = vsel %vm2134, %v2127, %v2131
          %v2136 = vand.u32 2147483647, %v1915
          %vm2137 = vcmp.eq.f32.partialorder %v2136, 8.507059e+37
          %v2138 = vand.u32 %v1915, 2147483648
          %v2139 = vor.u32 1.1754944e-38, %v2138
          %v2140 = vsel %vm2137, %v2139, %v2135
          %v2141 = vmul.f32 1.0, %v2140
          %v2142 = vrcp.pop %v1916
          %v2143 = vmul.f32 %v1916, %v2142
          %v2144 = vsub.f32 1.0, %v2143
          %v2145 = vmul.f32 %v2142, %v2144
          %v2146 = vadd.f32 %v2142, %v2145
          %vm2147 = vweird.f32 %v1916
          %vm2148 = vweird.f32 %v2142
          %vm2149 = vmor %vm2147, %vm2148
          %v2150 = vsel %vm2149, %v2142, %v2146
          %v2151 = vand.u32 2147483647, %v1916
          %vm2152 = vcmp.eq.f32.partialorder %v2151, 8.507059e+37
          %v2153 = vand.u32 %v1916, 2147483648
          %v2154 = vor.u32 1.1754944e-38, %v2153
          %v2155 = vsel %vm2152, %v2154, %v2150
          %v2156 = vmul.f32 1.0, %v2155
          %2158 = vset.pattern.permute.xlu0 32
          %2159 = vperm.xlu0 %2158, %v1931
          %v2160 = vpop.permute.xlu0 %2159
          %2163 = vset.pattern.permute.xlu0 32
          %2164 = vperm.xlu0 %2163, %v1946
          %v2165 = vpop.permute.xlu0 %2164
          %2168 = vset.pattern.permute.xlu0 32
          %2169 = vperm.xlu0 %2168, %v1961
          %v2170 = vpop.permute.xlu0 %2169
          %2173 = vset.pattern.permute.xlu0 32
          %2174 = vperm.xlu0 %2173, %v1976
          %v2175 = vpop.permute.xlu0 %2174
          %2178 = vset.pattern.permute.xlu0 32
          %2179 = vperm.xlu0 %2178, %v1991
          %v2180 = vpop.permute.xlu0 %2179
          %2183 = vset.pattern.permute.xlu0 32
          %2184 = vperm.xlu0 %2183, %v2006
          %v2185 = vpop.permute.xlu0 %2184
          %2188 = vset.pattern.permute.xlu0 32
          %2189 = vperm.xlu0 %2188, %v2021
          %v2190 = vpop.permute.xlu0 %2189
          %2193 = vset.pattern.permute.xlu0 32
          %2194 = vperm.xlu0 %2193, %v2036
          %v2195 = vpop.permute.xlu0 %2194
          %2198 = vset.pattern.permute.xlu0 32
          %2199 = vperm.xlu0 %2198, %v2051
          %v2200 = vpop.permute.xlu0 %2199
          %2203 = vset.pattern.permute.xlu0 32
          %2204 = vperm.xlu0 %2203, %v2066
          %v2205 = vpop.permute.xlu0 %2204
          %2208 = vset.pattern.permute.xlu0 32
          %2209 = vperm.xlu0 %2208, %v2081
          %v2210 = vpop.permute.xlu0 %2209
          %2213 = vset.pattern.permute.xlu0 32
          %2214 = vperm.xlu0 %2213, %v2096
          %v2215 = vpop.permute.xlu0 %2214
          %2218 = vset.pattern.permute.xlu0 32
          %2219 = vperm.xlu0 %2218, %v2111
          %v2220 = vpop.permute.xlu0 %2219
          %2223 = vset.pattern.permute.xlu0 32
          %2224 = vperm.xlu0 %2223, %v2126
          %v2225 = vpop.permute.xlu0 %2224
          %2228 = vset.pattern.permute.xlu0 32
          %2229 = vperm.xlu0 %2228, %v2141
          %v2230 = vpop.permute.xlu0 %2229
          %2233 = vset.pattern.permute.xlu0 32
          %2234 = vperm.xlu0 %2233, %v2156
          %v2235 = vpop.permute.xlu0 %2234
          %v2237 = vmul.f32 %v1885, %v2160
          %v2238 = vmul.f32 %v1886, %v2165
          %v2239 = vmul.f32 %v1887, %v2170
          %v2240 = vmul.f32 %v1888, %v2175
          %v2241 = vmul.f32 %v1889, %v2180
          %v2242 = vmul.f32 %v1890, %v2185
          %v2243 = vmul.f32 %v1891, %v2190
          %v2244 = vmul.f32 %v1892, %v2195
          %v2245 = vmul.f32 %v1893, %v2200
          %v2246 = vmul.f32 %v1894, %v2205
          %v2247 = vmul.f32 %v1895, %v2210
          %v2248 = vmul.f32 %v1896, %v2215
          %v2249 = vmul.f32 %v1897, %v2220
          %v2250 = vmul.f32 %v1898, %v2225
          %v2251 = vmul.f32 %v1899, %v2230
          %v2252 = vmul.f32 %v1900, %v2235
          %vm2253 = vcmp.gt.f32.partialorder %v2237, 0.0
          %vm2254 = vcmp.gt.f32.partialorder %v2238, 0.0
          %vm2255 = vcmp.gt.f32.partialorder %v2239, 0.0
          %vm2256 = vcmp.gt.f32.partialorder %v2240, 0.0
          %vm2257 = vcmp.gt.f32.partialorder %v2241, 0.0
          %vm2258 = vcmp.gt.f32.partialorder %v2242, 0.0
          %vm2259 = vcmp.gt.f32.partialorder %v2243, 0.0
          %vm2260 = vcmp.gt.f32.partialorder %v2244, 0.0
          %vm2261 = vcmp.gt.f32.partialorder %v2245, 0.0
          %vm2262 = vcmp.gt.f32.partialorder %v2246, 0.0
          %vm2263 = vcmp.gt.f32.partialorder %v2247, 0.0
          %vm2264 = vcmp.gt.f32.partialorder %v2248, 0.0
          %vm2265 = vcmp.gt.f32.partialorder %v2249, 0.0
          %vm2266 = vcmp.gt.f32.partialorder %v2250, 0.0
          %vm2267 = vcmp.gt.f32.partialorder %v2251, 0.0
          %vm2268 = vcmp.gt.f32.partialorder %v2252, 0.0
          %v2269 = vmul.f32 %v2237, 1.442695
          %v2270 = vpow.pop %v2269
          %v2271 = vmul.f32 %v2238, 1.442695
          %v2272 = vpow.pop %v2271
          %v2273 = vmul.f32 %v2239, 1.442695
          %v2274 = vpow.pop %v2273
          %v2275 = vmul.f32 %v2240, 1.442695
          %v2276 = vpow.pop %v2275
          %v2277 = vmul.f32 %v2241, 1.442695
          %v2278 = vpow.pop %v2277
          %v2279 = vmul.f32 %v2242, 1.442695
          %v2280 = vpow.pop %v2279
          %v2281 = vmul.f32 %v2243, 1.442695
          %v2282 = vpow.pop %v2281
          %v2283 = vmul.f32 %v2244, 1.442695
          %v2284 = vpow.pop %v2283
          %v2285 = vmul.f32 %v2245, 1.442695
          %v2286 = vpow.pop %v2285
          %v2287 = vmul.f32 %v2246, 1.442695
          %v2288 = vpow.pop %v2287
          %v2289 = vmul.f32 %v2247, 1.442695
          %v2290 = vpow.pop %v2289
          %v2291 = vmul.f32 %v2248, 1.442695
          %v2292 = vpow.pop %v2291
          %v2293 = vmul.f32 %v2249, 1.442695
          %v2294 = vpow.pop %v2293
          %v2295 = vmul.f32 %v2250, 1.442695
          %v2296 = vpow.pop %v2295
          %v2297 = vmul.f32 %v2251, 1.442695
          %v2298 = vpow.pop %v2297
          %v2299 = vmul.f32 %v2252, 1.442695
          %v2300 = vpow.pop %v2299
          %v2301 = vsub.f32 %v2270, 1.0
          %v2302 = vsub.f32 %v2272, 1.0
          %v2303 = vsub.f32 %v2274, 1.0
          %v2304 = vsub.f32 %v2276, 1.0
          %v2305 = vsub.f32 %v2278, 1.0
          %v2306 = vsub.f32 %v2280, 1.0
          %v2307 = vsub.f32 %v2282, 1.0
          %v2308 = vsub.f32 %v2284, 1.0
          %v2309 = vsub.f32 %v2286, 1.0
          %v2310 = vsub.f32 %v2288, 1.0
          %v2311 = vsub.f32 %v2290, 1.0
          %v2312 = vsub.f32 %v2292, 1.0
          %v2313 = vsub.f32 %v2294, 1.0
          %v2314 = vsub.f32 %v2296, 1.0
          %v2315 = vsub.f32 %v2298, 1.0
          %v2316 = vsub.f32 %v2300, 1.0
          %v2317 = vsel %vm2253, %v2237, %v2301
          %v2318 = vsel %vm2254, %v2238, %v2302
          %v2319 = vsel %vm2255, %v2239, %v2303
          %v2320 = vsel %vm2256, %v2240, %v2304
          %v2321 = vsel %vm2257, %v2241, %v2305
          %v2322 = vsel %vm2258, %v2242, %v2306
          %v2323 = vsel %vm2259, %v2243, %v2307
          %v2324 = vsel %vm2260, %v2244, %v2308
          %v2325 = vsel %vm2261, %v2245, %v2309
          %v2326 = vsel %vm2262, %v2246, %v2310
          %v2327 = vsel %vm2263, %v2247, %v2311
          %v2328 = vsel %vm2264, %v2248, %v2312
          %v2329 = vsel %vm2265, %v2249, %v2313
          %v2330 = vsel %vm2266, %v2250, %v2314
          %v2331 = vsel %vm2267, %v2251, %v2315
          %v2332 = vsel %vm2268, %v2252, %v2316
          %vm2333 = vcmp.ge.s32.totalorder %v1884, 0
          %vm2334 = vcmp.lt.s32.totalorder %v1884, 8
          %vm2335 = vmand %vm2333, %vm2334
          %v2336 = vsel %vm2335, %v2317, 0.0
          %v2337 = vsel %vm2335, %v2318, 0.0
          %v2338 = vsel %vm2335, %v2319, 0.0
          %v2339 = vsel %vm2335, %v2320, 0.0
          %v2340 = vsel %vm2335, %v2321, 0.0
          %v2341 = vsel %vm2335, %v2322, 0.0
          %v2342 = vsel %vm2335, %v2323, 0.0
          %v2343 = vsel %vm2335, %v2324, 0.0
          %v2344 = vsel %vm2335, %v2325, 0.0
          %v2345 = vsel %vm2335, %v2326, 0.0
          %v2346 = vsel %vm2335, %v2327, 0.0
          %v2347 = vsel %vm2335, %v2328, 0.0
          %v2348 = vsel %vm2335, %v2329, 0.0
          %v2349 = vsel %vm2335, %v2330, 0.0
          %v2350 = vsel %vm2335, %v2331, 0.0
          %v2351 = vsel %vm2335, %v2332, 0.0
          %v2352 = vld [vmem:[%s1141] sm:$0xff]
          %v2353 = vld [vmem:[%s1141 + $0x8] sm:$0xff]
          %v2354 = vld [vmem:[%s1141 + $0x10] sm:$0xff]
          %v2355 = vld [vmem:[%s1141 + $0x18] sm:$0xff]
          %v2356 = vld [vmem:[%s1141 + $0x20] sm:$0xff]
          %v2357 = vld [vmem:[%s1141 + $0x28] sm:$0xff]
          %v2358 = vld [vmem:[%s1141 + $0x30] sm:$0xff]
          %v2359 = vld [vmem:[%s1141 + $0x38] sm:$0xff]
          %v2360 = vld [vmem:[%s1141 + $0x40] sm:$0xff]
          %v2361 = vld [vmem:[%s1141 + $0x48] sm:$0xff]
          %v2362 = vld [vmem:[%s1141 + $0x50] sm:$0xff]
          %v2363 = vld [vmem:[%s1141 + $0x58] sm:$0xff]
          %v2364 = vld [vmem:[%s1141 + $0x60] sm:$0xff]
          %v2365 = vld [vmem:[%s1141 + $0x68] sm:$0xff]
          %v2366 = vld [vmem:[%s1141 + $0x70] sm:$0xff]
          %v2367 = vld [vmem:[%s1141 + $0x78] sm:$0xff]
          %v2368 = vmax.f32 %v2352, 1e-36
          %v2369 = vmax.f32 %v2353, 1e-36
          %v2370 = vmax.f32 %v2354, 1e-36
          %v2371 = vmax.f32 %v2355, 1e-36
          %v2372 = vmax.f32 %v2356, 1e-36
          %v2373 = vmax.f32 %v2357, 1e-36
          %v2374 = vmax.f32 %v2358, 1e-36
          %v2375 = vmax.f32 %v2359, 1e-36
          %v2376 = vmax.f32 %v2360, 1e-36
          %v2377 = vmax.f32 %v2361, 1e-36
          %v2378 = vmax.f32 %v2362, 1e-36
          %v2379 = vmax.f32 %v2363, 1e-36
          %v2380 = vmax.f32 %v2364, 1e-36
          %v2381 = vmax.f32 %v2365, 1e-36
          %v2382 = vmax.f32 %v2366, 1e-36
          %v2383 = vmax.f32 %v2367, 1e-36
          %v2384 = vrcp.pop %v2368
          %v2385 = vmul.f32 %v2368, %v2384
          %v2386 = vsub.f32 1.0, %v2385
          %v2387 = vmul.f32 %v2384, %v2386
          %v2388 = vadd.f32 %v2384, %v2387
          %vm2389 = vweird.f32 %v2368
          %vm2390 = vweird.f32 %v2384
          %vm2391 = vmor %vm2389, %vm2390
          %v2392 = vsel %vm2391, %v2384, %v2388
          %v2393 = vand.u32 2147483647, %v2368
          %vm2394 = vcmp.eq.f32.partialorder %v2393, 8.507059e+37
          %v2395 = vand.u32 %v2368, 2147483648
          %v2396 = vor.u32 1.1754944e-38, %v2395
          %v2397 = vsel %vm2394, %v2396, %v2392
          %v2398 = vmul.f32 1.0, %v2397
          %v2399 = vrcp.pop %v2369
          %v2400 = vmul.f32 %v2369, %v2399
          %v2401 = vsub.f32 1.0, %v2400
          %v2402 = vmul.f32 %v2399, %v2401
          %v2403 = vadd.f32 %v2399, %v2402
          %vm2404 = vweird.f32 %v2369
          %vm2405 = vweird.f32 %v2399
          %vm2406 = vmor %vm2404, %vm2405
          %v2407 = vsel %vm2406, %v2399, %v2403
          %v2408 = vand.u32 2147483647, %v2369
          %vm2409 = vcmp.eq.f32.partialorder %v2408, 8.507059e+37
          %v2410 = vand.u32 %v2369, 2147483648
          %v2411 = vor.u32 1.1754944e-38, %v2410
          %v2412 = vsel %vm2409, %v2411, %v2407
          %v2413 = vmul.f32 1.0, %v2412
          %v2414 = vrcp.pop %v2370
          %v2415 = vmul.f32 %v2370, %v2414
          %v2416 = vsub.f32 1.0, %v2415
          %v2417 = vmul.f32 %v2414, %v2416
          %v2418 = vadd.f32 %v2414, %v2417
          %vm2419 = vweird.f32 %v2370
          %vm2420 = vweird.f32 %v2414
          %vm2421 = vmor %vm2419, %vm2420
          %v2422 = vsel %vm2421, %v2414, %v2418
          %v2423 = vand.u32 2147483647, %v2370
          %vm2424 = vcmp.eq.f32.partialorder %v2423, 8.507059e+37
          %v2425 = vand.u32 %v2370, 2147483648
          %v2426 = vor.u32 1.1754944e-38, %v2425
          %v2427 = vsel %vm2424, %v2426, %v2422
          %v2428 = vmul.f32 1.0, %v2427
          %v2429 = vrcp.pop %v2371
          %v2430 = vmul.f32 %v2371, %v2429
          %v2431 = vsub.f32 1.0, %v2430
          %v2432 = vmul.f32 %v2429, %v2431
          %v2433 = vadd.f32 %v2429, %v2432
          %vm2434 = vweird.f32 %v2371
          %vm2435 = vweird.f32 %v2429
          %vm2436 = vmor %vm2434, %vm2435
          %v2437 = vsel %vm2436, %v2429, %v2433
          %v2438 = vand.u32 2147483647, %v2371
          %vm2439 = vcmp.eq.f32.partialorder %v2438, 8.507059e+37
          %v2440 = vand.u32 %v2371, 2147483648
          %v2441 = vor.u32 1.1754944e-38, %v2440
          %v2442 = vsel %vm2439, %v2441, %v2437
          %v2443 = vmul.f32 1.0, %v2442
          %v2444 = vrcp.pop %v2372
          %v2445 = vmul.f32 %v2372, %v2444
          %v2446 = vsub.f32 1.0, %v2445
          %v2447 = vmul.f32 %v2444, %v2446
          %v2448 = vadd.f32 %v2444, %v2447
          %vm2449 = vweird.f32 %v2372
          %vm2450 = vweird.f32 %v2444
          %vm2451 = vmor %vm2449, %vm2450
          %v2452 = vsel %vm2451, %v2444, %v2448
          %v2453 = vand.u32 2147483647, %v2372
          %vm2454 = vcmp.eq.f32.partialorder %v2453, 8.507059e+37
          %v2455 = vand.u32 %v2372, 2147483648
          %v2456 = vor.u32 1.1754944e-38, %v2455
          %v2457 = vsel %vm2454, %v2456, %v2452
          %v2458 = vmul.f32 1.0, %v2457
          %v2459 = vrcp.pop %v2373
          %v2460 = vmul.f32 %v2373, %v2459
          %v2461 = vsub.f32 1.0, %v2460
          %v2462 = vmul.f32 %v2459, %v2461
          %v2463 = vadd.f32 %v2459, %v2462
          %vm2464 = vweird.f32 %v2373
          %vm2465 = vweird.f32 %v2459
          %vm2466 = vmor %vm2464, %vm2465
          %v2467 = vsel %vm2466, %v2459, %v2463
          %v2468 = vand.u32 2147483647, %v2373
          %vm2469 = vcmp.eq.f32.partialorder %v2468, 8.507059e+37
          %v2470 = vand.u32 %v2373, 2147483648
          %v2471 = vor.u32 1.1754944e-38, %v2470
          %v2472 = vsel %vm2469, %v2471, %v2467
          %v2473 = vmul.f32 1.0, %v2472
          %v2474 = vrcp.pop %v2374
          %v2475 = vmul.f32 %v2374, %v2474
          %v2476 = vsub.f32 1.0, %v2475
          %v2477 = vmul.f32 %v2474, %v2476
          %v2478 = vadd.f32 %v2474, %v2477
          %vm2479 = vweird.f32 %v2374
          %vm2480 = vweird.f32 %v2474
          %vm2481 = vmor %vm2479, %vm2480
          %v2482 = vsel %vm2481, %v2474, %v2478
          %v2483 = vand.u32 2147483647, %v2374
          %vm2484 = vcmp.eq.f32.partialorder %v2483, 8.507059e+37
          %v2485 = vand.u32 %v2374, 2147483648
          %v2486 = vor.u32 1.1754944e-38, %v2485
          %v2487 = vsel %vm2484, %v2486, %v2482
          %v2488 = vmul.f32 1.0, %v2487
          %v2489 = vrcp.pop %v2375
          %v2490 = vmul.f32 %v2375, %v2489
          %v2491 = vsub.f32 1.0, %v2490
          %v2492 = vmul.f32 %v2489, %v2491
          %v2493 = vadd.f32 %v2489, %v2492
          %vm2494 = vweird.f32 %v2375
          %vm2495 = vweird.f32 %v2489
          %vm2496 = vmor %vm2494, %vm2495
          %v2497 = vsel %vm2496, %v2489, %v2493
          %v2498 = vand.u32 2147483647, %v2375
          %vm2499 = vcmp.eq.f32.partialorder %v2498, 8.507059e+37
          %v2500 = vand.u32 %v2375, 2147483648
          %v2501 = vor.u32 1.1754944e-38, %v2500
          %v2502 = vsel %vm2499, %v2501, %v2497
          %v2503 = vmul.f32 1.0, %v2502
          %v2504 = vrcp.pop %v2376
          %v2505 = vmul.f32 %v2376, %v2504
          %v2506 = vsub.f32 1.0, %v2505
          %v2507 = vmul.f32 %v2504, %v2506
          %v2508 = vadd.f32 %v2504, %v2507
          %vm2509 = vweird.f32 %v2376
          %vm2510 = vweird.f32 %v2504
          %vm2511 = vmor %vm2509, %vm2510
          %v2512 = vsel %vm2511, %v2504, %v2508
          %v2513 = vand.u32 2147483647, %v2376
          %vm2514 = vcmp.eq.f32.partialorder %v2513, 8.507059e+37
          %v2515 = vand.u32 %v2376, 2147483648
          %v2516 = vor.u32 1.1754944e-38, %v2515
          %v2517 = vsel %vm2514, %v2516, %v2512
          %v2518 = vmul.f32 1.0, %v2517
          %v2519 = vrcp.pop %v2377
          %v2520 = vmul.f32 %v2377, %v2519
          %v2521 = vsub.f32 1.0, %v2520
          %v2522 = vmul.f32 %v2519, %v2521
          %v2523 = vadd.f32 %v2519, %v2522
          %vm2524 = vweird.f32 %v2377
          %vm2525 = vweird.f32 %v2519
          %vm2526 = vmor %vm2524, %vm2525
          %v2527 = vsel %vm2526, %v2519, %v2523
          %v2528 = vand.u32 2147483647, %v2377
          %vm2529 = vcmp.eq.f32.partialorder %v2528, 8.507059e+37
          %v2530 = vand.u32 %v2377, 2147483648
          %v2531 = vor.u32 1.1754944e-38, %v2530
          %v2532 = vsel %vm2529, %v2531, %v2527
          %v2533 = vmul.f32 1.0, %v2532
          %v2534 = vrcp.pop %v2378
          %v2535 = vmul.f32 %v2378, %v2534
          %v2536 = vsub.f32 1.0, %v2535
          %v2537 = vmul.f32 %v2534, %v2536
          %v2538 = vadd.f32 %v2534, %v2537
          %vm2539 = vweird.f32 %v2378
          %vm2540 = vweird.f32 %v2534
          %vm2541 = vmor %vm2539, %vm2540
          %v2542 = vsel %vm2541, %v2534, %v2538
          %v2543 = vand.u32 2147483647, %v2378
          %vm2544 = vcmp.eq.f32.partialorder %v2543, 8.507059e+37
          %v2545 = vand.u32 %v2378, 2147483648
          %v2546 = vor.u32 1.1754944e-38, %v2545
          %v2547 = vsel %vm2544, %v2546, %v2542
          %v2548 = vmul.f32 1.0, %v2547
          %v2549 = vrcp.pop %v2379
          %v2550 = vmul.f32 %v2379, %v2549
          %v2551 = vsub.f32 1.0, %v2550
          %v2552 = vmul.f32 %v2549, %v2551
          %v2553 = vadd.f32 %v2549, %v2552
          %vm2554 = vweird.f32 %v2379
          %vm2555 = vweird.f32 %v2549
          %vm2556 = vmor %vm2554, %vm2555
          %v2557 = vsel %vm2556, %v2549, %v2553
          %v2558 = vand.u32 2147483647, %v2379
          %vm2559 = vcmp.eq.f32.partialorder %v2558, 8.507059e+37
          %v2560 = vand.u32 %v2379, 2147483648
          %v2561 = vor.u32 1.1754944e-38, %v2560
          %v2562 = vsel %vm2559, %v2561, %v2557
          %v2563 = vmul.f32 1.0, %v2562
          %v2564 = vrcp.pop %v2380
          %v2565 = vmul.f32 %v2380, %v2564
          %v2566 = vsub.f32 1.0, %v2565
          %v2567 = vmul.f32 %v2564, %v2566
          %v2568 = vadd.f32 %v2564, %v2567
          %vm2569 = vweird.f32 %v2380
          %vm2570 = vweird.f32 %v2564
          %vm2571 = vmor %vm2569, %vm2570
          %v2572 = vsel %vm2571, %v2564, %v2568
          %v2573 = vand.u32 2147483647, %v2380
          %vm2574 = vcmp.eq.f32.partialorder %v2573, 8.507059e+37
          %v2575 = vand.u32 %v2380, 2147483648
          %v2576 = vor.u32 1.1754944e-38, %v2575
          %v2577 = vsel %vm2574, %v2576, %v2572
          %v2578 = vmul.f32 1.0, %v2577
          %v2579 = vrcp.pop %v2381
          %v2580 = vmul.f32 %v2381, %v2579
          %v2581 = vsub.f32 1.0, %v2580
          %v2582 = vmul.f32 %v2579, %v2581
          %v2583 = vadd.f32 %v2579, %v2582
          %vm2584 = vweird.f32 %v2381
          %vm2585 = vweird.f32 %v2579
          %vm2586 = vmor %vm2584, %vm2585
          %v2587 = vsel %vm2586, %v2579, %v2583
          %v2588 = vand.u32 2147483647, %v2381
          %vm2589 = vcmp.eq.f32.partialorder %v2588, 8.507059e+37
          %v2590 = vand.u32 %v2381, 2147483648
          %v2591 = vor.u32 1.1754944e-38, %v2590
          %v2592 = vsel %vm2589, %v2591, %v2587
          %v2593 = vmul.f32 1.0, %v2592
          %v2594 = vrcp.pop %v2382
          %v2595 = vmul.f32 %v2382, %v2594
          %v2596 = vsub.f32 1.0, %v2595
          %v2597 = vmul.f32 %v2594, %v2596
          %v2598 = vadd.f32 %v2594, %v2597
          %vm2599 = vweird.f32 %v2382
          %vm2600 = vweird.f32 %v2594
          %vm2601 = vmor %vm2599, %vm2600
          %v2602 = vsel %vm2601, %v2594, %v2598
          %v2603 = vand.u32 2147483647, %v2382
          %vm2604 = vcmp.eq.f32.partialorder %v2603, 8.507059e+37
          %v2605 = vand.u32 %v2382, 2147483648
          %v2606 = vor.u32 1.1754944e-38, %v2605
          %v2607 = vsel %vm2604, %v2606, %v2602
          %v2608 = vmul.f32 1.0, %v2607
          %v2609 = vrcp.pop %v2383
          %v2610 = vmul.f32 %v2383, %v2609
          %v2611 = vsub.f32 1.0, %v2610
          %v2612 = vmul.f32 %v2609, %v2611
          %v2613 = vadd.f32 %v2609, %v2612
          %vm2614 = vweird.f32 %v2383
          %vm2615 = vweird.f32 %v2609
          %vm2616 = vmor %vm2614, %vm2615
          %v2617 = vsel %vm2616, %v2609, %v2613
          %v2618 = vand.u32 2147483647, %v2383
          %vm2619 = vcmp.eq.f32.partialorder %v2618, 8.507059e+37
          %v2620 = vand.u32 %v2383, 2147483648
          %v2621 = vor.u32 1.1754944e-38, %v2620
          %v2622 = vsel %vm2619, %v2621, %v2617
          %v2623 = vmul.f32 1.0, %v2622
          %2625 = vset.pattern.permute.xlu0 32
          %2626 = vperm.xlu0 %2625, %v2398
          %v2627 = vpop.permute.xlu0 %2626
          %2630 = vset.pattern.permute.xlu0 32
          %2631 = vperm.xlu0 %2630, %v2413
          %v2632 = vpop.permute.xlu0 %2631
          %2635 = vset.pattern.permute.xlu0 32
          %2636 = vperm.xlu0 %2635, %v2428
          %v2637 = vpop.permute.xlu0 %2636
          %2640 = vset.pattern.permute.xlu0 32
          %2641 = vperm.xlu0 %2640, %v2443
          %v2642 = vpop.permute.xlu0 %2641
          %2645 = vset.pattern.permute.xlu0 32
          %2646 = vperm.xlu0 %2645, %v2458
          %v2647 = vpop.permute.xlu0 %2646
          %2650 = vset.pattern.permute.xlu0 32
          %2651 = vperm.xlu0 %2650, %v2473
          %v2652 = vpop.permute.xlu0 %2651
          %2655 = vset.pattern.permute.xlu0 32
          %2656 = vperm.xlu0 %2655, %v2488
          %v2657 = vpop.permute.xlu0 %2656
          %2660 = vset.pattern.permute.xlu0 32
          %2661 = vperm.xlu0 %2660, %v2503
          %v2662 = vpop.permute.xlu0 %2661
          %2665 = vset.pattern.permute.xlu0 32
          %2666 = vperm.xlu0 %2665, %v2518
          %v2667 = vpop.permute.xlu0 %2666
          %2670 = vset.pattern.permute.xlu0 32
          %2671 = vperm.xlu0 %2670, %v2533
          %v2672 = vpop.permute.xlu0 %2671
          %2675 = vset.pattern.permute.xlu0 32
          %2676 = vperm.xlu0 %2675, %v2548
          %v2677 = vpop.permute.xlu0 %2676
          %2680 = vset.pattern.permute.xlu0 32
          %2681 = vperm.xlu0 %2680, %v2563
          %v2682 = vpop.permute.xlu0 %2681
          %2685 = vset.pattern.permute.xlu0 32
          %2686 = vperm.xlu0 %2685, %v2578
          %v2687 = vpop.permute.xlu0 %2686
          %2690 = vset.pattern.permute.xlu0 32
          %2691 = vperm.xlu0 %2690, %v2593
          %v2692 = vpop.permute.xlu0 %2691
          %2695 = vset.pattern.permute.xlu0 32
          %2696 = vperm.xlu0 %2695, %v2608
          %v2697 = vpop.permute.xlu0 %2696
          %2700 = vset.pattern.permute.xlu0 32
          %2701 = vperm.xlu0 %2700, %v2623
          %v2702 = vpop.permute.xlu0 %2701
          %v2704 = vmul.f32 %v2352, %v2627
          %v2705 = vmul.f32 %v2353, %v2632
          %v2706 = vmul.f32 %v2354, %v2637
          %v2707 = vmul.f32 %v2355, %v2642
          %v2708 = vmul.f32 %v2356, %v2647
          %v2709 = vmul.f32 %v2357, %v2652
          %v2710 = vmul.f32 %v2358, %v2657
          %v2711 = vmul.f32 %v2359, %v2662
          %v2712 = vmul.f32 %v2360, %v2667
          %v2713 = vmul.f32 %v2361, %v2672
          %v2714 = vmul.f32 %v2362, %v2677
          %v2715 = vmul.f32 %v2363, %v2682
          %v2716 = vmul.f32 %v2364, %v2687
          %v2717 = vmul.f32 %v2365, %v2692
          %v2718 = vmul.f32 %v2366, %v2697
          %v2719 = vmul.f32 %v2367, %v2702
          %vm2720 = vcmp.gt.f32.partialorder %v2704, 0.0
          %vm2721 = vcmp.gt.f32.partialorder %v2705, 0.0
          %vm2722 = vcmp.gt.f32.partialorder %v2706, 0.0
          %vm2723 = vcmp.gt.f32.partialorder %v2707, 0.0
          %vm2724 = vcmp.gt.f32.partialorder %v2708, 0.0
          %vm2725 = vcmp.gt.f32.partialorder %v2709, 0.0
          %vm2726 = vcmp.gt.f32.partialorder %v2710, 0.0
          %vm2727 = vcmp.gt.f32.partialorder %v2711, 0.0
          %vm2728 = vcmp.gt.f32.partialorder %v2712, 0.0
          %vm2729 = vcmp.gt.f32.partialorder %v2713, 0.0
          %vm2730 = vcmp.gt.f32.partialorder %v2714, 0.0
          %vm2731 = vcmp.gt.f32.partialorder %v2715, 0.0
          %vm2732 = vcmp.gt.f32.partialorder %v2716, 0.0
          %vm2733 = vcmp.gt.f32.partialorder %v2717, 0.0
          %vm2734 = vcmp.gt.f32.partialorder %v2718, 0.0
          %vm2735 = vcmp.gt.f32.partialorder %v2719, 0.0
          %v2736 = vmul.f32 %v2704, 1.442695
          %v2737 = vpow.pop %v2736
          %v2738 = vmul.f32 %v2705, 1.442695
          %v2739 = vpow.pop %v2738
          %v2740 = vmul.f32 %v2706, 1.442695
          %v2741 = vpow.pop %v2740
          %v2742 = vmul.f32 %v2707, 1.442695
          %v2743 = vpow.pop %v2742
          %v2744 = vmul.f32 %v2708, 1.442695
          %v2745 = vpow.pop %v2744
          %v2746 = vmul.f32 %v2709, 1.442695
          %v2747 = vpow.pop %v2746
          %v2748 = vmul.f32 %v2710, 1.442695
          %v2749 = vpow.pop %v2748
          %v2750 = vmul.f32 %v2711, 1.442695
          %v2751 = vpow.pop %v2750
          %v2752 = vmul.f32 %v2712, 1.442695
          %v2753 = vpow.pop %v2752
          %v2754 = vmul.f32 %v2713, 1.442695
          %v2755 = vpow.pop %v2754
          %v2756 = vmul.f32 %v2714, 1.442695
          %v2757 = vpow.pop %v2756
          %v2758 = vmul.f32 %v2715, 1.442695
          %v2759 = vpow.pop %v2758
          %v2760 = vmul.f32 %v2716, 1.442695
          %v2761 = vpow.pop %v2760
          %v2762 = vmul.f32 %v2717, 1.442695
          %v2763 = vpow.pop %v2762
          %v2764 = vmul.f32 %v2718, 1.442695
          %v2765 = vpow.pop %v2764
          %v2766 = vmul.f32 %v2719, 1.442695
          %v2767 = vpow.pop %v2766
          %v2768 = vsub.f32 %v2737, 1.0
          %v2769 = vsub.f32 %v2739, 1.0
          %v2770 = vsub.f32 %v2741, 1.0
          %v2771 = vsub.f32 %v2743, 1.0
          %v2772 = vsub.f32 %v2745, 1.0
          %v2773 = vsub.f32 %v2747, 1.0
          %v2774 = vsub.f32 %v2749, 1.0
          %v2775 = vsub.f32 %v2751, 1.0
          %v2776 = vsub.f32 %v2753, 1.0
          %v2777 = vsub.f32 %v2755, 1.0
          %v2778 = vsub.f32 %v2757, 1.0
          %v2779 = vsub.f32 %v2759, 1.0
          %v2780 = vsub.f32 %v2761, 1.0
          %v2781 = vsub.f32 %v2763, 1.0
          %v2782 = vsub.f32 %v2765, 1.0
          %v2783 = vsub.f32 %v2767, 1.0
          %v2784 = vsel %vm2720, %v2704, %v2768
          %v2785 = vsel %vm2721, %v2705, %v2769
          %v2786 = vsel %vm2722, %v2706, %v2770
          %v2787 = vsel %vm2723, %v2707, %v2771
          %v2788 = vsel %vm2724, %v2708, %v2772
          %v2789 = vsel %vm2725, %v2709, %v2773
          %v2790 = vsel %vm2726, %v2710, %v2774
          %v2791 = vsel %vm2727, %v2711, %v2775
          %v2792 = vsel %vm2728, %v2712, %v2776
          %v2793 = vsel %vm2729, %v2713, %v2777
          %v2794 = vsel %vm2730, %v2714, %v2778
          %v2795 = vsel %vm2731, %v2715, %v2779
          %v2796 = vsel %vm2732, %v2716, %v2780
          %v2797 = vsel %vm2733, %v2717, %v2781
          %v2798 = vsel %vm2734, %v2718, %v2782
          %v2799 = vsel %vm2735, %v2719, %v2783
          %vm2800 = vcmp.ge.s32.totalorder %v1884, 8
          %vm2801 = vcmp.lt.s32.totalorder %v1884, 16
          %vm2802 = vmand %vm2800, %vm2801
          %v2803 = vsel %vm2802, %v2784, %v2336
          %v2804 = vsel %vm2802, %v2785, %v2337
          %v2805 = vsel %vm2802, %v2786, %v2338
          %v2806 = vsel %vm2802, %v2787, %v2339
          %v2807 = vsel %vm2802, %v2788, %v2340
          %v2808 = vsel %vm2802, %v2789, %v2341
          %v2809 = vsel %vm2802, %v2790, %v2342
          %v2810 = vsel %vm2802, %v2791, %v2343
          %v2811 = vsel %vm2802, %v2792, %v2344
          %v2812 = vsel %vm2802, %v2793, %v2345
          %v2813 = vsel %vm2802, %v2794, %v2346
          %v2814 = vsel %vm2802, %v2795, %v2347
          %v2815 = vsel %vm2802, %v2796, %v2348
          %v2816 = vsel %vm2802, %v2797, %v2349
          %v2817 = vsel %vm2802, %v2798, %v2350
          %v2818 = vsel %vm2802, %v2799, %v2351
          %v2819 = vld [vmem:[%s1457] sm:$0xff]
          %v2820 = vld [vmem:[%s1457 + $0x8] sm:$0xff]
          %v2821 = vld [vmem:[%s1457 + $0x10] sm:$0xff]
          %v2822 = vld [vmem:[%s1457 + $0x18] sm:$0xff]
          %v2823 = vld [vmem:[%s1457 + $0x20] sm:$0xff]
          %v2824 = vld [vmem:[%s1457 + $0x28] sm:$0xff]
          %v2825 = vld [vmem:[%s1457 + $0x30] sm:$0xff]
          %v2826 = vld [vmem:[%s1457 + $0x38] sm:$0xff]
          %v2827 = vld [vmem:[%s1457 + $0x40] sm:$0xff]
          %v2828 = vld [vmem:[%s1457 + $0x48] sm:$0xff]
          %v2829 = vld [vmem:[%s1457 + $0x50] sm:$0xff]
          %v2830 = vld [vmem:[%s1457 + $0x58] sm:$0xff]
          %v2831 = vld [vmem:[%s1457 + $0x60] sm:$0xff]
          %v2832 = vld [vmem:[%s1457 + $0x68] sm:$0xff]
          %v2833 = vld [vmem:[%s1457 + $0x70] sm:$0xff]
          %v2834 = vld [vmem:[%s1457 + $0x78] sm:$0xff]
          %v2835 = vmax.f32 %v2819, 1e-36
          %v2836 = vmax.f32 %v2820, 1e-36
          %v2837 = vmax.f32 %v2821, 1e-36
          %v2838 = vmax.f32 %v2822, 1e-36
          %v2839 = vmax.f32 %v2823, 1e-36
          %v2840 = vmax.f32 %v2824, 1e-36
          %v2841 = vmax.f32 %v2825, 1e-36
          %v2842 = vmax.f32 %v2826, 1e-36
          %v2843 = vmax.f32 %v2827, 1e-36
          %v2844 = vmax.f32 %v2828, 1e-36
          %v2845 = vmax.f32 %v2829, 1e-36
          %v2846 = vmax.f32 %v2830, 1e-36
          %v2847 = vmax.f32 %v2831, 1e-36
          %v2848 = vmax.f32 %v2832, 1e-36
          %v2849 = vmax.f32 %v2833, 1e-36
          %v2850 = vmax.f32 %v2834, 1e-36
          %v2851 = vrcp.pop %v2835
          %v2852 = vmul.f32 %v2835, %v2851
          %v2853 = vsub.f32 1.0, %v2852
          %v2854 = vmul.f32 %v2851, %v2853
          %v2855 = vadd.f32 %v2851, %v2854
          %vm2856 = vweird.f32 %v2835
          %vm2857 = vweird.f32 %v2851
          %vm2858 = vmor %vm2856, %vm2857
          %v2859 = vsel %vm2858, %v2851, %v2855
          %v2860 = vand.u32 2147483647, %v2835
          %vm2861 = vcmp.eq.f32.partialorder %v2860, 8.507059e+37
          %v2862 = vand.u32 %v2835, 2147483648
          %v2863 = vor.u32 1.1754944e-38, %v2862
          %v2864 = vsel %vm2861, %v2863, %v2859
          %v2865 = vmul.f32 1.0, %v2864
          %v2866 = vrcp.pop %v2836
          %v2867 = vmul.f32 %v2836, %v2866
          %v2868 = vsub.f32 1.0, %v2867
          %v2869 = vmul.f32 %v2866, %v2868
          %v2870 = vadd.f32 %v2866, %v2869
          %vm2871 = vweird.f32 %v2836
          %vm2872 = vweird.f32 %v2866
          %vm2873 = vmor %vm2871, %vm2872
          %v2874 = vsel %vm2873, %v2866, %v2870
          %v2875 = vand.u32 2147483647, %v2836
          %vm2876 = vcmp.eq.f32.partialorder %v2875, 8.507059e+37
          %v2877 = vand.u32 %v2836, 2147483648
          %v2878 = vor.u32 1.1754944e-38, %v2877
          %v2879 = vsel %vm2876, %v2878, %v2874
          %v2880 = vmul.f32 1.0, %v2879
          %v2881 = vrcp.pop %v2837
          %v2882 = vmul.f32 %v2837, %v2881
          %v2883 = vsub.f32 1.0, %v2882
          %v2884 = vmul.f32 %v2881, %v2883
          %v2885 = vadd.f32 %v2881, %v2884
          %vm2886 = vweird.f32 %v2837
          %vm2887 = vweird.f32 %v2881
          %vm2888 = vmor %vm2886, %vm2887
          %v2889 = vsel %vm2888, %v2881, %v2885
          %v2890 = vand.u32 2147483647, %v2837
          %vm2891 = vcmp.eq.f32.partialorder %v2890, 8.507059e+37
          %v2892 = vand.u32 %v2837, 2147483648
          %v2893 = vor.u32 1.1754944e-38, %v2892
          %v2894 = vsel %vm2891, %v2893, %v2889
          %v2895 = vmul.f32 1.0, %v2894
          %v2896 = vrcp.pop %v2838
          %v2897 = vmul.f32 %v2838, %v2896
          %v2898 = vsub.f32 1.0, %v2897
          %v2899 = vmul.f32 %v2896, %v2898
          %v2900 = vadd.f32 %v2896, %v2899
          %vm2901 = vweird.f32 %v2838
          %vm2902 = vweird.f32 %v2896
          %vm2903 = vmor %vm2901, %vm2902
          %v2904 = vsel %vm2903, %v2896, %v2900
          %v2905 = vand.u32 2147483647, %v2838
          %vm2906 = vcmp.eq.f32.partialorder %v2905, 8.507059e+37
          %v2907 = vand.u32 %v2838, 2147483648
          %v2908 = vor.u32 1.1754944e-38, %v2907
          %v2909 = vsel %vm2906, %v2908, %v2904
          %v2910 = vmul.f32 1.0, %v2909
          %v2911 = vrcp.pop %v2839
          %v2912 = vmul.f32 %v2839, %v2911
          %v2913 = vsub.f32 1.0, %v2912
          %v2914 = vmul.f32 %v2911, %v2913
          %v2915 = vadd.f32 %v2911, %v2914
          %vm2916 = vweird.f32 %v2839
          %vm2917 = vweird.f32 %v2911
          %vm2918 = vmor %vm2916, %vm2917
          %v2919 = vsel %vm2918, %v2911, %v2915
          %v2920 = vand.u32 2147483647, %v2839
          %vm2921 = vcmp.eq.f32.partialorder %v2920, 8.507059e+37
          %v2922 = vand.u32 %v2839, 2147483648
          %v2923 = vor.u32 1.1754944e-38, %v2922
          %v2924 = vsel %vm2921, %v2923, %v2919
          %v2925 = vmul.f32 1.0, %v2924
          %v2926 = vrcp.pop %v2840
          %v2927 = vmul.f32 %v2840, %v2926
          %v2928 = vsub.f32 1.0, %v2927
          %v2929 = vmul.f32 %v2926, %v2928
          %v2930 = vadd.f32 %v2926, %v2929
          %vm2931 = vweird.f32 %v2840
          %vm2932 = vweird.f32 %v2926
          %vm2933 = vmor %vm2931, %vm2932
          %v2934 = vsel %vm2933, %v2926, %v2930
          %v2935 = vand.u32 2147483647, %v2840
          %vm2936 = vcmp.eq.f32.partialorder %v2935, 8.507059e+37
          %v2937 = vand.u32 %v2840, 2147483648
          %v2938 = vor.u32 1.1754944e-38, %v2937
          %v2939 = vsel %vm2936, %v2938, %v2934
          %v2940 = vmul.f32 1.0, %v2939
          %v2941 = vrcp.pop %v2841
          %v2942 = vmul.f32 %v2841, %v2941
          %v2943 = vsub.f32 1.0, %v2942
          %v2944 = vmul.f32 %v2941, %v2943
          %v2945 = vadd.f32 %v2941, %v2944
          %vm2946 = vweird.f32 %v2841
          %vm2947 = vweird.f32 %v2941
          %vm2948 = vmor %vm2946, %vm2947
          %v2949 = vsel %vm2948, %v2941, %v2945
          %v2950 = vand.u32 2147483647, %v2841
          %vm2951 = vcmp.eq.f32.partialorder %v2950, 8.507059e+37
          %v2952 = vand.u32 %v2841, 2147483648
          %v2953 = vor.u32 1.1754944e-38, %v2952
          %v2954 = vsel %vm2951, %v2953, %v2949
          %v2955 = vmul.f32 1.0, %v2954
          %v2956 = vrcp.pop %v2842
          %v2957 = vmul.f32 %v2842, %v2956
          %v2958 = vsub.f32 1.0, %v2957
          %v2959 = vmul.f32 %v2956, %v2958
          %v2960 = vadd.f32 %v2956, %v2959
          %vm2961 = vweird.f32 %v2842
          %vm2962 = vweird.f32 %v2956
          %vm2963 = vmor %vm2961, %vm2962
          %v2964 = vsel %vm2963, %v2956, %v2960
          %v2965 = vand.u32 2147483647, %v2842
          %vm2966 = vcmp.eq.f32.partialorder %v2965, 8.507059e+37
          %v2967 = vand.u32 %v2842, 2147483648
          %v2968 = vor.u32 1.1754944e-38, %v2967
          %v2969 = vsel %vm2966, %v2968, %v2964
          %v2970 = vmul.f32 1.0, %v2969
          %v2971 = vrcp.pop %v2843
          %v2972 = vmul.f32 %v2843, %v2971
          %v2973 = vsub.f32 1.0, %v2972
          %v2974 = vmul.f32 %v2971, %v2973
          %v2975 = vadd.f32 %v2971, %v2974
          %vm2976 = vweird.f32 %v2843
          %vm2977 = vweird.f32 %v2971
          %vm2978 = vmor %vm2976, %vm2977
          %v2979 = vsel %vm2978, %v2971, %v2975
          %v2980 = vand.u32 2147483647, %v2843
          %vm2981 = vcmp.eq.f32.partialorder %v2980, 8.507059e+37
          %v2982 = vand.u32 %v2843, 2147483648
          %v2983 = vor.u32 1.1754944e-38, %v2982
          %v2984 = vsel %vm2981, %v2983, %v2979
          %v2985 = vmul.f32 1.0, %v2984
          %v2986 = vrcp.pop %v2844
          %v2987 = vmul.f32 %v2844, %v2986
          %v2988 = vsub.f32 1.0, %v2987
          %v2989 = vmul.f32 %v2986, %v2988
          %v2990 = vadd.f32 %v2986, %v2989
          %vm2991 = vweird.f32 %v2844
          %vm2992 = vweird.f32 %v2986
          %vm2993 = vmor %vm2991, %vm2992
          %v2994 = vsel %vm2993, %v2986, %v2990
          %v2995 = vand.u32 2147483647, %v2844
          %vm2996 = vcmp.eq.f32.partialorder %v2995, 8.507059e+37
          %v2997 = vand.u32 %v2844, 2147483648
          %v2998 = vor.u32 1.1754944e-38, %v2997
          %v2999 = vsel %vm2996, %v2998, %v2994
          %v3000 = vmul.f32 1.0, %v2999
          %v3001 = vrcp.pop %v2845
          %v3002 = vmul.f32 %v2845, %v3001
          %v3003 = vsub.f32 1.0, %v3002
          %v3004 = vmul.f32 %v3001, %v3003
          %v3005 = vadd.f32 %v3001, %v3004
          %vm3006 = vweird.f32 %v2845
          %vm3007 = vweird.f32 %v3001
          %vm3008 = vmor %vm3006, %vm3007
          %v3009 = vsel %vm3008, %v3001, %v3005
          %v3010 = vand.u32 2147483647, %v2845
          %vm3011 = vcmp.eq.f32.partialorder %v3010, 8.507059e+37
          %v3012 = vand.u32 %v2845, 2147483648
          %v3013 = vor.u32 1.1754944e-38, %v3012
          %v3014 = vsel %vm3011, %v3013, %v3009
          %v3015 = vmul.f32 1.0, %v3014
          %v3016 = vrcp.pop %v2846
          %v3017 = vmul.f32 %v2846, %v3016
          %v3018 = vsub.f32 1.0, %v3017
          %v3019 = vmul.f32 %v3016, %v3018
          %v3020 = vadd.f32 %v3016, %v3019
          %vm3021 = vweird.f32 %v2846
          %vm3022 = vweird.f32 %v3016
          %vm3023 = vmor %vm3021, %vm3022
          %v3024 = vsel %vm3023, %v3016, %v3020
          %v3025 = vand.u32 2147483647, %v2846
          %vm3026 = vcmp.eq.f32.partialorder %v3025, 8.507059e+37
          %v3027 = vand.u32 %v2846, 2147483648
          %v3028 = vor.u32 1.1754944e-38, %v3027
          %v3029 = vsel %vm3026, %v3028, %v3024
          %v3030 = vmul.f32 1.0, %v3029
          %v3031 = vrcp.pop %v2847
          %v3032 = vmul.f32 %v2847, %v3031
          %v3033 = vsub.f32 1.0, %v3032
          %v3034 = vmul.f32 %v3031, %v3033
          %v3035 = vadd.f32 %v3031, %v3034
          %vm3036 = vweird.f32 %v2847
          %vm3037 = vweird.f32 %v3031
          %vm3038 = vmor %vm3036, %vm3037
          %v3039 = vsel %vm3038, %v3031, %v3035
          %v3040 = vand.u32 2147483647, %v2847
          %vm3041 = vcmp.eq.f32.partialorder %v3040, 8.507059e+37
          %v3042 = vand.u32 %v2847, 2147483648
          %v3043 = vor.u32 1.1754944e-38, %v3042
          %v3044 = vsel %vm3041, %v3043, %v3039
          %v3045 = vmul.f32 1.0, %v3044
          %v3046 = vrcp.pop %v2848
          %v3047 = vmul.f32 %v2848, %v3046
          %v3048 = vsub.f32 1.0, %v3047
          %v3049 = vmul.f32 %v3046, %v3048
          %v3050 = vadd.f32 %v3046, %v3049
          %vm3051 = vweird.f32 %v2848
          %vm3052 = vweird.f32 %v3046
          %vm3053 = vmor %vm3051, %vm3052
          %v3054 = vsel %vm3053, %v3046, %v3050
          %v3055 = vand.u32 2147483647, %v2848
          %vm3056 = vcmp.eq.f32.partialorder %v3055, 8.507059e+37
          %v3057 = vand.u32 %v2848, 2147483648
          %v3058 = vor.u32 1.1754944e-38, %v3057
          %v3059 = vsel %vm3056, %v3058, %v3054
          %v3060 = vmul.f32 1.0, %v3059
          %v3061 = vrcp.pop %v2849
          %v3062 = vmul.f32 %v2849, %v3061
          %v3063 = vsub.f32 1.0, %v3062
          %v3064 = vmul.f32 %v3061, %v3063
          %v3065 = vadd.f32 %v3061, %v3064
          %vm3066 = vweird.f32 %v2849
          %vm3067 = vweird.f32 %v3061
          %vm3068 = vmor %vm3066, %vm3067
          %v3069 = vsel %vm3068, %v3061, %v3065
          %v3070 = vand.u32 2147483647, %v2849
          %vm3071 = vcmp.eq.f32.partialorder %v3070, 8.507059e+37
          %v3072 = vand.u32 %v2849, 2147483648
          %v3073 = vor.u32 1.1754944e-38, %v3072
          %v3074 = vsel %vm3071, %v3073, %v3069
          %v3075 = vmul.f32 1.0, %v3074
          %v3076 = vrcp.pop %v2850
          %v3077 = vmul.f32 %v2850, %v3076
          %v3078 = vsub.f32 1.0, %v3077
          %v3079 = vmul.f32 %v3076, %v3078
          %v3080 = vadd.f32 %v3076, %v3079
          %vm3081 = vweird.f32 %v2850
          %vm3082 = vweird.f32 %v3076
          %vm3083 = vmor %vm3081, %vm3082
          %v3084 = vsel %vm3083, %v3076, %v3080
          %v3085 = vand.u32 2147483647, %v2850
          %vm3086 = vcmp.eq.f32.partialorder %v3085, 8.507059e+37
          %v3087 = vand.u32 %v2850, 2147483648
          %v3088 = vor.u32 1.1754944e-38, %v3087
          %v3089 = vsel %vm3086, %v3088, %v3084
          %v3090 = vmul.f32 1.0, %v3089
          %3092 = vset.pattern.permute.xlu0 32
          %3093 = vperm.xlu0 %3092, %v2865
          %v3094 = vpop.permute.xlu0 %3093
          %3097 = vset.pattern.permute.xlu0 32
          %3098 = vperm.xlu0 %3097, %v2880
          %v3099 = vpop.permute.xlu0 %3098
          %3102 = vset.pattern.permute.xlu0 32
          %3103 = vperm.xlu0 %3102, %v2895
          %v3104 = vpop.permute.xlu0 %3103
          %3107 = vset.pattern.permute.xlu0 32
          %3108 = vperm.xlu0 %3107, %v2910
          %v3109 = vpop.permute.xlu0 %3108
          %3112 = vset.pattern.permute.xlu0 32
          %3113 = vperm.xlu0 %3112, %v2925
          %v3114 = vpop.permute.xlu0 %3113
          %3117 = vset.pattern.permute.xlu0 32
          %3118 = vperm.xlu0 %3117, %v2940
          %v3119 = vpop.permute.xlu0 %3118
          %3122 = vset.pattern.permute.xlu0 32
          %3123 = vperm.xlu0 %3122, %v2955
          %v3124 = vpop.permute.xlu0 %3123
          %3127 = vset.pattern.permute.xlu0 32
          %3128 = vperm.xlu0 %3127, %v2970
          %v3129 = vpop.permute.xlu0 %3128
          %3132 = vset.pattern.permute.xlu0 32
          %3133 = vperm.xlu0 %3132, %v2985
          %v3134 = vpop.permute.xlu0 %3133
          %3137 = vset.pattern.permute.xlu0 32
          %3138 = vperm.xlu0 %3137, %v3000
          %v3139 = vpop.permute.xlu0 %3138
          %3142 = vset.pattern.permute.xlu0 32
          %3143 = vperm.xlu0 %3142, %v3015
          %v3144 = vpop.permute.xlu0 %3143
          %3147 = vset.pattern.permute.xlu0 32
          %3148 = vperm.xlu0 %3147, %v3030
          %v3149 = vpop.permute.xlu0 %3148
          %3152 = vset.pattern.permute.xlu0 32
          %3153 = vperm.xlu0 %3152, %v3045
          %v3154 = vpop.permute.xlu0 %3153
          %3157 = vset.pattern.permute.xlu0 32
          %3158 = vperm.xlu0 %3157, %v3060
          %v3159 = vpop.permute.xlu0 %3158
          %3162 = vset.pattern.permute.xlu0 32
          %3163 = vperm.xlu0 %3162, %v3075
          %v3164 = vpop.permute.xlu0 %3163
          %3167 = vset.pattern.permute.xlu0 32
          %3168 = vperm.xlu0 %3167, %v3090
          %v3169 = vpop.permute.xlu0 %3168
          %v3171 = vmul.f32 %v2819, %v3094
          %v3172 = vmul.f32 %v2820, %v3099
          %v3173 = vmul.f32 %v2821, %v3104
          %v3174 = vmul.f32 %v2822, %v3109
          %v3175 = vmul.f32 %v2823, %v3114
          %v3176 = vmul.f32 %v2824, %v3119
          %v3177 = vmul.f32 %v2825, %v3124
          %v3178 = vmul.f32 %v2826, %v3129
          %v3179 = vmul.f32 %v2827, %v3134
          %v3180 = vmul.f32 %v2828, %v3139
          %v3181 = vmul.f32 %v2829, %v3144
          %v3182 = vmul.f32 %v2830, %v3149
          %v3183 = vmul.f32 %v2831, %v3154
          %v3184 = vmul.f32 %v2832, %v3159
          %v3185 = vmul.f32 %v2833, %v3164
          %v3186 = vmul.f32 %v2834, %v3169
          %vm3187 = vcmp.gt.f32.partialorder %v3171, 0.0
          %vm3188 = vcmp.gt.f32.partialorder %v3172, 0.0
          %vm3189 = vcmp.gt.f32.partialorder %v3173, 0.0
          %vm3190 = vcmp.gt.f32.partialorder %v3174, 0.0
          %vm3191 = vcmp.gt.f32.partialorder %v3175, 0.0
          %vm3192 = vcmp.gt.f32.partialorder %v3176, 0.0
          %vm3193 = vcmp.gt.f32.partialorder %v3177, 0.0
          %vm3194 = vcmp.gt.f32.partialorder %v3178, 0.0
          %vm3195 = vcmp.gt.f32.partialorder %v3179, 0.0
          %vm3196 = vcmp.gt.f32.partialorder %v3180, 0.0
          %vm3197 = vcmp.gt.f32.partialorder %v3181, 0.0
          %vm3198 = vcmp.gt.f32.partialorder %v3182, 0.0
          %vm3199 = vcmp.gt.f32.partialorder %v3183, 0.0
          %vm3200 = vcmp.gt.f32.partialorder %v3184, 0.0
          %vm3201 = vcmp.gt.f32.partialorder %v3185, 0.0
          %vm3202 = vcmp.gt.f32.partialorder %v3186, 0.0
          %v3203 = vmul.f32 %v3171, 1.442695
          %v3204 = vpow.pop %v3203
          %v3205 = vmul.f32 %v3172, 1.442695
          %v3206 = vpow.pop %v3205
          %v3207 = vmul.f32 %v3173, 1.442695
          %v3208 = vpow.pop %v3207
          %v3209 = vmul.f32 %v3174, 1.442695
          %v3210 = vpow.pop %v3209
          %v3211 = vmul.f32 %v3175, 1.442695
          %v3212 = vpow.pop %v3211
          %v3213 = vmul.f32 %v3176, 1.442695
          %v3214 = vpow.pop %v3213
          %v3215 = vmul.f32 %v3177, 1.442695
          %v3216 = vpow.pop %v3215
          %v3217 = vmul.f32 %v3178, 1.442695
          %v3218 = vpow.pop %v3217
          %v3219 = vmul.f32 %v3179, 1.442695
          %v3220 = vpow.pop %v3219
          %v3221 = vmul.f32 %v3180, 1.442695
          %v3222 = vpow.pop %v3221
          %v3223 = vmul.f32 %v3181, 1.442695
          %v3224 = vpow.pop %v3223
          %v3225 = vmul.f32 %v3182, 1.442695
          %v3226 = vpow.pop %v3225
          %v3227 = vmul.f32 %v3183, 1.442695
          %v3228 = vpow.pop %v3227
          %v3229 = vmul.f32 %v3184, 1.442695
          %v3230 = vpow.pop %v3229
          %v3231 = vmul.f32 %v3185, 1.442695
          %v3232 = vpow.pop %v3231
          %v3233 = vmul.f32 %v3186, 1.442695
          %v3234 = vpow.pop %v3233
          %v3235 = vsub.f32 %v3204, 1.0
          %v3236 = vsub.f32 %v3206, 1.0
          %v3237 = vsub.f32 %v3208, 1.0
          %v3238 = vsub.f32 %v3210, 1.0
          %v3239 = vsub.f32 %v3212, 1.0
          %v3240 = vsub.f32 %v3214, 1.0
          %v3241 = vsub.f32 %v3216, 1.0
          %v3242 = vsub.f32 %v3218, 1.0
          %v3243 = vsub.f32 %v3220, 1.0
          %v3244 = vsub.f32 %v3222, 1.0
          %v3245 = vsub.f32 %v3224, 1.0
          %v3246 = vsub.f32 %v3226, 1.0
          %v3247 = vsub.f32 %v3228, 1.0
          %v3248 = vsub.f32 %v3230, 1.0
          %v3249 = vsub.f32 %v3232, 1.0
          %v3250 = vsub.f32 %v3234, 1.0
          %v3251 = vsel %vm3187, %v3171, %v3235
          %v3252 = vsel %vm3188, %v3172, %v3236
          %v3253 = vsel %vm3189, %v3173, %v3237
          %v3254 = vsel %vm3190, %v3174, %v3238
          %v3255 = vsel %vm3191, %v3175, %v3239
          %v3256 = vsel %vm3192, %v3176, %v3240
          %v3257 = vsel %vm3193, %v3177, %v3241
          %v3258 = vsel %vm3194, %v3178, %v3242
          %v3259 = vsel %vm3195, %v3179, %v3243
          %v3260 = vsel %vm3196, %v3180, %v3244
          %v3261 = vsel %vm3197, %v3181, %v3245
          %v3262 = vsel %vm3198, %v3182, %v3246
          %v3263 = vsel %vm3199, %v3183, %v3247
          %v3264 = vsel %vm3200, %v3184, %v3248
          %v3265 = vsel %vm3201, %v3185, %v3249
          %v3266 = vsel %vm3202, %v3186, %v3250
          %vm3267 = vcmp.ge.s32.totalorder %v1884, 16
          %vm3268 = vcmp.lt.s32.totalorder %v1884, 24
          %vm3269 = vmand %vm3267, %vm3268
          %v3270 = vsel %vm3269, %v3251, %v2803
          %v3271 = vsel %vm3269, %v3252, %v2804
          %v3272 = vsel %vm3269, %v3253, %v2805
          %v3273 = vsel %vm3269, %v3254, %v2806
          %v3274 = vsel %vm3269, %v3255, %v2807
          %v3275 = vsel %vm3269, %v3256, %v2808
          %v3276 = vsel %vm3269, %v3257, %v2809
          %v3277 = vsel %vm3269, %v3258, %v2810
          %v3278 = vsel %vm3269, %v3259, %v2811
          %v3279 = vsel %vm3269, %v3260, %v2812
          %v3280 = vsel %vm3269, %v3261, %v2813
          %v3281 = vsel %vm3269, %v3262, %v2814
          %v3282 = vsel %vm3269, %v3263, %v2815
          %v3283 = vsel %vm3269, %v3264, %v2816
          %v3284 = vsel %vm3269, %v3265, %v2817
          %v3285 = vsel %vm3269, %v3266, %v2818
          %v3286 = vld [vmem:[%s1773] sm:$0xff]
          %v3287 = vld [vmem:[%s1773 + $0x8] sm:$0xff]
          %v3288 = vld [vmem:[%s1773 + $0x10] sm:$0xff]
          %v3289 = vld [vmem:[%s1773 + $0x18] sm:$0xff]
          %v3290 = vld [vmem:[%s1773 + $0x20] sm:$0xff]
          %v3291 = vld [vmem:[%s1773 + $0x28] sm:$0xff]
          %v3292 = vld [vmem:[%s1773 + $0x30] sm:$0xff]
          %v3293 = vld [vmem:[%s1773 + $0x38] sm:$0xff]
          %v3294 = vld [vmem:[%s1773 + $0x40] sm:$0xff]
          %v3295 = vld [vmem:[%s1773 + $0x48] sm:$0xff]
          %v3296 = vld [vmem:[%s1773 + $0x50] sm:$0xff]
          %v3297 = vld [vmem:[%s1773 + $0x58] sm:$0xff]
          %v3298 = vld [vmem:[%s1773 + $0x60] sm:$0xff]
          %v3299 = vld [vmem:[%s1773 + $0x68] sm:$0xff]
          %v3300 = vld [vmem:[%s1773 + $0x70] sm:$0xff]
          %v3301 = vld [vmem:[%s1773 + $0x78] sm:$0xff]
          %v3302 = vmax.f32 %v3286, 1e-36
          %v3303 = vmax.f32 %v3287, 1e-36
          %v3304 = vmax.f32 %v3288, 1e-36
          %v3305 = vmax.f32 %v3289, 1e-36
          %v3306 = vmax.f32 %v3290, 1e-36
          %v3307 = vmax.f32 %v3291, 1e-36
          %v3308 = vmax.f32 %v3292, 1e-36
          %v3309 = vmax.f32 %v3293, 1e-36
          %v3310 = vmax.f32 %v3294, 1e-36
          %v3311 = vmax.f32 %v3295, 1e-36
          %v3312 = vmax.f32 %v3296, 1e-36
          %v3313 = vmax.f32 %v3297, 1e-36
          %v3314 = vmax.f32 %v3298, 1e-36
          %v3315 = vmax.f32 %v3299, 1e-36
          %v3316 = vmax.f32 %v3300, 1e-36
          %v3317 = vmax.f32 %v3301, 1e-36
          %v3318 = vrcp.pop %v3302
          %v3319 = vmul.f32 %v3302, %v3318
          %v3320 = vsub.f32 1.0, %v3319
          %v3321 = vmul.f32 %v3318, %v3320
          %v3322 = vadd.f32 %v3318, %v3321
          %vm3323 = vweird.f32 %v3302
          %vm3324 = vweird.f32 %v3318
          %vm3325 = vmor %vm3323, %vm3324
          %v3326 = vsel %vm3325, %v3318, %v3322
          %v3327 = vand.u32 2147483647, %v3302
          %vm3328 = vcmp.eq.f32.partialorder %v3327, 8.507059e+37
          %v3329 = vand.u32 %v3302, 2147483648
          %v3330 = vor.u32 1.1754944e-38, %v3329
          %v3331 = vsel %vm3328, %v3330, %v3326
          %v3332 = vmul.f32 1.0, %v3331
          %v3333 = vrcp.pop %v3303
          %v3334 = vmul.f32 %v3303, %v3333
          %v3335 = vsub.f32 1.0, %v3334
          %v3336 = vmul.f32 %v3333, %v3335
          %v3337 = vadd.f32 %v3333, %v3336
          %vm3338 = vweird.f32 %v3303
          %vm3339 = vweird.f32 %v3333
          %vm3340 = vmor %vm3338, %vm3339
          %v3341 = vsel %vm3340, %v3333, %v3337
          %v3342 = vand.u32 2147483647, %v3303
          %vm3343 = vcmp.eq.f32.partialorder %v3342, 8.507059e+37
          %v3344 = vand.u32 %v3303, 2147483648
          %v3345 = vor.u32 1.1754944e-38, %v3344
          %v3346 = vsel %vm3343, %v3345, %v3341
          %v3347 = vmul.f32 1.0, %v3346
          %v3348 = vrcp.pop %v3304
          %v3349 = vmul.f32 %v3304, %v3348
          %v3350 = vsub.f32 1.0, %v3349
          %v3351 = vmul.f32 %v3348, %v3350
          %v3352 = vadd.f32 %v3348, %v3351
          %vm3353 = vweird.f32 %v3304
          %vm3354 = vweird.f32 %v3348
          %vm3355 = vmor %vm3353, %vm3354
          %v3356 = vsel %vm3355, %v3348, %v3352
          %v3357 = vand.u32 2147483647, %v3304
          %vm3358 = vcmp.eq.f32.partialorder %v3357, 8.507059e+37
          %v3359 = vand.u32 %v3304, 2147483648
          %v3360 = vor.u32 1.1754944e-38, %v3359
          %v3361 = vsel %vm3358, %v3360, %v3356
          %v3362 = vmul.f32 1.0, %v3361
          %v3363 = vrcp.pop %v3305
          %v3364 = vmul.f32 %v3305, %v3363
          %v3365 = vsub.f32 1.0, %v3364
          %v3366 = vmul.f32 %v3363, %v3365
          %v3367 = vadd.f32 %v3363, %v3366
          %vm3368 = vweird.f32 %v3305
          %vm3369 = vweird.f32 %v3363
          %vm3370 = vmor %vm3368, %vm3369
          %v3371 = vsel %vm3370, %v3363, %v3367
          %v3372 = vand.u32 2147483647, %v3305
          %vm3373 = vcmp.eq.f32.partialorder %v3372, 8.507059e+37
          %v3374 = vand.u32 %v3305, 2147483648
          %v3375 = vor.u32 1.1754944e-38, %v3374
          %v3376 = vsel %vm3373, %v3375, %v3371
          %v3377 = vmul.f32 1.0, %v3376
          %v3378 = vrcp.pop %v3306
          %v3379 = vmul.f32 %v3306, %v3378
          %v3380 = vsub.f32 1.0, %v3379
          %v3381 = vmul.f32 %v3378, %v3380
          %v3382 = vadd.f32 %v3378, %v3381
          %vm3383 = vweird.f32 %v3306
          %vm3384 = vweird.f32 %v3378
          %vm3385 = vmor %vm3383, %vm3384
          %v3386 = vsel %vm3385, %v3378, %v3382
          %v3387 = vand.u32 2147483647, %v3306
          %vm3388 = vcmp.eq.f32.partialorder %v3387, 8.507059e+37
          %v3389 = vand.u32 %v3306, 2147483648
          %v3390 = vor.u32 1.1754944e-38, %v3389
          %v3391 = vsel %vm3388, %v3390, %v3386
          %v3392 = vmul.f32 1.0, %v3391
          %v3393 = vrcp.pop %v3307
          %v3394 = vmul.f32 %v3307, %v3393
          %v3395 = vsub.f32 1.0, %v3394
          %v3396 = vmul.f32 %v3393, %v3395
          %v3397 = vadd.f32 %v3393, %v3396
          %vm3398 = vweird.f32 %v3307
          %vm3399 = vweird.f32 %v3393
          %vm3400 = vmor %vm3398, %vm3399
          %v3401 = vsel %vm3400, %v3393, %v3397
          %v3402 = vand.u32 2147483647, %v3307
          %vm3403 = vcmp.eq.f32.partialorder %v3402, 8.507059e+37
          %v3404 = vand.u32 %v3307, 2147483648
          %v3405 = vor.u32 1.1754944e-38, %v3404
          %v3406 = vsel %vm3403, %v3405, %v3401
          %v3407 = vmul.f32 1.0, %v3406
          %v3408 = vrcp.pop %v3308
          %v3409 = vmul.f32 %v3308, %v3408
          %v3410 = vsub.f32 1.0, %v3409
          %v3411 = vmul.f32 %v3408, %v3410
          %v3412 = vadd.f32 %v3408, %v3411
          %vm3413 = vweird.f32 %v3308
          %vm3414 = vweird.f32 %v3408
          %vm3415 = vmor %vm3413, %vm3414
          %v3416 = vsel %vm3415, %v3408, %v3412
          %v3417 = vand.u32 2147483647, %v3308
          %vm3418 = vcmp.eq.f32.partialorder %v3417, 8.507059e+37
          %v3419 = vand.u32 %v3308, 2147483648
          %v3420 = vor.u32 1.1754944e-38, %v3419
          %v3421 = vsel %vm3418, %v3420, %v3416
          %v3422 = vmul.f32 1.0, %v3421
          %v3423 = vrcp.pop %v3309
          %v3424 = vmul.f32 %v3309, %v3423
          %v3425 = vsub.f32 1.0, %v3424
          %v3426 = vmul.f32 %v3423, %v3425
          %v3427 = vadd.f32 %v3423, %v3426
          %vm3428 = vweird.f32 %v3309
          %vm3429 = vweird.f32 %v3423
          %vm3430 = vmor %vm3428, %vm3429
          %v3431 = vsel %vm3430, %v3423, %v3427
          %v3432 = vand.u32 2147483647, %v3309
          %vm3433 = vcmp.eq.f32.partialorder %v3432, 8.507059e+37
          %v3434 = vand.u32 %v3309, 2147483648
          %v3435 = vor.u32 1.1754944e-38, %v3434
          %v3436 = vsel %vm3433, %v3435, %v3431
          %v3437 = vmul.f32 1.0, %v3436
          %v3438 = vrcp.pop %v3310
          %v3439 = vmul.f32 %v3310, %v3438
          %v3440 = vsub.f32 1.0, %v3439
          %v3441 = vmul.f32 %v3438, %v3440
          %v3442 = vadd.f32 %v3438, %v3441
          %vm3443 = vweird.f32 %v3310
          %vm3444 = vweird.f32 %v3438
          %vm3445 = vmor %vm3443, %vm3444
          %v3446 = vsel %vm3445, %v3438, %v3442
          %v3447 = vand.u32 2147483647, %v3310
          %vm3448 = vcmp.eq.f32.partialorder %v3447, 8.507059e+37
          %v3449 = vand.u32 %v3310, 2147483648
          %v3450 = vor.u32 1.1754944e-38, %v3449
          %v3451 = vsel %vm3448, %v3450, %v3446
          %v3452 = vmul.f32 1.0, %v3451
          %v3453 = vrcp.pop %v3311
          %v3454 = vmul.f32 %v3311, %v3453
          %v3455 = vsub.f32 1.0, %v3454
          %v3456 = vmul.f32 %v3453, %v3455
          %v3457 = vadd.f32 %v3453, %v3456
          %vm3458 = vweird.f32 %v3311
          %vm3459 = vweird.f32 %v3453
          %vm3460 = vmor %vm3458, %vm3459
          %v3461 = vsel %vm3460, %v3453, %v3457
          %v3462 = vand.u32 2147483647, %v3311
          %vm3463 = vcmp.eq.f32.partialorder %v3462, 8.507059e+37
          %v3464 = vand.u32 %v3311, 2147483648
          %v3465 = vor.u32 1.1754944e-38, %v3464
          %v3466 = vsel %vm3463, %v3465, %v3461
          %v3467 = vmul.f32 1.0, %v3466
          %v3468 = vrcp.pop %v3312
          %v3469 = vmul.f32 %v3312, %v3468
          %v3470 = vsub.f32 1.0, %v3469
          %v3471 = vmul.f32 %v3468, %v3470
          %v3472 = vadd.f32 %v3468, %v3471
          %vm3473 = vweird.f32 %v3312
          %vm3474 = vweird.f32 %v3468
          %vm3475 = vmor %vm3473, %vm3474
          %v3476 = vsel %vm3475, %v3468, %v3472
          %v3477 = vand.u32 2147483647, %v3312
          %vm3478 = vcmp.eq.f32.partialorder %v3477, 8.507059e+37
          %v3479 = vand.u32 %v3312, 2147483648
          %v3480 = vor.u32 1.1754944e-38, %v3479
          %v3481 = vsel %vm3478, %v3480, %v3476
          %v3482 = vmul.f32 1.0, %v3481
          %v3483 = vrcp.pop %v3313
          %v3484 = vmul.f32 %v3313, %v3483
          %v3485 = vsub.f32 1.0, %v3484
          %v3486 = vmul.f32 %v3483, %v3485
          %v3487 = vadd.f32 %v3483, %v3486
          %vm3488 = vweird.f32 %v3313
          %vm3489 = vweird.f32 %v3483
          %vm3490 = vmor %vm3488, %vm3489
          %v3491 = vsel %vm3490, %v3483, %v3487
          %v3492 = vand.u32 2147483647, %v3313
          %vm3493 = vcmp.eq.f32.partialorder %v3492, 8.507059e+37
          %v3494 = vand.u32 %v3313, 2147483648
          %v3495 = vor.u32 1.1754944e-38, %v3494
          %v3496 = vsel %vm3493, %v3495, %v3491
          %v3497 = vmul.f32 1.0, %v3496
          %v3498 = vrcp.pop %v3314
          %v3499 = vmul.f32 %v3314, %v3498
          %v3500 = vsub.f32 1.0, %v3499
          %v3501 = vmul.f32 %v3498, %v3500
          %v3502 = vadd.f32 %v3498, %v3501
          %vm3503 = vweird.f32 %v3314
          %vm3504 = vweird.f32 %v3498
          %vm3505 = vmor %vm3503, %vm3504
          %v3506 = vsel %vm3505, %v3498, %v3502
          %v3507 = vand.u32 2147483647, %v3314
          %vm3508 = vcmp.eq.f32.partialorder %v3507, 8.507059e+37
          %v3509 = vand.u32 %v3314, 2147483648
          %v3510 = vor.u32 1.1754944e-38, %v3509
          %v3511 = vsel %vm3508, %v3510, %v3506
          %v3512 = vmul.f32 1.0, %v3511
          %v3513 = vrcp.pop %v3315
          %v3514 = vmul.f32 %v3315, %v3513
          %v3515 = vsub.f32 1.0, %v3514
          %v3516 = vmul.f32 %v3513, %v3515
          %v3517 = vadd.f32 %v3513, %v3516
          %vm3518 = vweird.f32 %v3315
          %vm3519 = vweird.f32 %v3513
          %vm3520 = vmor %vm3518, %vm3519
          %v3521 = vsel %vm3520, %v3513, %v3517
          %v3522 = vand.u32 2147483647, %v3315
          %vm3523 = vcmp.eq.f32.partialorder %v3522, 8.507059e+37
          %v3524 = vand.u32 %v3315, 2147483648
          %v3525 = vor.u32 1.1754944e-38, %v3524
          %v3526 = vsel %vm3523, %v3525, %v3521
          %v3527 = vmul.f32 1.0, %v3526
          %v3528 = vrcp.pop %v3316
          %v3529 = vmul.f32 %v3316, %v3528
          %v3530 = vsub.f32 1.0, %v3529
          %v3531 = vmul.f32 %v3528, %v3530
          %v3532 = vadd.f32 %v3528, %v3531
          %vm3533 = vweird.f32 %v3316
          %vm3534 = vweird.f32 %v3528
          %vm3535 = vmor %vm3533, %vm3534
          %v3536 = vsel %vm3535, %v3528, %v3532
          %v3537 = vand.u32 2147483647, %v3316
          %vm3538 = vcmp.eq.f32.partialorder %v3537, 8.507059e+37
          %v3539 = vand.u32 %v3316, 2147483648
          %v3540 = vor.u32 1.1754944e-38, %v3539
          %v3541 = vsel %vm3538, %v3540, %v3536
          %v3542 = vmul.f32 1.0, %v3541
          %v3543 = vrcp.pop %v3317
          %v3544 = vmul.f32 %v3317, %v3543
          %v3545 = vsub.f32 1.0, %v3544
          %v3546 = vmul.f32 %v3543, %v3545
          %v3547 = vadd.f32 %v3543, %v3546
          %vm3548 = vweird.f32 %v3317
          %vm3549 = vweird.f32 %v3543
          %vm3550 = vmor %vm3548, %vm3549
          %v3551 = vsel %vm3550, %v3543, %v3547
          %v3552 = vand.u32 2147483647, %v3317
          %vm3553 = vcmp.eq.f32.partialorder %v3552, 8.507059e+37
          %v3554 = vand.u32 %v3317, 2147483648
          %v3555 = vor.u32 1.1754944e-38, %v3554
          %v3556 = vsel %vm3553, %v3555, %v3551
          %v3557 = vmul.f32 1.0, %v3556
          %3559 = vset.pattern.permute.xlu0 32
          %3560 = vperm.xlu0 %3559, %v3332
          %v3561 = vpop.permute.xlu0 %3560
          %3564 = vset.pattern.permute.xlu0 32
          %3565 = vperm.xlu0 %3564, %v3347
          %v3566 = vpop.permute.xlu0 %3565
          %3569 = vset.pattern.permute.xlu0 32
          %3570 = vperm.xlu0 %3569, %v3362
          %v3571 = vpop.permute.xlu0 %3570
          %3574 = vset.pattern.permute.xlu0 32
          %3575 = vperm.xlu0 %3574, %v3377
          %v3576 = vpop.permute.xlu0 %3575
          %3579 = vset.pattern.permute.xlu0 32
          %3580 = vperm.xlu0 %3579, %v3392
          %v3581 = vpop.permute.xlu0 %3580
          %3584 = vset.pattern.permute.xlu0 32
          %3585 = vperm.xlu0 %3584, %v3407
          %v3586 = vpop.permute.xlu0 %3585
          %3589 = vset.pattern.permute.xlu0 32
          %3590 = vperm.xlu0 %3589, %v3422
          %v3591 = vpop.permute.xlu0 %3590
          %3594 = vset.pattern.permute.xlu0 32
          %3595 = vperm.xlu0 %3594, %v3437
          %v3596 = vpop.permute.xlu0 %3595
          %3599 = vset.pattern.permute.xlu0 32
          %3600 = vperm.xlu0 %3599, %v3452
          %v3601 = vpop.permute.xlu0 %3600
          %3604 = vset.pattern.permute.xlu0 32
          %3605 = vperm.xlu0 %3604, %v3467
          %v3606 = vpop.permute.xlu0 %3605
          %3609 = vset.pattern.permute.xlu0 32
          %3610 = vperm.xlu0 %3609, %v3482
          %v3611 = vpop.permute.xlu0 %3610
          %3614 = vset.pattern.permute.xlu0 32
          %3615 = vperm.xlu0 %3614, %v3497
          %v3616 = vpop.permute.xlu0 %3615
          %3619 = vset.pattern.permute.xlu0 32
          %3620 = vperm.xlu0 %3619, %v3512
          %v3621 = vpop.permute.xlu0 %3620
          %3624 = vset.pattern.permute.xlu0 32
          %3625 = vperm.xlu0 %3624, %v3527
          %v3626 = vpop.permute.xlu0 %3625
          %3629 = vset.pattern.permute.xlu0 32
          %3630 = vperm.xlu0 %3629, %v3542
          %v3631 = vpop.permute.xlu0 %3630
          %3634 = vset.pattern.permute.xlu0 32
          %3635 = vperm.xlu0 %3634, %v3557
          %v3636 = vpop.permute.xlu0 %3635
          %v3638 = vmul.f32 %v3286, %v3561
          %v3639 = vmul.f32 %v3287, %v3566
          %v3640 = vmul.f32 %v3288, %v3571
          %v3641 = vmul.f32 %v3289, %v3576
          %v3642 = vmul.f32 %v3290, %v3581
          %v3643 = vmul.f32 %v3291, %v3586
          %v3644 = vmul.f32 %v3292, %v3591
          %v3645 = vmul.f32 %v3293, %v3596
          %v3646 = vmul.f32 %v3294, %v3601
          %v3647 = vmul.f32 %v3295, %v3606
          %v3648 = vmul.f32 %v3296, %v3611
          %v3649 = vmul.f32 %v3297, %v3616
          %v3650 = vmul.f32 %v3298, %v3621
          %v3651 = vmul.f32 %v3299, %v3626
          %v3652 = vmul.f32 %v3300, %v3631
          %v3653 = vmul.f32 %v3301, %v3636
          %vm3654 = vcmp.gt.f32.partialorder %v3638, 0.0
          %vm3655 = vcmp.gt.f32.partialorder %v3639, 0.0
          %vm3656 = vcmp.gt.f32.partialorder %v3640, 0.0
          %vm3657 = vcmp.gt.f32.partialorder %v3641, 0.0
          %vm3658 = vcmp.gt.f32.partialorder %v3642, 0.0
          %vm3659 = vcmp.gt.f32.partialorder %v3643, 0.0
          %vm3660 = vcmp.gt.f32.partialorder %v3644, 0.0
          %vm3661 = vcmp.gt.f32.partialorder %v3645, 0.0
          %vm3662 = vcmp.gt.f32.partialorder %v3646, 0.0
          %vm3663 = vcmp.gt.f32.partialorder %v3647, 0.0
          %vm3664 = vcmp.gt.f32.partialorder %v3648, 0.0
          %vm3665 = vcmp.gt.f32.partialorder %v3649, 0.0
          %vm3666 = vcmp.gt.f32.partialorder %v3650, 0.0
          %vm3667 = vcmp.gt.f32.partialorder %v3651, 0.0
          %vm3668 = vcmp.gt.f32.partialorder %v3652, 0.0
          %vm3669 = vcmp.gt.f32.partialorder %v3653, 0.0
          %v3670 = vmul.f32 %v3638, 1.442695
          %v3671 = vpow.pop %v3670
          %v3672 = vmul.f32 %v3639, 1.442695
          %v3673 = vpow.pop %v3672
          %v3674 = vmul.f32 %v3640, 1.442695
          %v3675 = vpow.pop %v3674
          %v3676 = vmul.f32 %v3641, 1.442695
          %v3677 = vpow.pop %v3676
          %v3678 = vmul.f32 %v3642, 1.442695
          %v3679 = vpow.pop %v3678
          %v3680 = vmul.f32 %v3643, 1.442695
          %v3681 = vpow.pop %v3680
          %v3682 = vmul.f32 %v3644, 1.442695
          %v3683 = vpow.pop %v3682
          %v3684 = vmul.f32 %v3645, 1.442695
          %v3685 = vpow.pop %v3684
          %v3686 = vmul.f32 %v3646, 1.442695
          %v3687 = vpow.pop %v3686
          %v3688 = vmul.f32 %v3647, 1.442695
          %v3689 = vpow.pop %v3688
          %v3690 = vmul.f32 %v3648, 1.442695
          %v3691 = vpow.pop %v3690
          %v3692 = vmul.f32 %v3649, 1.442695
          %v3693 = vpow.pop %v3692
          %v3694 = vmul.f32 %v3650, 1.442695
          %v3695 = vpow.pop %v3694
          %v3696 = vmul.f32 %v3651, 1.442695
          %v3697 = vpow.pop %v3696
          %v3698 = vmul.f32 %v3652, 1.442695
          %v3699 = vpow.pop %v3698
          %v3700 = vmul.f32 %v3653, 1.442695
          %v3701 = vpow.pop %v3700
          %v3702 = vsub.f32 %v3671, 1.0
          %v3703 = vsub.f32 %v3673, 1.0
          %v3704 = vsub.f32 %v3675, 1.0
          %v3705 = vsub.f32 %v3677, 1.0
          %v3706 = vsub.f32 %v3679, 1.0
          %v3707 = vsub.f32 %v3681, 1.0
          %v3708 = vsub.f32 %v3683, 1.0
          %v3709 = vsub.f32 %v3685, 1.0
          %v3710 = vsub.f32 %v3687, 1.0
          %v3711 = vsub.f32 %v3689, 1.0
          %v3712 = vsub.f32 %v3691, 1.0
          %v3713 = vsub.f32 %v3693, 1.0
          %v3714 = vsub.f32 %v3695, 1.0
          %v3715 = vsub.f32 %v3697, 1.0
          %v3716 = vsub.f32 %v3699, 1.0
          %v3717 = vsub.f32 %v3701, 1.0
          %v3718 = vsel %vm3654, %v3638, %v3702
          %v3719 = vsel %vm3655, %v3639, %v3703
          %v3720 = vsel %vm3656, %v3640, %v3704
          %v3721 = vsel %vm3657, %v3641, %v3705
          %v3722 = vsel %vm3658, %v3642, %v3706
          %v3723 = vsel %vm3659, %v3643, %v3707
          %v3724 = vsel %vm3660, %v3644, %v3708
          %v3725 = vsel %vm3661, %v3645, %v3709
          %v3726 = vsel %vm3662, %v3646, %v3710
          %v3727 = vsel %vm3663, %v3647, %v3711
          %v3728 = vsel %vm3664, %v3648, %v3712
          %v3729 = vsel %vm3665, %v3649, %v3713
          %v3730 = vsel %vm3666, %v3650, %v3714
          %v3731 = vsel %vm3667, %v3651, %v3715
          %v3732 = vsel %vm3668, %v3652, %v3716
          %v3733 = vsel %vm3669, %v3653, %v3717
          %vm3734 = vcmp.ge.s32.totalorder %v1884, 24
          %vm3735 = vcmp.lt.s32.totalorder %v1884, 32
          %vm3736 = vmand %vm3734, %vm3735
          %v3737 = vsel %vm3736, %v3718, %v3270
          %v3738 = vsel %vm3736, %v3719, %v3271
          %v3739 = vsel %vm3736, %v3720, %v3272
          %v3740 = vsel %vm3736, %v3721, %v3273
          %v3741 = vsel %vm3736, %v3722, %v3274
          %v3742 = vsel %vm3736, %v3723, %v3275
          %v3743 = vsel %vm3736, %v3724, %v3276
          %v3744 = vsel %vm3736, %v3725, %v3277
          %v3745 = vsel %vm3736, %v3726, %v3278
          %v3746 = vsel %vm3736, %v3727, %v3279
          %v3747 = vsel %vm3736, %v3728, %v3280
          %v3748 = vsel %vm3736, %v3729, %v3281
          %v3749 = vsel %vm3736, %v3730, %v3282
          %v3750 = vsel %vm3736, %v3731, %v3283
          %v3751 = vsel %vm3736, %v3732, %v3284
          %v3752 = vsel %vm3736, %v3733, %v3285
          %3753 = vst [vmem:[%s323] sm:$0xff] %v3737
          %3754 = vst [vmem:[%s323 + $0x8] sm:$0xff] %v3738
          %3755 = vst [vmem:[%s323 + $0x10] sm:$0xff] %v3739
          %3756 = vst [vmem:[%s323 + $0x18] sm:$0xff] %v3740
          %3757 = vst [vmem:[%s323 + $0x20] sm:$0xff] %v3741
          %3758 = vst [vmem:[%s323 + $0x28] sm:$0xff] %v3742
          %3759 = vst [vmem:[%s323 + $0x30] sm:$0xff] %v3743
          %3760 = vst [vmem:[%s323 + $0x38] sm:$0xff] %v3744
          %3761 = vst [vmem:[%s323 + $0x40] sm:$0xff] %v3745
          %3762 = vst [vmem:[%s323 + $0x48] sm:$0xff] %v3746
          %3763 = vst [vmem:[%s323 + $0x50] sm:$0xff] %v3747
          %3764 = vst [vmem:[%s323 + $0x58] sm:$0xff] %v3748
          %3765 = vst [vmem:[%s323 + $0x60] sm:$0xff] %v3749
          %3766 = vst [vmem:[%s323 + $0x68] sm:$0xff] %v3750
          %3767 = vst [vmem:[%s323 + $0x70] sm:$0xff] %v3751
          %3768 = vst [vmem:[%s323 + $0x78] sm:$0xff] %v3752
        $region82: #{spgat_forward.5} parent=69 // pred_fallthru
          _
        %s3769 = smul.u32 16, %s19
        %p3770 = scmp.lt.s32.totalorder %s3769, 31
        %s3771 = scalar_select %p3770, %s3769, 31
        %s3772 = smul.addr %s3771, 8
        %s3773 = scalar_lea.vmem %s4, %s3772
        // Predicated region
        $region83: #{spgat_forward.5} parent=69 // pred_check
          %p3774 = pneg %p151
        $region84: #{spgat_forward.5} parent=69 // pred_check_branch
          %3776 = sbr.rel (%p3774) target = $region86
        $region85: #{spgat_forward.5} parent=69 // pred_region
          %s3777 = smul.u32 16, %s19
        $region86: #{spgat_forward.5} parent=69 // pred_fallthru
          _
      $region70: #{spgat_forward.5} parent=5 // pred_fallthru
        _
      %p3778 = scmp.le.s32.totalorder 2, %s10
      // Predicated region
      $region87: #{spgat_forward.5} parent=5 // pred_check
        %p3779 = pneg %p3778
      $region88: #{spgat_forward.5} parent=5 // pred_check_branch
        %3781 = sbr.rel (%p3779) target = $region90
      $region89: #{spgat_forward.5} parent=5 // pred_region
        %s3782 = ssub.s32 %s10, 2
        // Predicated region
        $region91: #{spgat_forward.5} parent=89 // pred_check
          %p3783 = pneg %p157
        $region92: #{spgat_forward.5} parent=89 // pred_check_branch
          %3785 = sbr.rel (%p3783) target = $region94
        $region93: #{spgat_forward.5} parent=89 // pred_region
          %s3786 = smul.u32 16, %s21
          %p3787 = scmp.lt.s32.totalorder %s3786, 31
          %s3788 = scalar_select %p3787, %s3786, 31
          %s3789 = smul.addr %s3788, 8
          %s3790 = scalar_lea.vmem %s4, %s3789
        $region94: #{spgat_forward.5} parent=89 // pred_fallthru
          _
      $region90: #{spgat_forward.5} parent=5 // pred_fallthru
        _
    $region6: #{spgat_forward.5} parent=1 // loop_footer
      %s14 = sadd.s32 1, %s10
    $region7: #{spgat_forward.5} parent=1 // loop_footer_branch
      %9 = sbr.rel target = $region3
    $region8: #{spgat_forward.5} parent=1 // loop_exit
      _

</llo_original>
